<compile_context>
chip_gen: v6e
topology: v6e:2x2x1
jax: 0.10.0
libtpu: 0.0.40
codegen_flags: <defaults>
</compile_context>

<pallas_src>
import numpy as np
import jax
import jax.numpy as jnp
from jax.experimental import pallas as pl
from jax.experimental.pallas import tpu as pltpu

CPAD = 128                      # lane-dense padded class dimension
_VMEM_LIMIT = 64 * 1024 * 1024  # explicit scoped-VMEM budget for every call


# --------------------------------------------------------------------------
# Bilinear interpolation matrices (PyTorch align_corners=False semantics)
# --------------------------------------------------------------------------
def _interp_matrix(size_in, size_out):
    A = np.zeros((size_out, size_in), np.float32)
    scale = size_in / size_out
    for o in range(size_out):
        src = max(scale * (o + 0.5) - 0.5, 0.0)
        i0 = min(int(np.floor(src)), size_in - 1)
        frac = src - i0
        i1 = min(i0 + 1, size_in - 1)
        A[o, i0] += 1.0 - frac
        A[o, i1] += frac
    return A


def _bilinear_matrix(hin, win, hout, wout):
    # out.reshape(HWout, C) = M @ x.reshape(HWin, C), row-major (h, w) flattening.
    return np.kron(_interp_matrix(hin, hout), _interp_matrix(win, wout)).astype(np.float32)


# --------------------------------------------------------------------------
# Fused per-level kernel: 3x (conv3x3 + GroupNorm + ReLU) + per-level 1x1 pred
# --------------------------------------------------------------------------
def _make_level_kernel(H, W, Cin, Cout):

    def conv_gn_relu(pad_ref, w_ref, gamma_ref, beta_ref, gmat_ref):
        # im2col: 9 shifted views concatenated along channels -> one big-K matmul
        taps = [pad_ref[dy:dy + H, dx:dx + W, :] for dy in range(3) for dx in range(3)]
        xcat = jnp.concatenate(taps, axis=-1).astype(jnp.bfloat16)        # (H, W, 9*cin)
        y = jnp.dot(xcat, w_ref[...], preferred_element_type=jnp.float32)  # (H, W, cout) f32
        # GroupNorm (two-pass variance) + ReLU, all in f32
        mu = jnp.mean(jnp.mean(y, axis=0), axis=0, keepdims=True)          # (1, cout)
        gmu = jnp.dot(mu, gmat_ref[...], preferred_element_type=jnp.float32)
        d = y - gmu
        var = jnp.mean(jnp.mean(d * d, axis=0), axis=0, keepdims=True)
        gvar = jnp.dot(var, gmat_ref[...], preferred_element_type=jnp.float32)
        y = d * jax.lax.rsqrt(gvar + 1e-5) * gamma_ref[...] + beta_ref[...]
        return jnp.maximum(y, 0.0)                                          # (H, W, cout) f32

    def kernel(x_ref, w1, g1, b1, w2, g2, b2, w3, g3, b3, gmA, gmB, wp,
               o_ref, padA, padB):
        # Zero the halo buffers every step (safe under "parallel" semantics).
        padA[...] = jnp.zeros_like(padA)
        padB[...] = jnp.zeros_like(padB)

        padA[1:H + 1, 1:W + 1, :] = x_ref[0]
        h1 = conv_gn_relu(padA, w1, g1, b1, gmA)          # (H, W, Cin)
        padA[1:H + 1, 1:W + 1, :] = h1
        h2 = conv_gn_relu(padA, w2, g2, b2, gmB)          # (H, W, Cout)
        padB[1:H + 1, 1:W + 1, :] = h2
        h3 = conv_gn_relu(padB, w3, g3, b3, gmB)          # (H, W, Cout)

        # Per-level slice of the 1x1 conv_pred, lane-dense (padded to CPAD).
        o_ref[0] = jnp.dot(h3.astype(jnp.bfloat16), wp[...],
                           preferred_element_type=jnp.float32)

    return kernel


def _level_scores(x_nhwc, p, wp_level):
    """x: (N, H, W, Cin) f32 -> per-level padded score map (N, H, W, CPAD) f32."""
    N, H, W, Cin = x_nhwc.shape
    Cout = p["w3"].shape[-1]

    def fixed(shape):  # full-array 2D constant operands
        return pl.BlockSpec(shape, lambda n: (0, 0))

    return pl.pallas_call(
        _make_level_kernel(H, W, Cin, Cout),
        out_shape=jax.ShapeDtypeStruct((N, H, W, CPAD), jnp.float32),
        grid=(N,),
        in_specs=[
            pl.BlockSpec((1, H, W, Cin), lambda n: (n, 0, 0, 0)),
            fixed((9 * Cin, Cin)), fixed((1, Cin)), fixed((1, Cin)),
            fixed((9 * Cin, Cout)), fixed((1, Cout)), fixed((1, Cout)),
            fixed((9 * Cout, Cout)), fixed((1, Cout)), fixed((1, Cout)),
            fixed((Cin, Cin)), fixed((Cout, Cout)),
            fixed((Cout, CPAD)),
        ],
        out_specs=pl.BlockSpec((1, H, W, CPAD), lambda n: (n, 0, 0, 0)),
        scratch_shapes=[pltpu.VMEM((H + 2, W + 2, Cin), jnp.float32),
                        pltpu.VMEM((H + 2, W + 2, Cout), jnp.float32)],
        compiler_params=pltpu.CompilerParams(
            dimension_semantics=("parallel",),
            vmem_limit_bytes=_VMEM_LIMIT),
    )(x_nhwc, p["w1"], p["g1"], p["b1"], p["w2"], p["g2"], p["b2"],
      p["w3"], p["g3"], p["b3"], p["gmA"], p["gmB"], wp_level)


# --------------------------------------------------------------------------
# Combine kernel: upsample levels 1..3 to the level-0 grid, sum, add bias.
# (Mathematically == conv_pred applied to the concat of upsampled features.)
# --------------------------------------------------------------------------
def _combine_kernel(s0, s1, s2, s3, m1, m2, m3, b, o_ref):
    acc = s0[0] + b[...]
    acc = acc + jnp.dot(m1[...], s1[0].astype(jnp.bfloat16),
                        preferred_element_type=jnp.float32)
    acc = acc + jnp.dot(m2[...], s2[0].astype(jnp.bfloat16),
                        preferred_element_type=jnp.float32)
    acc = acc + jnp.dot(m3[...], s3[0].astype(jnp.bfloat16),
                        preferred_element_type=jnp.float32)
    o_ref[0] = acc


def _combine_scores(scores_flat, up_mats, bias_pad):
    N, HW0, _ = scores_flat[0].shape

    def spec_s(hw):
        return pl.BlockSpec((1, hw, CPAD), lambda n: (n, 0, 0))

    def spec_m(shape):
        return pl.BlockSpec(shape, lambda n: (0, 0))

    return pl.pallas_call(
        _combine_kernel,
        out_shape=jax.ShapeDtypeStruct((N, HW0, CPAD), jnp.float32),
        grid=(N,),
        in_specs=[spec_s(scores_flat[0].shape[1]), spec_s(scores_flat[1].shape[1]),
                  spec_s(scores_flat[2].shape[1]), spec_s(scores_flat[3].shape[1]),
                  spec_m(up_mats[0].shape), spec_m(up_mats[1].shape),
                  spec_m(up_mats[2].shape), spec_m((1, CPAD))],
        out_specs=pl.BlockSpec((1, HW0, CPAD), lambda n: (n, 0, 0)),
        compiler_params=pltpu.CompilerParams(
            dimension_semantics=("parallel",),
            vmem_limit_bytes=_VMEM_LIMIT),
    )(scores_flat[0], scores_flat[1], scores_flat[2], scores_flat[3],
      up_mats[0], up_mats[1], up_mats[2], bias_pad)


# --------------------------------------------------------------------------
# Final bilinear upsample (x4): single matmul, row-tiled over a parallel axis.
# --------------------------------------------------------------------------
def _upsample_kernel(m_ref, x_ref, o_ref):
    o_ref[0] = jnp.dot(m_ref[...], x_ref[0].astype(jnp.bfloat16),
                       preferred_element_type=jnp.float32)


def _upsample_rows(x_flat, up_mat_bf16):
    N, HWin, _ = x_flat.shape
    HWout = up_mat_bf16.shape[0]
    tile = 512 if HWout % 512 == 0 else HWout
    return pl.pallas_call(
        _upsample_kernel,
        out_shape=jax.ShapeDtypeStruct((N, HWout, CPAD), jnp.float32),
        grid=(N, HWout // tile),
        in_specs=[pl.BlockSpec((tile, HWin), lambda n, j: (j, 0)),
                  pl.BlockSpec((1, HWin, CPAD), lambda n, j: (n, 0, 0))],
        out_specs=pl.BlockSpec((1, tile, CPAD), lambda n, j: (n, j, 0)),
        compiler_params=pltpu.CompilerParams(
            dimension_semantics=("parallel", "parallel"),
            vmem_limit_bytes=_VMEM_LIMIT),
    )(up_mat_bf16, x_flat)


# --------------------------------------------------------------------------
# Parameters + forward
# --------------------------------------------------------------------------
def init_params(key, cin, cout, num_classes, num_groups=32):
    assert cin % num_groups == 0 and cout % num_groups == 0
    assert num_classes <= CPAD
    ks = jax.random.split(key, 4)

    def xavier(k, shape, fan_in, fan_out):
        lim = float(np.sqrt(6.0 / (fan_in + fan_out)))
        return jax.random.uniform(k, shape, jnp.float32, -lim, lim)

    def im2col_w(k, ci, co):
        w = xavier(k, (3, 3, ci, co), 9 * ci, 9 * co)
        return w.reshape(9 * ci, co).astype(jnp.bfloat16)   # tap-major rows

    def gmat(c):
        cpg = c // num_groups
        gidx = np.arange(c) // cpg
        return jnp.asarray((gidx[:, None] == gidx[None, :]).astype(np.float32) / cpg)

    wp = xavier(ks[3], (4 * cout, num_classes), 4 * cout, num_classes)
    wp_pad = jnp.zeros((4 * cout, CPAD), jnp.float32).at[:, :num_classes].set(wp)

    return {
        "w1": im2col_w(ks[0], cin, cin),
        "g1": jnp.ones((1, cin), jnp.float32), "b1": jnp.zeros((1, cin), jnp.float32),
        "w2": im2col_w(ks[1], cin, cout),
        "g2": jnp.ones((1, cout), jnp.float32), "b2": jnp.zeros((1, cout), jnp.float32),
        "w3": im2col_w(ks[2], cout, cout),
        "g3": jnp.ones((1, cout), jnp.float32), "b3": jnp.zeros((1, cout), jnp.float32),
        "gmA": gmat(cin), "gmB": gmat(cout),
        "wp_pad": wp_pad.astype(jnp.bfloat16),
        "bp_pad": jnp.zeros((1, CPAD), jnp.float32),
        "num_classes": num_classes,
    }


def upsnet_fpn_forward(inputs_nchw, params):
    """inputs_nchw: list of 4 NCHW tensors (strides 1,2,4,8 vs. level 0).
    Returns (fcn_output, fcn_score) in NCHW, matching the PyTorch module."""
    assert len(inputs_nchw) == 4
    Cout = params["w3"].shape[-1]
    num_classes = params["num_classes"]

    feats_in = [jnp.transpose(x, (0, 2, 3, 1)) for x in inputs_nchw]   # NCHW -> NHWC
    N, H0, W0, _ = feats_in[0].shape

    # One fused kernel per level -> narrow, lane-dense score maps.
    scores = []
    for l, x in enumerate(feats_in):
        wp_l = params["wp_pad"][l * Cout:(l + 1) * Cout, :]
        s = _level_scores(x, params, wp_l)                 # (N, H_l, W_l, CPAD)
        _, Hl, Wl, _ = s.shape
        scores.append(s.reshape(N, Hl * Wl, CPAD))         # free row-major reshape

    # Bilinear matrices (exact in bf16 for power-of-two scales).
    up_mats = []
    for l in range(1, 4):
        Hl, Wl = feats_in[l].shape[1], feats_in[l].shape[2]
        assert Hl * (2 ** l) == H0 and Wl * (2 ** l) == W0
        up_mats.append(jnp.asarray(_bilinear_matrix(Hl, Wl, H0, W0), jnp.bfloat16))

    # Upsample-to-level0 + sum over levels + bias == conv_pred(concat(...)).
    fcn_score_pad = _combine_scores(scores, up_mats, params["bp_pad"])  # (N, H0*W0, CPAD)

    # Final x4 bilinear upsample.
    m4 = jnp.asarray(_bilinear_matrix(H0, W0, 4 * H0, 4 * W0), jnp.bfloat16)
    fcn_out_pad = _upsample_rows(fcn_score_pad, m4)                     # (N, 16*H0*W0, CPAD)

    fcn_score = fcn_score_pad.reshape(N, H0, W0, CPAD)[..., :num_classes]
    fcn_output = fcn_out_pad.reshape(N, 4 * H0, 4 * W0, CPAD)[..., :num_classes]
    return (jnp.transpose(fcn_output, (0, 3, 1, 2)),
            jnp.transpose(fcn_score, (0, 3, 1, 2)))


# --------------------------------------------------------------------------
if __name__ == "__main__":
    N = 2
    in_channels = 32       # divisible by 32 for GroupNorm(32, C)
    out_channels = 32
    num_levels = 4
    num_classes = 8
    H = W = 16             # level-0 spatial size; levels are /1, /2, /4, /8

    key = jax.random.PRNGKey(0)
    key, pkey = jax.random.split(key)
    params = init_params(pkey, in_channels, out_channels, num_classes)

    inputs = []
    for i in range(num_levels):
        key, k = jax.random.split(key)
        inputs.append(jax.random.normal(
            k, (N, in_channels, H // (2 ** i), W // (2 ** i)), jnp.float32))

    fcn_output, fcn_score = upsnet_fpn_forward(inputs, params)
    fcn_output, fcn_score = jax.block_until_ready((fcn_output, fcn_score))

    assert fcn_score.shape == (N, num_classes, H, W), fcn_score.shape
    assert fcn_output.shape == (N, num_classes, 4 * H, 4 * W), fcn_output.shape
    assert bool(jnp.all(jnp.isfinite(fcn_output))) and bool(jnp.all(jnp.isfinite(fcn_score)))
    print("KERNEL_OK")
</pallas_src>

<mosaic_0001>
module attributes {stable_mosaic.version = 11 : i64} {
  func.func @kernel(%arg0: i32, %arg1: memref<1x16x16x32xf32, #tpu.memory_space<vmem>>, %arg2: memref<288x32xbf16, #tpu.memory_space<vmem>>, %arg3: memref<1x32xf32, #tpu.memory_space<vmem>>, %arg4: memref<1x32xf32, #tpu.memory_space<vmem>>, %arg5: memref<288x32xbf16, #tpu.memory_space<vmem>>, %arg6: memref<1x32xf32, #tpu.memory_space<vmem>>, %arg7: memref<1x32xf32, #tpu.memory_space<vmem>>, %arg8: memref<288x32xbf16, #tpu.memory_space<vmem>>, %arg9: memref<1x32xf32, #tpu.memory_space<vmem>>, %arg10: memref<1x32xf32, #tpu.memory_space<vmem>>, %arg11: memref<32x32xf32, #tpu.memory_space<vmem>>, %arg12: memref<32x32xf32, #tpu.memory_space<vmem>>, %arg13: memref<32x128xbf16, #tpu.memory_space<vmem>>, %arg14: memref<1x16x16x128xf32, #tpu.memory_space<vmem>>, %arg15: memref<18x18x32xf32, #tpu.memory_space<vmem>>, %arg16: memref<18x18x32xf32, #tpu.memory_space<vmem>>) attributes {dimension_semantics = [#tpu.dimension_semantics<parallel>], iteration_bounds = array<i64: 2>, scalar_prefetch = 0 : i64, scratch_operands = 2 : i64, tpu.core_type = #tpu.core_type<tc>, window_params = [{transform_indices = @transform_0, window_bounds = array<i64: 1, 16, 16, 32>}, {pipeline_mode = #tpu.pipeline_mode<synchronous>, transform_indices = @transform_1, window_bounds = array<i64: 288, 32>}, {pipeline_mode = #tpu.pipeline_mode<synchronous>, transform_indices = @transform_2, window_bounds = array<i64: 1, 32>}, {pipeline_mode = #tpu.pipeline_mode<synchronous>, transform_indices = @transform_3, window_bounds = array<i64: 1, 32>}, {pipeline_mode = #tpu.pipeline_mode<synchronous>, transform_indices = @transform_4, window_bounds = array<i64: 288, 32>}, {pipeline_mode = #tpu.pipeline_mode<synchronous>, transform_indices = @transform_5, window_bounds = array<i64: 1, 32>}, {pipeline_mode = #tpu.pipeline_mode<synchronous>, transform_indices = @transform_6, window_bounds = array<i64: 1, 32>}, {pipeline_mode = #tpu.pipeline_mode<synchronous>, transform_indices = @transform_7, window_bounds = array<i64: 288, 32>}, {pipeline_mode = #tpu.pipeline_mode<synchronous>, transform_indices = @transform_8, window_bounds = array<i64: 1, 32>}, {pipeline_mode = #tpu.pipeline_mode<synchronous>, transform_indices = @transform_9, window_bounds = array<i64: 1, 32>}, {pipeline_mode = #tpu.pipeline_mode<synchronous>, transform_indices = @transform_10, window_bounds = array<i64: 32, 32>}, {pipeline_mode = #tpu.pipeline_mode<synchronous>, transform_indices = @transform_11, window_bounds = array<i64: 32, 32>}, {pipeline_mode = #tpu.pipeline_mode<synchronous>, transform_indices = @transform_12, window_bounds = array<i64: 32, 128>}, {transform_indices = @transform_13, window_bounds = array<i64: 1, 16, 16, 128>}]} {
    %cst = arith.constant 0.000000e+00 : f32
    %0 = vector.broadcast %cst : f32 to vector<18x18x32xf32>
    %c0 = arith.constant 0 : index
    %c0_0 = arith.constant 0 : index
    %c0_1 = arith.constant 0 : index
    %1 = vector.load %arg15[%c0, %c0_0, %c0_1] : memref<18x18x32xf32, #tpu.memory_space<vmem>>, vector<18x18x32xf32>
    tpu.vector_store %arg15[%c0, %c0_0, %c0_1], %0 {strides = array<i32>} : memref<18x18x32xf32, #tpu.memory_space<vmem>>, vector<18x18x32xf32>,
    %cst_2 = arith.constant 0.000000e+00 : f32
    %2 = vector.broadcast %cst_2 : f32 to vector<18x18x32xf32>
    %c0_3 = arith.constant 0 : index
    %c0_4 = arith.constant 0 : index
    %c0_5 = arith.constant 0 : index
    %3 = vector.load %arg16[%c0_3, %c0_4, %c0_5] : memref<18x18x32xf32, #tpu.memory_space<vmem>>, vector<18x18x32xf32>
    tpu.vector_store %arg16[%c0_3, %c0_4, %c0_5], %2 {strides = array<i32>} : memref<18x18x32xf32, #tpu.memory_space<vmem>>, vector<18x18x32xf32>,
    %c0_6 = arith.constant 0 : index
    %c0_7 = arith.constant 0 : index
    %c0_8 = arith.constant 0 : index
    %c0_9 = arith.constant 0 : index
    %4 = vector.load %arg1[%c0_6, %c0_7, %c0_8, %c0_9] : memref<1x16x16x32xf32, #tpu.memory_space<vmem>>, vector<1x16x16x32xf32>
    %5 = vector.shape_cast %4 : vector<1x16x16x32xf32> to vector<16x16x32xf32>
    %c1 = arith.constant 1 : index
    %c1_10 = arith.constant 1 : index
    %c0_11 = arith.constant 0 : index
    %6 = vector.load %arg15[%c1, %c1_10, %c0_11] : memref<18x18x32xf32, #tpu.memory_space<vmem>>, vector<16x16x32xf32>
    tpu.vector_store %arg15[%c1, %c1_10, %c0_11], %5 {strides = array<i32>} : memref<18x18x32xf32, #tpu.memory_space<vmem>>, vector<16x16x32xf32>,
    %c0_12 = arith.constant 0 : index
    %c0_13 = arith.constant 0 : index
    %c0_14 = arith.constant 0 : index
    %7 = vector.load %arg15[%c0_12, %c0_13, %c0_14] : memref<18x18x32xf32, #tpu.memory_space<vmem>>, vector<16x16x32xf32>
    %c0_15 = arith.constant 0 : index
    %c1_16 = arith.constant 1 : index
    %c0_17 = arith.constant 0 : index
    %8 = vector.load %arg15[%c0_15, %c1_16, %c0_17] : memref<18x18x32xf32, #tpu.memory_space<vmem>>, vector<16x16x32xf32>
    %c0_18 = arith.constant 0 : index
    %c2 = arith.constant 2 : index
    %c0_19 = arith.constant 0 : index
    %9 = vector.load %arg15[%c0_18, %c2, %c0_19] : memref<18x18x32xf32, #tpu.memory_space<vmem>>, vector<16x16x32xf32>
    %c1_20 = arith.constant 1 : index
    %c0_21 = arith.constant 0 : index
    %c0_22 = arith.constant 0 : index
    %10 = vector.load %arg15[%c1_20, %c0_21, %c0_22] : memref<18x18x32xf32, #tpu.memory_space<vmem>>, vector<16x16x32xf32>
    %c1_23 = arith.constant 1 : index
    %c1_24 = arith.constant 1 : index
    %c0_25 = arith.constant 0 : index
    %11 = vector.load %arg15[%c1_23, %c1_24, %c0_25] : memref<18x18x32xf32, #tpu.memory_space<vmem>>, vector<16x16x32xf32>
    %c1_26 = arith.constant 1 : index
    %c2_27 = arith.constant 2 : index
    %c0_28 = arith.constant 0 : index
    %12 = vector.load %arg15[%c1_26, %c2_27, %c0_28] : memref<18x18x32xf32, #tpu.memory_space<vmem>>, vector<16x16x32xf32>
    %c2_29 = arith.constant 2 : index
    %c0_30 = arith.constant 0 : index
    %c0_31 = arith.constant 0 : index
    %13 = vector.load %arg15[%c2_29, %c0_30, %c0_31] : memref<18x18x32xf32, #tpu.memory_space<vmem>>, vector<16x16x32xf32>
    %c2_32 = arith.constant 2 : index
    %c1_33 = arith.constant 1 : index
    %c0_34 = arith.constant 0 : index
    %14 = vector.load %arg15[%c2_32, %c1_33, %c0_34] : memref<18x18x32xf32, #tpu.memory_space<vmem>>, vector<16x16x32xf32>
    %c2_35 = arith.constant 2 : index
    %c2_36 = arith.constant 2 : index
    %c0_37 = arith.constant 0 : index
    %15 = vector.load %arg15[%c2_35, %c2_36, %c0_37] : memref<18x18x32xf32, #tpu.memory_space<vmem>>, vector<16x16x32xf32>
    %16 = tpu.concatenate %7, %8, %9, %10, %11, %12, %13, %14, %15 in 2 : vector<16x16x32xf32>, vector<16x16x32xf32>, vector<16x16x32xf32>, vector<16x16x32xf32>, vector<16x16x32xf32>, vector<16x16x32xf32>, vector<16x16x32xf32>, vector<16x16x32xf32>, vector<16x16x32xf32> -> vector<16x16x288xf32>
    %17 = arith.truncf %16 : vector<16x16x288xf32> to vector<16x16x288xbf16>
    %c0_38 = arith.constant 0 : index
    %c0_39 = arith.constant 0 : index
    %18 = vector.load %arg2[%c0_38, %c0_39] : memref<288x32xbf16, #tpu.memory_space<vmem>>, vector<288x32xbf16>
    %cst_40 = arith.constant dense<0.000000e+00> : vector<16x16x32xf32>
    %19 = tpu.matmul %17, %18, %cst_40 {dimension_numbers = #tpu.dot_dimension_numbers<[2], [0], [0, 1], [1], [0, 0, 0, 1, 1, 1], [], []>} : vector<16x16x288xbf16>, vector<288x32xbf16>, vector<16x16x32xf32> -> vector<16x16x32xf32>
    %cst_41 = arith.constant dense<0.000000e+00> : vector<16x32xf32>
    %20 = vector.multi_reduction <add>, %19, %cst_41 [0] : vector<16x16x32xf32> to vector<16x32xf32>
    %cst_42 = arith.constant 1.600000e+01 : f32
    %21 = vector.broadcast %cst_42 : f32 to vector<16x32xf32>
    %22 = arith.divf %20, %21 : vector<16x32xf32>
    %cst_43 = arith.constant dense<0.000000e+00> : vector<32xf32>
    %23 = vector.multi_reduction <add>, %22, %cst_43 [0] : vector<16x32xf32> to vector<32xf32>
    %24 = vector.shape_cast %23 : vector<32xf32> to vector<1x32xf32>
    %cst_44 = arith.constant 1.600000e+01 : f32
    %25 = vector.broadcast %cst_44 : f32 to vector<1x32xf32>
    %26 = arith.divf %24, %25 : vector<1x32xf32>
    %c0_45 = arith.constant 0 : index
    %c0_46 = arith.constant 0 : index
    %27 = vector.load %arg11[%c0_45, %c0_46] : memref<32x32xf32, #tpu.memory_space<vmem>>, vector<32x32xf32>
    %cst_47 = arith.constant dense<0.000000e+00> : vector<1x32xf32>
    %28 = tpu.matmul %26, %27, %cst_47 {dimension_numbers = #tpu.dot_dimension_numbers<[1], [0], [0], [1], [0, 0, 1, 1], [], []>} : vector<1x32xf32>, vector<32x32xf32>, vector<1x32xf32> -> vector<1x32xf32>
    %29 = vector.shape_cast %28 : vector<1x32xf32> to vector<1x1x32xf32>
    %30 = vector.broadcast %29 : vector<1x1x32xf32> to vector<16x16x32xf32>
    %31 = arith.subf %19, %30 : vector<16x16x32xf32>
    %32 = arith.mulf %31, %31 : vector<16x16x32xf32>
    %cst_48 = arith.constant dense<0.000000e+00> : vector<16x32xf32>
    %33 = vector.multi_reduction <add>, %32, %cst_48 [0] : vector<16x16x32xf32> to vector<16x32xf32>
    %cst_49 = arith.constant 1.600000e+01 : f32
    %34 = vector.broadcast %cst_49 : f32 to vector<16x32xf32>
    %35 = arith.divf %33, %34 : vector<16x32xf32>
    %cst_50 = arith.constant dense<0.000000e+00> : vector<32xf32>
    %36 = vector.multi_reduction <add>, %35, %cst_50 [0] : vector<16x32xf32> to vector<32xf32>
    %37 = vector.shape_cast %36 : vector<32xf32> to vector<1x32xf32>
    %cst_51 = arith.constant 1.600000e+01 : f32
    %38 = vector.broadcast %cst_51 : f32 to vector<1x32xf32>
    %39 = arith.divf %37, %38 : vector<1x32xf32>
    %c0_52 = arith.constant 0 : index
    %c0_53 = arith.constant 0 : index
    %40 = vector.load %arg11[%c0_52, %c0_53] : memref<32x32xf32, #tpu.memory_space<vmem>>, vector<32x32xf32>
    %cst_54 = arith.constant dense<0.000000e+00> : vector<1x32xf32>
    %41 = tpu.matmul %39, %40, %cst_54 {dimension_numbers = #tpu.dot_dimension_numbers<[1], [0], [0], [1], [0, 0, 1, 1], [], []>} : vector<1x32xf32>, vector<32x32xf32>, vector<1x32xf32> -> vector<1x32xf32>
    %cst_55 = arith.constant 9.99999974E-6 : f32
    %42 = vector.broadcast %cst_55 : f32 to vector<1x32xf32>
    %43 = arith.addf %41, %42 : vector<1x32xf32>
    %44 = math.rsqrt %43 : vector<1x32xf32>
    %45 = vector.shape_cast %44 : vector<1x32xf32> to vector<1x1x32xf32>
    %46 = vector.broadcast %45 : vector<1x1x32xf32> to vector<16x16x32xf32>
    %47 = arith.mulf %31, %46 : vector<16x16x32xf32>
    %c0_56 = arith.constant 0 : index
    %c0_57 = arith.constant 0 : index
    %48 = vector.load %arg3[%c0_56, %c0_57] : memref<1x32xf32, #tpu.memory_space<vmem>>, vector<1x32xf32>
    %49 = vector.shape_cast %48 : vector<1x32xf32> to vector<1x1x32xf32>
    %50 = vector.broadcast %49 : vector<1x1x32xf32> to vector<16x16x32xf32>
    %51 = arith.mulf %47, %50 : vector<16x16x32xf32>
    %c0_58 = arith.constant 0 : index
    %c0_59 = arith.constant 0 : index
    %52 = vector.load %arg4[%c0_58, %c0_59] : memref<1x32xf32, #tpu.memory_space<vmem>>, vector<1x32xf32>
    %53 = vector.shape_cast %52 : vector<1x32xf32> to vector<1x1x32xf32>
    %54 = vector.broadcast %53 : vector<1x1x32xf32> to vector<16x16x32xf32>
    %55 = arith.addf %51, %54 : vector<16x16x32xf32>
    %cst_60 = arith.constant 0.000000e+00 : f32
    %56 = vector.broadcast %cst_60 : f32 to vector<16x16x32xf32>
    %57 = arith.maximumf %55, %56 : vector<16x16x32xf32>
    %c1_61 = arith.constant 1 : index
    %c1_62 = arith.constant 1 : index
    %c0_63 = arith.constant 0 : index
    %58 = vector.load %arg15[%c1_61, %c1_62, %c0_63] : memref<18x18x32xf32, #tpu.memory_space<vmem>>, vector<16x16x32xf32>
    tpu.vector_store %arg15[%c1_61, %c1_62, %c0_63], %57 {strides = array<i32>} : memref<18x18x32xf32, #tpu.memory_space<vmem>>, vector<16x16x32xf32>,
    %c0_64 = arith.constant 0 : index
    %c0_65 = arith.constant 0 : index
    %c0_66 = arith.constant 0 : index
    %59 = vector.load %arg15[%c0_64, %c0_65, %c0_66] : memref<18x18x32xf32, #tpu.memory_space<vmem>>, vector<16x16x32xf32>
    %c0_67 = arith.constant 0 : index
    %c1_68 = arith.constant 1 : index
    %c0_69 = arith.constant 0 : index
    %60 = vector.load %arg15[%c0_67, %c1_68, %c0_69] : memref<18x18x32xf32, #tpu.memory_space<vmem>>, vector<16x16x32xf32>
    %c0_70 = arith.constant 0 : index
    %c2_71 = arith.constant 2 : index
    %c0_72 = arith.constant 0 : index
    %61 = vector.load %arg15[%c0_70, %c2_71, %c0_72] : memref<18x18x32xf32, #tpu.memory_space<vmem>>, vector<16x16x32xf32>
    %c1_73 = arith.constant 1 : index
    %c0_74 = arith.constant 0 : index
    %c0_75 = arith.constant 0 : index
    %62 = vector.load %arg15[%c1_73, %c0_74, %c0_75] : memref<18x18x32xf32, #tpu.memory_space<vmem>>, vector<16x16x32xf32>
    %c1_76 = arith.constant 1 : index
    %c1_77 = arith.constant 1 : index
    %c0_78 = arith.constant 0 : index
    %63 = vector.load %arg15[%c1_76, %c1_77, %c0_78] : memref<18x18x32xf32, #tpu.memory_space<vmem>>, vector<16x16x32xf32>
    %c1_79 = arith.constant 1 : index
    %c2_80 = arith.constant 2 : index
    %c0_81 = arith.constant 0 : index
    %64 = vector.load %arg15[%c1_79, %c2_80, %c0_81] : memref<18x18x32xf32, #tpu.memory_space<vmem>>, vector<16x16x32xf32>
    %c2_82 = arith.constant 2 : index
    %c0_83 = arith.constant 0 : index
    %c0_84 = arith.constant 0 : index
    %65 = vector.load %arg15[%c2_82, %c0_83, %c0_84] : memref<18x18x32xf32, #tpu.memory_space<vmem>>, vector<16x16x32xf32>
    %c2_85 = arith.constant 2 : index
    %c1_86 = arith.constant 1 : index
    %c0_87 = arith.constant 0 : index
    %66 = vector.load %arg15[%c2_85, %c1_86, %c0_87] : memref<18x18x32xf32, #tpu.memory_space<vmem>>, vector<16x16x32xf32>
    %c2_88 = arith.constant 2 : index
    %c2_89 = arith.constant 2 : index
    %c0_90 = arith.constant 0 : index
    %67 = vector.load %arg15[%c2_88, %c2_89, %c0_90] : memref<18x18x32xf32, #tpu.memory_space<vmem>>, vector<16x16x32xf32>
    %68 = tpu.concatenate %59, %60, %61, %62, %63, %64, %65, %66, %67 in 2 : vector<16x16x32xf32>, vector<16x16x32xf32>, vector<16x16x32xf32>, vector<16x16x32xf32>, vector<16x16x32xf32>, vector<16x16x32xf32>, vector<16x16x32xf32>, vector<16x16x32xf32>, vector<16x16x32xf32> -> vector<16x16x288xf32>
    %69 = arith.truncf %68 : vector<16x16x288xf32> to vector<16x16x288xbf16>
    %c0_91 = arith.constant 0 : index
    %c0_92 = arith.constant 0 : index
    %70 = vector.load %arg5[%c0_91, %c0_92] : memref<288x32xbf16, #tpu.memory_space<vmem>>, vector<288x32xbf16>
    %cst_93 = arith.constant dense<0.000000e+00> : vector<16x16x32xf32>
    %71 = tpu.matmul %69, %70, %cst_93 {dimension_numbers = #tpu.dot_dimension_numbers<[2], [0], [0, 1], [1], [0, 0, 0, 1, 1, 1], [], []>} : vector<16x16x288xbf16>, vector<288x32xbf16>, vector<16x16x32xf32> -> vector<16x16x32xf32>
    %cst_94 = arith.constant dense<0.000000e+00> : vector<16x32xf32>
    %72 = vector.multi_reduction <add>, %71, %cst_94 [0] : vector<16x16x32xf32> to vector<16x32xf32>
    %cst_95 = arith.constant 1.600000e+01 : f32
    %73 = vector.broadcast %cst_95 : f32 to vector<16x32xf32>
    %74 = arith.divf %72, %73 : vector<16x32xf32>
    %cst_96 = arith.constant dense<0.000000e+00> : vector<32xf32>
    %75 = vector.multi_reduction <add>, %74, %cst_96 [0] : vector<16x32xf32> to vector<32xf32>
    %76 = vector.shape_cast %75 : vector<32xf32> to vector<1x32xf32>
    %cst_97 = arith.constant 1.600000e+01 : f32
    %77 = vector.broadcast %cst_97 : f32 to vector<1x32xf32>
    %78 = arith.divf %76, %77 : vector<1x32xf32>
    %c0_98 = arith.constant 0 : index
    %c0_99 = arith.constant 0 : index
    %79 = vector.load %arg12[%c0_98, %c0_99] : memref<32x32xf32, #tpu.memory_space<vmem>>, vector<32x32xf32>
    %cst_100 = arith.constant dense<0.000000e+00> : vector<1x32xf32>
    %80 = tpu.matmul %78, %79, %cst_100 {dimension_numbers = #tpu.dot_dimension_numbers<[1], [0], [0], [1], [0, 0, 1, 1], [], []>} : vector<1x32xf32>, vector<32x32xf32>, vector<1x32xf32> -> vector<1x32xf32>
    %81 = vector.shape_cast %80 : vector<1x32xf32> to vector<1x1x32xf32>
    %82 = vector.broadcast %81 : vector<1x1x32xf32> to vector<16x16x32xf32>
    %83 = arith.subf %71, %82 : vector<16x16x32xf32>
    %84 = arith.mulf %83, %83 : vector<16x16x32xf32>
    %cst_101 = arith.constant dense<0.000000e+00> : vector<16x32xf32>
    %85 = vector.multi_reduction <add>, %84, %cst_101 [0] : vector<16x16x32xf32> to vector<16x32xf32>
    %cst_102 = arith.constant 1.600000e+01 : f32
    %86 = vector.broadcast %cst_102 : f32 to vector<16x32xf32>
    %87 = arith.divf %85, %86 : vector<16x32xf32>
    %cst_103 = arith.constant dense<0.000000e+00> : vector<32xf32>
    %88 = vector.multi_reduction <add>, %87, %cst_103 [0] : vector<16x32xf32> to vector<32xf32>
    %89 = vector.shape_cast %88 : vector<32xf32> to vector<1x32xf32>
    %cst_104 = arith.constant 1.600000e+01 : f32
    %90 = vector.broadcast %cst_104 : f32 to vector<1x32xf32>
    %91 = arith.divf %89, %90 : vector<1x32xf32>
    %c0_105 = arith.constant 0 : index
    %c0_106 = arith.constant 0 : index
    %92 = vector.load %arg12[%c0_105, %c0_106] : memref<32x32xf32, #tpu.memory_space<vmem>>, vector<32x32xf32>
    %cst_107 = arith.constant dense<0.000000e+00> : vector<1x32xf32>
    %93 = tpu.matmul %91, %92, %cst_107 {dimension_numbers = #tpu.dot_dimension_numbers<[1], [0], [0], [1], [0, 0, 1, 1], [], []>} : vector<1x32xf32>, vector<32x32xf32>, vector<1x32xf32> -> vector<1x32xf32>
    %cst_108 = arith.constant 9.99999974E-6 : f32
    %94 = vector.broadcast %cst_108 : f32 to vector<1x32xf32>
    %95 = arith.addf %93, %94 : vector<1x32xf32>
    %96 = math.rsqrt %95 : vector<1x32xf32>
    %97 = vector.shape_cast %96 : vector<1x32xf32> to vector<1x1x32xf32>
    %98 = vector.broadcast %97 : vector<1x1x32xf32> to vector<16x16x32xf32>
    %99 = arith.mulf %83, %98 : vector<16x16x32xf32>
    %c0_109 = arith.constant 0 : index
    %c0_110 = arith.constant 0 : index
    %100 = vector.load %arg6[%c0_109, %c0_110] : memref<1x32xf32, #tpu.memory_space<vmem>>, vector<1x32xf32>
    %101 = vector.shape_cast %100 : vector<1x32xf32> to vector<1x1x32xf32>
    %102 = vector.broadcast %101 : vector<1x1x32xf32> to vector<16x16x32xf32>
    %103 = arith.mulf %99, %102 : vector<16x16x32xf32>
    %c0_111 = arith.constant 0 : index
    %c0_112 = arith.constant 0 : index
    %104 = vector.load %arg7[%c0_111, %c0_112] : memref<1x32xf32, #tpu.memory_space<vmem>>, vector<1x32xf32>
    %105 = vector.shape_cast %104 : vector<1x32xf32> to vector<1x1x32xf32>
    %106 = vector.broadcast %105 : vector<1x1x32xf32> to vector<16x16x32xf32>
    %107 = arith.addf %103, %106 : vector<16x16x32xf32>
    %cst_113 = arith.constant 0.000000e+00 : f32
    %108 = vector.broadcast %cst_113 : f32 to vector<16x16x32xf32>
    %109 = arith.maximumf %107, %108 : vector<16x16x32xf32>
    %c1_114 = arith.constant 1 : index
    %c1_115 = arith.constant 1 : index
    %c0_116 = arith.constant 0 : index
    %110 = vector.load %arg16[%c1_114, %c1_115, %c0_116] : memref<18x18x32xf32, #tpu.memory_space<vmem>>, vector<16x16x32xf32>
    tpu.vector_store %arg16[%c1_114, %c1_115, %c0_116], %109 {strides = array<i32>} : memref<18x18x32xf32, #tpu.memory_space<vmem>>, vector<16x16x32xf32>,
    %c0_117 = arith.constant 0 : index
    %c0_118 = arith.constant 0 : index
    %c0_119 = arith.constant 0 : index
    %111 = vector.load %arg16[%c0_117, %c0_118, %c0_119] : memref<18x18x32xf32, #tpu.memory_space<vmem>>, vector<16x16x32xf32>
    %c0_120 = arith.constant 0 : index
    %c1_121 = arith.constant 1 : index
    %c0_122 = arith.constant 0 : index
    %112 = vector.load %arg16[%c0_120, %c1_121, %c0_122] : memref<18x18x32xf32, #tpu.memory_space<vmem>>, vector<16x16x32xf32>
    %c0_123 = arith.constant 0 : index
    %c2_124 = arith.constant 2 : index
    %c0_125 = arith.constant 0 : index
    %113 = vector.load %arg16[%c0_123, %c2_124, %c0_125] : memref<18x18x32xf32, #tpu.memory_space<vmem>>, vector<16x16x32xf32>
    %c1_126 = arith.constant 1 : index
    %c0_127 = arith.constant 0 : index
    %c0_128 = arith.constant 0 : index
    %114 = vector.load %arg16[%c1_126, %c0_127, %c0_128] : memref<18x18x32xf32, #tpu.memory_space<vmem>>, vector<16x16x32xf32>
    %c1_129 = arith.constant 1 : index
    %c1_130 = arith.constant 1 : index
    %c0_131 = arith.constant 0 : index
    %115 = vector.load %arg16[%c1_129, %c1_130, %c0_131] : memref<18x18x32xf32, #tpu.memory_space<vmem>>, vector<16x16x32xf32>
    %c1_132 = arith.constant 1 : index
    %c2_133 = arith.constant 2 : index
    %c0_134 = arith.constant 0 : index
    %116 = vector.load %arg16[%c1_132, %c2_133, %c0_134] : memref<18x18x32xf32, #tpu.memory_space<vmem>>, vector<16x16x32xf32>
    %c2_135 = arith.constant 2 : index
    %c0_136 = arith.constant 0 : index
    %c0_137 = arith.constant 0 : index
    %117 = vector.load %arg16[%c2_135, %c0_136, %c0_137] : memref<18x18x32xf32, #tpu.memory_space<vmem>>, vector<16x16x32xf32>
    %c2_138 = arith.constant 2 : index
    %c1_139 = arith.constant 1 : index
    %c0_140 = arith.constant 0 : index
    %118 = vector.load %arg16[%c2_138, %c1_139, %c0_140] : memref<18x18x32xf32, #tpu.memory_space<vmem>>, vector<16x16x32xf32>
    %c2_141 = arith.constant 2 : index
    %c2_142 = arith.constant 2 : index
    %c0_143 = arith.constant 0 : index
    %119 = vector.load %arg16[%c2_141, %c2_142, %c0_143] : memref<18x18x32xf32, #tpu.memory_space<vmem>>, vector<16x16x32xf32>
    %120 = tpu.concatenate %111, %112, %113, %114, %115, %116, %117, %118, %119 in 2 : vector<16x16x32xf32>, vector<16x16x32xf32>, vector<16x16x32xf32>, vector<16x16x32xf32>, vector<16x16x32xf32>, vector<16x16x32xf32>, vector<16x16x32xf32>, vector<16x16x32xf32>, vector<16x16x32xf32> -> vector<16x16x288xf32>
    %121 = arith.truncf %120 : vector<16x16x288xf32> to vector<16x16x288xbf16>
    %c0_144 = arith.constant 0 : index
    %c0_145 = arith.constant 0 : index
    %122 = vector.load %arg8[%c0_144, %c0_145] : memref<288x32xbf16, #tpu.memory_space<vmem>>, vector<288x32xbf16>
    %cst_146 = arith.constant dense<0.000000e+00> : vector<16x16x32xf32>
    %123 = tpu.matmul %121, %122, %cst_146 {dimension_numbers = #tpu.dot_dimension_numbers<[2], [0], [0, 1], [1], [0, 0, 0, 1, 1, 1], [], []>} : vector<16x16x288xbf16>, vector<288x32xbf16>, vector<16x16x32xf32> -> vector<16x16x32xf32>
    %cst_147 = arith.constant dense<0.000000e+00> : vector<16x32xf32>
    %124 = vector.multi_reduction <add>, %123, %cst_147 [0] : vector<16x16x32xf32> to vector<16x32xf32>
    %cst_148 = arith.constant 1.600000e+01 : f32
    %125 = vector.broadcast %cst_148 : f32 to vector<16x32xf32>
    %126 = arith.divf %124, %125 : vector<16x32xf32>
    %cst_149 = arith.constant dense<0.000000e+00> : vector<32xf32>
    %127 = vector.multi_reduction <add>, %126, %cst_149 [0] : vector<16x32xf32> to vector<32xf32>
    %128 = vector.shape_cast %127 : vector<32xf32> to vector<1x32xf32>
    %cst_150 = arith.constant 1.600000e+01 : f32
    %129 = vector.broadcast %cst_150 : f32 to vector<1x32xf32>
    %130 = arith.divf %128, %129 : vector<1x32xf32>
    %c0_151 = arith.constant 0 : index
    %c0_152 = arith.constant 0 : index
    %131 = vector.load %arg12[%c0_151, %c0_152] : memref<32x32xf32, #tpu.memory_space<vmem>>, vector<32x32xf32>
    %cst_153 = arith.constant dense<0.000000e+00> : vector<1x32xf32>
    %132 = tpu.matmul %130, %131, %cst_153 {dimension_numbers = #tpu.dot_dimension_numbers<[1], [0], [0], [1], [0, 0, 1, 1], [], []>} : vector<1x32xf32>, vector<32x32xf32>, vector<1x32xf32> -> vector<1x32xf32>
    %133 = vector.shape_cast %132 : vector<1x32xf32> to vector<1x1x32xf32>
    %134 = vector.broadcast %133 : vector<1x1x32xf32> to vector<16x16x32xf32>
    %135 = arith.subf %123, %134 : vector<16x16x32xf32>
    %136 = arith.mulf %135, %135 : vector<16x16x32xf32>
    %cst_154 = arith.constant dense<0.000000e+00> : vector<16x32xf32>
    %137 = vector.multi_reduction <add>, %136, %cst_154 [0] : vector<16x16x32xf32> to vector<16x32xf32>
    %cst_155 = arith.constant 1.600000e+01 : f32
    %138 = vector.broadcast %cst_155 : f32 to vector<16x32xf32>
    %139 = arith.divf %137, %138 : vector<16x32xf32>
    %cst_156 = arith.constant dense<0.000000e+00> : vector<32xf32>
    %140 = vector.multi_reduction <add>, %139, %cst_156 [0] : vector<16x32xf32> to vector<32xf32>
    %141 = vector.shape_cast %140 : vector<32xf32> to vector<1x32xf32>
    %cst_157 = arith.constant 1.600000e+01 : f32
    %142 = vector.broadcast %cst_157 : f32 to vector<1x32xf32>
    %143 = arith.divf %141, %142 : vector<1x32xf32>
    %c0_158 = arith.constant 0 : index
    %c0_159 = arith.constant 0 : index
    %144 = vector.load %arg12[%c0_158, %c0_159] : memref<32x32xf32, #tpu.memory_space<vmem>>, vector<32x32xf32>
    %cst_160 = arith.constant dense<0.000000e+00> : vector<1x32xf32>
    %145 = tpu.matmul %143, %144, %cst_160 {dimension_numbers = #tpu.dot_dimension_numbers<[1], [0], [0], [1], [0, 0, 1, 1], [], []>} : vector<1x32xf32>, vector<32x32xf32>, vector<1x32xf32> -> vector<1x32xf32>
    %cst_161 = arith.constant 9.99999974E-6 : f32
    %146 = vector.broadcast %cst_161 : f32 to vector<1x32xf32>
    %147 = arith.addf %145, %146 : vector<1x32xf32>
    %148 = math.rsqrt %147 : vector<1x32xf32>
    %149 = vector.shape_cast %148 : vector<1x32xf32> to vector<1x1x32xf32>
    %150 = vector.broadcast %149 : vector<1x1x32xf32> to vector<16x16x32xf32>
    %151 = arith.mulf %135, %150 : vector<16x16x32xf32>
    %c0_162 = arith.constant 0 : index
    %c0_163 = arith.constant 0 : index
    %152 = vector.load %arg9[%c0_162, %c0_163] : memref<1x32xf32, #tpu.memory_space<vmem>>, vector<1x32xf32>
    %153 = vector.shape_cast %152 : vector<1x32xf32> to vector<1x1x32xf32>
    %154 = vector.broadcast %153 : vector<1x1x32xf32> to vector<16x16x32xf32>
    %155 = arith.mulf %151, %154 : vector<16x16x32xf32>
    %c0_164 = arith.constant 0 : index
    %c0_165 = arith.constant 0 : index
    %156 = vector.load %arg10[%c0_164, %c0_165] : memref<1x32xf32, #tpu.memory_space<vmem>>, vector<1x32xf32>
    %157 = vector.shape_cast %156 : vector<1x32xf32> to vector<1x1x32xf32>
    %158 = vector.broadcast %157 : vector<1x1x32xf32> to vector<16x16x32xf32>
    %159 = arith.addf %155, %158 : vector<16x16x32xf32>
    %cst_166 = arith.constant 0.000000e+00 : f32
    %160 = vector.broadcast %cst_166 : f32 to vector<16x16x32xf32>
    %161 = arith.maximumf %159, %160 : vector<16x16x32xf32>
    %162 = arith.truncf %161 : vector<16x16x32xf32> to vector<16x16x32xbf16>
    %c0_167 = arith.constant 0 : index
    %c0_168 = arith.constant 0 : index
    %163 = vector.load %arg13[%c0_167, %c0_168] : memref<32x128xbf16, #tpu.memory_space<vmem>>, vector<32x128xbf16>
    %cst_169 = arith.constant dense<0.000000e+00> : vector<16x16x128xf32>
    %164 = tpu.matmul %162, %163, %cst_169 {dimension_numbers = #tpu.dot_dimension_numbers<[2], [0], [0, 1], [1], [0, 0, 0, 1, 1, 1], [], []>} : vector<16x16x32xbf16>, vector<32x128xbf16>, vector<16x16x128xf32> -> vector<16x16x128xf32>
    %c0_170 = arith.constant 0 : index
    %c0_171 = arith.constant 0 : index
    %c0_172 = arith.constant 0 : index
    %c0_173 = arith.constant 0 : index
    %165 = vector.load %arg14[%c0_170, %c0_171, %c0_172, %c0_173] : memref<1x16x16x128xf32, #tpu.memory_space<vmem>>, vector<1x16x16x128xf32>
    %166 = vector.shape_cast %165 : vector<1x16x16x128xf32> to vector<16x16x128xf32>
    %167 = vector.shape_cast %164 : vector<16x16x128xf32> to vector<1x16x16x128xf32>
    tpu.vector_store %arg14[%c0_170, %c0_171, %c0_172, %c0_173], %167 {strides = array<i32>} : memref<1x16x16x128xf32, #tpu.memory_space<vmem>>, vector<1x16x16x128xf32>,
    return
  }
  func.func @transform_0(%arg0: i32) -> (i32, i32, i32, i32) {
    %c0_i32 = arith.constant 0 : i32
    %c0_i32_0 = arith.constant 0 : i32
    %c0_i32_1 = arith.constant 0 : i32
    %c0_i32_2 = arith.constant 0 : i32
    return %arg0, %c0_i32, %c0_i32_0, %c0_i32_1 : i32, i32, i32, i32
  }
  func.func @transform_1(%arg0: i32) -> (i32, i32) {
    %c0_i32 = arith.constant 0 : i32
    %c0_i32_0 = arith.constant 0 : i32
    %c0_i32_1 = arith.constant 0 : i32
    return %c0_i32, %c0_i32_0 : i32, i32
  }
  func.func @transform_2(%arg0: i32) -> (i32, i32) {
    %c0_i32 = arith.constant 0 : i32
    %c0_i32_0 = arith.constant 0 : i32
    %c0_i32_1 = arith.constant 0 : i32
    return %c0_i32, %c0_i32_0 : i32, i32
  }
  func.func @transform_3(%arg0: i32) -> (i32, i32) {
    %c0_i32 = arith.constant 0 : i32
    %c0_i32_0 = arith.constant 0 : i32
    %c0_i32_1 = arith.constant 0 : i32
    return %c0_i32, %c0_i32_0 : i32, i32
  }
  func.func @transform_4(%arg0: i32) -> (i32, i32) {
    %c0_i32 = arith.constant 0 : i32
    %c0_i32_0 = arith.constant 0 : i32
    %c0_i32_1 = arith.constant 0 : i32
    return %c0_i32, %c0_i32_0 : i32, i32
  }
  func.func @transform_5(%arg0: i32) -> (i32, i32) {
    %c0_i32 = arith.constant 0 : i32
    %c0_i32_0 = arith.constant 0 : i32
    %c0_i32_1 = arith.constant 0 : i32
    return %c0_i32, %c0_i32_0 : i32, i32
  }
  func.func @transform_6(%arg0: i32) -> (i32, i32) {
    %c0_i32 = arith.constant 0 : i32
    %c0_i32_0 = arith.constant 0 : i32
    %c0_i32_1 = arith.constant 0 : i32
    return %c0_i32, %c0_i32_0 : i32, i32
  }
  func.func @transform_7(%arg0: i32) -> (i32, i32) {
    %c0_i32 = arith.constant 0 : i32
    %c0_i32_0 = arith.constant 0 : i32
    %c0_i32_1 = arith.constant 0 : i32
    return %c0_i32, %c0_i32_0 : i32, i32
  }
  func.func @transform_8(%arg0: i32) -> (i32, i32) {
    %c0_i32 = arith.constant 0 : i32
    %c0_i32_0 = arith.constant 0 : i32
    %c0_i32_1 = arith.constant 0 : i32
    return %c0_i32, %c0_i32_0 : i32, i32
  }
  func.func @transform_9(%arg0: i32) -> (i32, i32) {
    %c0_i32 = arith.constant 0 : i32
    %c0_i32_0 = arith.constant 0 : i32
    %c0_i32_1 = arith.constant 0 : i32
    return %c0_i32, %c0_i32_0 : i32, i32
  }
  func.func @transform_10(%arg0: i32) -> (i32, i32) {
    %c0_i32 = arith.constant 0 : i32
    %c0_i32_0 = arith.constant 0 : i32
    %c0_i32_1 = arith.constant 0 : i32
    return %c0_i32, %c0_i32_0 : i32, i32
  }
  func.func @transform_11(%arg0: i32) -> (i32, i32) {
    %c0_i32 = arith.constant 0 : i32
    %c0_i32_0 = arith.constant 0 : i32
    %c0_i32_1 = arith.constant 0 : i32
    return %c0_i32, %c0_i32_0 : i32, i32
  }
  func.func @transform_12(%arg0: i32) -> (i32, i32) {
    %c0_i32 = arith.constant 0 : i32
    %c0_i32_0 = arith.constant 0 : i32
    %c0_i32_1 = arith.constant 0 : i32
    return %c0_i32, %c0_i32_0 : i32, i32
  }
  func.func @transform_13(%arg0: i32) -> (i32, i32, i32, i32) {
    %c0_i32 = arith.constant 0 : i32
    %c0_i32_0 = arith.constant 0 : i32
    %c0_i32_1 = arith.constant 0 : i32
    %c0_i32_2 = arith.constant 0 : i32
    return %arg0, %c0_i32, %c0_i32_0, %c0_i32_1 : i32, i32, i32, i32
  }
}

</mosaic_0001>

<llo_original>
// kernel: tpu_custom_call.1
$region0: #{tpu_custom_call.1}
  #allocation0 [shape = 'u32[]', space=smem, size = 0x4, offset = 0x4, fixed_abs, tag = 'smem constant byte address 0x4 - core index']
  #allocation1 [shape = 'u32[144,128]{1,0:T(1,128)}', space=vmem, size = 0x12000, scoped, tag = 'internal scratch']
  #allocation2 [shape = 'f32[18,18,32]{2,1,0:T(8,128)}', space=vmem, size = 0x36000, scoped, tag = 'scratch operand']
  #allocation3 [shape = 'f32[18,18,32]{2,1,0:T(8,128)}', space=vmem, size = 0x36000, scoped, tag = 'scratch operand']
  %s0 = inlined_call_operand.vmem [shape: f32[2,16,16,32], index: 0, kind: input, shape index: {}]
  %s1 = inlined_call_operand.vmem [shape: bf16[288,32], index: 1, kind: input, shape index: {}]
  %s2 = inlined_call_operand.vmem [shape: f32[1,32], index: 2, kind: input, shape index: {}]
  %s3 = inlined_call_operand.vmem [shape: f32[1,32], index: 3, kind: input, shape index: {}]
  %s4 = inlined_call_operand.vmem [shape: bf16[288,32], index: 4, kind: input, shape index: {}]
  %s5 = inlined_call_operand.vmem [shape: f32[1,32], index: 5, kind: input, shape index: {}]
  %s6 = inlined_call_operand.vmem [shape: f32[1,32], index: 6, kind: input, shape index: {}]
  %s7 = inlined_call_operand.vmem [shape: bf16[288,32], index: 7, kind: input, shape index: {}]
  %s8 = inlined_call_operand.vmem [shape: f32[1,32], index: 8, kind: input, shape index: {}]
  %s9 = inlined_call_operand.vmem [shape: f32[1,32], index: 9, kind: input, shape index: {}]
  %s10 = inlined_call_operand.hbm [shape: f32[32,32], index: 10, kind: input, shape index: {}]
  %s11 = inlined_call_operand.hbm [shape: f32[32,32], index: 11, kind: input, shape index: {}]
  %s12 = inlined_call_operand.vmem [shape: bf16[32,128], index: 12, kind: input, shape index: {}]
  %s13 = inlined_call_operand.hbm [shape: f32[2,16,16,128], index: 13, kind: output, shape index: {}]
  %s14 = sld [smem:[#allocation0]]
  $region93: #{tpu_custom_call.1} parent=0
    _
  %s16 = ssub.s32 1, %s14
  %s17 = scalar_select 0, %s16, %s14
  $region1: #{tpu_custom_call.1} parent=0
    #allocation4 [shape = 'u8[16384]{0}', space=vmem, size = 0x4000, scoped, tag = 'input window, operand 10, single buffered']
    #allocation5 [shape = 's32[2]{0}', space=sflag, size = 0x8, scoped, tag = 'scoped memory for tpu_custom_call.1']
    #allocation6 [shape = 's32[2]{0}', space=sflag, size = 0x8, scoped, tag = 'scoped memory for tpu_custom_call.1']
    #allocation7 [shape = 'u8[16384]{0}', space=vmem, size = 0x4000, scoped, tag = 'input window, operand 11, single buffered']
    #allocation8 [shape = 's32[1]{0}', space=sflag, size = 0x4, scoped, tag = 'scoped memory for tpu_custom_call.1']
    #allocation9 [shape = 'u8[262144]{0}', space=vmem, size = 0x40000, scoped, tag = 'output window, operand 0']
    %18 = vsyncpa [#allocation5], 0
    %19 = vsyncpa [#allocation8], 0
    %20 = vsyncpa [#allocation6], 0
    %s21 = scalar_lea.sflag [#allocation6], 1
    %22 = vsyncpa %s21, 0
    loop: start=0, step=1, limit=4
    $region2: #{tpu_custom_call.1} parent=1 // loop_pre_header
      _
    $region3: #{tpu_custom_call.1} parent=1 // loop_header
      %s24 = sphi 0, %s28
      %p25 = scmp.ge.s32.totalorder %s24, 4
      %s34 = sphi 0, %s36
      %s37 = sphi 0, %s34
      %s38 = sphi 0, %s37
      %s54 = sphi 0, %s38
      %s58 = sphi 0, %s58
      %s60 = sphi 0, %s58
      %s61 = sphi 0, %s60
      %s75 = sphi 0, %s61
      %s79 = sphi 0, %s79
      %s81 = sphi 0, %s79
      %s82 = sphi 0, %s81
      %s96 = sphi 0, %s82
      %s100 = sphi 0, %s100
      %s102 = sphi 0, %s100
      %s103 = sphi 0, %s102
      %s117 = sphi 0, %s103
      %s121 = sphi 0, %s121
      %s123 = sphi 0, %s121
      %s124 = sphi 0, %s123
      %s138 = sphi 0, %s124
      %s142 = sphi 0, %s142
      %s144 = sphi 0, %s142
      %s145 = sphi 0, %s144
      %s159 = sphi 0, %s145
      %s163 = sphi 0, %s163
      %s165 = sphi 0, %s163
      %s166 = sphi 0, %s165
      %s180 = sphi 0, %s166
      %s184 = sphi 0, %s184
      %s186 = sphi 0, %s184
      %s187 = sphi 0, %s186
      %s201 = sphi 0, %s187
      %s205 = sphi 0, %s205
      %s207 = sphi 0, %s205
      %s208 = sphi 0, %s207
      %s222 = sphi 0, %s208
      %s226 = sphi 0, %s226
      %s228 = sphi 0, %s226
      %s229 = sphi 0, %s228
      %s243 = sphi 0, %s229
      %s247 = sphi 0, %s247
      %s249 = sphi 0, %s247
      %s250 = sphi 0, %s249
      %s264 = sphi 0, %s250
      %s268 = sphi 0, %s268
      %s270 = sphi 0, %s268
      %s271 = sphi 0, %s270
      %s285 = sphi 0, %s271
      %s289 = sphi 0, %s289
      %s291 = sphi 0, %s289
      %s292 = sphi 0, %s291
      %s306 = sphi 0, %s292
      %s312 = sphi 0, %s314
      %s315 = sphi 0, %s312
      %s316 = sphi 0, %s315
      %s332 = sphi 0, %s316
    $region4: #{tpu_custom_call.1} parent=1 // loop_header_branch
      %27 = sbr.rel (%p25) target = $region8
    $region5: #{tpu_custom_call.1} parent=1 // loop_body
      %s29 = ssub.s32 %s24, 1
      %s30 = ssub.s32 %s24, 2
      %s31 = sadd.s32 %s24, 1
      %s32 = ssub.s32 %s24, %s31
      %p33 = scmp.eq.s32.totalorder %s32, 0
      %s35 = sadd.s32 %s34, 1
      %s36 = scalar_select %p33, %s34, %s35
      %p39 = pneg %p33
      %p40 = scmp.eq.s32.totalorder %s24, 1
      %p41 = por %p39, %p40
      %p42 = scmp.ne.s32.totalorder %s34, %s37
      %p43 = scmp.eq.s32.totalorder %s24, 0
      %p44 = por %p42, %p43
      %p45 = scmp.ne.s32.totalorder %s34, %s37
      %p46 = scmp.eq.s32.totalorder %s29, 1
      %p47 = por %p45, %p46
      %p48 = scmp.ne.s32.totalorder %s37, %s38
      %p49 = scmp.eq.s32.totalorder %s29, 0
      %p50 = por %p48, %p49
      %p51 = scmp.ne.s32.totalorder %s37, %s38
      %p52 = scmp.eq.s32.totalorder %s30, 1
      %p53 = por %p51, %p52
      %p55 = scmp.ne.s32.totalorder %s38, %s54
      %p56 = scmp.eq.s32.totalorder %s30, 0
      %p57 = por %p55, %p56
      %s59 = sadd.s32 %s58, 1
      %p62 = scmp.eq.s32.totalorder %s24, 1
      %p63 = scmp.ne.s32.totalorder %s58, %s60
      %p64 = scmp.eq.s32.totalorder %s24, 0
      %p65 = por %p63, %p64
      %p66 = scmp.ne.s32.totalorder %s58, %s60
      %p67 = scmp.eq.s32.totalorder %s29, 1
      %p68 = por %p66, %p67
      %p69 = scmp.ne.s32.totalorder %s60, %s61
      %p70 = scmp.eq.s32.totalorder %s29, 0
      %p71 = por %p69, %p70
      %p72 = scmp.ne.s32.totalorder %s60, %s61
      %p73 = scmp.eq.s32.totalorder %s30, 1
      %p74 = por %p72, %p73
      %p76 = scmp.ne.s32.totalorder %s61, %s75
      %p77 = scmp.eq.s32.totalorder %s30, 0
      %p78 = por %p76, %p77
      %s80 = sadd.s32 %s79, 1
      %p83 = scmp.eq.s32.totalorder %s24, 1
      %p84 = scmp.ne.s32.totalorder %s79, %s81
      %p85 = scmp.eq.s32.totalorder %s24, 0
      %p86 = por %p84, %p85
      %p87 = scmp.ne.s32.totalorder %s79, %s81
      %p88 = scmp.eq.s32.totalorder %s29, 1
      %p89 = por %p87, %p88
      %p90 = scmp.ne.s32.totalorder %s81, %s82
      %p91 = scmp.eq.s32.totalorder %s29, 0
      %p92 = por %p90, %p91
      %p93 = scmp.ne.s32.totalorder %s81, %s82
      %p94 = scmp.eq.s32.totalorder %s30, 1
      %p95 = por %p93, %p94
      %p97 = scmp.ne.s32.totalorder %s82, %s96
      %p98 = scmp.eq.s32.totalorder %s30, 0
      %p99 = por %p97, %p98
      %s101 = sadd.s32 %s100, 1
      %p104 = scmp.eq.s32.totalorder %s24, 1
      %p105 = scmp.ne.s32.totalorder %s100, %s102
      %p106 = scmp.eq.s32.totalorder %s24, 0
      %p107 = por %p105, %p106
      %p108 = scmp.ne.s32.totalorder %s100, %s102
      %p109 = scmp.eq.s32.totalorder %s29, 1
      %p110 = por %p108, %p109
      %p111 = scmp.ne.s32.totalorder %s102, %s103
      %p112 = scmp.eq.s32.totalorder %s29, 0
      %p113 = por %p111, %p112
      %p114 = scmp.ne.s32.totalorder %s102, %s103
      %p115 = scmp.eq.s32.totalorder %s30, 1
      %p116 = por %p114, %p115
      %p118 = scmp.ne.s32.totalorder %s103, %s117
      %p119 = scmp.eq.s32.totalorder %s30, 0
      %p120 = por %p118, %p119
      %s122 = sadd.s32 %s121, 1
      %p125 = scmp.eq.s32.totalorder %s24, 1
      %p126 = scmp.ne.s32.totalorder %s121, %s123
      %p127 = scmp.eq.s32.totalorder %s24, 0
      %p128 = por %p126, %p127
      %p129 = scmp.ne.s32.totalorder %s121, %s123
      %p130 = scmp.eq.s32.totalorder %s29, 1
      %p131 = por %p129, %p130
      %p132 = scmp.ne.s32.totalorder %s123, %s124
      %p133 = scmp.eq.s32.totalorder %s29, 0
      %p134 = por %p132, %p133
      %p135 = scmp.ne.s32.totalorder %s123, %s124
      %p136 = scmp.eq.s32.totalorder %s30, 1
      %p137 = por %p135, %p136
      %p139 = scmp.ne.s32.totalorder %s124, %s138
      %p140 = scmp.eq.s32.totalorder %s30, 0
      %p141 = por %p139, %p140
      %s143 = sadd.s32 %s142, 1
      %p146 = scmp.eq.s32.totalorder %s24, 1
      %p147 = scmp.ne.s32.totalorder %s142, %s144
      %p148 = scmp.eq.s32.totalorder %s24, 0
      %p149 = por %p147, %p148
      %p150 = scmp.ne.s32.totalorder %s142, %s144
      %p151 = scmp.eq.s32.totalorder %s29, 1
      %p152 = por %p150, %p151
      %p153 = scmp.ne.s32.totalorder %s144, %s145
      %p154 = scmp.eq.s32.totalorder %s29, 0
      %p155 = por %p153, %p154
      %p156 = scmp.ne.s32.totalorder %s144, %s145
      %p157 = scmp.eq.s32.totalorder %s30, 1
      %p158 = por %p156, %p157
      %p160 = scmp.ne.s32.totalorder %s145, %s159
      %p161 = scmp.eq.s32.totalorder %s30, 0
      %p162 = por %p160, %p161
      %s164 = sadd.s32 %s163, 1
      %p167 = scmp.eq.s32.totalorder %s24, 1
      %p168 = scmp.ne.s32.totalorder %s163, %s165
      %p169 = scmp.eq.s32.totalorder %s24, 0
      %p170 = por %p168, %p169
      %p171 = scmp.ne.s32.totalorder %s163, %s165
      %p172 = scmp.eq.s32.totalorder %s29, 1
      %p173 = por %p171, %p172
      %p174 = scmp.ne.s32.totalorder %s165, %s166
      %p175 = scmp.eq.s32.totalorder %s29, 0
      %p176 = por %p174, %p175
      %p177 = scmp.ne.s32.totalorder %s165, %s166
      %p178 = scmp.eq.s32.totalorder %s30, 1
      %p179 = por %p177, %p178
      %p181 = scmp.ne.s32.totalorder %s166, %s180
      %p182 = scmp.eq.s32.totalorder %s30, 0
      %p183 = por %p181, %p182
      %s185 = sadd.s32 %s184, 1
      %p188 = scmp.eq.s32.totalorder %s24, 1
      %p189 = scmp.ne.s32.totalorder %s184, %s186
      %p190 = scmp.eq.s32.totalorder %s24, 0
      %p191 = por %p189, %p190
      %p192 = scmp.ne.s32.totalorder %s184, %s186
      %p193 = scmp.eq.s32.totalorder %s29, 1
      %p194 = por %p192, %p193
      %p195 = scmp.ne.s32.totalorder %s186, %s187
      %p196 = scmp.eq.s32.totalorder %s29, 0
      %p197 = por %p195, %p196
      %p198 = scmp.ne.s32.totalorder %s186, %s187
      %p199 = scmp.eq.s32.totalorder %s30, 1
      %p200 = por %p198, %p199
      %p202 = scmp.ne.s32.totalorder %s187, %s201
      %p203 = scmp.eq.s32.totalorder %s30, 0
      %p204 = por %p202, %p203
      %s206 = sadd.s32 %s205, 1
      %p209 = scmp.eq.s32.totalorder %s24, 1
      %p210 = scmp.ne.s32.totalorder %s205, %s207
      %p211 = scmp.eq.s32.totalorder %s24, 0
      %p212 = por %p210, %p211
      %p213 = scmp.ne.s32.totalorder %s205, %s207
      %p214 = scmp.eq.s32.totalorder %s29, 1
      %p215 = por %p213, %p214
      %p216 = scmp.ne.s32.totalorder %s207, %s208
      %p217 = scmp.eq.s32.totalorder %s29, 0
      %p218 = por %p216, %p217
      %p219 = scmp.ne.s32.totalorder %s207, %s208
      %p220 = scmp.eq.s32.totalorder %s30, 1
      %p221 = por %p219, %p220
      %p223 = scmp.ne.s32.totalorder %s208, %s222
      %p224 = scmp.eq.s32.totalorder %s30, 0
      %p225 = por %p223, %p224
      %s227 = sadd.s32 %s226, 1
      %p230 = scmp.eq.s32.totalorder %s24, 1
      %p231 = scmp.ne.s32.totalorder %s226, %s228
      %p232 = scmp.eq.s32.totalorder %s24, 0
      %p233 = por %p231, %p232
      %p234 = scmp.ne.s32.totalorder %s226, %s228
      %p235 = scmp.eq.s32.totalorder %s29, 1
      %p236 = por %p234, %p235
      %p237 = scmp.ne.s32.totalorder %s228, %s229
      %p238 = scmp.eq.s32.totalorder %s29, 0
      %p239 = por %p237, %p238
      %p240 = scmp.ne.s32.totalorder %s228, %s229
      %p241 = scmp.eq.s32.totalorder %s30, 1
      %p242 = por %p240, %p241
      %p244 = scmp.ne.s32.totalorder %s229, %s243
      %p245 = scmp.eq.s32.totalorder %s30, 0
      %p246 = por %p244, %p245
      %s248 = sadd.s32 %s247, 1
      %p251 = scmp.eq.s32.totalorder %s24, 1
      %p252 = scmp.ne.s32.totalorder %s247, %s249
      %p253 = scmp.eq.s32.totalorder %s24, 0
      %p254 = por %p252, %p253
      %p255 = scmp.ne.s32.totalorder %s247, %s249
      %p256 = scmp.eq.s32.totalorder %s29, 1
      %p257 = por %p255, %p256
      %p258 = scmp.ne.s32.totalorder %s249, %s250
      %p259 = scmp.eq.s32.totalorder %s29, 0
      %p260 = por %p258, %p259
      %p261 = scmp.ne.s32.totalorder %s249, %s250
      %p262 = scmp.eq.s32.totalorder %s30, 1
      %p263 = por %p261, %p262
      %p265 = scmp.ne.s32.totalorder %s250, %s264
      %p266 = scmp.eq.s32.totalorder %s30, 0
      %p267 = por %p265, %p266
      %s269 = sadd.s32 %s268, 1
      %p272 = scmp.eq.s32.totalorder %s24, 1
      %p273 = scmp.ne.s32.totalorder %s268, %s270
      %p274 = scmp.eq.s32.totalorder %s24, 0
      %p275 = por %p273, %p274
      %p276 = scmp.ne.s32.totalorder %s268, %s270
      %p277 = scmp.eq.s32.totalorder %s29, 1
      %p278 = por %p276, %p277
      %p279 = scmp.ne.s32.totalorder %s270, %s271
      %p280 = scmp.eq.s32.totalorder %s29, 0
      %p281 = por %p279, %p280
      %p282 = scmp.ne.s32.totalorder %s270, %s271
      %p283 = scmp.eq.s32.totalorder %s30, 1
      %p284 = por %p282, %p283
      %p286 = scmp.ne.s32.totalorder %s271, %s285
      %p287 = scmp.eq.s32.totalorder %s30, 0
      %p288 = por %p286, %p287
      %s290 = sadd.s32 %s289, 1
      %p293 = scmp.eq.s32.totalorder %s24, 1
      %p294 = scmp.ne.s32.totalorder %s289, %s291
      %p295 = scmp.eq.s32.totalorder %s24, 0
      %p296 = por %p294, %p295
      %p297 = scmp.ne.s32.totalorder %s289, %s291
      %p298 = scmp.eq.s32.totalorder %s29, 1
      %p299 = por %p297, %p298
      %p300 = scmp.ne.s32.totalorder %s291, %s292
      %p301 = scmp.eq.s32.totalorder %s29, 0
      %p302 = por %p300, %p301
      %p303 = scmp.ne.s32.totalorder %s291, %s292
      %p304 = scmp.eq.s32.totalorder %s30, 1
      %p305 = por %p303, %p304
      %p307 = scmp.ne.s32.totalorder %s292, %s306
      %p308 = scmp.eq.s32.totalorder %s30, 0
      %p309 = por %p307, %p308
      %s310 = ssub.s32 %s24, %s31
      %p311 = scmp.eq.s32.totalorder %s310, 0
      %s313 = sadd.s32 %s312, 1
      %s314 = scalar_select %p311, %s312, %s313
      %p317 = pneg %p311
      %p318 = scmp.eq.s32.totalorder %s24, 1
      %p319 = por %p317, %p318
      %p320 = scmp.ne.s32.totalorder %s312, %s315
      %p321 = scmp.eq.s32.totalorder %s24, 0
      %p322 = por %p320, %p321
      %p323 = scmp.ne.s32.totalorder %s312, %s315
      %p324 = scmp.eq.s32.totalorder %s29, 1
      %p325 = por %p323, %p324
      %p326 = scmp.ne.s32.totalorder %s315, %s316
      %p327 = scmp.eq.s32.totalorder %s29, 0
      %p328 = por %p326, %p327
      %p329 = scmp.ne.s32.totalorder %s315, %s316
      %p330 = scmp.eq.s32.totalorder %s30, 1
      %p331 = por %p329, %p330
      %p333 = scmp.ne.s32.totalorder %s316, %s332
      %p334 = scmp.eq.s32.totalorder %s30, 0
      %p335 = por %p333, %p334
      %p336 = scmp.le.s32.totalorder 1, %s24
      %p337 = scmp.lt.s32.totalorder %s24, 3
      %p338 = pnand %p336, %p337
      %p339 = pneg %p338
      // Predicated region
      $region9: #{tpu_custom_call.1} parent=5 // pred_check
        _
      $region10: #{tpu_custom_call.1} parent=5 // pred_check_branch
        %341 = sbr.rel (%p338) target = $region12
      $region11: #{tpu_custom_call.1} parent=5 // pred_region
        %s342 = ssub.s32 %s24, 1
        // Predicated region
        $region13: #{tpu_custom_call.1} parent=11 // pred_check
          %p343 = pneg %p71
        $region14: #{tpu_custom_call.1} parent=11 // pred_check_branch
          %345 = sbr.rel (%p343) target = $region16
        $region15: #{tpu_custom_call.1} parent=11 // pred_region
          _
        $region16: #{tpu_custom_call.1} parent=11 // pred_fallthru
          _
        // Predicated region
        $region17: #{tpu_custom_call.1} parent=11 // pred_check
          %p346 = pneg %p92
        $region18: #{tpu_custom_call.1} parent=11 // pred_check_branch
          %348 = sbr.rel (%p346) target = $region20
        $region19: #{tpu_custom_call.1} parent=11 // pred_region
          _
        $region20: #{tpu_custom_call.1} parent=11 // pred_fallthru
          _
        // Predicated region
        $region21: #{tpu_custom_call.1} parent=11 // pred_check
          %p349 = pneg %p113
        $region22: #{tpu_custom_call.1} parent=11 // pred_check_branch
          %351 = sbr.rel (%p349) target = $region24
        $region23: #{tpu_custom_call.1} parent=11 // pred_region
          _
        $region24: #{tpu_custom_call.1} parent=11 // pred_fallthru
          _
        // Predicated region
        $region25: #{tpu_custom_call.1} parent=11 // pred_check
          %p352 = pneg %p134
        $region26: #{tpu_custom_call.1} parent=11 // pred_check_branch
          %354 = sbr.rel (%p352) target = $region28
        $region27: #{tpu_custom_call.1} parent=11 // pred_region
          _
        $region28: #{tpu_custom_call.1} parent=11 // pred_fallthru
          _
        // Predicated region
        $region29: #{tpu_custom_call.1} parent=11 // pred_check
          %p355 = pneg %p155
        $region30: #{tpu_custom_call.1} parent=11 // pred_check_branch
          %357 = sbr.rel (%p355) target = $region32
        $region31: #{tpu_custom_call.1} parent=11 // pred_region
          _
        $region32: #{tpu_custom_call.1} parent=11 // pred_fallthru
          _
        // Predicated region
        $region33: #{tpu_custom_call.1} parent=11 // pred_check
          %p358 = pneg %p176
        $region34: #{tpu_custom_call.1} parent=11 // pred_check_branch
          %360 = sbr.rel (%p358) target = $region36
        $region35: #{tpu_custom_call.1} parent=11 // pred_region
          _
        $region36: #{tpu_custom_call.1} parent=11 // pred_fallthru
          _
        // Predicated region
        $region37: #{tpu_custom_call.1} parent=11 // pred_check
          %p361 = pneg %p197
        $region38: #{tpu_custom_call.1} parent=11 // pred_check_branch
          %363 = sbr.rel (%p361) target = $region40
        $region39: #{tpu_custom_call.1} parent=11 // pred_region
          _
        $region40: #{tpu_custom_call.1} parent=11 // pred_fallthru
          _
        // Predicated region
        $region41: #{tpu_custom_call.1} parent=11 // pred_check
          %p364 = pneg %p218
        $region42: #{tpu_custom_call.1} parent=11 // pred_check_branch
          %366 = sbr.rel (%p364) target = $region44
        $region43: #{tpu_custom_call.1} parent=11 // pred_region
          _
        $region44: #{tpu_custom_call.1} parent=11 // pred_fallthru
          _
        // Predicated region
        $region45: #{tpu_custom_call.1} parent=11 // pred_check
          %p367 = pneg %p239
        $region46: #{tpu_custom_call.1} parent=11 // pred_check_branch
          %369 = sbr.rel (%p367) target = $region48
        $region47: #{tpu_custom_call.1} parent=11 // pred_region
          _
        $region48: #{tpu_custom_call.1} parent=11 // pred_fallthru
          _
        // Predicated region
        $region49: #{tpu_custom_call.1} parent=11 // pred_check
          %p370 = pneg %p260
        $region50: #{tpu_custom_call.1} parent=11 // pred_check_branch
          %372 = sbr.rel (%p370) target = $region52
        $region51: #{tpu_custom_call.1} parent=11 // pred_region
          %s374 = ssub.s32 512, 512
          %375 = vsyncadd [#allocation5], %s374
          %s376 = sshll.u32 [#allocation4], 4
          %s377 = int_to_ptr.vmem [resolvable:$true] %s376
          %382 = dma.hbm_to_vmem [thread:$0]  %s10, 512, %s377, [#allocation5], 128, 128, 8
        $region52: #{tpu_custom_call.1} parent=11 // pred_fallthru
          _
        // Predicated region
        $region53: #{tpu_custom_call.1} parent=11 // pred_check
          %p383 = pneg %p281
        $region54: #{tpu_custom_call.1} parent=11 // pred_check_branch
          %385 = sbr.rel (%p383) target = $region56
        $region55: #{tpu_custom_call.1} parent=11 // pred_region
          %s387 = ssub.s32 512, 512
          %388 = vsyncadd [#allocation8], %s387
          %s389 = sshll.u32 [#allocation7], 4
          %s390 = int_to_ptr.vmem [resolvable:$true] %s389
          %395 = dma.hbm_to_vmem [thread:$0]  %s11, 512, %s390, [#allocation8], 128, 128, 8
        $region56: #{tpu_custom_call.1} parent=11 // pred_fallthru
          _
        // Predicated region
        $region57: #{tpu_custom_call.1} parent=11 // pred_check
          %p396 = pneg %p302
        $region58: #{tpu_custom_call.1} parent=11 // pred_check_branch
          %398 = sbr.rel (%p396) target = $region60
        $region59: #{tpu_custom_call.1} parent=11 // pred_region
          _
        $region60: #{tpu_custom_call.1} parent=11 // pred_fallthru
          _
      $region12: #{tpu_custom_call.1} parent=5 // pred_fallthru
        _
      %p399 = scmp.lt.s32.totalorder %s24, 2
      // Predicated region
      $region61: #{tpu_custom_call.1} parent=5 // pred_check
        %p400 = pneg %p399
      $region62: #{tpu_custom_call.1} parent=5 // pred_check_branch
        %402 = sbr.rel (%p400) target = $region64
      $region63: #{tpu_custom_call.1} parent=5 // pred_region
        // Predicated region
        $region65: #{tpu_custom_call.1} parent=63 // pred_check
          %p403 = pneg %p44
        $region66: #{tpu_custom_call.1} parent=63 // pred_check_branch
          %405 = sbr.rel (%p403) target = $region68
        $region67: #{tpu_custom_call.1} parent=63 // pred_region
          %p406 = scmp.lt.s32.totalorder %s24, 1
          %s407 = scalar_select %p406, %s24, 1
          %s408 = smul.addr %s407, 32
          %s409 = smul.addr %s408, 8
          %s410 = scalar_lea.vmem %s0, %s409
        $region68: #{tpu_custom_call.1} parent=63 // pred_fallthru
          _
      $region64: #{tpu_custom_call.1} parent=5 // pred_fallthru
        _
      %p411 = scmp.le.s32.totalorder 1, %s24
      %p412 = scmp.lt.s32.totalorder %s24, 3
      %p413 = pnand %p411, %p412
      %p414 = pneg %p413
      // Predicated region
      $region69: #{tpu_custom_call.1} parent=5 // pred_check
        _
      $region70: #{tpu_custom_call.1} parent=5 // pred_check_branch
        %416 = sbr.rel (%p413) target = $region72
      $region71: #{tpu_custom_call.1} parent=5 // pred_region
        %s417 = ssub.s32 %s24, 1
        // Predicated region
        $region73: #{tpu_custom_call.1} parent=71 // pred_check
          %p418 = pneg %p260
        $region74: #{tpu_custom_call.1} parent=71 // pred_check_branch
          %420 = sbr.rel (%p418) target = $region76
        $region75: #{tpu_custom_call.1} parent=71 // pred_region
          %421 = dma.done [#allocation5], 512
        $region76: #{tpu_custom_call.1} parent=71 // pred_fallthru
          _
        // Predicated region
        $region77: #{tpu_custom_call.1} parent=71 // pred_check
          %p422 = pneg %p281
        $region78: #{tpu_custom_call.1} parent=71 // pred_check_branch
          %424 = sbr.rel (%p422) target = $region80
        $region79: #{tpu_custom_call.1} parent=71 // pred_region
          %425 = dma.done [#allocation8], 512
        $region80: #{tpu_custom_call.1} parent=71 // pred_fallthru
          _
        %p426 = scmp.lt.s32.totalorder %s29, 1
        %s427 = scalar_select %p426, %s29, 1
        %s428 = smul.addr %s427, 32
        %s429 = smul.addr %s428, 8
        %s430 = scalar_lea.vmem %s0, %s429
        %p431 = pneg %p50
        %p432 = pneg %p47
        %p433 = pneg %p71
        %p434 = pneg %p68
        %p435 = pneg %p92
        %p436 = pneg %p89
        %p437 = pneg %p113
        %p438 = pneg %p110
        %p439 = pneg %p134
        %p440 = pneg %p131
        %p441 = pneg %p155
        %p442 = pneg %p152
        %p443 = pneg %p176
        %p444 = pneg %p173
        %p445 = pneg %p197
        %p446 = pneg %p194
        %p447 = pneg %p218
        %p448 = pneg %p215
        %p449 = pneg %p239
        %p450 = pneg %p236
        %p451 = pneg %p260
        %p452 = pneg %p257
        %p453 = pneg %p281
        %p454 = pneg %p278
        %p455 = pneg %p302
        %p456 = pneg %p299
        %p457 = pneg %p328
        %p458 = pneg %p325
        %s459 = sand.u32 %s315, 1
        %s460 = scalar_lea.sflag [#allocation6], %s459
        %s461 = sand.u32 %s315, 1
        %s462 = smul.addr %s461, 256
        %s463 = scalar_lea.vmem [#allocation9], %s462
        %p464 = scmp.lt.s32.totalorder %s29, 1
        %s465 = scalar_select %p464, %s29, 1
        %s466 = smul.addr %s465, 32
        %s467 = smul.addr %s466, 8
        %s468 = scalar_lea.vmem %s0, %s467
        %vm470 = vcmask 261120
        %471 = vst.msk [vmem:[#allocation2] sm:$0xff] %vm470, 0.0
        %472 = vst.msk [vmem:[#allocation2 + $0x8] sm:$0xff] %vm470, 0.0
        %vm473 = vcmask 254976
        %474 = vst.msk [vmem:[#allocation2 + $0x10] sm:$0x3] %vm473, 0.0
        %475 = vst.msk [vmem:[#allocation2 + $0x18] sm:$0xff] %vm470, 0.0
        %476 = vst.msk [vmem:[#allocation2 + $0x20] sm:$0xff] %vm470, 0.0
        %477 = vst.msk [vmem:[#allocation2 + $0x28] sm:$0x3] %vm473, 0.0
        %478 = vst.msk [vmem:[#allocation2 + $0x30] sm:$0xff] %vm470, 0.0
        %479 = vst.msk [vmem:[#allocation2 + $0x38] sm:$0xff] %vm470, 0.0
        %480 = vst.msk [vmem:[#allocation2 + $0x40] sm:$0x3] %vm473, 0.0
        %481 = vst.msk [vmem:[#allocation2 + $0x48] sm:$0xff] %vm470, 0.0
        %482 = vst.msk [vmem:[#allocation2 + $0x50] sm:$0xff] %vm470, 0.0
        %483 = vst.msk [vmem:[#allocation2 + $0x58] sm:$0x3] %vm473, 0.0
        %484 = vst.msk [vmem:[#allocation2 + $0x60] sm:$0xff] %vm470, 0.0
        %485 = vst.msk [vmem:[#allocation2 + $0x68] sm:$0xff] %vm470, 0.0
        %486 = vst.msk [vmem:[#allocation2 + $0x70] sm:$0x3] %vm473, 0.0
        %487 = vst.msk [vmem:[#allocation2 + $0x78] sm:$0xff] %vm470, 0.0
        %488 = vst.msk [vmem:[#allocation2 + $0x80] sm:$0xff] %vm470, 0.0
        %489 = vst.msk [vmem:[#allocation2 + $0x88] sm:$0x3] %vm473, 0.0
        %490 = vst.msk [vmem:[#allocation2 + $0x90] sm:$0xff] %vm470, 0.0
        %491 = vst.msk [vmem:[#allocation2 + $0x98] sm:$0xff] %vm470, 0.0
        %492 = vst.msk [vmem:[#allocation2 + $0xa0] sm:$0x3] %vm473, 0.0
        %493 = vst.msk [vmem:[#allocation2 + $0xa8] sm:$0xff] %vm470, 0.0
        %494 = vst.msk [vmem:[#allocation2 + $0xb0] sm:$0xff] %vm470, 0.0
        %495 = vst.msk [vmem:[#allocation2 + $0xb8] sm:$0x3] %vm473, 0.0
        %496 = vst.msk [vmem:[#allocation2 + $0xc0] sm:$0xff] %vm470, 0.0
        %497 = vst.msk [vmem:[#allocation2 + $0xc8] sm:$0xff] %vm470, 0.0
        %498 = vst.msk [vmem:[#allocation2 + $0xd0] sm:$0x3] %vm473, 0.0
        %499 = vst.msk [vmem:[#allocation2 + $0xd8] sm:$0xff] %vm470, 0.0
        %500 = vst.msk [vmem:[#allocation2 + $0xe0] sm:$0xff] %vm470, 0.0
        %501 = vst.msk [vmem:[#allocation2 + $0xe8] sm:$0x3] %vm473, 0.0
        %502 = vst.msk [vmem:[#allocation2 + $0xf0] sm:$0xff] %vm470, 0.0
        %503 = vst.msk [vmem:[#allocation2 + $0xf8] sm:$0xff] %vm470, 0.0
        %504 = vst.msk [vmem:[#allocation2 + $0x100] sm:$0x3] %vm473, 0.0
        %505 = vst.msk [vmem:[#allocation2 + $0x108] sm:$0xff] %vm470, 0.0
        %506 = vst.msk [vmem:[#allocation2 + $0x110] sm:$0xff] %vm470, 0.0
        %507 = vst.msk [vmem:[#allocation2 + $0x118] sm:$0x3] %vm473, 0.0
        %508 = vst.msk [vmem:[#allocation2 + $0x120] sm:$0xff] %vm470, 0.0
        %509 = vst.msk [vmem:[#allocation2 + $0x128] sm:$0xff] %vm470, 0.0
        %510 = vst.msk [vmem:[#allocation2 + $0x130] sm:$0x3] %vm473, 0.0
        %511 = vst.msk [vmem:[#allocation2 + $0x138] sm:$0xff] %vm470, 0.0
        %512 = vst.msk [vmem:[#allocation2 + $0x140] sm:$0xff] %vm470, 0.0
        %513 = vst.msk [vmem:[#allocation2 + $0x148] sm:$0x3] %vm473, 0.0
        %514 = vst.msk [vmem:[#allocation2 + $0x150] sm:$0xff] %vm470, 0.0
        %515 = vst.msk [vmem:[#allocation2 + $0x158] sm:$0xff] %vm470, 0.0
        %516 = vst.msk [vmem:[#allocation2 + $0x160] sm:$0x3] %vm473, 0.0
        %517 = vst.msk [vmem:[#allocation2 + $0x168] sm:$0xff] %vm470, 0.0
        %518 = vst.msk [vmem:[#allocation2 + $0x170] sm:$0xff] %vm470, 0.0
        %519 = vst.msk [vmem:[#allocation2 + $0x178] sm:$0x3] %vm473, 0.0
        %520 = vst.msk [vmem:[#allocation2 + $0x180] sm:$0xff] %vm470, 0.0
        %521 = vst.msk [vmem:[#allocation2 + $0x188] sm:$0xff] %vm470, 0.0
        %522 = vst.msk [vmem:[#allocation2 + $0x190] sm:$0x3] %vm473, 0.0
        %523 = vst.msk [vmem:[#allocation2 + $0x198] sm:$0xff] %vm470, 0.0
        %524 = vst.msk [vmem:[#allocation2 + $0x1a0] sm:$0xff] %vm470, 0.0
        %525 = vst.msk [vmem:[#allocation2 + $0x1a8] sm:$0x3] %vm473, 0.0
        %526 = vst.msk [vmem:[#allocation3] sm:$0xff] %vm470, 0.0
        %527 = vst.msk [vmem:[#allocation3 + $0x8] sm:$0xff] %vm470, 0.0
        %528 = vst.msk [vmem:[#allocation3 + $0x10] sm:$0x3] %vm473, 0.0
        %529 = vst.msk [vmem:[#allocation3 + $0x18] sm:$0xff] %vm470, 0.0
        %530 = vst.msk [vmem:[#allocation3 + $0x20] sm:$0xff] %vm470, 0.0
        %531 = vst.msk [vmem:[#allocation3 + $0x28] sm:$0x3] %vm473, 0.0
        %532 = vst.msk [vmem:[#allocation3 + $0x30] sm:$0xff] %vm470, 0.0
        %533 = vst.msk [vmem:[#allocation3 + $0x38] sm:$0xff] %vm470, 0.0
        %534 = vst.msk [vmem:[#allocation3 + $0x40] sm:$0x3] %vm473, 0.0
        %535 = vst.msk [vmem:[#allocation3 + $0x48] sm:$0xff] %vm470, 0.0
        %536 = vst.msk [vmem:[#allocation3 + $0x50] sm:$0xff] %vm470, 0.0
        %537 = vst.msk [vmem:[#allocation3 + $0x58] sm:$0x3] %vm473, 0.0
        %538 = vst.msk [vmem:[#allocation3 + $0x60] sm:$0xff] %vm470, 0.0
        %539 = vst.msk [vmem:[#allocation3 + $0x68] sm:$0xff] %vm470, 0.0
        %540 = vst.msk [vmem:[#allocation3 + $0x70] sm:$0x3] %vm473, 0.0
        %541 = vst.msk [vmem:[#allocation3 + $0x78] sm:$0xff] %vm470, 0.0
        %542 = vst.msk [vmem:[#allocation3 + $0x80] sm:$0xff] %vm470, 0.0
        %543 = vst.msk [vmem:[#allocation3 + $0x88] sm:$0x3] %vm473, 0.0
        %544 = vst.msk [vmem:[#allocation3 + $0x90] sm:$0xff] %vm470, 0.0
        %545 = vst.msk [vmem:[#allocation3 + $0x98] sm:$0xff] %vm470, 0.0
        %546 = vst.msk [vmem:[#allocation3 + $0xa0] sm:$0x3] %vm473, 0.0
        %547 = vst.msk [vmem:[#allocation3 + $0xa8] sm:$0xff] %vm470, 0.0
        %548 = vst.msk [vmem:[#allocation3 + $0xb0] sm:$0xff] %vm470, 0.0
        %549 = vst.msk [vmem:[#allocation3 + $0xb8] sm:$0x3] %vm473, 0.0
        %550 = vst.msk [vmem:[#allocation3 + $0xc0] sm:$0xff] %vm470, 0.0
        %551 = vst.msk [vmem:[#allocation3 + $0xc8] sm:$0xff] %vm470, 0.0
        %552 = vst.msk [vmem:[#allocation3 + $0xd0] sm:$0x3] %vm473, 0.0
        %553 = vst.msk [vmem:[#allocation3 + $0xd8] sm:$0xff] %vm470, 0.0
        %554 = vst.msk [vmem:[#allocation3 + $0xe0] sm:$0xff] %vm470, 0.0
        %555 = vst.msk [vmem:[#allocation3 + $0xe8] sm:$0x3] %vm473, 0.0
        %556 = vst.msk [vmem:[#allocation3 + $0xf0] sm:$0xff] %vm470, 0.0
        %557 = vst.msk [vmem:[#allocation3 + $0xf8] sm:$0xff] %vm470, 0.0
        %558 = vst.msk [vmem:[#allocation3 + $0x100] sm:$0x3] %vm473, 0.0
        %559 = vst.msk [vmem:[#allocation3 + $0x108] sm:$0xff] %vm470, 0.0
        %560 = vst.msk [vmem:[#allocation3 + $0x110] sm:$0xff] %vm470, 0.0
        %561 = vst.msk [vmem:[#allocation3 + $0x118] sm:$0x3] %vm473, 0.0
        %562 = vst.msk [vmem:[#allocation3 + $0x120] sm:$0xff] %vm470, 0.0
        %563 = vst.msk [vmem:[#allocation3 + $0x128] sm:$0xff] %vm470, 0.0
        %564 = vst.msk [vmem:[#allocation3 + $0x130] sm:$0x3] %vm473, 0.0
        %565 = vst.msk [vmem:[#allocation3 + $0x138] sm:$0xff] %vm470, 0.0
        %566 = vst.msk [vmem:[#allocation3 + $0x140] sm:$0xff] %vm470, 0.0
        %567 = vst.msk [vmem:[#allocation3 + $0x148] sm:$0x3] %vm473, 0.0
        %568 = vst.msk [vmem:[#allocation3 + $0x150] sm:$0xff] %vm470, 0.0
        %569 = vst.msk [vmem:[#allocation3 + $0x158] sm:$0xff] %vm470, 0.0
        %570 = vst.msk [vmem:[#allocation3 + $0x160] sm:$0x3] %vm473, 0.0
        %571 = vst.msk [vmem:[#allocation3 + $0x168] sm:$0xff] %vm470, 0.0
        %572 = vst.msk [vmem:[#allocation3 + $0x170] sm:$0xff] %vm470, 0.0
        %573 = vst.msk [vmem:[#allocation3 + $0x178] sm:$0x3] %vm473, 0.0
        %574 = vst.msk [vmem:[#allocation3 + $0x180] sm:$0xff] %vm470, 0.0
        %575 = vst.msk [vmem:[#allocation3 + $0x188] sm:$0xff] %vm470, 0.0
        %576 = vst.msk [vmem:[#allocation3 + $0x190] sm:$0x3] %vm473, 0.0
        %577 = vst.msk [vmem:[#allocation3 + $0x198] sm:$0xff] %vm470, 0.0
        %578 = vst.msk [vmem:[#allocation3 + $0x1a0] sm:$0xff] %vm470, 0.0
        %579 = vst.msk [vmem:[#allocation3 + $0x1a8] sm:$0x3] %vm473, 0.0
        %v580 = vld [vmem:[%s468] sm:$0xff]
        %v581 = vld [vmem:[%s468 + $0x8] sm:$0xff]
        %v582 = vld [vmem:[%s468 + $0x10] sm:$0xff]
        %v583 = vld [vmem:[%s468 + $0x18] sm:$0xff]
        %v584 = vld [vmem:[%s468 + $0x20] sm:$0xff]
        %v585 = vld [vmem:[%s468 + $0x28] sm:$0xff]
        %v586 = vld [vmem:[%s468 + $0x30] sm:$0xff]
        %v587 = vld [vmem:[%s468 + $0x38] sm:$0xff]
        %v588 = vld [vmem:[%s468 + $0x40] sm:$0xff]
        %v589 = vld [vmem:[%s468 + $0x48] sm:$0xff]
        %v590 = vld [vmem:[%s468 + $0x50] sm:$0xff]
        %v591 = vld [vmem:[%s468 + $0x58] sm:$0xff]
        %v592 = vld [vmem:[%s468 + $0x60] sm:$0xff]
        %v593 = vld [vmem:[%s468 + $0x68] sm:$0xff]
        %v594 = vld [vmem:[%s468 + $0x70] sm:$0xff]
        %v595 = vld [vmem:[%s468 + $0x78] sm:$0xff]
        %v596 = vld [vmem:[%s468 + $0x80] sm:$0xff]
        %v597 = vld [vmem:[%s468 + $0x88] sm:$0xff]
        %v598 = vld [vmem:[%s468 + $0x90] sm:$0xff]
        %v599 = vld [vmem:[%s468 + $0x98] sm:$0xff]
        %v600 = vld [vmem:[%s468 + $0xa0] sm:$0xff]
        %v601 = vld [vmem:[%s468 + $0xa8] sm:$0xff]
        %v602 = vld [vmem:[%s468 + $0xb0] sm:$0xff]
        %v603 = vld [vmem:[%s468 + $0xb8] sm:$0xff]
        %v604 = vld [vmem:[%s468 + $0xc0] sm:$0xff]
        %v605 = vld [vmem:[%s468 + $0xc8] sm:$0xff]
        %v606 = vld [vmem:[%s468 + $0xd0] sm:$0xff]
        %v607 = vld [vmem:[%s468 + $0xd8] sm:$0xff]
        %v608 = vld [vmem:[%s468 + $0xe0] sm:$0xff]
        %v609 = vld [vmem:[%s468 + $0xe8] sm:$0xff]
        %v610 = vld [vmem:[%s468 + $0xf0] sm:$0xff]
        %v611 = vld [vmem:[%s468 + $0xf8] sm:$0xff]
        %s612 = scalar_lea.vmem [#allocation2], 24
        %613 = vst.msk [vmem:[%s612 + $0x1] sm:$0xff] %vm470, %v580
        %614 = vst.msk [vmem:[%s612 + $0x9] sm:$0xff] %vm470, %v581
        %615 = vst.msk [vmem:[%s612 + $0x19] sm:$0xff] %vm470, %v582
        %616 = vst.msk [vmem:[%s612 + $0x21] sm:$0xff] %vm470, %v583
        %617 = vst.msk [vmem:[%s612 + $0x31] sm:$0xff] %vm470, %v584
        %618 = vst.msk [vmem:[%s612 + $0x39] sm:$0xff] %vm470, %v585
        %619 = vst.msk [vmem:[%s612 + $0x49] sm:$0xff] %vm470, %v586
        %620 = vst.msk [vmem:[%s612 + $0x51] sm:$0xff] %vm470, %v587
        %621 = vst.msk [vmem:[%s612 + $0x61] sm:$0xff] %vm470, %v588
        %622 = vst.msk [vmem:[%s612 + $0x69] sm:$0xff] %vm470, %v589
        %623 = vst.msk [vmem:[%s612 + $0x79] sm:$0xff] %vm470, %v590
        %624 = vst.msk [vmem:[%s612 + $0x81] sm:$0xff] %vm470, %v591
        %625 = vst.msk [vmem:[%s612 + $0x91] sm:$0xff] %vm470, %v592
        %626 = vst.msk [vmem:[%s612 + $0x99] sm:$0xff] %vm470, %v593
        %627 = vst.msk [vmem:[%s612 + $0xa9] sm:$0xff] %vm470, %v594
        %628 = vst.msk [vmem:[%s612 + $0xb1] sm:$0xff] %vm470, %v595
        %629 = vst.msk [vmem:[%s612 + $0xc1] sm:$0xff] %vm470, %v596
        %630 = vst.msk [vmem:[%s612 + $0xc9] sm:$0xff] %vm470, %v597
        %631 = vst.msk [vmem:[%s612 + $0xd9] sm:$0xff] %vm470, %v598
        %632 = vst.msk [vmem:[%s612 + $0xe1] sm:$0xff] %vm470, %v599
        %633 = vst.msk [vmem:[%s612 + $0xf1] sm:$0xff] %vm470, %v600
        %634 = vst.msk [vmem:[%s612 + $0xf9] sm:$0xff] %vm470, %v601
        %635 = vst.msk [vmem:[%s612 + $0x109] sm:$0xff] %vm470, %v602
        %636 = vst.msk [vmem:[%s612 + $0x111] sm:$0xff] %vm470, %v603
        %637 = vst.msk [vmem:[%s612 + $0x121] sm:$0xff] %vm470, %v604
        %638 = vst.msk [vmem:[%s612 + $0x129] sm:$0xff] %vm470, %v605
        %639 = vst.msk [vmem:[%s612 + $0x139] sm:$0xff] %vm470, %v606
        %640 = vst.msk [vmem:[%s612 + $0x141] sm:$0xff] %vm470, %v607
        %641 = vst.msk [vmem:[%s612 + $0x151] sm:$0xff] %vm470, %v608
        %642 = vst.msk [vmem:[%s612 + $0x159] sm:$0xff] %vm470, %v609
        %643 = vst.msk [vmem:[%s612 + $0x169] sm:$0xff] %vm470, %v610
        %644 = vst.msk [vmem:[%s612 + $0x171] sm:$0xff] %vm470, %v611
        %v645 = vld [vmem:[#allocation2] sm:$0xff]
        %v646 = vld [vmem:[#allocation2 + $0x8] sm:$0xff]
        %v647 = vld [vmem:[#allocation2 + $0x18] sm:$0xff]
        %v648 = vld [vmem:[#allocation2 + $0x20] sm:$0xff]
        %v649 = vld [vmem:[#allocation2 + $0x30] sm:$0xff]
        %v650 = vld [vmem:[#allocation2 + $0x38] sm:$0xff]
        %v651 = vld [vmem:[#allocation2 + $0x48] sm:$0xff]
        %v652 = vld [vmem:[#allocation2 + $0x50] sm:$0xff]
        %v653 = vld [vmem:[#allocation2 + $0x60] sm:$0xff]
        %v654 = vld [vmem:[#allocation2 + $0x68] sm:$0xff]
        %v655 = vld [vmem:[#allocation2 + $0x78] sm:$0xff]
        %v656 = vld [vmem:[#allocation2 + $0x80] sm:$0xff]
        %v657 = vld [vmem:[#allocation2 + $0x90] sm:$0xff]
        %v658 = vld [vmem:[#allocation2 + $0x98] sm:$0xff]
        %v659 = vld [vmem:[#allocation2 + $0xa8] sm:$0xff]
        %v660 = vld [vmem:[#allocation2 + $0xb0] sm:$0xff]
        %v661 = vld [vmem:[#allocation2 + $0xc0] sm:$0xff]
        %v662 = vld [vmem:[#allocation2 + $0xc8] sm:$0xff]
        %v663 = vld [vmem:[#allocation2 + $0xd8] sm:$0xff]
        %v664 = vld [vmem:[#allocation2 + $0xe0] sm:$0xff]
        %v665 = vld [vmem:[#allocation2 + $0xf0] sm:$0xff]
        %v666 = vld [vmem:[#allocation2 + $0xf8] sm:$0xff]
        %v667 = vld [vmem:[#allocation2 + $0x108] sm:$0xff]
        %v668 = vld [vmem:[#allocation2 + $0x110] sm:$0xff]
        %v669 = vld [vmem:[#allocation2 + $0x120] sm:$0xff]
        %v670 = vld [vmem:[#allocation2 + $0x128] sm:$0xff]
        %v671 = vld [vmem:[#allocation2 + $0x138] sm:$0xff]
        %v672 = vld [vmem:[#allocation2 + $0x140] sm:$0xff]
        %v673 = vld [vmem:[#allocation2 + $0x150] sm:$0xff]
        %v674 = vld [vmem:[#allocation2 + $0x158] sm:$0xff]
        %v675 = vld [vmem:[#allocation2 + $0x168] sm:$0xff]
        %v676 = vld [vmem:[#allocation2 + $0x170] sm:$0xff]
        %v677 = vld [vmem:[#allocation2 + $0x1] sm:$0xff]
        %v678 = vld [vmem:[#allocation2 + $0x9] sm:$0xff]
        %v679 = vld [vmem:[#allocation2 + $0x19] sm:$0xff]
        %v680 = vld [vmem:[#allocation2 + $0x21] sm:$0xff]
        %v681 = vld [vmem:[#allocation2 + $0x31] sm:$0xff]
        %v682 = vld [vmem:[#allocation2 + $0x39] sm:$0xff]
        %v683 = vld [vmem:[#allocation2 + $0x49] sm:$0xff]
        %v684 = vld [vmem:[#allocation2 + $0x51] sm:$0xff]
        %v685 = vld [vmem:[#allocation2 + $0x61] sm:$0xff]
        %v686 = vld [vmem:[#allocation2 + $0x69] sm:$0xff]
        %v687 = vld [vmem:[#allocation2 + $0x79] sm:$0xff]
        %v688 = vld [vmem:[#allocation2 + $0x81] sm:$0xff]
        %v689 = vld [vmem:[#allocation2 + $0x91] sm:$0xff]
        %v690 = vld [vmem:[#allocation2 + $0x99] sm:$0xff]
        %v691 = vld [vmem:[#allocation2 + $0xa9] sm:$0xff]
        %v692 = vld [vmem:[#allocation2 + $0xb1] sm:$0xff]
        %v693 = vld [vmem:[#allocation2 + $0xc1] sm:$0xff]
        %v694 = vld [vmem:[#allocation2 + $0xc9] sm:$0xff]
        %v695 = vld [vmem:[#allocation2 + $0xd9] sm:$0xff]
        %v696 = vld [vmem:[#allocation2 + $0xe1] sm:$0xff]
        %v697 = vld [vmem:[#allocation2 + $0xf1] sm:$0xff]
        %v698 = vld [vmem:[#allocation2 + $0xf9] sm:$0xff]
        %v699 = vld [vmem:[#allocation2 + $0x109] sm:$0xff]
        %v700 = vld [vmem:[#allocation2 + $0x111] sm:$0xff]
        %v701 = vld [vmem:[#allocation2 + $0x121] sm:$0xff]
        %v702 = vld [vmem:[#allocation2 + $0x129] sm:$0xff]
        %v703 = vld [vmem:[#allocation2 + $0x139] sm:$0xff]
        %v704 = vld [vmem:[#allocation2 + $0x141] sm:$0xff]
        %v705 = vld [vmem:[#allocation2 + $0x151] sm:$0xff]
        %v706 = vld [vmem:[#allocation2 + $0x159] sm:$0xff]
        %v707 = vld [vmem:[#allocation2 + $0x169] sm:$0xff]
        %v708 = vld [vmem:[#allocation2 + $0x171] sm:$0xff]
        %v709 = vld [vmem:[#allocation2 + $0x2] sm:$0xff]
        %v710 = vld [vmem:[#allocation2 + $0xa] sm:$0xff]
        %v711 = vld [vmem:[#allocation2 + $0x1a] sm:$0xff]
        %v712 = vld [vmem:[#allocation2 + $0x22] sm:$0xff]
        %v713 = vld [vmem:[#allocation2 + $0x32] sm:$0xff]
        %v714 = vld [vmem:[#allocation2 + $0x3a] sm:$0xff]
        %v715 = vld [vmem:[#allocation2 + $0x4a] sm:$0xff]
        %v716 = vld [vmem:[#allocation2 + $0x52] sm:$0xff]
        %v717 = vld [vmem:[#allocation2 + $0x62] sm:$0xff]
        %v718 = vld [vmem:[#allocation2 + $0x6a] sm:$0xff]
        %v719 = vld [vmem:[#allocation2 + $0x7a] sm:$0xff]
        %v720 = vld [vmem:[#allocation2 + $0x82] sm:$0xff]
        %v721 = vld [vmem:[#allocation2 + $0x92] sm:$0xff]
        %v722 = vld [vmem:[#allocation2 + $0x9a] sm:$0xff]
        %v723 = vld [vmem:[#allocation2 + $0xaa] sm:$0xff]
        %v724 = vld [vmem:[#allocation2 + $0xb2] sm:$0xff]
        %v725 = vld [vmem:[#allocation2 + $0xc2] sm:$0xff]
        %v726 = vld [vmem:[#allocation2 + $0xca] sm:$0xff]
        %v727 = vld [vmem:[#allocation2 + $0xda] sm:$0xff]
        %v728 = vld [vmem:[#allocation2 + $0xe2] sm:$0xff]
        %v729 = vld [vmem:[#allocation2 + $0xf2] sm:$0xff]
        %v730 = vld [vmem:[#allocation2 + $0xfa] sm:$0xff]
        %v731 = vld [vmem:[#allocation2 + $0x10a] sm:$0xff]
        %v732 = vld [vmem:[#allocation2 + $0x112] sm:$0xff]
        %v733 = vld [vmem:[#allocation2 + $0x122] sm:$0xff]
        %v734 = vld [vmem:[#allocation2 + $0x12a] sm:$0xff]
        %v735 = vld [vmem:[#allocation2 + $0x13a] sm:$0xff]
        %v736 = vld [vmem:[#allocation2 + $0x142] sm:$0xff]
        %v737 = vld [vmem:[#allocation2 + $0x152] sm:$0xff]
        %v738 = vld [vmem:[#allocation2 + $0x15a] sm:$0xff]
        %v739 = vld [vmem:[#allocation2 + $0x16a] sm:$0xff]
        %v740 = vld [vmem:[#allocation2 + $0x172] sm:$0xff]
        %v741 = vld [vmem:[%s612] sm:$0xff]
        %v742 = vld [vmem:[%s612 + $0x8] sm:$0xff]
        %v743 = vld [vmem:[%s612 + $0x18] sm:$0xff]
        %v744 = vld [vmem:[%s612 + $0x20] sm:$0xff]
        %v745 = vld [vmem:[%s612 + $0x30] sm:$0xff]
        %v746 = vld [vmem:[%s612 + $0x38] sm:$0xff]
        %v747 = vld [vmem:[%s612 + $0x48] sm:$0xff]
        %v748 = vld [vmem:[%s612 + $0x50] sm:$0xff]
        %v749 = vld [vmem:[%s612 + $0x60] sm:$0xff]
        %v750 = vld [vmem:[%s612 + $0x68] sm:$0xff]
        %v751 = vld [vmem:[%s612 + $0x78] sm:$0xff]
        %v752 = vld [vmem:[%s612 + $0x80] sm:$0xff]
        %v753 = vld [vmem:[%s612 + $0x90] sm:$0xff]
        %v754 = vld [vmem:[%s612 + $0x98] sm:$0xff]
        %v755 = vld [vmem:[%s612 + $0xa8] sm:$0xff]
        %v756 = vld [vmem:[%s612 + $0xb0] sm:$0xff]
        %v757 = vld [vmem:[%s612 + $0xc0] sm:$0xff]
        %v758 = vld [vmem:[%s612 + $0xc8] sm:$0xff]
        %v759 = vld [vmem:[%s612 + $0xd8] sm:$0xff]
        %v760 = vld [vmem:[%s612 + $0xe0] sm:$0xff]
        %v761 = vld [vmem:[%s612 + $0xf0] sm:$0xff]
        %v762 = vld [vmem:[%s612 + $0xf8] sm:$0xff]
        %v763 = vld [vmem:[%s612 + $0x108] sm:$0xff]
        %v764 = vld [vmem:[%s612 + $0x110] sm:$0xff]
        %v765 = vld [vmem:[%s612 + $0x120] sm:$0xff]
        %v766 = vld [vmem:[%s612 + $0x128] sm:$0xff]
        %v767 = vld [vmem:[%s612 + $0x138] sm:$0xff]
        %v768 = vld [vmem:[%s612 + $0x140] sm:$0xff]
        %v769 = vld [vmem:[%s612 + $0x150] sm:$0xff]
        %v770 = vld [vmem:[%s612 + $0x158] sm:$0xff]
        %v771 = vld [vmem:[%s612 + $0x168] sm:$0xff]
        %v772 = vld [vmem:[%s612 + $0x170] sm:$0xff]
        %v773 = vld [vmem:[%s612 + $0x1] sm:$0xff]
        %v774 = vld [vmem:[%s612 + $0x9] sm:$0xff]
        %v775 = vld [vmem:[%s612 + $0x19] sm:$0xff]
        %v776 = vld [vmem:[%s612 + $0x21] sm:$0xff]
        %v777 = vld [vmem:[%s612 + $0x31] sm:$0xff]
        %v778 = vld [vmem:[%s612 + $0x39] sm:$0xff]
        %v779 = vld [vmem:[%s612 + $0x49] sm:$0xff]
        %v780 = vld [vmem:[%s612 + $0x51] sm:$0xff]
        %v781 = vld [vmem:[%s612 + $0x61] sm:$0xff]
        %v782 = vld [vmem:[%s612 + $0x69] sm:$0xff]
        %v783 = vld [vmem:[%s612 + $0x79] sm:$0xff]
        %v784 = vld [vmem:[%s612 + $0x81] sm:$0xff]
        %v785 = vld [vmem:[%s612 + $0x91] sm:$0xff]
        %v786 = vld [vmem:[%s612 + $0x99] sm:$0xff]
        %v787 = vld [vmem:[%s612 + $0xa9] sm:$0xff]
        %v788 = vld [vmem:[%s612 + $0xb1] sm:$0xff]
        %v789 = vld [vmem:[%s612 + $0xc1] sm:$0xff]
        %v790 = vld [vmem:[%s612 + $0xc9] sm:$0xff]
        %v791 = vld [vmem:[%s612 + $0xd9] sm:$0xff]
        %v792 = vld [vmem:[%s612 + $0xe1] sm:$0xff]
        %v793 = vld [vmem:[%s612 + $0xf1] sm:$0xff]
        %v794 = vld [vmem:[%s612 + $0xf9] sm:$0xff]
        %v795 = vld [vmem:[%s612 + $0x109] sm:$0xff]
        %v796 = vld [vmem:[%s612 + $0x111] sm:$0xff]
        %v797 = vld [vmem:[%s612 + $0x121] sm:$0xff]
        %v798 = vld [vmem:[%s612 + $0x129] sm:$0xff]
        %v799 = vld [vmem:[%s612 + $0x139] sm:$0xff]
        %v800 = vld [vmem:[%s612 + $0x141] sm:$0xff]
        %v801 = vld [vmem:[%s612 + $0x151] sm:$0xff]
        %v802 = vld [vmem:[%s612 + $0x159] sm:$0xff]
        %v803 = vld [vmem:[%s612 + $0x169] sm:$0xff]
        %v804 = vld [vmem:[%s612 + $0x171] sm:$0xff]
        %v805 = vld [vmem:[%s612 + $0x2] sm:$0xff]
        %v806 = vld [vmem:[%s612 + $0xa] sm:$0xff]
        %v807 = vld [vmem:[%s612 + $0x1a] sm:$0xff]
        %v808 = vld [vmem:[%s612 + $0x22] sm:$0xff]
        %v809 = vld [vmem:[%s612 + $0x32] sm:$0xff]
        %v810 = vld [vmem:[%s612 + $0x3a] sm:$0xff]
        %v811 = vld [vmem:[%s612 + $0x4a] sm:$0xff]
        %v812 = vld [vmem:[%s612 + $0x52] sm:$0xff]
        %v813 = vld [vmem:[%s612 + $0x62] sm:$0xff]
        %v814 = vld [vmem:[%s612 + $0x6a] sm:$0xff]
        %v815 = vld [vmem:[%s612 + $0x7a] sm:$0xff]
        %v816 = vld [vmem:[%s612 + $0x82] sm:$0xff]
        %v817 = vld [vmem:[%s612 + $0x92] sm:$0xff]
        %v818 = vld [vmem:[%s612 + $0x9a] sm:$0xff]
        %v819 = vld [vmem:[%s612 + $0xaa] sm:$0xff]
        %v820 = vld [vmem:[%s612 + $0xb2] sm:$0xff]
        %v821 = vld [vmem:[%s612 + $0xc2] sm:$0xff]
        %v822 = vld [vmem:[%s612 + $0xca] sm:$0xff]
        %v823 = vld [vmem:[%s612 + $0xda] sm:$0xff]
        %v824 = vld [vmem:[%s612 + $0xe2] sm:$0xff]
        %v825 = vld [vmem:[%s612 + $0xf2] sm:$0xff]
        %v826 = vld [vmem:[%s612 + $0xfa] sm:$0xff]
        %v827 = vld [vmem:[%s612 + $0x10a] sm:$0xff]
        %v828 = vld [vmem:[%s612 + $0x112] sm:$0xff]
        %v829 = vld [vmem:[%s612 + $0x122] sm:$0xff]
        %v830 = vld [vmem:[%s612 + $0x12a] sm:$0xff]
        %v831 = vld [vmem:[%s612 + $0x13a] sm:$0xff]
        %v832 = vld [vmem:[%s612 + $0x142] sm:$0xff]
        %v833 = vld [vmem:[%s612 + $0x152] sm:$0xff]
        %v834 = vld [vmem:[%s612 + $0x15a] sm:$0xff]
        %v835 = vld [vmem:[%s612 + $0x16a] sm:$0xff]
        %v836 = vld [vmem:[%s612 + $0x172] sm:$0xff]
        %s837 = scalar_lea.vmem [#allocation2], 48
        %v838 = vld [vmem:[%s837] sm:$0xff]
        %v839 = vld [vmem:[%s837 + $0x8] sm:$0xff]
        %v840 = vld [vmem:[%s837 + $0x18] sm:$0xff]
        %v841 = vld [vmem:[%s837 + $0x20] sm:$0xff]
        %v842 = vld [vmem:[%s837 + $0x30] sm:$0xff]
        %v843 = vld [vmem:[%s837 + $0x38] sm:$0xff]
        %v844 = vld [vmem:[%s837 + $0x48] sm:$0xff]
        %v845 = vld [vmem:[%s837 + $0x50] sm:$0xff]
        %v846 = vld [vmem:[%s837 + $0x60] sm:$0xff]
        %v847 = vld [vmem:[%s837 + $0x68] sm:$0xff]
        %v848 = vld [vmem:[%s837 + $0x78] sm:$0xff]
        %v849 = vld [vmem:[%s837 + $0x80] sm:$0xff]
        %v850 = vld [vmem:[%s837 + $0x90] sm:$0xff]
        %v851 = vld [vmem:[%s837 + $0x98] sm:$0xff]
        %v852 = vld [vmem:[%s837 + $0xa8] sm:$0xff]
        %v853 = vld [vmem:[%s837 + $0xb0] sm:$0xff]
        %v854 = vld [vmem:[%s837 + $0xc0] sm:$0xff]
        %v855 = vld [vmem:[%s837 + $0xc8] sm:$0xff]
        %v856 = vld [vmem:[%s837 + $0xd8] sm:$0xff]
        %v857 = vld [vmem:[%s837 + $0xe0] sm:$0xff]
        %v858 = vld [vmem:[%s837 + $0xf0] sm:$0xff]
        %v859 = vld [vmem:[%s837 + $0xf8] sm:$0xff]
        %v860 = vld [vmem:[%s837 + $0x108] sm:$0xff]
        %v861 = vld [vmem:[%s837 + $0x110] sm:$0xff]
        %v862 = vld [vmem:[%s837 + $0x120] sm:$0xff]
        %v863 = vld [vmem:[%s837 + $0x128] sm:$0xff]
        %v864 = vld [vmem:[%s837 + $0x138] sm:$0xff]
        %v865 = vld [vmem:[%s837 + $0x140] sm:$0xff]
        %v866 = vld [vmem:[%s837 + $0x150] sm:$0xff]
        %v867 = vld [vmem:[%s837 + $0x158] sm:$0xff]
        %v868 = vld [vmem:[%s837 + $0x168] sm:$0xff]
        %v869 = vld [vmem:[%s837 + $0x170] sm:$0xff]
        %v870 = vld [vmem:[%s837 + $0x1] sm:$0xff]
        %v871 = vld [vmem:[%s837 + $0x9] sm:$0xff]
        %v872 = vld [vmem:[%s837 + $0x19] sm:$0xff]
        %v873 = vld [vmem:[%s837 + $0x21] sm:$0xff]
        %v874 = vld [vmem:[%s837 + $0x31] sm:$0xff]
        %v875 = vld [vmem:[%s837 + $0x39] sm:$0xff]
        %v876 = vld [vmem:[%s837 + $0x49] sm:$0xff]
        %v877 = vld [vmem:[%s837 + $0x51] sm:$0xff]
        %v878 = vld [vmem:[%s837 + $0x61] sm:$0xff]
        %v879 = vld [vmem:[%s837 + $0x69] sm:$0xff]
        %v880 = vld [vmem:[%s837 + $0x79] sm:$0xff]
        %v881 = vld [vmem:[%s837 + $0x81] sm:$0xff]
        %v882 = vld [vmem:[%s837 + $0x91] sm:$0xff]
        %v883 = vld [vmem:[%s837 + $0x99] sm:$0xff]
        %v884 = vld [vmem:[%s837 + $0xa9] sm:$0xff]
        %v885 = vld [vmem:[%s837 + $0xb1] sm:$0xff]
        %v886 = vld [vmem:[%s837 + $0xc1] sm:$0xff]
        %v887 = vld [vmem:[%s837 + $0xc9] sm:$0xff]
        %v888 = vld [vmem:[%s837 + $0xd9] sm:$0xff]
        %v889 = vld [vmem:[%s837 + $0xe1] sm:$0xff]
        %v890 = vld [vmem:[%s837 + $0xf1] sm:$0xff]
        %v891 = vld [vmem:[%s837 + $0xf9] sm:$0xff]
        %v892 = vld [vmem:[%s837 + $0x109] sm:$0xff]
        %v893 = vld [vmem:[%s837 + $0x111] sm:$0xff]
        %v894 = vld [vmem:[%s837 + $0x121] sm:$0xff]
        %v895 = vld [vmem:[%s837 + $0x129] sm:$0xff]
        %v896 = vld [vmem:[%s837 + $0x139] sm:$0xff]
        %v897 = vld [vmem:[%s837 + $0x141] sm:$0xff]
        %v898 = vld [vmem:[%s837 + $0x151] sm:$0xff]
        %v899 = vld [vmem:[%s837 + $0x159] sm:$0xff]
        %v900 = vld [vmem:[%s837 + $0x169] sm:$0xff]
        %v901 = vld [vmem:[%s837 + $0x171] sm:$0xff]
        %v902 = vld [vmem:[%s837 + $0x2] sm:$0xff]
        %v903 = vld [vmem:[%s837 + $0xa] sm:$0xff]
        %v904 = vld [vmem:[%s837 + $0x1a] sm:$0xff]
        %v905 = vld [vmem:[%s837 + $0x22] sm:$0xff]
        %v906 = vld [vmem:[%s837 + $0x32] sm:$0xff]
        %v907 = vld [vmem:[%s837 + $0x3a] sm:$0xff]
        %v908 = vld [vmem:[%s837 + $0x4a] sm:$0xff]
        %v909 = vld [vmem:[%s837 + $0x52] sm:$0xff]
        %v910 = vld [vmem:[%s837 + $0x62] sm:$0xff]
        %v911 = vld [vmem:[%s837 + $0x6a] sm:$0xff]
        %v912 = vld [vmem:[%s837 + $0x7a] sm:$0xff]
        %v913 = vld [vmem:[%s837 + $0x82] sm:$0xff]
        %v914 = vld [vmem:[%s837 + $0x92] sm:$0xff]
        %v915 = vld [vmem:[%s837 + $0x9a] sm:$0xff]
        %v916 = vld [vmem:[%s837 + $0xaa] sm:$0xff]
        %v917 = vld [vmem:[%s837 + $0xb2] sm:$0xff]
        %v918 = vld [vmem:[%s837 + $0xc2] sm:$0xff]
        %v919 = vld [vmem:[%s837 + $0xca] sm:$0xff]
        %v920 = vld [vmem:[%s837 + $0xda] sm:$0xff]
        %v921 = vld [vmem:[%s837 + $0xe2] sm:$0xff]
        %v922 = vld [vmem:[%s837 + $0xf2] sm:$0xff]
        %v923 = vld [vmem:[%s837 + $0xfa] sm:$0xff]
        %v924 = vld [vmem:[%s837 + $0x10a] sm:$0xff]
        %v925 = vld [vmem:[%s837 + $0x112] sm:$0xff]
        %v926 = vld [vmem:[%s837 + $0x122] sm:$0xff]
        %v927 = vld [vmem:[%s837 + $0x12a] sm:$0xff]
        %v928 = vld [vmem:[%s837 + $0x13a] sm:$0xff]
        %v929 = vld [vmem:[%s837 + $0x142] sm:$0xff]
        %v930 = vld [vmem:[%s837 + $0x152] sm:$0xff]
        %v931 = vld [vmem:[%s837 + $0x15a] sm:$0xff]
        %v932 = vld [vmem:[%s837 + $0x16a] sm:$0xff]
        %v933 = vld [vmem:[%s837 + $0x172] sm:$0xff]
        %966 = vrot.lane.b32.xlu0 %v677, 32
        %v967 = vpop.permute.xlu0 %966
        %968 = vrot.lane.b32.xlu0 %v678, 32
        %v969 = vpop.permute.xlu0 %968
        %970 = vrot.lane.b32.xlu0 %v679, 32
        %v971 = vpop.permute.xlu0 %970
        %972 = vrot.lane.b32.xlu0 %v680, 32
        %v973 = vpop.permute.xlu0 %972
        %974 = vrot.lane.b32.xlu0 %v681, 32
        %v975 = vpop.permute.xlu0 %974
        %976 = vrot.lane.b32.xlu0 %v682, 32
        %v977 = vpop.permute.xlu0 %976
        %978 = vrot.lane.b32.xlu0 %v683, 32
        %v979 = vpop.permute.xlu0 %978
        %980 = vrot.lane.b32.xlu0 %v684, 32
        %v981 = vpop.permute.xlu0 %980
        %982 = vrot.lane.b32.xlu0 %v685, 32
        %v983 = vpop.permute.xlu0 %982
        %984 = vrot.lane.b32.xlu0 %v686, 32
        %v985 = vpop.permute.xlu0 %984
        %986 = vrot.lane.b32.xlu0 %v687, 32
        %v987 = vpop.permute.xlu0 %986
        %988 = vrot.lane.b32.xlu0 %v688, 32
        %v989 = vpop.permute.xlu0 %988
        %990 = vrot.lane.b32.xlu0 %v689, 32
        %v991 = vpop.permute.xlu0 %990
        %992 = vrot.lane.b32.xlu0 %v690, 32
        %v993 = vpop.permute.xlu0 %992
        %994 = vrot.lane.b32.xlu0 %v691, 32
        %v995 = vpop.permute.xlu0 %994
        %996 = vrot.lane.b32.xlu0 %v692, 32
        %v997 = vpop.permute.xlu0 %996
        %998 = vrot.lane.b32.xlu0 %v693, 32
        %v999 = vpop.permute.xlu0 %998
        %1000 = vrot.lane.b32.xlu0 %v694, 32
        %v1001 = vpop.permute.xlu0 %1000
        %1002 = vrot.lane.b32.xlu0 %v695, 32
        %v1003 = vpop.permute.xlu0 %1002
        %1004 = vrot.lane.b32.xlu0 %v696, 32
        %v1005 = vpop.permute.xlu0 %1004
        %1006 = vrot.lane.b32.xlu0 %v697, 32
        %v1007 = vpop.permute.xlu0 %1006
        %1008 = vrot.lane.b32.xlu0 %v698, 32
        %v1009 = vpop.permute.xlu0 %1008
        %1010 = vrot.lane.b32.xlu0 %v699, 32
        %v1011 = vpop.permute.xlu0 %1010
        %1012 = vrot.lane.b32.xlu0 %v700, 32
        %v1013 = vpop.permute.xlu0 %1012
        %1014 = vrot.lane.b32.xlu0 %v701, 32
        %v1015 = vpop.permute.xlu0 %1014
        %1016 = vrot.lane.b32.xlu0 %v702, 32
        %v1017 = vpop.permute.xlu0 %1016
        %1018 = vrot.lane.b32.xlu0 %v703, 32
        %v1019 = vpop.permute.xlu0 %1018
        %1020 = vrot.lane.b32.xlu0 %v704, 32
        %v1021 = vpop.permute.xlu0 %1020
        %1022 = vrot.lane.b32.xlu0 %v705, 32
        %v1023 = vpop.permute.xlu0 %1022
        %1024 = vrot.lane.b32.xlu0 %v706, 32
        %v1025 = vpop.permute.xlu0 %1024
        %1026 = vrot.lane.b32.xlu0 %v707, 32
        %v1027 = vpop.permute.xlu0 %1026
        %1028 = vrot.lane.b32.xlu0 %v708, 32
        %v1029 = vpop.permute.xlu0 %1028
        %1094 = vrot.lane.b32.xlu0 %v709, 64
        %v1095 = vpop.permute.xlu0 %1094
        %1096 = vrot.lane.b32.xlu0 %v710, 64
        %v1097 = vpop.permute.xlu0 %1096
        %1098 = vrot.lane.b32.xlu0 %v711, 64
        %v1099 = vpop.permute.xlu0 %1098
        %1100 = vrot.lane.b32.xlu0 %v712, 64
        %v1101 = vpop.permute.xlu0 %1100
        %1102 = vrot.lane.b32.xlu0 %v713, 64
        %v1103 = vpop.permute.xlu0 %1102
        %1104 = vrot.lane.b32.xlu0 %v714, 64
        %v1105 = vpop.permute.xlu0 %1104
        %1106 = vrot.lane.b32.xlu0 %v715, 64
        %v1107 = vpop.permute.xlu0 %1106
        %1108 = vrot.lane.b32.xlu0 %v716, 64
        %v1109 = vpop.permute.xlu0 %1108
        %1110 = vrot.lane.b32.xlu0 %v717, 64
        %v1111 = vpop.permute.xlu0 %1110
        %1112 = vrot.lane.b32.xlu0 %v718, 64
        %v1113 = vpop.permute.xlu0 %1112
        %1114 = vrot.lane.b32.xlu0 %v719, 64
        %v1115 = vpop.permute.xlu0 %1114
        %1116 = vrot.lane.b32.xlu0 %v720, 64
        %v1117 = vpop.permute.xlu0 %1116
        %1118 = vrot.lane.b32.xlu0 %v721, 64
        %v1119 = vpop.permute.xlu0 %1118
        %1120 = vrot.lane.b32.xlu0 %v722, 64
        %v1121 = vpop.permute.xlu0 %1120
        %1122 = vrot.lane.b32.xlu0 %v723, 64
        %v1123 = vpop.permute.xlu0 %1122
        %1124 = vrot.lane.b32.xlu0 %v724, 64
        %v1125 = vpop.permute.xlu0 %1124
        %1126 = vrot.lane.b32.xlu0 %v725, 64
        %v1127 = vpop.permute.xlu0 %1126
        %1128 = vrot.lane.b32.xlu0 %v726, 64
        %v1129 = vpop.permute.xlu0 %1128
        %1130 = vrot.lane.b32.xlu0 %v727, 64
        %v1131 = vpop.permute.xlu0 %1130
        %1132 = vrot.lane.b32.xlu0 %v728, 64
        %v1133 = vpop.permute.xlu0 %1132
        %1134 = vrot.lane.b32.xlu0 %v729, 64
        %v1135 = vpop.permute.xlu0 %1134
        %1136 = vrot.lane.b32.xlu0 %v730, 64
        %v1137 = vpop.permute.xlu0 %1136
        %1138 = vrot.lane.b32.xlu0 %v731, 64
        %v1139 = vpop.permute.xlu0 %1138
        %1140 = vrot.lane.b32.xlu0 %v732, 64
        %v1141 = vpop.permute.xlu0 %1140
        %1142 = vrot.lane.b32.xlu0 %v733, 64
        %v1143 = vpop.permute.xlu0 %1142
        %1144 = vrot.lane.b32.xlu0 %v734, 64
        %v1145 = vpop.permute.xlu0 %1144
        %1146 = vrot.lane.b32.xlu0 %v735, 64
        %v1147 = vpop.permute.xlu0 %1146
        %1148 = vrot.lane.b32.xlu0 %v736, 64
        %v1149 = vpop.permute.xlu0 %1148
        %1150 = vrot.lane.b32.xlu0 %v737, 64
        %v1151 = vpop.permute.xlu0 %1150
        %1152 = vrot.lane.b32.xlu0 %v738, 64
        %v1153 = vpop.permute.xlu0 %1152
        %1154 = vrot.lane.b32.xlu0 %v739, 64
        %v1155 = vpop.permute.xlu0 %1154
        %1156 = vrot.lane.b32.xlu0 %v740, 64
        %v1157 = vpop.permute.xlu0 %1156
        %1222 = vrot.lane.b32.xlu0 %v741, 96
        %v1223 = vpop.permute.xlu0 %1222
        %1224 = vrot.lane.b32.xlu0 %v742, 96
        %v1225 = vpop.permute.xlu0 %1224
        %1226 = vrot.lane.b32.xlu0 %v743, 96
        %v1227 = vpop.permute.xlu0 %1226
        %1228 = vrot.lane.b32.xlu0 %v744, 96
        %v1229 = vpop.permute.xlu0 %1228
        %1230 = vrot.lane.b32.xlu0 %v745, 96
        %v1231 = vpop.permute.xlu0 %1230
        %1232 = vrot.lane.b32.xlu0 %v746, 96
        %v1233 = vpop.permute.xlu0 %1232
        %1234 = vrot.lane.b32.xlu0 %v747, 96
        %v1235 = vpop.permute.xlu0 %1234
        %1236 = vrot.lane.b32.xlu0 %v748, 96
        %v1237 = vpop.permute.xlu0 %1236
        %1238 = vrot.lane.b32.xlu0 %v749, 96
        %v1239 = vpop.permute.xlu0 %1238
        %1240 = vrot.lane.b32.xlu0 %v750, 96
        %v1241 = vpop.permute.xlu0 %1240
        %1242 = vrot.lane.b32.xlu0 %v751, 96
        %v1243 = vpop.permute.xlu0 %1242
        %1244 = vrot.lane.b32.xlu0 %v752, 96
        %v1245 = vpop.permute.xlu0 %1244
        %1246 = vrot.lane.b32.xlu0 %v753, 96
        %v1247 = vpop.permute.xlu0 %1246
        %1248 = vrot.lane.b32.xlu0 %v754, 96
        %v1249 = vpop.permute.xlu0 %1248
        %1250 = vrot.lane.b32.xlu0 %v755, 96
        %v1251 = vpop.permute.xlu0 %1250
        %1252 = vrot.lane.b32.xlu0 %v756, 96
        %v1253 = vpop.permute.xlu0 %1252
        %1254 = vrot.lane.b32.xlu0 %v757, 96
        %v1255 = vpop.permute.xlu0 %1254
        %1256 = vrot.lane.b32.xlu0 %v758, 96
        %v1257 = vpop.permute.xlu0 %1256
        %1258 = vrot.lane.b32.xlu0 %v759, 96
        %v1259 = vpop.permute.xlu0 %1258
        %1260 = vrot.lane.b32.xlu0 %v760, 96
        %v1261 = vpop.permute.xlu0 %1260
        %1262 = vrot.lane.b32.xlu0 %v761, 96
        %v1263 = vpop.permute.xlu0 %1262
        %1264 = vrot.lane.b32.xlu0 %v762, 96
        %v1265 = vpop.permute.xlu0 %1264
        %1266 = vrot.lane.b32.xlu0 %v763, 96
        %v1267 = vpop.permute.xlu0 %1266
        %1268 = vrot.lane.b32.xlu0 %v764, 96
        %v1269 = vpop.permute.xlu0 %1268
        %1270 = vrot.lane.b32.xlu0 %v765, 96
        %v1271 = vpop.permute.xlu0 %1270
        %1272 = vrot.lane.b32.xlu0 %v766, 96
        %v1273 = vpop.permute.xlu0 %1272
        %1274 = vrot.lane.b32.xlu0 %v767, 96
        %v1275 = vpop.permute.xlu0 %1274
        %1276 = vrot.lane.b32.xlu0 %v768, 96
        %v1277 = vpop.permute.xlu0 %1276
        %1278 = vrot.lane.b32.xlu0 %v769, 96
        %v1279 = vpop.permute.xlu0 %1278
        %1280 = vrot.lane.b32.xlu0 %v770, 96
        %v1281 = vpop.permute.xlu0 %1280
        %1282 = vrot.lane.b32.xlu0 %v771, 96
        %v1283 = vpop.permute.xlu0 %1282
        %1284 = vrot.lane.b32.xlu0 %v772, 96
        %v1285 = vpop.permute.xlu0 %1284
        %1350 = vrot.lane.b32.xlu0 %v805, 32
        %v1351 = vpop.permute.xlu0 %1350
        %1352 = vrot.lane.b32.xlu0 %v806, 32
        %v1353 = vpop.permute.xlu0 %1352
        %1354 = vrot.lane.b32.xlu0 %v807, 32
        %v1355 = vpop.permute.xlu0 %1354
        %1356 = vrot.lane.b32.xlu0 %v808, 32
        %v1357 = vpop.permute.xlu0 %1356
        %1358 = vrot.lane.b32.xlu0 %v809, 32
        %v1359 = vpop.permute.xlu0 %1358
        %1360 = vrot.lane.b32.xlu0 %v810, 32
        %v1361 = vpop.permute.xlu0 %1360
        %1362 = vrot.lane.b32.xlu0 %v811, 32
        %v1363 = vpop.permute.xlu0 %1362
        %1364 = vrot.lane.b32.xlu0 %v812, 32
        %v1365 = vpop.permute.xlu0 %1364
        %1366 = vrot.lane.b32.xlu0 %v813, 32
        %v1367 = vpop.permute.xlu0 %1366
        %1368 = vrot.lane.b32.xlu0 %v814, 32
        %v1369 = vpop.permute.xlu0 %1368
        %1370 = vrot.lane.b32.xlu0 %v815, 32
        %v1371 = vpop.permute.xlu0 %1370
        %1372 = vrot.lane.b32.xlu0 %v816, 32
        %v1373 = vpop.permute.xlu0 %1372
        %1374 = vrot.lane.b32.xlu0 %v817, 32
        %v1375 = vpop.permute.xlu0 %1374
        %1376 = vrot.lane.b32.xlu0 %v818, 32
        %v1377 = vpop.permute.xlu0 %1376
        %1378 = vrot.lane.b32.xlu0 %v819, 32
        %v1379 = vpop.permute.xlu0 %1378
        %1380 = vrot.lane.b32.xlu0 %v820, 32
        %v1381 = vpop.permute.xlu0 %1380
        %1382 = vrot.lane.b32.xlu0 %v821, 32
        %v1383 = vpop.permute.xlu0 %1382
        %1384 = vrot.lane.b32.xlu0 %v822, 32
        %v1385 = vpop.permute.xlu0 %1384
        %1386 = vrot.lane.b32.xlu0 %v823, 32
        %v1387 = vpop.permute.xlu0 %1386
        %1388 = vrot.lane.b32.xlu0 %v824, 32
        %v1389 = vpop.permute.xlu0 %1388
        %1390 = vrot.lane.b32.xlu0 %v825, 32
        %v1391 = vpop.permute.xlu0 %1390
        %1392 = vrot.lane.b32.xlu0 %v826, 32
        %v1393 = vpop.permute.xlu0 %1392
        %1394 = vrot.lane.b32.xlu0 %v827, 32
        %v1395 = vpop.permute.xlu0 %1394
        %1396 = vrot.lane.b32.xlu0 %v828, 32
        %v1397 = vpop.permute.xlu0 %1396
        %1398 = vrot.lane.b32.xlu0 %v829, 32
        %v1399 = vpop.permute.xlu0 %1398
        %1400 = vrot.lane.b32.xlu0 %v830, 32
        %v1401 = vpop.permute.xlu0 %1400
        %1402 = vrot.lane.b32.xlu0 %v831, 32
        %v1403 = vpop.permute.xlu0 %1402
        %1404 = vrot.lane.b32.xlu0 %v832, 32
        %v1405 = vpop.permute.xlu0 %1404
        %1406 = vrot.lane.b32.xlu0 %v833, 32
        %v1407 = vpop.permute.xlu0 %1406
        %1408 = vrot.lane.b32.xlu0 %v834, 32
        %v1409 = vpop.permute.xlu0 %1408
        %1410 = vrot.lane.b32.xlu0 %v835, 32
        %v1411 = vpop.permute.xlu0 %1410
        %1412 = vrot.lane.b32.xlu0 %v836, 32
        %v1413 = vpop.permute.xlu0 %1412
        %1478 = vrot.lane.b32.xlu0 %v838, 64
        %v1479 = vpop.permute.xlu0 %1478
        %1480 = vrot.lane.b32.xlu0 %v839, 64
        %v1481 = vpop.permute.xlu0 %1480
        %1482 = vrot.lane.b32.xlu0 %v840, 64
        %v1483 = vpop.permute.xlu0 %1482
        %1484 = vrot.lane.b32.xlu0 %v841, 64
        %v1485 = vpop.permute.xlu0 %1484
        %1486 = vrot.lane.b32.xlu0 %v842, 64
        %v1487 = vpop.permute.xlu0 %1486
        %1488 = vrot.lane.b32.xlu0 %v843, 64
        %v1489 = vpop.permute.xlu0 %1488
        %1490 = vrot.lane.b32.xlu0 %v844, 64
        %v1491 = vpop.permute.xlu0 %1490
        %1492 = vrot.lane.b32.xlu0 %v845, 64
        %v1493 = vpop.permute.xlu0 %1492
        %1494 = vrot.lane.b32.xlu0 %v846, 64
        %v1495 = vpop.permute.xlu0 %1494
        %1496 = vrot.lane.b32.xlu0 %v847, 64
        %v1497 = vpop.permute.xlu0 %1496
        %1498 = vrot.lane.b32.xlu0 %v848, 64
        %v1499 = vpop.permute.xlu0 %1498
        %1500 = vrot.lane.b32.xlu0 %v849, 64
        %v1501 = vpop.permute.xlu0 %1500
        %1502 = vrot.lane.b32.xlu0 %v850, 64
        %v1503 = vpop.permute.xlu0 %1502
        %1504 = vrot.lane.b32.xlu0 %v851, 64
        %v1505 = vpop.permute.xlu0 %1504
        %1506 = vrot.lane.b32.xlu0 %v852, 64
        %v1507 = vpop.permute.xlu0 %1506
        %1508 = vrot.lane.b32.xlu0 %v853, 64
        %v1509 = vpop.permute.xlu0 %1508
        %1510 = vrot.lane.b32.xlu0 %v854, 64
        %v1511 = vpop.permute.xlu0 %1510
        %1512 = vrot.lane.b32.xlu0 %v855, 64
        %v1513 = vpop.permute.xlu0 %1512
        %1514 = vrot.lane.b32.xlu0 %v856, 64
        %v1515 = vpop.permute.xlu0 %1514
        %1516 = vrot.lane.b32.xlu0 %v857, 64
        %v1517 = vpop.permute.xlu0 %1516
        %1518 = vrot.lane.b32.xlu0 %v858, 64
        %v1519 = vpop.permute.xlu0 %1518
        %1520 = vrot.lane.b32.xlu0 %v859, 64
        %v1521 = vpop.permute.xlu0 %1520
        %1522 = vrot.lane.b32.xlu0 %v860, 64
        %v1523 = vpop.permute.xlu0 %1522
        %1524 = vrot.lane.b32.xlu0 %v861, 64
        %v1525 = vpop.permute.xlu0 %1524
        %1526 = vrot.lane.b32.xlu0 %v862, 64
        %v1527 = vpop.permute.xlu0 %1526
        %1528 = vrot.lane.b32.xlu0 %v863, 64
        %v1529 = vpop.permute.xlu0 %1528
        %1530 = vrot.lane.b32.xlu0 %v864, 64
        %v1531 = vpop.permute.xlu0 %1530
        %1532 = vrot.lane.b32.xlu0 %v865, 64
        %v1533 = vpop.permute.xlu0 %1532
        %1534 = vrot.lane.b32.xlu0 %v866, 64
        %v1535 = vpop.permute.xlu0 %1534
        %1536 = vrot.lane.b32.xlu0 %v867, 64
        %v1537 = vpop.permute.xlu0 %1536
        %1538 = vrot.lane.b32.xlu0 %v868, 64
        %v1539 = vpop.permute.xlu0 %1538
        %1540 = vrot.lane.b32.xlu0 %v869, 64
        %v1541 = vpop.permute.xlu0 %1540
        %1606 = vrot.lane.b32.xlu0 %v870, 96
        %v1607 = vpop.permute.xlu0 %1606
        %1608 = vrot.lane.b32.xlu0 %v871, 96
        %v1609 = vpop.permute.xlu0 %1608
        %1610 = vrot.lane.b32.xlu0 %v872, 96
        %v1611 = vpop.permute.xlu0 %1610
        %1612 = vrot.lane.b32.xlu0 %v873, 96
        %v1613 = vpop.permute.xlu0 %1612
        %1614 = vrot.lane.b32.xlu0 %v874, 96
        %v1615 = vpop.permute.xlu0 %1614
        %1616 = vrot.lane.b32.xlu0 %v875, 96
        %v1617 = vpop.permute.xlu0 %1616
        %1618 = vrot.lane.b32.xlu0 %v876, 96
        %v1619 = vpop.permute.xlu0 %1618
        %1620 = vrot.lane.b32.xlu0 %v877, 96
        %v1621 = vpop.permute.xlu0 %1620
        %1622 = vrot.lane.b32.xlu0 %v878, 96
        %v1623 = vpop.permute.xlu0 %1622
        %1624 = vrot.lane.b32.xlu0 %v879, 96
        %v1625 = vpop.permute.xlu0 %1624
        %1626 = vrot.lane.b32.xlu0 %v880, 96
        %v1627 = vpop.permute.xlu0 %1626
        %1628 = vrot.lane.b32.xlu0 %v881, 96
        %v1629 = vpop.permute.xlu0 %1628
        %1630 = vrot.lane.b32.xlu0 %v882, 96
        %v1631 = vpop.permute.xlu0 %1630
        %1632 = vrot.lane.b32.xlu0 %v883, 96
        %v1633 = vpop.permute.xlu0 %1632
        %1634 = vrot.lane.b32.xlu0 %v884, 96
        %v1635 = vpop.permute.xlu0 %1634
        %1636 = vrot.lane.b32.xlu0 %v885, 96
        %v1637 = vpop.permute.xlu0 %1636
        %1638 = vrot.lane.b32.xlu0 %v886, 96
        %v1639 = vpop.permute.xlu0 %1638
        %1640 = vrot.lane.b32.xlu0 %v887, 96
        %v1641 = vpop.permute.xlu0 %1640
        %1642 = vrot.lane.b32.xlu0 %v888, 96
        %v1643 = vpop.permute.xlu0 %1642
        %1644 = vrot.lane.b32.xlu0 %v889, 96
        %v1645 = vpop.permute.xlu0 %1644
        %1646 = vrot.lane.b32.xlu0 %v890, 96
        %v1647 = vpop.permute.xlu0 %1646
        %1648 = vrot.lane.b32.xlu0 %v891, 96
        %v1649 = vpop.permute.xlu0 %1648
        %1650 = vrot.lane.b32.xlu0 %v892, 96
        %v1651 = vpop.permute.xlu0 %1650
        %1652 = vrot.lane.b32.xlu0 %v893, 96
        %v1653 = vpop.permute.xlu0 %1652
        %1654 = vrot.lane.b32.xlu0 %v894, 96
        %v1655 = vpop.permute.xlu0 %1654
        %1656 = vrot.lane.b32.xlu0 %v895, 96
        %v1657 = vpop.permute.xlu0 %1656
        %1658 = vrot.lane.b32.xlu0 %v896, 96
        %v1659 = vpop.permute.xlu0 %1658
        %1660 = vrot.lane.b32.xlu0 %v897, 96
        %v1661 = vpop.permute.xlu0 %1660
        %1662 = vrot.lane.b32.xlu0 %v898, 96
        %v1663 = vpop.permute.xlu0 %1662
        %1664 = vrot.lane.b32.xlu0 %v899, 96
        %v1665 = vpop.permute.xlu0 %1664
        %1666 = vrot.lane.b32.xlu0 %v900, 96
        %v1667 = vpop.permute.xlu0 %1666
        %1668 = vrot.lane.b32.xlu0 %v901, 96
        %v1669 = vpop.permute.xlu0 %1668
        %v1702 = vsel %vm470, %v645, %v967
        %v1703 = vsel %vm470, %v646, %v969
        %v1704 = vsel %vm470, %v647, %v971
        %v1705 = vsel %vm470, %v648, %v973
        %v1706 = vsel %vm470, %v649, %v975
        %v1707 = vsel %vm470, %v650, %v977
        %v1708 = vsel %vm470, %v651, %v979
        %v1709 = vsel %vm470, %v652, %v981
        %v1710 = vsel %vm470, %v653, %v983
        %v1711 = vsel %vm470, %v654, %v985
        %v1712 = vsel %vm470, %v655, %v987
        %v1713 = vsel %vm470, %v656, %v989
        %v1714 = vsel %vm470, %v657, %v991
        %v1715 = vsel %vm470, %v658, %v993
        %v1716 = vsel %vm470, %v659, %v995
        %v1717 = vsel %vm470, %v660, %v997
        %v1718 = vsel %vm470, %v661, %v999
        %v1719 = vsel %vm470, %v662, %v1001
        %v1720 = vsel %vm470, %v663, %v1003
        %v1721 = vsel %vm470, %v664, %v1005
        %v1722 = vsel %vm470, %v665, %v1007
        %v1723 = vsel %vm470, %v666, %v1009
        %v1724 = vsel %vm470, %v667, %v1011
        %v1725 = vsel %vm470, %v668, %v1013
        %v1726 = vsel %vm470, %v669, %v1015
        %v1727 = vsel %vm470, %v670, %v1017
        %v1728 = vsel %vm470, %v671, %v1019
        %v1729 = vsel %vm470, %v672, %v1021
        %v1730 = vsel %vm470, %v673, %v1023
        %v1731 = vsel %vm470, %v674, %v1025
        %v1732 = vsel %vm470, %v675, %v1027
        %v1733 = vsel %vm470, %v676, %v1029
        %vm1734 = vcmask 523264
        %v1735 = vsel %vm1734, %v1702, %v1095
        %v1736 = vsel %vm1734, %v1703, %v1097
        %v1737 = vsel %vm1734, %v1704, %v1099
        %v1738 = vsel %vm1734, %v1705, %v1101
        %v1739 = vsel %vm1734, %v1706, %v1103
        %v1740 = vsel %vm1734, %v1707, %v1105
        %v1741 = vsel %vm1734, %v1708, %v1107
        %v1742 = vsel %vm1734, %v1709, %v1109
        %v1743 = vsel %vm1734, %v1710, %v1111
        %v1744 = vsel %vm1734, %v1711, %v1113
        %v1745 = vsel %vm1734, %v1712, %v1115
        %v1746 = vsel %vm1734, %v1713, %v1117
        %v1747 = vsel %vm1734, %v1714, %v1119
        %v1748 = vsel %vm1734, %v1715, %v1121
        %v1749 = vsel %vm1734, %v1716, %v1123
        %v1750 = vsel %vm1734, %v1717, %v1125
        %v1751 = vsel %vm1734, %v1718, %v1127
        %v1752 = vsel %vm1734, %v1719, %v1129
        %v1753 = vsel %vm1734, %v1720, %v1131
        %v1754 = vsel %vm1734, %v1721, %v1133
        %v1755 = vsel %vm1734, %v1722, %v1135
        %v1756 = vsel %vm1734, %v1723, %v1137
        %v1757 = vsel %vm1734, %v1724, %v1139
        %v1758 = vsel %vm1734, %v1725, %v1141
        %v1759 = vsel %vm1734, %v1726, %v1143
        %v1760 = vsel %vm1734, %v1727, %v1145
        %v1761 = vsel %vm1734, %v1728, %v1147
        %v1762 = vsel %vm1734, %v1729, %v1149
        %v1763 = vsel %vm1734, %v1730, %v1151
        %v1764 = vsel %vm1734, %v1731, %v1153
        %v1765 = vsel %vm1734, %v1732, %v1155
        %v1766 = vsel %vm1734, %v1733, %v1157
        %vm1767 = vcmask 785408
        %v1768 = vsel %vm1767, %v1735, %v1223
        %v1769 = vsel %vm1767, %v1736, %v1225
        %v1770 = vsel %vm1767, %v1737, %v1227
        %v1771 = vsel %vm1767, %v1738, %v1229
        %v1772 = vsel %vm1767, %v1739, %v1231
        %v1773 = vsel %vm1767, %v1740, %v1233
        %v1774 = vsel %vm1767, %v1741, %v1235
        %v1775 = vsel %vm1767, %v1742, %v1237
        %v1776 = vsel %vm1767, %v1743, %v1239
        %v1777 = vsel %vm1767, %v1744, %v1241
        %v1778 = vsel %vm1767, %v1745, %v1243
        %v1779 = vsel %vm1767, %v1746, %v1245
        %v1780 = vsel %vm1767, %v1747, %v1247
        %v1781 = vsel %vm1767, %v1748, %v1249
        %v1782 = vsel %vm1767, %v1749, %v1251
        %v1783 = vsel %vm1767, %v1750, %v1253
        %v1784 = vsel %vm1767, %v1751, %v1255
        %v1785 = vsel %vm1767, %v1752, %v1257
        %v1786 = vsel %vm1767, %v1753, %v1259
        %v1787 = vsel %vm1767, %v1754, %v1261
        %v1788 = vsel %vm1767, %v1755, %v1263
        %v1789 = vsel %vm1767, %v1756, %v1265
        %v1790 = vsel %vm1767, %v1757, %v1267
        %v1791 = vsel %vm1767, %v1758, %v1269
        %v1792 = vsel %vm1767, %v1759, %v1271
        %v1793 = vsel %vm1767, %v1760, %v1273
        %v1794 = vsel %vm1767, %v1761, %v1275
        %v1795 = vsel %vm1767, %v1762, %v1277
        %v1796 = vsel %vm1767, %v1763, %v1279
        %v1797 = vsel %vm1767, %v1764, %v1281
        %v1798 = vsel %vm1767, %v1765, %v1283
        %v1799 = vsel %vm1767, %v1766, %v1285
        %v1800 = vsel %vm470, %v773, %v1351
        %v1801 = vsel %vm470, %v774, %v1353
        %v1802 = vsel %vm470, %v775, %v1355
        %v1803 = vsel %vm470, %v776, %v1357
        %v1804 = vsel %vm470, %v777, %v1359
        %v1805 = vsel %vm470, %v778, %v1361
        %v1806 = vsel %vm470, %v779, %v1363
        %v1807 = vsel %vm470, %v780, %v1365
        %v1808 = vsel %vm470, %v781, %v1367
        %v1809 = vsel %vm470, %v782, %v1369
        %v1810 = vsel %vm470, %v783, %v1371
        %v1811 = vsel %vm470, %v784, %v1373
        %v1812 = vsel %vm470, %v785, %v1375
        %v1813 = vsel %vm470, %v786, %v1377
        %v1814 = vsel %vm470, %v787, %v1379
        %v1815 = vsel %vm470, %v788, %v1381
        %v1816 = vsel %vm470, %v789, %v1383
        %v1817 = vsel %vm470, %v790, %v1385
        %v1818 = vsel %vm470, %v791, %v1387
        %v1819 = vsel %vm470, %v792, %v1389
        %v1820 = vsel %vm470, %v793, %v1391
        %v1821 = vsel %vm470, %v794, %v1393
        %v1822 = vsel %vm470, %v795, %v1395
        %v1823 = vsel %vm470, %v796, %v1397
        %v1824 = vsel %vm470, %v797, %v1399
        %v1825 = vsel %vm470, %v798, %v1401
        %v1826 = vsel %vm470, %v799, %v1403
        %v1827 = vsel %vm470, %v800, %v1405
        %v1828 = vsel %vm470, %v801, %v1407
        %v1829 = vsel %vm470, %v802, %v1409
        %v1830 = vsel %vm470, %v803, %v1411
        %v1831 = vsel %vm470, %v804, %v1413
        %v1832 = vsel %vm1734, %v1800, %v1479
        %v1833 = vsel %vm1734, %v1801, %v1481
        %v1834 = vsel %vm1734, %v1802, %v1483
        %v1835 = vsel %vm1734, %v1803, %v1485
        %v1836 = vsel %vm1734, %v1804, %v1487
        %v1837 = vsel %vm1734, %v1805, %v1489
        %v1838 = vsel %vm1734, %v1806, %v1491
        %v1839 = vsel %vm1734, %v1807, %v1493
        %v1840 = vsel %vm1734, %v1808, %v1495
        %v1841 = vsel %vm1734, %v1809, %v1497
        %v1842 = vsel %vm1734, %v1810, %v1499
        %v1843 = vsel %vm1734, %v1811, %v1501
        %v1844 = vsel %vm1734, %v1812, %v1503
        %v1845 = vsel %vm1734, %v1813, %v1505
        %v1846 = vsel %vm1734, %v1814, %v1507
        %v1847 = vsel %vm1734, %v1815, %v1509
        %v1848 = vsel %vm1734, %v1816, %v1511
        %v1849 = vsel %vm1734, %v1817, %v1513
        %v1850 = vsel %vm1734, %v1818, %v1515
        %v1851 = vsel %vm1734, %v1819, %v1517
        %v1852 = vsel %vm1734, %v1820, %v1519
        %v1853 = vsel %vm1734, %v1821, %v1521
        %v1854 = vsel %vm1734, %v1822, %v1523
        %v1855 = vsel %vm1734, %v1823, %v1525
        %v1856 = vsel %vm1734, %v1824, %v1527
        %v1857 = vsel %vm1734, %v1825, %v1529
        %v1858 = vsel %vm1734, %v1826, %v1531
        %v1859 = vsel %vm1734, %v1827, %v1533
        %v1860 = vsel %vm1734, %v1828, %v1535
        %v1861 = vsel %vm1734, %v1829, %v1537
        %v1862 = vsel %vm1734, %v1830, %v1539
        %v1863 = vsel %vm1734, %v1831, %v1541
        %v1864 = vsel %vm1767, %v1832, %v1607
        %v1865 = vsel %vm1767, %v1833, %v1609
        %v1866 = vsel %vm1767, %v1834, %v1611
        %v1867 = vsel %vm1767, %v1835, %v1613
        %v1868 = vsel %vm1767, %v1836, %v1615
        %v1869 = vsel %vm1767, %v1837, %v1617
        %v1870 = vsel %vm1767, %v1838, %v1619
        %v1871 = vsel %vm1767, %v1839, %v1621
        %v1872 = vsel %vm1767, %v1840, %v1623
        %v1873 = vsel %vm1767, %v1841, %v1625
        %v1874 = vsel %vm1767, %v1842, %v1627
        %v1875 = vsel %vm1767, %v1843, %v1629
        %v1876 = vsel %vm1767, %v1844, %v1631
        %v1877 = vsel %vm1767, %v1845, %v1633
        %v1878 = vsel %vm1767, %v1846, %v1635
        %v1879 = vsel %vm1767, %v1847, %v1637
        %v1880 = vsel %vm1767, %v1848, %v1639
        %v1881 = vsel %vm1767, %v1849, %v1641
        %v1882 = vsel %vm1767, %v1850, %v1643
        %v1883 = vsel %vm1767, %v1851, %v1645
        %v1884 = vsel %vm1767, %v1852, %v1647
        %v1885 = vsel %vm1767, %v1853, %v1649
        %v1886 = vsel %vm1767, %v1854, %v1651
        %v1887 = vsel %vm1767, %v1855, %v1653
        %v1888 = vsel %vm1767, %v1856, %v1655
        %v1889 = vsel %vm1767, %v1857, %v1657
        %v1890 = vsel %vm1767, %v1858, %v1659
        %v1891 = vsel %vm1767, %v1859, %v1661
        %v1892 = vsel %vm1767, %v1860, %v1663
        %v1893 = vsel %vm1767, %v1861, %v1665
        %v1894 = vsel %vm1767, %v1862, %v1667
        %v1895 = vsel %vm1767, %v1863, %v1669
        %v1896 = vpack.c.bf16 %v1769, %v1768
        %v1897 = vpack.c.bf16 %v1865, %v1864
        %v1898 = vpack.c.bf16 %v903, %v902
        %v1899 = vpack.c.bf16 %v1771, %v1770
        %v1900 = vpack.c.bf16 %v1867, %v1866
        %v1901 = vpack.c.bf16 %v905, %v904
        %v1902 = vpack.c.bf16 %v1773, %v1772
        %v1903 = vpack.c.bf16 %v1869, %v1868
        %v1904 = vpack.c.bf16 %v907, %v906
        %v1905 = vpack.c.bf16 %v1775, %v1774
        %v1906 = vpack.c.bf16 %v1871, %v1870
        %v1907 = vpack.c.bf16 %v909, %v908
        %v1908 = vpack.c.bf16 %v1777, %v1776
        %v1909 = vpack.c.bf16 %v1873, %v1872
        %v1910 = vpack.c.bf16 %v911, %v910
        %v1911 = vpack.c.bf16 %v1779, %v1778
        %v1912 = vpack.c.bf16 %v1875, %v1874
        %v1913 = vpack.c.bf16 %v913, %v912
        %v1914 = vpack.c.bf16 %v1781, %v1780
        %v1915 = vpack.c.bf16 %v1877, %v1876
        %v1916 = vpack.c.bf16 %v915, %v914
        %v1917 = vpack.c.bf16 %v1783, %v1782
        %v1918 = vpack.c.bf16 %v1879, %v1878
        %v1919 = vpack.c.bf16 %v917, %v916
        %v1920 = vpack.c.bf16 %v1785, %v1784
        %v1921 = vpack.c.bf16 %v1881, %v1880
        %v1922 = vpack.c.bf16 %v919, %v918
        %v1923 = vpack.c.bf16 %v1787, %v1786
        %v1924 = vpack.c.bf16 %v1883, %v1882
        %v1925 = vpack.c.bf16 %v921, %v920
        %v1926 = vpack.c.bf16 %v1789, %v1788
        %v1927 = vpack.c.bf16 %v1885, %v1884
        %v1928 = vpack.c.bf16 %v923, %v922
        %v1929 = vpack.c.bf16 %v1791, %v1790
        %v1930 = vpack.c.bf16 %v1887, %v1886
        %v1931 = vpack.c.bf16 %v925, %v924
        %v1932 = vpack.c.bf16 %v1793, %v1792
        %v1933 = vpack.c.bf16 %v1889, %v1888
        %v1934 = vpack.c.bf16 %v927, %v926
        %v1935 = vpack.c.bf16 %v1795, %v1794
        %v1936 = vpack.c.bf16 %v1891, %v1890
        %v1937 = vpack.c.bf16 %v929, %v928
        %v1938 = vpack.c.bf16 %v1797, %v1796
        %v1939 = vpack.c.bf16 %v1893, %v1892
        %v1940 = vpack.c.bf16 %v931, %v930
        %v1941 = vpack.c.bf16 %v1799, %v1798
        %v1942 = vpack.c.bf16 %v1895, %v1894
        %v1943 = vpack.c.bf16 %v933, %v932
        %v1944 = vld [vmem:[%s1] sm:$0xf]
        %v1945 = vld [vmem:[%s1 + $0x4] sm:$0xf]
        %v1946 = vld [vmem:[%s1 + $0x8] sm:$0xf]
        %v1947 = vld [vmem:[%s1 + $0xc] sm:$0xf]
        %v1948 = vld [vmem:[%s1 + $0x10] sm:$0xf]
        %v1949 = vld [vmem:[%s1 + $0x14] sm:$0xf]
        %v1950 = vld [vmem:[%s1 + $0x18] sm:$0xf]
        %v1951 = vld [vmem:[%s1 + $0x1c] sm:$0xf]
        %v1952 = vld [vmem:[%s1 + $0x20] sm:$0xf]
        %v1953 = vld [vmem:[%s1 + $0x24] sm:$0xf]
        %v1954 = vld [vmem:[%s1 + $0x28] sm:$0xf]
        %v1955 = vld [vmem:[%s1 + $0x2c] sm:$0xf]
        %v1956 = vld [vmem:[%s1 + $0x30] sm:$0xf]
        %v1957 = vld [vmem:[%s1 + $0x34] sm:$0xf]
        %v1958 = vld [vmem:[%s1 + $0x38] sm:$0xf]
        %v1959 = vld [vmem:[%s1 + $0x3c] sm:$0xf]
        %v1960 = vld [vmem:[%s1 + $0x40] sm:$0xf]
        %v1961 = vld [vmem:[%s1 + $0x44] sm:$0xf]
        %v1962 = vld [vmem:[%s1 + $0x48] sm:$0xf]
        %v1963 = vld [vmem:[%s1 + $0x4c] sm:$0xf]
        %v1964 = vld [vmem:[%s1 + $0x50] sm:$0xf]
        %v1965 = vld [vmem:[%s1 + $0x54] sm:$0xf]
        %v1966 = vld [vmem:[%s1 + $0x58] sm:$0xf]
        %v1967 = vld [vmem:[%s1 + $0x5c] sm:$0xf]
        %v1968 = vld [vmem:[%s1 + $0x60] sm:$0xf]
        %v1969 = vld [vmem:[%s1 + $0x64] sm:$0xf]
        %v1970 = vld [vmem:[%s1 + $0x68] sm:$0xf]
        %v1971 = vld [vmem:[%s1 + $0x6c] sm:$0xf]
        %v1972 = vld [vmem:[%s1 + $0x70] sm:$0xf]
        %v1973 = vld [vmem:[%s1 + $0x74] sm:$0xf]
        %v1974 = vld [vmem:[%s1 + $0x78] sm:$0xf]
        %v1975 = vld [vmem:[%s1 + $0x7c] sm:$0xf]
        %v1976 = vld [vmem:[%s1 + $0x80] sm:$0xf]
        %v1977 = vld [vmem:[%s1 + $0x84] sm:$0xf]
        %v1978 = vld [vmem:[%s1 + $0x88] sm:$0xf]
        %v1979 = vld [vmem:[%s1 + $0x8c] sm:$0xf]
        %v2016 = vunpack.c.l.b16 %v1944
        %v2017 = vunpack.c.l.b16 %v1945
        %v2018 = vunpack.c.l.b16 %v1946
        %v2019 = vunpack.c.l.b16 %v1947
        %v2020 = vunpack.c.l.b16 %v1948
        %v2021 = vunpack.c.l.b16 %v1949
        %v2022 = vunpack.c.l.b16 %v1950
        %v2023 = vunpack.c.l.b16 %v1951
        %v2024 = vunpack.c.l.b16 %v1952
        %v2025 = vunpack.c.l.b16 %v1953
        %v2026 = vunpack.c.l.b16 %v1954
        %v2027 = vunpack.c.l.b16 %v1955
        %v2028 = vunpack.c.l.b16 %v1956
        %v2029 = vunpack.c.l.b16 %v1957
        %v2030 = vunpack.c.l.b16 %v1958
        %v2031 = vunpack.c.l.b16 %v1959
        %v2032 = vunpack.c.l.b16 %v1960
        %v2033 = vunpack.c.l.b16 %v1961
        %v2034 = vunpack.c.l.b16 %v1962
        %v2035 = vunpack.c.l.b16 %v1963
        %v2036 = vunpack.c.l.b16 %v1964
        %v2037 = vunpack.c.l.b16 %v1965
        %v2038 = vunpack.c.l.b16 %v1966
        %v2039 = vunpack.c.l.b16 %v1967
        %v2040 = vunpack.c.l.b16 %v1968
        %v2041 = vunpack.c.l.b16 %v1969
        %v2042 = vunpack.c.l.b16 %v1970
        %v2043 = vunpack.c.l.b16 %v1971
        %v2044 = vunpack.c.l.b16 %v1972
        %v2045 = vunpack.c.l.b16 %v1973
        %v2046 = vunpack.c.l.b16 %v1974
        %v2047 = vunpack.c.l.b16 %v1975
        %v2048 = vunpack.c.l.b16 %v1976
        %v2049 = vunpack.c.l.b16 %v1977
        %v2050 = vunpack.c.l.b16 %v1978
        %v2051 = vunpack.c.l.b16 %v1979
        %v2052 = vpack.c.b16 %v2017, %v2016
        %v2053 = vpack.c.b16 %v2019, %v2018
        %v2054 = vpack.c.b16 %v2021, %v2020
        %v2055 = vpack.c.b16 %v2023, %v2022
        %v2056 = vpack.c.b16 %v2025, %v2024
        %v2057 = vpack.c.b16 %v2027, %v2026
        %v2058 = vpack.c.b16 %v2029, %v2028
        %v2059 = vpack.c.b16 %v2031, %v2030
        %v2060 = vpack.c.b16 %v2033, %v2032
        %v2061 = vpack.c.b16 %v2035, %v2034
        %v2062 = vpack.c.b16 %v2037, %v2036
        %v2063 = vpack.c.b16 %v2039, %v2038
        %v2064 = vpack.c.b16 %v2041, %v2040
        %v2065 = vpack.c.b16 %v2043, %v2042
        %v2066 = vpack.c.b16 %v2045, %v2044
        %v2067 = vpack.c.b16 %v2047, %v2046
        %v2068 = vpack.c.b16 %v2049, %v2048
        %v2069 = vpack.c.b16 %v2051, %v2050
        %v2089 = vsel %vm470, %v1898, 0
        %v2092 = vsel %vm470, %v1901, 0
        %v2095 = vsel %vm470, %v1904, 0
        %v2098 = vsel %vm470, %v1907, 0
        %v2101 = vsel %vm470, %v1910, 0
        %v2104 = vsel %vm470, %v1913, 0
        %v2107 = vsel %vm470, %v1916, 0
        %v2110 = vsel %vm470, %v1919, 0
        %v2113 = vsel %vm470, %v1922, 0
        %v2116 = vsel %vm470, %v1925, 0
        %v2119 = vsel %vm470, %v1928, 0
        %v2122 = vsel %vm470, %v1931, 0
        %v2125 = vsel %vm470, %v1934, 0
        %v2128 = vsel %vm470, %v1937, 0
        %v2131 = vsel %vm470, %v1940, 0
        %v2134 = vsel %vm470, %v1943, 0
        %2136 = vmatprep.subr.bf16.mxu0 0
        %2137 = vmatpush1.bf16.msra.mxu0 %v2059
        %2138 = vmatprep.subr.bf16.mxu0 0
        %2139 = vmatpush1.bf16.msra.mxu0 %v2058
        %2140 = vmatprep.subr.bf16.mxu0 0
        %2141 = vmatpush1.bf16.msra.mxu0 %v2057
        %2142 = vmatprep.subr.bf16.mxu0 0
        %2143 = vmatpush1.bf16.msra.mxu0 %v2056
        %2144 = vmatprep.subr.bf16.mxu0 0
        %2145 = vmatpush1.bf16.msra.mxu0 %v2055
        %2146 = vmatprep.subr.bf16.mxu0 0
        %2147 = vmatpush1.bf16.msra.mxu0 %v2054
        %2148 = vmatprep.subr.bf16.mxu0 0
        %2149 = vmatpush1.bf16.msra.mxu0 %v2053
        %2150 = vmatprep.subr.bf16.mxu0 0
        %2151 = vmatpush1.bf16.msra.mxu0 %v2052
        %2152 = vmatprep.subr.bf16.mxu0 0
        %2153 = vmatpush2.bf16.msra.mxu0 %v2067
        %2154 = vmatprep.subr.bf16.mxu0 0
        %2155 = vmatpush2.bf16.msra.mxu0 %v2066
        %2156 = vmatprep.subr.bf16.mxu0 0
        %2157 = vmatpush2.bf16.msra.mxu0 %v2065
        %2158 = vmatprep.subr.bf16.mxu0 0
        %2159 = vmatpush2.bf16.msra.mxu0 %v2064
        %2160 = vmatprep.subr.bf16.mxu0 0
        %2161 = vmatpush2.bf16.msra.mxu0 %v2063
        %2162 = vmatprep.subr.bf16.mxu0 0
        %2163 = vmatpush2.bf16.msra.mxu0 %v2062
        %2164 = vmatprep.subr.bf16.mxu0 0
        %2165 = vmatpush2.bf16.msra.mxu0 %v2061
        %2166 = vmatprep.subr.bf16.mxu0 0
        %2167 = vmatpush2.bf16.msra.mxu0 %v2060
        %2168 = vmatprep.mubr.bf16.mxu0 %v1897
        %2169 = vmatmul.mubr.bf16.gmra.mxu0 %v1896
        %v2170 = vpop.f32.mrf.mxu0
        %v2171 = vadd.f32 0.0, %v2170
        %v2172 = vpop.f32.mrf.mxu0
        %v2173 = vpop.f32.mrf.mxu0
        %v2174 = vadd.f32 0.0, %v2173
        %v2175 = vpop.f32.mrf.mxu0
        %2176 = vmatprep.mubr.bf16.mxu0 %v1900
        %2177 = vmatmul.mubr.bf16.gmra.mxu0 %v1899
        %v2178 = vpop.f32.mrf.mxu0
        %v2179 = vadd.f32 0.0, %v2178
        %v2180 = vpop.f32.mrf.mxu0
        %v2181 = vpop.f32.mrf.mxu0
        %v2182 = vadd.f32 0.0, %v2181
        %v2183 = vpop.f32.mrf.mxu0
        %2184 = vmatprep.mubr.bf16.mxu0 %v1903
        %2185 = vmatmul.mubr.bf16.gmra.mxu0 %v1902
        %v2186 = vpop.f32.mrf.mxu0
        %v2187 = vadd.f32 0.0, %v2186
        %v2188 = vpop.f32.mrf.mxu0
        %v2189 = vpop.f32.mrf.mxu0
        %v2190 = vadd.f32 0.0, %v2189
        %v2191 = vpop.f32.mrf.mxu0
        %2192 = vmatprep.mubr.bf16.mxu0 %v1906
        %2193 = vmatmul.mubr.bf16.gmra.mxu0 %v1905
        %v2194 = vpop.f32.mrf.mxu0
        %v2195 = vadd.f32 0.0, %v2194
        %v2196 = vpop.f32.mrf.mxu0
        %v2197 = vpop.f32.mrf.mxu0
        %v2198 = vadd.f32 0.0, %v2197
        %v2199 = vpop.f32.mrf.mxu0
        %2200 = vmatprep.mubr.bf16.mxu0 %v1909
        %2201 = vmatmul.mubr.bf16.gmra.mxu0 %v1908
        %v2202 = vpop.f32.mrf.mxu0
        %v2203 = vadd.f32 0.0, %v2202
        %v2204 = vpop.f32.mrf.mxu0
        %v2205 = vpop.f32.mrf.mxu0
        %v2206 = vadd.f32 0.0, %v2205
        %v2207 = vpop.f32.mrf.mxu0
        %2208 = vmatprep.mubr.bf16.mxu0 %v1912
        %2209 = vmatmul.mubr.bf16.gmra.mxu0 %v1911
        %v2210 = vpop.f32.mrf.mxu0
        %v2211 = vadd.f32 0.0, %v2210
        %v2212 = vpop.f32.mrf.mxu0
        %v2213 = vpop.f32.mrf.mxu0
        %v2214 = vadd.f32 0.0, %v2213
        %v2215 = vpop.f32.mrf.mxu0
        %2216 = vmatprep.mubr.bf16.mxu0 %v1915
        %2217 = vmatmul.mubr.bf16.gmra.mxu0 %v1914
        %v2218 = vpop.f32.mrf.mxu0
        %v2219 = vadd.f32 0.0, %v2218
        %v2220 = vpop.f32.mrf.mxu0
        %v2221 = vpop.f32.mrf.mxu0
        %v2222 = vadd.f32 0.0, %v2221
        %v2223 = vpop.f32.mrf.mxu0
        %2224 = vmatprep.mubr.bf16.mxu0 %v1918
        %2225 = vmatmul.mubr.bf16.gmra.mxu0 %v1917
        %v2226 = vpop.f32.mrf.mxu0
        %v2227 = vadd.f32 0.0, %v2226
        %v2228 = vpop.f32.mrf.mxu0
        %v2229 = vpop.f32.mrf.mxu0
        %v2230 = vadd.f32 0.0, %v2229
        %v2231 = vpop.f32.mrf.mxu0
        %2232 = vmatprep.mubr.bf16.mxu0 %v1921
        %2233 = vmatmul.mubr.bf16.gmra.mxu0 %v1920
        %v2234 = vpop.f32.mrf.mxu0
        %v2235 = vadd.f32 0.0, %v2234
        %v2236 = vpop.f32.mrf.mxu0
        %v2237 = vpop.f32.mrf.mxu0
        %v2238 = vadd.f32 0.0, %v2237
        %v2239 = vpop.f32.mrf.mxu0
        %2240 = vmatprep.mubr.bf16.mxu0 %v1924
        %2241 = vmatmul.mubr.bf16.gmra.mxu0 %v1923
        %v2242 = vpop.f32.mrf.mxu0
        %v2243 = vadd.f32 0.0, %v2242
        %v2244 = vpop.f32.mrf.mxu0
        %v2245 = vpop.f32.mrf.mxu0
        %v2246 = vadd.f32 0.0, %v2245
        %v2247 = vpop.f32.mrf.mxu0
        %2248 = vmatprep.mubr.bf16.mxu0 %v1927
        %2249 = vmatmul.mubr.bf16.gmra.mxu0 %v1926
        %v2250 = vpop.f32.mrf.mxu0
        %v2251 = vadd.f32 0.0, %v2250
        %v2252 = vpop.f32.mrf.mxu0
        %v2253 = vpop.f32.mrf.mxu0
        %v2254 = vadd.f32 0.0, %v2253
        %v2255 = vpop.f32.mrf.mxu0
        %2256 = vmatprep.mubr.bf16.mxu0 %v1930
        %2257 = vmatmul.mubr.bf16.gmra.mxu0 %v1929
        %v2258 = vpop.f32.mrf.mxu0
        %v2259 = vadd.f32 0.0, %v2258
        %v2260 = vpop.f32.mrf.mxu0
        %v2261 = vpop.f32.mrf.mxu0
        %v2262 = vadd.f32 0.0, %v2261
        %v2263 = vpop.f32.mrf.mxu0
        %2264 = vmatprep.mubr.bf16.mxu0 %v1933
        %2265 = vmatmul.mubr.bf16.gmra.mxu0 %v1932
        %v2266 = vpop.f32.mrf.mxu0
        %v2267 = vadd.f32 0.0, %v2266
        %v2268 = vpop.f32.mrf.mxu0
        %v2269 = vpop.f32.mrf.mxu0
        %v2270 = vadd.f32 0.0, %v2269
        %v2271 = vpop.f32.mrf.mxu0
        %2272 = vmatprep.mubr.bf16.mxu0 %v1936
        %2273 = vmatmul.mubr.bf16.gmra.mxu0 %v1935
        %v2274 = vpop.f32.mrf.mxu0
        %v2275 = vadd.f32 0.0, %v2274
        %v2276 = vpop.f32.mrf.mxu0
        %v2277 = vpop.f32.mrf.mxu0
        %v2278 = vadd.f32 0.0, %v2277
        %v2279 = vpop.f32.mrf.mxu0
        %2280 = vmatprep.mubr.bf16.mxu0 %v1939
        %2281 = vmatmul.mubr.bf16.gmra.mxu0 %v1938
        %v2282 = vpop.f32.mrf.mxu0
        %v2283 = vadd.f32 0.0, %v2282
        %v2284 = vpop.f32.mrf.mxu0
        %v2285 = vpop.f32.mrf.mxu0
        %v2286 = vadd.f32 0.0, %v2285
        %v2287 = vpop.f32.mrf.mxu0
        %2288 = vmatprep.mubr.bf16.mxu0 %v1942
        %2289 = vmatmul.mubr.bf16.gmra.mxu0 %v1941
        %v2290 = vpop.f32.mrf.mxu0
        %v2291 = vadd.f32 0.0, %v2290
        %v2292 = vpop.f32.mrf.mxu0
        %v2293 = vpop.f32.mrf.mxu0
        %v2294 = vadd.f32 0.0, %v2293
        %v2295 = vpop.f32.mrf.mxu0
        %2296 = vdwg.mxu0
        %2297 = vmatprep.subr.bf16.mxu0 0
        %2298 = vmatpush1.bf16.msra.mxu0 0
        %2299 = vmatprep.subr.bf16.mxu0 0
        %2300 = vmatpush1.bf16.msra.mxu0 0
        %2301 = vmatprep.subr.bf16.mxu0 0
        %2302 = vmatpush1.bf16.msra.mxu0 0
        %2303 = vmatprep.subr.bf16.mxu0 0
        %2304 = vmatpush1.bf16.msra.mxu0 0
        %2305 = vmatprep.subr.bf16.mxu0 0
        %2306 = vmatpush1.bf16.msra.mxu0 0
        %2307 = vmatprep.subr.bf16.mxu0 0
        %2308 = vmatpush1.bf16.msra.mxu0 0
        %2309 = vmatprep.subr.bf16.mxu0 0
        %2310 = vmatpush1.bf16.msra.mxu0 %v2069
        %2311 = vmatprep.subr.bf16.mxu0 0
        %2312 = vmatpush1.bf16.msra.mxu0 %v2068
        %2313 = vmatprep.subr.bf16.mxu0 0
        %2314 = vmatpush2.bf16.msra.mxu0 0
        %2315 = vmatprep.subr.bf16.mxu0 0
        %2316 = vmatpush2.bf16.msra.mxu0 0
        %2317 = vmatprep.subr.bf16.mxu0 0
        %2318 = vmatpush2.bf16.msra.mxu0 0
        %2319 = vmatprep.subr.bf16.mxu0 0
        %2320 = vmatpush2.bf16.msra.mxu0 0
        %2321 = vmatprep.subr.bf16.mxu0 0
        %2322 = vmatpush2.bf16.msra.mxu0 0
        %2323 = vmatprep.subr.bf16.mxu0 0
        %2324 = vmatpush2.bf16.msra.mxu0 0
        %2325 = vmatprep.subr.bf16.mxu0 0
        %2326 = vmatpush2.bf16.msra.mxu0 0
        %2327 = vmatprep.subr.bf16.mxu0 0
        %2328 = vmatpush2.bf16.msra.mxu0 0
        %2329 = vmatprep.mubr.bf16.mxu0 0
        %2330 = vmatmul.mubr.bf16.gmra.mxu0 %v2089
        %v2331 = vpop.f32.mrf.mxu0
        %v2332 = vadd.f32 %v2171, %v2331
        %v2333 = vpop.f32.mrf.mxu0
        %v2334 = vpop.f32.mrf.mxu0
        %v2335 = vadd.f32 %v2174, %v2334
        %v2336 = vpop.f32.mrf.mxu0
        %2337 = vmatprep.mubr.bf16.mxu0 0
        %2338 = vmatmul.mubr.bf16.gmra.mxu0 %v2092
        %v2339 = vpop.f32.mrf.mxu0
        %v2340 = vadd.f32 %v2179, %v2339
        %v2341 = vpop.f32.mrf.mxu0
        %v2342 = vpop.f32.mrf.mxu0
        %v2343 = vadd.f32 %v2182, %v2342
        %v2344 = vpop.f32.mrf.mxu0
        %2345 = vmatprep.mubr.bf16.mxu0 0
        %2346 = vmatmul.mubr.bf16.gmra.mxu0 %v2095
        %v2347 = vpop.f32.mrf.mxu0
        %v2348 = vadd.f32 %v2187, %v2347
        %v2349 = vpop.f32.mrf.mxu0
        %v2350 = vpop.f32.mrf.mxu0
        %v2351 = vadd.f32 %v2190, %v2350
        %v2352 = vpop.f32.mrf.mxu0
        %2353 = vmatprep.mubr.bf16.mxu0 0
        %2354 = vmatmul.mubr.bf16.gmra.mxu0 %v2098
        %v2355 = vpop.f32.mrf.mxu0
        %v2356 = vadd.f32 %v2195, %v2355
        %v2357 = vpop.f32.mrf.mxu0
        %v2358 = vpop.f32.mrf.mxu0
        %v2359 = vadd.f32 %v2198, %v2358
        %v2360 = vpop.f32.mrf.mxu0
        %2361 = vmatprep.mubr.bf16.mxu0 0
        %2362 = vmatmul.mubr.bf16.gmra.mxu0 %v2101
        %v2363 = vpop.f32.mrf.mxu0
        %v2364 = vadd.f32 %v2203, %v2363
        %v2365 = vpop.f32.mrf.mxu0
        %v2366 = vpop.f32.mrf.mxu0
        %v2367 = vadd.f32 %v2206, %v2366
        %v2368 = vpop.f32.mrf.mxu0
        %2369 = vmatprep.mubr.bf16.mxu0 0
        %2370 = vmatmul.mubr.bf16.gmra.mxu0 %v2104
        %v2371 = vpop.f32.mrf.mxu0
        %v2372 = vadd.f32 %v2211, %v2371
        %v2373 = vpop.f32.mrf.mxu0
        %v2374 = vpop.f32.mrf.mxu0
        %v2375 = vadd.f32 %v2214, %v2374
        %v2376 = vpop.f32.mrf.mxu0
        %2377 = vmatprep.mubr.bf16.mxu0 0
        %2378 = vmatmul.mubr.bf16.gmra.mxu0 %v2107
        %v2379 = vpop.f32.mrf.mxu0
        %v2380 = vadd.f32 %v2219, %v2379
        %v2381 = vpop.f32.mrf.mxu0
        %v2382 = vpop.f32.mrf.mxu0
        %v2383 = vadd.f32 %v2222, %v2382
        %v2384 = vpop.f32.mrf.mxu0
        %2385 = vmatprep.mubr.bf16.mxu0 0
        %2386 = vmatmul.mubr.bf16.gmra.mxu0 %v2110
        %v2387 = vpop.f32.mrf.mxu0
        %v2388 = vadd.f32 %v2227, %v2387
        %v2389 = vpop.f32.mrf.mxu0
        %v2390 = vpop.f32.mrf.mxu0
        %v2391 = vadd.f32 %v2230, %v2390
        %v2392 = vpop.f32.mrf.mxu0
        %2393 = vmatprep.mubr.bf16.mxu0 0
        %2394 = vmatmul.mubr.bf16.gmra.mxu0 %v2113
        %v2395 = vpop.f32.mrf.mxu0
        %v2396 = vadd.f32 %v2235, %v2395
        %v2397 = vpop.f32.mrf.mxu0
        %v2398 = vpop.f32.mrf.mxu0
        %v2399 = vadd.f32 %v2238, %v2398
        %v2400 = vpop.f32.mrf.mxu0
        %2401 = vmatprep.mubr.bf16.mxu0 0
        %2402 = vmatmul.mubr.bf16.gmra.mxu0 %v2116
        %v2403 = vpop.f32.mrf.mxu0
        %v2404 = vadd.f32 %v2243, %v2403
        %v2405 = vpop.f32.mrf.mxu0
        %v2406 = vpop.f32.mrf.mxu0
        %v2407 = vadd.f32 %v2246, %v2406
        %v2408 = vpop.f32.mrf.mxu0
        %2409 = vmatprep.mubr.bf16.mxu0 0
        %2410 = vmatmul.mubr.bf16.gmra.mxu0 %v2119
        %v2411 = vpop.f32.mrf.mxu0
        %v2412 = vadd.f32 %v2251, %v2411
        %v2413 = vpop.f32.mrf.mxu0
        %v2414 = vpop.f32.mrf.mxu0
        %v2415 = vadd.f32 %v2254, %v2414
        %v2416 = vpop.f32.mrf.mxu0
        %2417 = vmatprep.mubr.bf16.mxu0 0
        %2418 = vmatmul.mubr.bf16.gmra.mxu0 %v2122
        %v2419 = vpop.f32.mrf.mxu0
        %v2420 = vadd.f32 %v2259, %v2419
        %v2421 = vpop.f32.mrf.mxu0
        %v2422 = vpop.f32.mrf.mxu0
        %v2423 = vadd.f32 %v2262, %v2422
        %v2424 = vpop.f32.mrf.mxu0
        %2425 = vmatprep.mubr.bf16.mxu0 0
        %2426 = vmatmul.mubr.bf16.gmra.mxu0 %v2125
        %v2427 = vpop.f32.mrf.mxu0
        %v2428 = vadd.f32 %v2267, %v2427
        %v2429 = vpop.f32.mrf.mxu0
        %v2430 = vpop.f32.mrf.mxu0
        %v2431 = vadd.f32 %v2270, %v2430
        %v2432 = vpop.f32.mrf.mxu0
        %2433 = vmatprep.mubr.bf16.mxu0 0
        %2434 = vmatmul.mubr.bf16.gmra.mxu0 %v2128
        %v2435 = vpop.f32.mrf.mxu0
        %v2436 = vadd.f32 %v2275, %v2435
        %v2437 = vpop.f32.mrf.mxu0
        %v2438 = vpop.f32.mrf.mxu0
        %v2439 = vadd.f32 %v2278, %v2438
        %v2440 = vpop.f32.mrf.mxu0
        %2441 = vmatprep.mubr.bf16.mxu0 0
        %2442 = vmatmul.mubr.bf16.gmra.mxu0 %v2131
        %v2443 = vpop.f32.mrf.mxu0
        %v2444 = vadd.f32 %v2283, %v2443
        %v2445 = vpop.f32.mrf.mxu0
        %v2446 = vpop.f32.mrf.mxu0
        %v2447 = vadd.f32 %v2286, %v2446
        %v2448 = vpop.f32.mrf.mxu0
        %2449 = vmatprep.mubr.bf16.mxu0 0
        %2450 = vmatmul.mubr.bf16.gmra.mxu0 %v2134
        %v2451 = vpop.f32.mrf.mxu0
        %v2452 = vadd.f32 %v2291, %v2451
        %v2453 = vpop.f32.mrf.mxu0
        %v2454 = vpop.f32.mrf.mxu0
        %v2455 = vadd.f32 %v2294, %v2454
        %v2456 = vpop.f32.mrf.mxu0
        %2457 = vdwg.mxu0
        %v2458 = vsel %vm470, %v2332, 0.0
        %v2459 = vsel %vm470, %v2340, 0.0
        %v2460 = vadd.f32 %v2458, %v2459
        %v2461 = vsel %vm470, %v2348, 0.0
        %v2462 = vadd.f32 %v2460, %v2461
        %v2463 = vsel %vm470, %v2356, 0.0
        %v2464 = vadd.f32 %v2462, %v2463
        %v2465 = vsel %vm470, %v2364, 0.0
        %v2466 = vadd.f32 %v2464, %v2465
        %v2467 = vsel %vm470, %v2372, 0.0
        %v2468 = vadd.f32 %v2466, %v2467
        %v2469 = vsel %vm470, %v2380, 0.0
        %v2470 = vadd.f32 %v2468, %v2469
        %v2471 = vsel %vm470, %v2388, 0.0
        %v2472 = vadd.f32 %v2470, %v2471
        %v2473 = vsel %vm470, %v2396, 0.0
        %v2474 = vadd.f32 %v2472, %v2473
        %v2475 = vsel %vm470, %v2404, 0.0
        %v2476 = vadd.f32 %v2474, %v2475
        %v2477 = vsel %vm470, %v2412, 0.0
        %v2478 = vadd.f32 %v2476, %v2477
        %v2479 = vsel %vm470, %v2420, 0.0
        %v2480 = vadd.f32 %v2478, %v2479
        %v2481 = vsel %vm470, %v2428, 0.0
        %v2482 = vadd.f32 %v2480, %v2481
        %v2483 = vsel %vm470, %v2436, 0.0
        %v2484 = vadd.f32 %v2482, %v2483
        %v2485 = vsel %vm470, %v2444, 0.0
        %v2486 = vadd.f32 %v2484, %v2485
        %v2487 = vsel %vm470, %v2452, 0.0
        %v2488 = vadd.f32 %v2486, %v2487
        %v2489 = vsel %vm470, %v2335, 0.0
        %v2490 = vsel %vm470, %v2343, 0.0
        %v2491 = vadd.f32 %v2489, %v2490
        %v2492 = vsel %vm470, %v2351, 0.0
        %v2493 = vadd.f32 %v2491, %v2492
        %v2494 = vsel %vm470, %v2359, 0.0
        %v2495 = vadd.f32 %v2493, %v2494
        %v2496 = vsel %vm470, %v2367, 0.0
        %v2497 = vadd.f32 %v2495, %v2496
        %v2498 = vsel %vm470, %v2375, 0.0
        %v2499 = vadd.f32 %v2497, %v2498
        %v2500 = vsel %vm470, %v2383, 0.0
        %v2501 = vadd.f32 %v2499, %v2500
        %v2502 = vsel %vm470, %v2391, 0.0
        %v2503 = vadd.f32 %v2501, %v2502
        %v2504 = vsel %vm470, %v2399, 0.0
        %v2505 = vadd.f32 %v2503, %v2504
        %v2506 = vsel %vm470, %v2407, 0.0
        %v2507 = vadd.f32 %v2505, %v2506
        %v2508 = vsel %vm470, %v2415, 0.0
        %v2509 = vadd.f32 %v2507, %v2508
        %v2510 = vsel %vm470, %v2423, 0.0
        %v2511 = vadd.f32 %v2509, %v2510
        %v2512 = vsel %vm470, %v2431, 0.0
        %v2513 = vadd.f32 %v2511, %v2512
        %v2514 = vsel %vm470, %v2439, 0.0
        %v2515 = vadd.f32 %v2513, %v2514
        %v2516 = vsel %vm470, %v2447, 0.0
        %v2517 = vadd.f32 %v2515, %v2516
        %v2518 = vsel %vm470, %v2455, 0.0
        %v2519 = vadd.f32 %v2517, %v2518
        %v2520 = vrcp.pop 16.0
        %v2521 = vmul.f32 %v2488, %v2520
        %v2522 = vmul.f32 %v2519, %v2520
        %v2523 = vsel %vm470, %v2521, 0.0
        %v2524 = vsel %vm470, %v2522, 0.0
        %v2525 = vadd.f32 %v2523, %v2524
        %v2526 = vrot.slane %v2525, 4
        %v2527 = vadd.f32 %v2525, %v2526
        %v2528 = vrot.slane %v2527, 2
        %v2529 = vadd.f32 %v2527, %v2528
        %v2530 = vrot.slane %v2529, 1
        %v2531 = vadd.f32 %v2529, %v2530
        %v2532 = vmul.f32 %v2531, %v2520
        %v2533 = vld [vmem:[#allocation4] sm:$0xff]
        %v2534 = vld [vmem:[#allocation4 + $0x8] sm:$0xff]
        %v2535 = vld [vmem:[#allocation4 + $0x10] sm:$0xff]
        %v2536 = vld [vmem:[#allocation4 + $0x18] sm:$0xff]
        %v2538 = vsel %vm470, %v2532, 0
        %2540 = vmatprep.subr.mxu0 0.0
        %2541 = vmatpush1.msra.mxu0 0.0
        %2542 = vmatprep.subr.mxu0 0.0
        %2543 = vmatpush1.msra.mxu0 0.0
        %2544 = vmatprep.subr.mxu0 0.0
        %2545 = vmatpush1.msra.mxu0 0.0
        %2546 = vmatprep.subr.mxu0 0.0
        %2547 = vmatpush1.msra.mxu0 0.0
        %2548 = vmatprep.subr.mxu0 0.0
        %2549 = vmatpush1.msra.mxu0 0.0
        %2550 = vmatprep.subr.mxu0 0.0
        %2551 = vmatpush1.msra.mxu0 0.0
        %2552 = vmatprep.subr.mxu0 0.0
        %2553 = vmatpush1.msra.mxu0 0.0
        %2554 = vmatprep.subr.mxu0 0.0
        %2555 = vmatpush1.msra.mxu0 0.0
        %2556 = vmatprep.subr.mxu0 0.0
        %2557 = vmatpush1.msra.mxu0 0.0
        %2558 = vmatprep.subr.mxu0 0.0
        %2559 = vmatpush1.msra.mxu0 0.0
        %2560 = vmatprep.subr.mxu0 0.0
        %2561 = vmatpush1.msra.mxu0 0.0
        %2562 = vmatprep.subr.mxu0 0.0
        %2563 = vmatpush1.msra.mxu0 0.0
        %2564 = vmatprep.subr.mxu0 0.0
        %2565 = vmatpush1.msra.mxu0 %v2536
        %2566 = vmatprep.subr.mxu0 0.0
        %2567 = vmatpush1.msra.mxu0 %v2535
        %2568 = vmatprep.subr.mxu0 0.0
        %2569 = vmatpush1.msra.mxu0 %v2534
        %2570 = vmatprep.subr.mxu0 0.0
        %2571 = vmatpush1.msra.mxu0 %v2533
        %2572 = vmatprep.subr.mxu0 0.0
        %2573 = vmatpush2.msra.mxu0 0.0
        %2574 = vmatprep.subr.mxu0 0.0
        %2575 = vmatpush2.msra.mxu0 0.0
        %2576 = vmatprep.subr.mxu0 0.0
        %2577 = vmatpush2.msra.mxu0 0.0
        %2578 = vmatprep.subr.mxu0 0.0
        %2579 = vmatpush2.msra.mxu0 0.0
        %2580 = vmatprep.subr.mxu0 0.0
        %2581 = vmatpush2.msra.mxu0 0.0
        %2582 = vmatprep.subr.mxu0 0.0
        %2583 = vmatpush2.msra.mxu0 0.0
        %2584 = vmatprep.subr.mxu0 0.0
        %2585 = vmatpush2.msra.mxu0 0.0
        %2586 = vmatprep.subr.mxu0 0.0
        %2587 = vmatpush2.msra.mxu0 0.0
        %2588 = vmatprep.subr.mxu0 0.0
        %2589 = vmatpush2.msra.mxu0 0.0
        %2590 = vmatprep.subr.mxu0 0.0
        %2591 = vmatpush2.msra.mxu0 0.0
        %2592 = vmatprep.subr.mxu0 0.0
        %2593 = vmatpush2.msra.mxu0 0.0
        %2594 = vmatprep.subr.mxu0 0.0
        %2595 = vmatpush2.msra.mxu0 0.0
        %2596 = vmatprep.subr.mxu0 0.0
        %2597 = vmatpush2.msra.mxu0 0.0
        %2598 = vmatprep.subr.mxu0 0.0
        %2599 = vmatpush2.msra.mxu0 0.0
        %2600 = vmatprep.subr.mxu0 0.0
        %2601 = vmatpush2.msra.mxu0 0.0
        %2602 = vmatprep.subr.mxu0 0.0
        %2603 = vmatpush2.msra.mxu0 0.0
        %2604 = vmatprep.mubr.f32.mxu0 0.0
        %2605 = vmatmul.mubr.f32.gmra.mxu0 %v2538
        %v2606 = vpop.f32.mrf.mxu0
        %v2607 = vadd.f32 0.0, %v2606
        %v2608 = vpop.f32.mrf.mxu0
        %2609 = vdwg.mxu0
        %v2610 = vlaneseq
        %v2611 = vshrl.u32 %v2610, 7
        %v2612 = vsub.s32 0, %v2611
        %v2613 = vrot.slane %v2607, %v2612
        %v2614 = vsub.f32 %v2332, %v2613
        %v2615 = vsub.f32 %v2335, %v2613
        %v2616 = vsub.f32 %v2340, %v2613
        %v2617 = vsub.f32 %v2343, %v2613
        %v2618 = vsub.f32 %v2348, %v2613
        %v2619 = vsub.f32 %v2351, %v2613
        %v2620 = vsub.f32 %v2356, %v2613
        %v2621 = vsub.f32 %v2359, %v2613
        %v2622 = vsub.f32 %v2364, %v2613
        %v2623 = vsub.f32 %v2367, %v2613
        %v2624 = vsub.f32 %v2372, %v2613
        %v2625 = vsub.f32 %v2375, %v2613
        %v2626 = vsub.f32 %v2380, %v2613
        %v2627 = vsub.f32 %v2383, %v2613
        %v2628 = vsub.f32 %v2388, %v2613
        %v2629 = vsub.f32 %v2391, %v2613
        %v2630 = vsub.f32 %v2396, %v2613
        %v2631 = vsub.f32 %v2399, %v2613
        %v2632 = vsub.f32 %v2404, %v2613
        %v2633 = vsub.f32 %v2407, %v2613
        %v2634 = vsub.f32 %v2412, %v2613
        %v2635 = vsub.f32 %v2415, %v2613
        %v2636 = vsub.f32 %v2420, %v2613
        %v2637 = vsub.f32 %v2423, %v2613
        %v2638 = vsub.f32 %v2428, %v2613
        %v2639 = vsub.f32 %v2431, %v2613
        %v2640 = vsub.f32 %v2436, %v2613
        %v2641 = vsub.f32 %v2439, %v2613
        %v2642 = vsub.f32 %v2444, %v2613
        %v2643 = vsub.f32 %v2447, %v2613
        %v2644 = vsub.f32 %v2452, %v2613
        %v2645 = vsub.f32 %v2455, %v2613
        %v2646 = vmul.f32 %v2614, %v2614
        %v2647 = vmul.f32 %v2615, %v2615
        %v2648 = vmul.f32 %v2616, %v2616
        %v2649 = vmul.f32 %v2617, %v2617
        %v2650 = vmul.f32 %v2618, %v2618
        %v2651 = vmul.f32 %v2619, %v2619
        %v2652 = vmul.f32 %v2620, %v2620
        %v2653 = vmul.f32 %v2621, %v2621
        %v2654 = vmul.f32 %v2622, %v2622
        %v2655 = vmul.f32 %v2623, %v2623
        %v2656 = vmul.f32 %v2624, %v2624
        %v2657 = vmul.f32 %v2625, %v2625
        %v2658 = vmul.f32 %v2626, %v2626
        %v2659 = vmul.f32 %v2627, %v2627
        %v2660 = vmul.f32 %v2628, %v2628
        %v2661 = vmul.f32 %v2629, %v2629
        %v2662 = vmul.f32 %v2630, %v2630
        %v2663 = vmul.f32 %v2631, %v2631
        %v2664 = vmul.f32 %v2632, %v2632
        %v2665 = vmul.f32 %v2633, %v2633
        %v2666 = vmul.f32 %v2634, %v2634
        %v2667 = vmul.f32 %v2635, %v2635
        %v2668 = vmul.f32 %v2636, %v2636
        %v2669 = vmul.f32 %v2637, %v2637
        %v2670 = vmul.f32 %v2638, %v2638
        %v2671 = vmul.f32 %v2639, %v2639
        %v2672 = vmul.f32 %v2640, %v2640
        %v2673 = vmul.f32 %v2641, %v2641
        %v2674 = vmul.f32 %v2642, %v2642
        %v2675 = vmul.f32 %v2643, %v2643
        %v2676 = vmul.f32 %v2644, %v2644
        %v2677 = vmul.f32 %v2645, %v2645
        %v2678 = vsel %vm470, %v2646, 0.0
        %v2679 = vsel %vm470, %v2648, 0.0
        %v2680 = vadd.f32 %v2678, %v2679
        %v2681 = vsel %vm470, %v2650, 0.0
        %v2682 = vadd.f32 %v2680, %v2681
        %v2683 = vsel %vm470, %v2652, 0.0
        %v2684 = vadd.f32 %v2682, %v2683
        %v2685 = vsel %vm470, %v2654, 0.0
        %v2686 = vadd.f32 %v2684, %v2685
        %v2687 = vsel %vm470, %v2656, 0.0
        %v2688 = vadd.f32 %v2686, %v2687
        %v2689 = vsel %vm470, %v2658, 0.0
        %v2690 = vadd.f32 %v2688, %v2689
        %v2691 = vsel %vm470, %v2660, 0.0
        %v2692 = vadd.f32 %v2690, %v2691
        %v2693 = vsel %vm470, %v2662, 0.0
        %v2694 = vadd.f32 %v2692, %v2693
        %v2695 = vsel %vm470, %v2664, 0.0
        %v2696 = vadd.f32 %v2694, %v2695
        %v2697 = vsel %vm470, %v2666, 0.0
        %v2698 = vadd.f32 %v2696, %v2697
        %v2699 = vsel %vm470, %v2668, 0.0
        %v2700 = vadd.f32 %v2698, %v2699
        %v2701 = vsel %vm470, %v2670, 0.0
        %v2702 = vadd.f32 %v2700, %v2701
        %v2703 = vsel %vm470, %v2672, 0.0
        %v2704 = vadd.f32 %v2702, %v2703
        %v2705 = vsel %vm470, %v2674, 0.0
        %v2706 = vadd.f32 %v2704, %v2705
        %v2707 = vsel %vm470, %v2676, 0.0
        %v2708 = vadd.f32 %v2706, %v2707
        %v2709 = vsel %vm470, %v2647, 0.0
        %v2710 = vsel %vm470, %v2649, 0.0
        %v2711 = vadd.f32 %v2709, %v2710
        %v2712 = vsel %vm470, %v2651, 0.0
        %v2713 = vadd.f32 %v2711, %v2712
        %v2714 = vsel %vm470, %v2653, 0.0
        %v2715 = vadd.f32 %v2713, %v2714
        %v2716 = vsel %vm470, %v2655, 0.0
        %v2717 = vadd.f32 %v2715, %v2716
        %v2718 = vsel %vm470, %v2657, 0.0
        %v2719 = vadd.f32 %v2717, %v2718
        %v2720 = vsel %vm470, %v2659, 0.0
        %v2721 = vadd.f32 %v2719, %v2720
        %v2722 = vsel %vm470, %v2661, 0.0
        %v2723 = vadd.f32 %v2721, %v2722
        %v2724 = vsel %vm470, %v2663, 0.0
        %v2725 = vadd.f32 %v2723, %v2724
        %v2726 = vsel %vm470, %v2665, 0.0
        %v2727 = vadd.f32 %v2725, %v2726
        %v2728 = vsel %vm470, %v2667, 0.0
        %v2729 = vadd.f32 %v2727, %v2728
        %v2730 = vsel %vm470, %v2669, 0.0
        %v2731 = vadd.f32 %v2729, %v2730
        %v2732 = vsel %vm470, %v2671, 0.0
        %v2733 = vadd.f32 %v2731, %v2732
        %v2734 = vsel %vm470, %v2673, 0.0
        %v2735 = vadd.f32 %v2733, %v2734
        %v2736 = vsel %vm470, %v2675, 0.0
        %v2737 = vadd.f32 %v2735, %v2736
        %v2738 = vsel %vm470, %v2677, 0.0
        %v2739 = vadd.f32 %v2737, %v2738
        %v2740 = vmul.f32 %v2708, %v2520
        %v2741 = vmul.f32 %v2739, %v2520
        %v2742 = vsel %vm470, %v2740, 0.0
        %v2743 = vsel %vm470, %v2741, 0.0
        %v2744 = vadd.f32 %v2742, %v2743
        %v2745 = vrot.slane %v2744, 4
        %v2746 = vadd.f32 %v2744, %v2745
        %v2747 = vrot.slane %v2746, 2
        %v2748 = vadd.f32 %v2746, %v2747
        %v2749 = vrot.slane %v2748, 1
        %v2750 = vadd.f32 %v2748, %v2749
        %v2751 = vmul.f32 %v2750, %v2520
        %v2753 = vsel %vm470, %v2751, 0
        %2755 = vmatprep.subr.mxu0 0.0
        %2756 = vmatpush1.msra.mxu0 0.0
        %2757 = vmatprep.subr.mxu0 0.0
        %2758 = vmatpush1.msra.mxu0 0.0
        %2759 = vmatprep.subr.mxu0 0.0
        %2760 = vmatpush1.msra.mxu0 0.0
        %2761 = vmatprep.subr.mxu0 0.0
        %2762 = vmatpush1.msra.mxu0 0.0
        %2763 = vmatprep.subr.mxu0 0.0
        %2764 = vmatpush1.msra.mxu0 0.0
        %2765 = vmatprep.subr.mxu0 0.0
        %2766 = vmatpush1.msra.mxu0 0.0
        %2767 = vmatprep.subr.mxu0 0.0
        %2768 = vmatpush1.msra.mxu0 0.0
        %2769 = vmatprep.subr.mxu0 0.0
        %2770 = vmatpush1.msra.mxu0 0.0
        %2771 = vmatprep.subr.mxu0 0.0
        %2772 = vmatpush1.msra.mxu0 0.0
        %2773 = vmatprep.subr.mxu0 0.0
        %2774 = vmatpush1.msra.mxu0 0.0
        %2775 = vmatprep.subr.mxu0 0.0
        %2776 = vmatpush1.msra.mxu0 0.0
        %2777 = vmatprep.subr.mxu0 0.0
        %2778 = vmatpush1.msra.mxu0 0.0
        %2779 = vmatprep.subr.mxu0 0.0
        %2780 = vmatpush1.msra.mxu0 %v2536
        %2781 = vmatprep.subr.mxu0 0.0
        %2782 = vmatpush1.msra.mxu0 %v2535
        %2783 = vmatprep.subr.mxu0 0.0
        %2784 = vmatpush1.msra.mxu0 %v2534
        %2785 = vmatprep.subr.mxu0 0.0
        %2786 = vmatpush1.msra.mxu0 %v2533
        %2787 = vmatprep.subr.mxu0 0.0
        %2788 = vmatpush2.msra.mxu0 0.0
        %2789 = vmatprep.subr.mxu0 0.0
        %2790 = vmatpush2.msra.mxu0 0.0
        %2791 = vmatprep.subr.mxu0 0.0
        %2792 = vmatpush2.msra.mxu0 0.0
        %2793 = vmatprep.subr.mxu0 0.0
        %2794 = vmatpush2.msra.mxu0 0.0
        %2795 = vmatprep.subr.mxu0 0.0
        %2796 = vmatpush2.msra.mxu0 0.0
        %2797 = vmatprep.subr.mxu0 0.0
        %2798 = vmatpush2.msra.mxu0 0.0
        %2799 = vmatprep.subr.mxu0 0.0
        %2800 = vmatpush2.msra.mxu0 0.0
        %2801 = vmatprep.subr.mxu0 0.0
        %2802 = vmatpush2.msra.mxu0 0.0
        %2803 = vmatprep.subr.mxu0 0.0
        %2804 = vmatpush2.msra.mxu0 0.0
        %2805 = vmatprep.subr.mxu0 0.0
        %2806 = vmatpush2.msra.mxu0 0.0
        %2807 = vmatprep.subr.mxu0 0.0
        %2808 = vmatpush2.msra.mxu0 0.0
        %2809 = vmatprep.subr.mxu0 0.0
        %2810 = vmatpush2.msra.mxu0 0.0
        %2811 = vmatprep.subr.mxu0 0.0
        %2812 = vmatpush2.msra.mxu0 0.0
        %2813 = vmatprep.subr.mxu0 0.0
        %2814 = vmatpush2.msra.mxu0 0.0
        %2815 = vmatprep.subr.mxu0 0.0
        %2816 = vmatpush2.msra.mxu0 0.0
        %2817 = vmatprep.subr.mxu0 0.0
        %2818 = vmatpush2.msra.mxu0 0.0
        %2819 = vmatprep.mubr.f32.mxu0 0.0
        %2820 = vmatmul.mubr.f32.gmra.mxu0 %v2753
        %v2821 = vpop.f32.mrf.mxu0
        %v2822 = vadd.f32 1e-05, %v2821
        %v2823 = vpop.f32.mrf.mxu0
        %2824 = vdwg.mxu0
        %v2825 = vrsqrt.pop %v2822
        %v2826 = vlaneseq
        %v2827 = vshrl.u32 %v2826, 7
        %v2828 = vsub.s32 0, %v2827
        %v2829 = vrot.slane %v2825, %v2828
        %v2830 = vmul.f32 %v2614, %v2829
        %v2831 = vmul.f32 %v2615, %v2829
        %v2832 = vmul.f32 %v2616, %v2829
        %v2833 = vmul.f32 %v2617, %v2829
        %v2834 = vmul.f32 %v2618, %v2829
        %v2835 = vmul.f32 %v2619, %v2829
        %v2836 = vmul.f32 %v2620, %v2829
        %v2837 = vmul.f32 %v2621, %v2829
        %v2838 = vmul.f32 %v2622, %v2829
        %v2839 = vmul.f32 %v2623, %v2829
        %v2840 = vmul.f32 %v2624, %v2829
        %v2841 = vmul.f32 %v2625, %v2829
        %v2842 = vmul.f32 %v2626, %v2829
        %v2843 = vmul.f32 %v2627, %v2829
        %v2844 = vmul.f32 %v2628, %v2829
        %v2845 = vmul.f32 %v2629, %v2829
        %v2846 = vmul.f32 %v2630, %v2829
        %v2847 = vmul.f32 %v2631, %v2829
        %v2848 = vmul.f32 %v2632, %v2829
        %v2849 = vmul.f32 %v2633, %v2829
        %v2850 = vmul.f32 %v2634, %v2829
        %v2851 = vmul.f32 %v2635, %v2829
        %v2852 = vmul.f32 %v2636, %v2829
        %v2853 = vmul.f32 %v2637, %v2829
        %v2854 = vmul.f32 %v2638, %v2829
        %v2855 = vmul.f32 %v2639, %v2829
        %v2856 = vmul.f32 %v2640, %v2829
        %v2857 = vmul.f32 %v2641, %v2829
        %v2858 = vmul.f32 %v2642, %v2829
        %v2859 = vmul.f32 %v2643, %v2829
        %v2860 = vmul.f32 %v2644, %v2829
        %v2861 = vmul.f32 %v2645, %v2829
        %v2862 = vld [vmem:[%s2] sm:$0x1]
        %v2864 = vlaneseq
        %v2865 = vshrl.u32 %v2864, 7
        %v2866 = vsub.s32 0, %v2865
        %v2867 = vrot.slane %v2862, %v2866
        %v2869 = vmul.f32 %v2830, %v2867
        %v2870 = vmul.f32 %v2831, %v2867
        %v2871 = vmul.f32 %v2832, %v2867
        %v2872 = vmul.f32 %v2833, %v2867
        %v2873 = vmul.f32 %v2834, %v2867
        %v2874 = vmul.f32 %v2835, %v2867
        %v2875 = vmul.f32 %v2836, %v2867
        %v2876 = vmul.f32 %v2837, %v2867
        %v2877 = vmul.f32 %v2838, %v2867
        %v2878 = vmul.f32 %v2839, %v2867
        %v2879 = vmul.f32 %v2840, %v2867
        %v2880 = vmul.f32 %v2841, %v2867
        %v2881 = vmul.f32 %v2842, %v2867
        %v2882 = vmul.f32 %v2843, %v2867
        %v2883 = vmul.f32 %v2844, %v2867
        %v2884 = vmul.f32 %v2845, %v2867
        %v2885 = vmul.f32 %v2846, %v2867
        %v2886 = vmul.f32 %v2847, %v2867
        %v2887 = vmul.f32 %v2848, %v2867
        %v2888 = vmul.f32 %v2849, %v2867
        %v2889 = vmul.f32 %v2850, %v2867
        %v2890 = vmul.f32 %v2851, %v2867
        %v2891 = vmul.f32 %v2852, %v2867
        %v2892 = vmul.f32 %v2853, %v2867
        %v2893 = vmul.f32 %v2854, %v2867
        %v2894 = vmul.f32 %v2855, %v2867
        %v2895 = vmul.f32 %v2856, %v2867
        %v2896 = vmul.f32 %v2857, %v2867
        %v2897 = vmul.f32 %v2858, %v2867
        %v2898 = vmul.f32 %v2859, %v2867
        %v2899 = vmul.f32 %v2860, %v2867
        %v2900 = vmul.f32 %v2861, %v2867
        %v2901 = vld [vmem:[%s3] sm:$0x1]
        %v2903 = vlaneseq
        %v2904 = vshrl.u32 %v2903, 7
        %v2905 = vsub.s32 0, %v2904
        %v2906 = vrot.slane %v2901, %v2905
        %v2908 = vadd.f32 %v2869, %v2906
        %v2909 = vadd.f32 %v2870, %v2906
        %v2910 = vadd.f32 %v2871, %v2906
        %v2911 = vadd.f32 %v2872, %v2906
        %v2912 = vadd.f32 %v2873, %v2906
        %v2913 = vadd.f32 %v2874, %v2906
        %v2914 = vadd.f32 %v2875, %v2906
        %v2915 = vadd.f32 %v2876, %v2906
        %v2916 = vadd.f32 %v2877, %v2906
        %v2917 = vadd.f32 %v2878, %v2906
        %v2918 = vadd.f32 %v2879, %v2906
        %v2919 = vadd.f32 %v2880, %v2906
        %v2920 = vadd.f32 %v2881, %v2906
        %v2921 = vadd.f32 %v2882, %v2906
        %v2922 = vadd.f32 %v2883, %v2906
        %v2923 = vadd.f32 %v2884, %v2906
        %v2924 = vadd.f32 %v2885, %v2906
        %v2925 = vadd.f32 %v2886, %v2906
        %v2926 = vadd.f32 %v2887, %v2906
        %v2927 = vadd.f32 %v2888, %v2906
        %v2928 = vadd.f32 %v2889, %v2906
        %v2929 = vadd.f32 %v2890, %v2906
        %v2930 = vadd.f32 %v2891, %v2906
        %v2931 = vadd.f32 %v2892, %v2906
        %v2932 = vadd.f32 %v2893, %v2906
        %v2933 = vadd.f32 %v2894, %v2906
        %v2934 = vadd.f32 %v2895, %v2906
        %v2935 = vadd.f32 %v2896, %v2906
        %v2936 = vadd.f32 %v2897, %v2906
        %v2937 = vadd.f32 %v2898, %v2906
        %v2938 = vadd.f32 %v2899, %v2906
        %v2939 = vadd.f32 %v2900, %v2906
        %v2940 = vmax.f32 %v2908, 0.0
        %v2941 = vmax.f32 %v2909, 0.0
        %v2942 = vmax.f32 %v2910, 0.0
        %v2943 = vmax.f32 %v2911, 0.0
        %v2944 = vmax.f32 %v2912, 0.0
        %v2945 = vmax.f32 %v2913, 0.0
        %v2946 = vmax.f32 %v2914, 0.0
        %v2947 = vmax.f32 %v2915, 0.0
        %v2948 = vmax.f32 %v2916, 0.0
        %v2949 = vmax.f32 %v2917, 0.0
        %v2950 = vmax.f32 %v2918, 0.0
        %v2951 = vmax.f32 %v2919, 0.0
        %v2952 = vmax.f32 %v2920, 0.0
        %v2953 = vmax.f32 %v2921, 0.0
        %v2954 = vmax.f32 %v2922, 0.0
        %v2955 = vmax.f32 %v2923, 0.0
        %v2956 = vmax.f32 %v2924, 0.0
        %v2957 = vmax.f32 %v2925, 0.0
        %v2958 = vmax.f32 %v2926, 0.0
        %v2959 = vmax.f32 %v2927, 0.0
        %v2960 = vmax.f32 %v2928, 0.0
        %v2961 = vmax.f32 %v2929, 0.0
        %v2962 = vmax.f32 %v2930, 0.0
        %v2963 = vmax.f32 %v2931, 0.0
        %v2964 = vmax.f32 %v2932, 0.0
        %v2965 = vmax.f32 %v2933, 0.0
        %v2966 = vmax.f32 %v2934, 0.0
        %v2967 = vmax.f32 %v2935, 0.0
        %v2968 = vmax.f32 %v2936, 0.0
        %v2969 = vmax.f32 %v2937, 0.0
        %v2970 = vmax.f32 %v2938, 0.0
        %v2971 = vmax.f32 %v2939, 0.0
        %2972 = vst.msk [vmem:[%s612 + $0x1] sm:$0xff] %vm470, %v2940
        %2973 = vst.msk [vmem:[%s612 + $0x9] sm:$0xff] %vm470, %v2941
        %2974 = vst.msk [vmem:[%s612 + $0x19] sm:$0xff] %vm470, %v2942
        %2975 = vst.msk [vmem:[%s612 + $0x21] sm:$0xff] %vm470, %v2943
        %2976 = vst.msk [vmem:[%s612 + $0x31] sm:$0xff] %vm470, %v2944
        %2977 = vst.msk [vmem:[%s612 + $0x39] sm:$0xff] %vm470, %v2945
        %2978 = vst.msk [vmem:[%s612 + $0x49] sm:$0xff] %vm470, %v2946
        %2979 = vst.msk [vmem:[%s612 + $0x51] sm:$0xff] %vm470, %v2947
        %2980 = vst.msk [vmem:[%s612 + $0x61] sm:$0xff] %vm470, %v2948
        %2981 = vst.msk [vmem:[%s612 + $0x69] sm:$0xff] %vm470, %v2949
        %2982 = vst.msk [vmem:[%s612 + $0x79] sm:$0xff] %vm470, %v2950
        %2983 = vst.msk [vmem:[%s612 + $0x81] sm:$0xff] %vm470, %v2951
        %2984 = vst.msk [vmem:[%s612 + $0x91] sm:$0xff] %vm470, %v2952
        %2985 = vst.msk [vmem:[%s612 + $0x99] sm:$0xff] %vm470, %v2953
        %2986 = vst.msk [vmem:[%s612 + $0xa9] sm:$0xff] %vm470, %v2954
        %2987 = vst.msk [vmem:[%s612 + $0xb1] sm:$0xff] %vm470, %v2955
        %2988 = vst.msk [vmem:[%s612 + $0xc1] sm:$0xff] %vm470, %v2956
        %2989 = vst.msk [vmem:[%s612 + $0xc9] sm:$0xff] %vm470, %v2957
        %2990 = vst.msk [vmem:[%s612 + $0xd9] sm:$0xff] %vm470, %v2958
        %2991 = vst.msk [vmem:[%s612 + $0xe1] sm:$0xff] %vm470, %v2959
        %2992 = vst.msk [vmem:[%s612 + $0xf1] sm:$0xff] %vm470, %v2960
        %2993 = vst.msk [vmem:[%s612 + $0xf9] sm:$0xff] %vm470, %v2961
        %2994 = vst.msk [vmem:[%s612 + $0x109] sm:$0xff] %vm470, %v2962
        %2995 = vst.msk [vmem:[%s612 + $0x111] sm:$0xff] %vm470, %v2963
        %2996 = vst.msk [vmem:[%s612 + $0x121] sm:$0xff] %vm470, %v2964
        %2997 = vst.msk [vmem:[%s612 + $0x129] sm:$0xff] %vm470, %v2965
        %2998 = vst.msk [vmem:[%s612 + $0x139] sm:$0xff] %vm470, %v2966
        %2999 = vst.msk [vmem:[%s612 + $0x141] sm:$0xff] %vm470, %v2967
        %3000 = vst.msk [vmem:[%s612 + $0x151] sm:$0xff] %vm470, %v2968
        %3001 = vst.msk [vmem:[%s612 + $0x159] sm:$0xff] %vm470, %v2969
        %3002 = vst.msk [vmem:[%s612 + $0x169] sm:$0xff] %vm470, %v2970
        %3003 = vst.msk [vmem:[%s612 + $0x171] sm:$0xff] %vm470, %v2971
        %v3004 = vld [vmem:[#allocation2] sm:$0xff]
        %v3005 = vld [vmem:[#allocation2 + $0x8] sm:$0xff]
        %v3006 = vld [vmem:[#allocation2 + $0x18] sm:$0xff]
        %v3007 = vld [vmem:[#allocation2 + $0x20] sm:$0xff]
        %v3008 = vld [vmem:[#allocation2 + $0x30] sm:$0xff]
        %v3009 = vld [vmem:[#allocation2 + $0x38] sm:$0xff]
        %v3010 = vld [vmem:[#allocation2 + $0x48] sm:$0xff]
        %v3011 = vld [vmem:[#allocation2 + $0x50] sm:$0xff]
        %v3012 = vld [vmem:[#allocation2 + $0x60] sm:$0xff]
        %v3013 = vld [vmem:[#allocation2 + $0x68] sm:$0xff]
        %v3014 = vld [vmem:[#allocation2 + $0x78] sm:$0xff]
        %v3015 = vld [vmem:[#allocation2 + $0x80] sm:$0xff]
        %v3016 = vld [vmem:[#allocation2 + $0x90] sm:$0xff]
        %v3017 = vld [vmem:[#allocation2 + $0x98] sm:$0xff]
        %v3018 = vld [vmem:[#allocation2 + $0xa8] sm:$0xff]
        %v3019 = vld [vmem:[#allocation2 + $0xb0] sm:$0xff]
        %v3020 = vld [vmem:[#allocation2 + $0xc0] sm:$0xff]
        %v3021 = vld [vmem:[#allocation2 + $0xc8] sm:$0xff]
        %v3022 = vld [vmem:[#allocation2 + $0xd8] sm:$0xff]
        %v3023 = vld [vmem:[#allocation2 + $0xe0] sm:$0xff]
        %v3024 = vld [vmem:[#allocation2 + $0xf0] sm:$0xff]
        %v3025 = vld [vmem:[#allocation2 + $0xf8] sm:$0xff]
        %v3026 = vld [vmem:[#allocation2 + $0x108] sm:$0xff]
        %v3027 = vld [vmem:[#allocation2 + $0x110] sm:$0xff]
        %v3028 = vld [vmem:[#allocation2 + $0x120] sm:$0xff]
        %v3029 = vld [vmem:[#allocation2 + $0x128] sm:$0xff]
        %v3030 = vld [vmem:[#allocation2 + $0x138] sm:$0xff]
        %v3031 = vld [vmem:[#allocation2 + $0x140] sm:$0xff]
        %v3032 = vld [vmem:[#allocation2 + $0x150] sm:$0xff]
        %v3033 = vld [vmem:[#allocation2 + $0x158] sm:$0xff]
        %v3034 = vld [vmem:[#allocation2 + $0x168] sm:$0xff]
        %v3035 = vld [vmem:[#allocation2 + $0x170] sm:$0xff]
        %v3036 = vld [vmem:[#allocation2 + $0x1] sm:$0xff]
        %v3037 = vld [vmem:[#allocation2 + $0x9] sm:$0xff]
        %v3038 = vld [vmem:[#allocation2 + $0x19] sm:$0xff]
        %v3039 = vld [vmem:[#allocation2 + $0x21] sm:$0xff]
        %v3040 = vld [vmem:[#allocation2 + $0x31] sm:$0xff]
        %v3041 = vld [vmem:[#allocation2 + $0x39] sm:$0xff]
        %v3042 = vld [vmem:[#allocation2 + $0x49] sm:$0xff]
        %v3043 = vld [vmem:[#allocation2 + $0x51] sm:$0xff]
        %v3044 = vld [vmem:[#allocation2 + $0x61] sm:$0xff]
        %v3045 = vld [vmem:[#allocation2 + $0x69] sm:$0xff]
        %v3046 = vld [vmem:[#allocation2 + $0x79] sm:$0xff]
        %v3047 = vld [vmem:[#allocation2 + $0x81] sm:$0xff]
        %v3048 = vld [vmem:[#allocation2 + $0x91] sm:$0xff]
        %v3049 = vld [vmem:[#allocation2 + $0x99] sm:$0xff]
        %v3050 = vld [vmem:[#allocation2 + $0xa9] sm:$0xff]
        %v3051 = vld [vmem:[#allocation2 + $0xb1] sm:$0xff]
        %v3052 = vld [vmem:[#allocation2 + $0xc1] sm:$0xff]
        %v3053 = vld [vmem:[#allocation2 + $0xc9] sm:$0xff]
        %v3054 = vld [vmem:[#allocation2 + $0xd9] sm:$0xff]
        %v3055 = vld [vmem:[#allocation2 + $0xe1] sm:$0xff]
        %v3056 = vld [vmem:[#allocation2 + $0xf1] sm:$0xff]
        %v3057 = vld [vmem:[#allocation2 + $0xf9] sm:$0xff]
        %v3058 = vld [vmem:[#allocation2 + $0x109] sm:$0xff]
        %v3059 = vld [vmem:[#allocation2 + $0x111] sm:$0xff]
        %v3060 = vld [vmem:[#allocation2 + $0x121] sm:$0xff]
        %v3061 = vld [vmem:[#allocation2 + $0x129] sm:$0xff]
        %v3062 = vld [vmem:[#allocation2 + $0x139] sm:$0xff]
        %v3063 = vld [vmem:[#allocation2 + $0x141] sm:$0xff]
        %v3064 = vld [vmem:[#allocation2 + $0x151] sm:$0xff]
        %v3065 = vld [vmem:[#allocation2 + $0x159] sm:$0xff]
        %v3066 = vld [vmem:[#allocation2 + $0x169] sm:$0xff]
        %v3067 = vld [vmem:[#allocation2 + $0x171] sm:$0xff]
        %v3068 = vld [vmem:[#allocation2 + $0x2] sm:$0xff]
        %v3069 = vld [vmem:[#allocation2 + $0xa] sm:$0xff]
        %v3070 = vld [vmem:[#allocation2 + $0x1a] sm:$0xff]
        %v3071 = vld [vmem:[#allocation2 + $0x22] sm:$0xff]
        %v3072 = vld [vmem:[#allocation2 + $0x32] sm:$0xff]
        %v3073 = vld [vmem:[#allocation2 + $0x3a] sm:$0xff]
        %v3074 = vld [vmem:[#allocation2 + $0x4a] sm:$0xff]
        %v3075 = vld [vmem:[#allocation2 + $0x52] sm:$0xff]
        %v3076 = vld [vmem:[#allocation2 + $0x62] sm:$0xff]
        %v3077 = vld [vmem:[#allocation2 + $0x6a] sm:$0xff]
        %v3078 = vld [vmem:[#allocation2 + $0x7a] sm:$0xff]
        %v3079 = vld [vmem:[#allocation2 + $0x82] sm:$0xff]
        %v3080 = vld [vmem:[#allocation2 + $0x92] sm:$0xff]
        %v3081 = vld [vmem:[#allocation2 + $0x9a] sm:$0xff]
        %v3082 = vld [vmem:[#allocation2 + $0xaa] sm:$0xff]
        %v3083 = vld [vmem:[#allocation2 + $0xb2] sm:$0xff]
        %v3084 = vld [vmem:[#allocation2 + $0xc2] sm:$0xff]
        %v3085 = vld [vmem:[#allocation2 + $0xca] sm:$0xff]
        %v3086 = vld [vmem:[#allocation2 + $0xda] sm:$0xff]
        %v3087 = vld [vmem:[#allocation2 + $0xe2] sm:$0xff]
        %v3088 = vld [vmem:[#allocation2 + $0xf2] sm:$0xff]
        %v3089 = vld [vmem:[#allocation2 + $0xfa] sm:$0xff]
        %v3090 = vld [vmem:[#allocation2 + $0x10a] sm:$0xff]
        %v3091 = vld [vmem:[#allocation2 + $0x112] sm:$0xff]
        %v3092 = vld [vmem:[#allocation2 + $0x122] sm:$0xff]
        %v3093 = vld [vmem:[#allocation2 + $0x12a] sm:$0xff]
        %v3094 = vld [vmem:[#allocation2 + $0x13a] sm:$0xff]
        %v3095 = vld [vmem:[#allocation2 + $0x142] sm:$0xff]
        %v3096 = vld [vmem:[#allocation2 + $0x152] sm:$0xff]
        %v3097 = vld [vmem:[#allocation2 + $0x15a] sm:$0xff]
        %v3098 = vld [vmem:[#allocation2 + $0x16a] sm:$0xff]
        %v3099 = vld [vmem:[#allocation2 + $0x172] sm:$0xff]
        %v3100 = vld [vmem:[%s612] sm:$0xff]
        %v3101 = vld [vmem:[%s612 + $0x8] sm:$0xff]
        %v3102 = vld [vmem:[%s612 + $0x18] sm:$0xff]
        %v3103 = vld [vmem:[%s612 + $0x20] sm:$0xff]
        %v3104 = vld [vmem:[%s612 + $0x30] sm:$0xff]
        %v3105 = vld [vmem:[%s612 + $0x38] sm:$0xff]
        %v3106 = vld [vmem:[%s612 + $0x48] sm:$0xff]
        %v3107 = vld [vmem:[%s612 + $0x50] sm:$0xff]
        %v3108 = vld [vmem:[%s612 + $0x60] sm:$0xff]
        %v3109 = vld [vmem:[%s612 + $0x68] sm:$0xff]
        %v3110 = vld [vmem:[%s612 + $0x78] sm:$0xff]
        %v3111 = vld [vmem:[%s612 + $0x80] sm:$0xff]
        %v3112 = vld [vmem:[%s612 + $0x90] sm:$0xff]
        %v3113 = vld [vmem:[%s612 + $0x98] sm:$0xff]
        %v3114 = vld [vmem:[%s612 + $0xa8] sm:$0xff]
        %v3115 = vld [vmem:[%s612 + $0xb0] sm:$0xff]
        %v3116 = vld [vmem:[%s612 + $0xc0] sm:$0xff]
        %v3117 = vld [vmem:[%s612 + $0xc8] sm:$0xff]
        %v3118 = vld [vmem:[%s612 + $0xd8] sm:$0xff]
        %v3119 = vld [vmem:[%s612 + $0xe0] sm:$0xff]
        %v3120 = vld [vmem:[%s612 + $0xf0] sm:$0xff]
        %v3121 = vld [vmem:[%s612 + $0xf8] sm:$0xff]
        %v3122 = vld [vmem:[%s612 + $0x108] sm:$0xff]
        %v3123 = vld [vmem:[%s612 + $0x110] sm:$0xff]
        %v3124 = vld [vmem:[%s612 + $0x120] sm:$0xff]
        %v3125 = vld [vmem:[%s612 + $0x128] sm:$0xff]
        %v3126 = vld [vmem:[%s612 + $0x138] sm:$0xff]
        %v3127 = vld [vmem:[%s612 + $0x140] sm:$0xff]
        %v3128 = vld [vmem:[%s612 + $0x150] sm:$0xff]
        %v3129 = vld [vmem:[%s612 + $0x158] sm:$0xff]
        %v3130 = vld [vmem:[%s612 + $0x168] sm:$0xff]
        %v3131 = vld [vmem:[%s612 + $0x170] sm:$0xff]
        %v3132 = vld [vmem:[%s612 + $0x1] sm:$0xff]
        %v3133 = vld [vmem:[%s612 + $0x9] sm:$0xff]
        %v3134 = vld [vmem:[%s612 + $0x19] sm:$0xff]
        %v3135 = vld [vmem:[%s612 + $0x21] sm:$0xff]
        %v3136 = vld [vmem:[%s612 + $0x31] sm:$0xff]
        %v3137 = vld [vmem:[%s612 + $0x39] sm:$0xff]
        %v3138 = vld [vmem:[%s612 + $0x49] sm:$0xff]
        %v3139 = vld [vmem:[%s612 + $0x51] sm:$0xff]
        %v3140 = vld [vmem:[%s612 + $0x61] sm:$0xff]
        %v3141 = vld [vmem:[%s612 + $0x69] sm:$0xff]
        %v3142 = vld [vmem:[%s612 + $0x79] sm:$0xff]
        %v3143 = vld [vmem:[%s612 + $0x81] sm:$0xff]
        %v3144 = vld [vmem:[%s612 + $0x91] sm:$0xff]
        %v3145 = vld [vmem:[%s612 + $0x99] sm:$0xff]
        %v3146 = vld [vmem:[%s612 + $0xa9] sm:$0xff]
        %v3147 = vld [vmem:[%s612 + $0xb1] sm:$0xff]
        %v3148 = vld [vmem:[%s612 + $0xc1] sm:$0xff]
        %v3149 = vld [vmem:[%s612 + $0xc9] sm:$0xff]
        %v3150 = vld [vmem:[%s612 + $0xd9] sm:$0xff]
        %v3151 = vld [vmem:[%s612 + $0xe1] sm:$0xff]
        %v3152 = vld [vmem:[%s612 + $0xf1] sm:$0xff]
        %v3153 = vld [vmem:[%s612 + $0xf9] sm:$0xff]
        %v3154 = vld [vmem:[%s612 + $0x109] sm:$0xff]
        %v3155 = vld [vmem:[%s612 + $0x111] sm:$0xff]
        %v3156 = vld [vmem:[%s612 + $0x121] sm:$0xff]
        %v3157 = vld [vmem:[%s612 + $0x129] sm:$0xff]
        %v3158 = vld [vmem:[%s612 + $0x139] sm:$0xff]
        %v3159 = vld [vmem:[%s612 + $0x141] sm:$0xff]
        %v3160 = vld [vmem:[%s612 + $0x151] sm:$0xff]
        %v3161 = vld [vmem:[%s612 + $0x159] sm:$0xff]
        %v3162 = vld [vmem:[%s612 + $0x169] sm:$0xff]
        %v3163 = vld [vmem:[%s612 + $0x171] sm:$0xff]
        %v3164 = vld [vmem:[%s612 + $0x2] sm:$0xff]
        %v3165 = vld [vmem:[%s612 + $0xa] sm:$0xff]
        %v3166 = vld [vmem:[%s612 + $0x1a] sm:$0xff]
        %v3167 = vld [vmem:[%s612 + $0x22] sm:$0xff]
        %v3168 = vld [vmem:[%s612 + $0x32] sm:$0xff]
        %v3169 = vld [vmem:[%s612 + $0x3a] sm:$0xff]
        %v3170 = vld [vmem:[%s612 + $0x4a] sm:$0xff]
        %v3171 = vld [vmem:[%s612 + $0x52] sm:$0xff]
        %v3172 = vld [vmem:[%s612 + $0x62] sm:$0xff]
        %v3173 = vld [vmem:[%s612 + $0x6a] sm:$0xff]
        %v3174 = vld [vmem:[%s612 + $0x7a] sm:$0xff]
        %v3175 = vld [vmem:[%s612 + $0x82] sm:$0xff]
        %v3176 = vld [vmem:[%s612 + $0x92] sm:$0xff]
        %v3177 = vld [vmem:[%s612 + $0x9a] sm:$0xff]
        %v3178 = vld [vmem:[%s612 + $0xaa] sm:$0xff]
        %v3179 = vld [vmem:[%s612 + $0xb2] sm:$0xff]
        %v3180 = vld [vmem:[%s612 + $0xc2] sm:$0xff]
        %v3181 = vld [vmem:[%s612 + $0xca] sm:$0xff]
        %v3182 = vld [vmem:[%s612 + $0xda] sm:$0xff]
        %v3183 = vld [vmem:[%s612 + $0xe2] sm:$0xff]
        %v3184 = vld [vmem:[%s612 + $0xf2] sm:$0xff]
        %v3185 = vld [vmem:[%s612 + $0xfa] sm:$0xff]
        %v3186 = vld [vmem:[%s612 + $0x10a] sm:$0xff]
        %v3187 = vld [vmem:[%s612 + $0x112] sm:$0xff]
        %v3188 = vld [vmem:[%s612 + $0x122] sm:$0xff]
        %v3189 = vld [vmem:[%s612 + $0x12a] sm:$0xff]
        %v3190 = vld [vmem:[%s612 + $0x13a] sm:$0xff]
        %v3191 = vld [vmem:[%s612 + $0x142] sm:$0xff]
        %v3192 = vld [vmem:[%s612 + $0x152] sm:$0xff]
        %v3193 = vld [vmem:[%s612 + $0x15a] sm:$0xff]
        %v3194 = vld [vmem:[%s612 + $0x16a] sm:$0xff]
        %v3195 = vld [vmem:[%s612 + $0x172] sm:$0xff]
        %v3196 = vld [vmem:[%s837] sm:$0xff]
        %v3197 = vld [vmem:[%s837 + $0x8] sm:$0xff]
        %v3198 = vld [vmem:[%s837 + $0x18] sm:$0xff]
        %v3199 = vld [vmem:[%s837 + $0x20] sm:$0xff]
        %v3200 = vld [vmem:[%s837 + $0x30] sm:$0xff]
        %v3201 = vld [vmem:[%s837 + $0x38] sm:$0xff]
        %v3202 = vld [vmem:[%s837 + $0x48] sm:$0xff]
        %v3203 = vld [vmem:[%s837 + $0x50] sm:$0xff]
        %v3204 = vld [vmem:[%s837 + $0x60] sm:$0xff]
        %v3205 = vld [vmem:[%s837 + $0x68] sm:$0xff]
        %v3206 = vld [vmem:[%s837 + $0x78] sm:$0xff]
        %v3207 = vld [vmem:[%s837 + $0x80] sm:$0xff]
        %v3208 = vld [vmem:[%s837 + $0x90] sm:$0xff]
        %v3209 = vld [vmem:[%s837 + $0x98] sm:$0xff]
        %v3210 = vld [vmem:[%s837 + $0xa8] sm:$0xff]
        %v3211 = vld [vmem:[%s837 + $0xb0] sm:$0xff]
        %v3212 = vld [vmem:[%s837 + $0xc0] sm:$0xff]
        %v3213 = vld [vmem:[%s837 + $0xc8] sm:$0xff]
        %v3214 = vld [vmem:[%s837 + $0xd8] sm:$0xff]
        %v3215 = vld [vmem:[%s837 + $0xe0] sm:$0xff]
        %v3216 = vld [vmem:[%s837 + $0xf0] sm:$0xff]
        %v3217 = vld [vmem:[%s837 + $0xf8] sm:$0xff]
        %v3218 = vld [vmem:[%s837 + $0x108] sm:$0xff]
        %v3219 = vld [vmem:[%s837 + $0x110] sm:$0xff]
        %v3220 = vld [vmem:[%s837 + $0x120] sm:$0xff]
        %v3221 = vld [vmem:[%s837 + $0x128] sm:$0xff]
        %v3222 = vld [vmem:[%s837 + $0x138] sm:$0xff]
        %v3223 = vld [vmem:[%s837 + $0x140] sm:$0xff]
        %v3224 = vld [vmem:[%s837 + $0x150] sm:$0xff]
        %v3225 = vld [vmem:[%s837 + $0x158] sm:$0xff]
        %v3226 = vld [vmem:[%s837 + $0x168] sm:$0xff]
        %v3227 = vld [vmem:[%s837 + $0x170] sm:$0xff]
        %v3228 = vld [vmem:[%s837 + $0x1] sm:$0xff]
        %v3229 = vld [vmem:[%s837 + $0x9] sm:$0xff]
        %v3230 = vld [vmem:[%s837 + $0x19] sm:$0xff]
        %v3231 = vld [vmem:[%s837 + $0x21] sm:$0xff]
        %v3232 = vld [vmem:[%s837 + $0x31] sm:$0xff]
        %v3233 = vld [vmem:[%s837 + $0x39] sm:$0xff]
        %v3234 = vld [vmem:[%s837 + $0x49] sm:$0xff]
        %v3235 = vld [vmem:[%s837 + $0x51] sm:$0xff]
        %v3236 = vld [vmem:[%s837 + $0x61] sm:$0xff]
        %v3237 = vld [vmem:[%s837 + $0x69] sm:$0xff]
        %v3238 = vld [vmem:[%s837 + $0x79] sm:$0xff]
        %v3239 = vld [vmem:[%s837 + $0x81] sm:$0xff]
        %v3240 = vld [vmem:[%s837 + $0x91] sm:$0xff]
        %v3241 = vld [vmem:[%s837 + $0x99] sm:$0xff]
        %v3242 = vld [vmem:[%s837 + $0xa9] sm:$0xff]
        %v3243 = vld [vmem:[%s837 + $0xb1] sm:$0xff]
        %v3244 = vld [vmem:[%s837 + $0xc1] sm:$0xff]
        %v3245 = vld [vmem:[%s837 + $0xc9] sm:$0xff]
        %v3246 = vld [vmem:[%s837 + $0xd9] sm:$0xff]
        %v3247 = vld [vmem:[%s837 + $0xe1] sm:$0xff]
        %v3248 = vld [vmem:[%s837 + $0xf1] sm:$0xff]
        %v3249 = vld [vmem:[%s837 + $0xf9] sm:$0xff]
        %v3250 = vld [vmem:[%s837 + $0x109] sm:$0xff]
        %v3251 = vld [vmem:[%s837 + $0x111] sm:$0xff]
        %v3252 = vld [vmem:[%s837 + $0x121] sm:$0xff]
        %v3253 = vld [vmem:[%s837 + $0x129] sm:$0xff]
        %v3254 = vld [vmem:[%s837 + $0x139] sm:$0xff]
        %v3255 = vld [vmem:[%s837 + $0x141] sm:$0xff]
        %v3256 = vld [vmem:[%s837 + $0x151] sm:$0xff]
        %v3257 = vld [vmem:[%s837 + $0x159] sm:$0xff]
        %v3258 = vld [vmem:[%s837 + $0x169] sm:$0xff]
        %v3259 = vld [vmem:[%s837 + $0x171] sm:$0xff]
        %v3260 = vld [vmem:[%s837 + $0x2] sm:$0xff]
        %v3261 = vld [vmem:[%s837 + $0xa] sm:$0xff]
        %v3262 = vld [vmem:[%s837 + $0x1a] sm:$0xff]
        %v3263 = vld [vmem:[%s837 + $0x22] sm:$0xff]
        %v3264 = vld [vmem:[%s837 + $0x32] sm:$0xff]
        %v3265 = vld [vmem:[%s837 + $0x3a] sm:$0xff]
        %v3266 = vld [vmem:[%s837 + $0x4a] sm:$0xff]
        %v3267 = vld [vmem:[%s837 + $0x52] sm:$0xff]
        %v3268 = vld [vmem:[%s837 + $0x62] sm:$0xff]
        %v3269 = vld [vmem:[%s837 + $0x6a] sm:$0xff]
        %v3270 = vld [vmem:[%s837 + $0x7a] sm:$0xff]
        %v3271 = vld [vmem:[%s837 + $0x82] sm:$0xff]
        %v3272 = vld [vmem:[%s837 + $0x92] sm:$0xff]
        %v3273 = vld [vmem:[%s837 + $0x9a] sm:$0xff]
        %v3274 = vld [vmem:[%s837 + $0xaa] sm:$0xff]
        %v3275 = vld [vmem:[%s837 + $0xb2] sm:$0xff]
        %v3276 = vld [vmem:[%s837 + $0xc2] sm:$0xff]
        %v3277 = vld [vmem:[%s837 + $0xca] sm:$0xff]
        %v3278 = vld [vmem:[%s837 + $0xda] sm:$0xff]
        %v3279 = vld [vmem:[%s837 + $0xe2] sm:$0xff]
        %v3280 = vld [vmem:[%s837 + $0xf2] sm:$0xff]
        %v3281 = vld [vmem:[%s837 + $0xfa] sm:$0xff]
        %v3282 = vld [vmem:[%s837 + $0x10a] sm:$0xff]
        %v3283 = vld [vmem:[%s837 + $0x112] sm:$0xff]
        %v3284 = vld [vmem:[%s837 + $0x122] sm:$0xff]
        %v3285 = vld [vmem:[%s837 + $0x12a] sm:$0xff]
        %v3286 = vld [vmem:[%s837 + $0x13a] sm:$0xff]
        %v3287 = vld [vmem:[%s837 + $0x142] sm:$0xff]
        %v3288 = vld [vmem:[%s837 + $0x152] sm:$0xff]
        %v3289 = vld [vmem:[%s837 + $0x15a] sm:$0xff]
        %v3290 = vld [vmem:[%s837 + $0x16a] sm:$0xff]
        %v3291 = vld [vmem:[%s837 + $0x172] sm:$0xff]
        %3324 = vrot.lane.b32.xlu0 %v3036, 32
        %v3325 = vpop.permute.xlu0 %3324
        %3326 = vrot.lane.b32.xlu0 %v3037, 32
        %v3327 = vpop.permute.xlu0 %3326
        %3328 = vrot.lane.b32.xlu0 %v3038, 32
        %v3329 = vpop.permute.xlu0 %3328
        %3330 = vrot.lane.b32.xlu0 %v3039, 32
        %v3331 = vpop.permute.xlu0 %3330
        %3332 = vrot.lane.b32.xlu0 %v3040, 32
        %v3333 = vpop.permute.xlu0 %3332
        %3334 = vrot.lane.b32.xlu0 %v3041, 32
        %v3335 = vpop.permute.xlu0 %3334
        %3336 = vrot.lane.b32.xlu0 %v3042, 32
        %v3337 = vpop.permute.xlu0 %3336
        %3338 = vrot.lane.b32.xlu0 %v3043, 32
        %v3339 = vpop.permute.xlu0 %3338
        %3340 = vrot.lane.b32.xlu0 %v3044, 32
        %v3341 = vpop.permute.xlu0 %3340
        %3342 = vrot.lane.b32.xlu0 %v3045, 32
        %v3343 = vpop.permute.xlu0 %3342
        %3344 = vrot.lane.b32.xlu0 %v3046, 32
        %v3345 = vpop.permute.xlu0 %3344
        %3346 = vrot.lane.b32.xlu0 %v3047, 32
        %v3347 = vpop.permute.xlu0 %3346
        %3348 = vrot.lane.b32.xlu0 %v3048, 32
        %v3349 = vpop.permute.xlu0 %3348
        %3350 = vrot.lane.b32.xlu0 %v3049, 32
        %v3351 = vpop.permute.xlu0 %3350
        %3352 = vrot.lane.b32.xlu0 %v3050, 32
        %v3353 = vpop.permute.xlu0 %3352
        %3354 = vrot.lane.b32.xlu0 %v3051, 32
        %v3355 = vpop.permute.xlu0 %3354
        %3356 = vrot.lane.b32.xlu0 %v3052, 32
        %v3357 = vpop.permute.xlu0 %3356
        %3358 = vrot.lane.b32.xlu0 %v3053, 32
        %v3359 = vpop.permute.xlu0 %3358
        %3360 = vrot.lane.b32.xlu0 %v3054, 32
        %v3361 = vpop.permute.xlu0 %3360
        %3362 = vrot.lane.b32.xlu0 %v3055, 32
        %v3363 = vpop.permute.xlu0 %3362
        %3364 = vrot.lane.b32.xlu0 %v3056, 32
        %v3365 = vpop.permute.xlu0 %3364
        %3366 = vrot.lane.b32.xlu0 %v3057, 32
        %v3367 = vpop.permute.xlu0 %3366
        %3368 = vrot.lane.b32.xlu0 %v3058, 32
        %v3369 = vpop.permute.xlu0 %3368
        %3370 = vrot.lane.b32.xlu0 %v3059, 32
        %v3371 = vpop.permute.xlu0 %3370
        %3372 = vrot.lane.b32.xlu0 %v3060, 32
        %v3373 = vpop.permute.xlu0 %3372
        %3374 = vrot.lane.b32.xlu0 %v3061, 32
        %v3375 = vpop.permute.xlu0 %3374
        %3376 = vrot.lane.b32.xlu0 %v3062, 32
        %v3377 = vpop.permute.xlu0 %3376
        %3378 = vrot.lane.b32.xlu0 %v3063, 32
        %v3379 = vpop.permute.xlu0 %3378
        %3380 = vrot.lane.b32.xlu0 %v3064, 32
        %v3381 = vpop.permute.xlu0 %3380
        %3382 = vrot.lane.b32.xlu0 %v3065, 32
        %v3383 = vpop.permute.xlu0 %3382
        %3384 = vrot.lane.b32.xlu0 %v3066, 32
        %v3385 = vpop.permute.xlu0 %3384
        %3386 = vrot.lane.b32.xlu0 %v3067, 32
        %v3387 = vpop.permute.xlu0 %3386
        %3452 = vrot.lane.b32.xlu0 %v3068, 64
        %v3453 = vpop.permute.xlu0 %3452
        %3454 = vrot.lane.b32.xlu0 %v3069, 64
        %v3455 = vpop.permute.xlu0 %3454
        %3456 = vrot.lane.b32.xlu0 %v3070, 64
        %v3457 = vpop.permute.xlu0 %3456
        %3458 = vrot.lane.b32.xlu0 %v3071, 64
        %v3459 = vpop.permute.xlu0 %3458
        %3460 = vrot.lane.b32.xlu0 %v3072, 64
        %v3461 = vpop.permute.xlu0 %3460
        %3462 = vrot.lane.b32.xlu0 %v3073, 64
        %v3463 = vpop.permute.xlu0 %3462
        %3464 = vrot.lane.b32.xlu0 %v3074, 64
        %v3465 = vpop.permute.xlu0 %3464
        %3466 = vrot.lane.b32.xlu0 %v3075, 64
        %v3467 = vpop.permute.xlu0 %3466
        %3468 = vrot.lane.b32.xlu0 %v3076, 64
        %v3469 = vpop.permute.xlu0 %3468
        %3470 = vrot.lane.b32.xlu0 %v3077, 64
        %v3471 = vpop.permute.xlu0 %3470
        %3472 = vrot.lane.b32.xlu0 %v3078, 64
        %v3473 = vpop.permute.xlu0 %3472
        %3474 = vrot.lane.b32.xlu0 %v3079, 64
        %v3475 = vpop.permute.xlu0 %3474
        %3476 = vrot.lane.b32.xlu0 %v3080, 64
        %v3477 = vpop.permute.xlu0 %3476
        %3478 = vrot.lane.b32.xlu0 %v3081, 64
        %v3479 = vpop.permute.xlu0 %3478
        %3480 = vrot.lane.b32.xlu0 %v3082, 64
        %v3481 = vpop.permute.xlu0 %3480
        %3482 = vrot.lane.b32.xlu0 %v3083, 64
        %v3483 = vpop.permute.xlu0 %3482
        %3484 = vrot.lane.b32.xlu0 %v3084, 64
        %v3485 = vpop.permute.xlu0 %3484
        %3486 = vrot.lane.b32.xlu0 %v3085, 64
        %v3487 = vpop.permute.xlu0 %3486
        %3488 = vrot.lane.b32.xlu0 %v3086, 64
        %v3489 = vpop.permute.xlu0 %3488
        %3490 = vrot.lane.b32.xlu0 %v3087, 64
        %v3491 = vpop.permute.xlu0 %3490
        %3492 = vrot.lane.b32.xlu0 %v3088, 64
        %v3493 = vpop.permute.xlu0 %3492
        %3494 = vrot.lane.b32.xlu0 %v3089, 64
        %v3495 = vpop.permute.xlu0 %3494
        %3496 = vrot.lane.b32.xlu0 %v3090, 64
        %v3497 = vpop.permute.xlu0 %3496
        %3498 = vrot.lane.b32.xlu0 %v3091, 64
        %v3499 = vpop.permute.xlu0 %3498
        %3500 = vrot.lane.b32.xlu0 %v3092, 64
        %v3501 = vpop.permute.xlu0 %3500
        %3502 = vrot.lane.b32.xlu0 %v3093, 64
        %v3503 = vpop.permute.xlu0 %3502
        %3504 = vrot.lane.b32.xlu0 %v3094, 64
        %v3505 = vpop.permute.xlu0 %3504
        %3506 = vrot.lane.b32.xlu0 %v3095, 64
        %v3507 = vpop.permute.xlu0 %3506
        %3508 = vrot.lane.b32.xlu0 %v3096, 64
        %v3509 = vpop.permute.xlu0 %3508
        %3510 = vrot.lane.b32.xlu0 %v3097, 64
        %v3511 = vpop.permute.xlu0 %3510
        %3512 = vrot.lane.b32.xlu0 %v3098, 64
        %v3513 = vpop.permute.xlu0 %3512
        %3514 = vrot.lane.b32.xlu0 %v3099, 64
        %v3515 = vpop.permute.xlu0 %3514
        %3580 = vrot.lane.b32.xlu0 %v3100, 96
        %v3581 = vpop.permute.xlu0 %3580
        %3582 = vrot.lane.b32.xlu0 %v3101, 96
        %v3583 = vpop.permute.xlu0 %3582
        %3584 = vrot.lane.b32.xlu0 %v3102, 96
        %v3585 = vpop.permute.xlu0 %3584
        %3586 = vrot.lane.b32.xlu0 %v3103, 96
        %v3587 = vpop.permute.xlu0 %3586
        %3588 = vrot.lane.b32.xlu0 %v3104, 96
        %v3589 = vpop.permute.xlu0 %3588
        %3590 = vrot.lane.b32.xlu0 %v3105, 96
        %v3591 = vpop.permute.xlu0 %3590
        %3592 = vrot.lane.b32.xlu0 %v3106, 96
        %v3593 = vpop.permute.xlu0 %3592
        %3594 = vrot.lane.b32.xlu0 %v3107, 96
        %v3595 = vpop.permute.xlu0 %3594
        %3596 = vrot.lane.b32.xlu0 %v3108, 96
        %v3597 = vpop.permute.xlu0 %3596
        %3598 = vrot.lane.b32.xlu0 %v3109, 96
        %v3599 = vpop.permute.xlu0 %3598
        %3600 = vrot.lane.b32.xlu0 %v3110, 96
        %v3601 = vpop.permute.xlu0 %3600
        %3602 = vrot.lane.b32.xlu0 %v3111, 96
        %v3603 = vpop.permute.xlu0 %3602
        %3604 = vrot.lane.b32.xlu0 %v3112, 96
        %v3605 = vpop.permute.xlu0 %3604
        %3606 = vrot.lane.b32.xlu0 %v3113, 96
        %v3607 = vpop.permute.xlu0 %3606
        %3608 = vrot.lane.b32.xlu0 %v3114, 96
        %v3609 = vpop.permute.xlu0 %3608
        %3610 = vrot.lane.b32.xlu0 %v3115, 96
        %v3611 = vpop.permute.xlu0 %3610
        %3612 = vrot.lane.b32.xlu0 %v3116, 96
        %v3613 = vpop.permute.xlu0 %3612
        %3614 = vrot.lane.b32.xlu0 %v3117, 96
        %v3615 = vpop.permute.xlu0 %3614
        %3616 = vrot.lane.b32.xlu0 %v3118, 96
        %v3617 = vpop.permute.xlu0 %3616
        %3618 = vrot.lane.b32.xlu0 %v3119, 96
        %v3619 = vpop.permute.xlu0 %3618
        %3620 = vrot.lane.b32.xlu0 %v3120, 96
        %v3621 = vpop.permute.xlu0 %3620
        %3622 = vrot.lane.b32.xlu0 %v3121, 96
        %v3623 = vpop.permute.xlu0 %3622
        %3624 = vrot.lane.b32.xlu0 %v3122, 96
        %v3625 = vpop.permute.xlu0 %3624
        %3626 = vrot.lane.b32.xlu0 %v3123, 96
        %v3627 = vpop.permute.xlu0 %3626
        %3628 = vrot.lane.b32.xlu0 %v3124, 96
        %v3629 = vpop.permute.xlu0 %3628
        %3630 = vrot.lane.b32.xlu0 %v3125, 96
        %v3631 = vpop.permute.xlu0 %3630
        %3632 = vrot.lane.b32.xlu0 %v3126, 96
        %v3633 = vpop.permute.xlu0 %3632
        %3634 = vrot.lane.b32.xlu0 %v3127, 96
        %v3635 = vpop.permute.xlu0 %3634
        %3636 = vrot.lane.b32.xlu0 %v3128, 96
        %v3637 = vpop.permute.xlu0 %3636
        %3638 = vrot.lane.b32.xlu0 %v3129, 96
        %v3639 = vpop.permute.xlu0 %3638
        %3640 = vrot.lane.b32.xlu0 %v3130, 96
        %v3641 = vpop.permute.xlu0 %3640
        %3642 = vrot.lane.b32.xlu0 %v3131, 96
        %v3643 = vpop.permute.xlu0 %3642
        %3708 = vrot.lane.b32.xlu0 %v3164, 32
        %v3709 = vpop.permute.xlu0 %3708
        %3710 = vrot.lane.b32.xlu0 %v3165, 32
        %v3711 = vpop.permute.xlu0 %3710
        %3712 = vrot.lane.b32.xlu0 %v3166, 32
        %v3713 = vpop.permute.xlu0 %3712
        %3714 = vrot.lane.b32.xlu0 %v3167, 32
        %v3715 = vpop.permute.xlu0 %3714
        %3716 = vrot.lane.b32.xlu0 %v3168, 32
        %v3717 = vpop.permute.xlu0 %3716
        %3718 = vrot.lane.b32.xlu0 %v3169, 32
        %v3719 = vpop.permute.xlu0 %3718
        %3720 = vrot.lane.b32.xlu0 %v3170, 32
        %v3721 = vpop.permute.xlu0 %3720
        %3722 = vrot.lane.b32.xlu0 %v3171, 32
        %v3723 = vpop.permute.xlu0 %3722
        %3724 = vrot.lane.b32.xlu0 %v3172, 32
        %v3725 = vpop.permute.xlu0 %3724
        %3726 = vrot.lane.b32.xlu0 %v3173, 32
        %v3727 = vpop.permute.xlu0 %3726
        %3728 = vrot.lane.b32.xlu0 %v3174, 32
        %v3729 = vpop.permute.xlu0 %3728
        %3730 = vrot.lane.b32.xlu0 %v3175, 32
        %v3731 = vpop.permute.xlu0 %3730
        %3732 = vrot.lane.b32.xlu0 %v3176, 32
        %v3733 = vpop.permute.xlu0 %3732
        %3734 = vrot.lane.b32.xlu0 %v3177, 32
        %v3735 = vpop.permute.xlu0 %3734
        %3736 = vrot.lane.b32.xlu0 %v3178, 32
        %v3737 = vpop.permute.xlu0 %3736
        %3738 = vrot.lane.b32.xlu0 %v3179, 32
        %v3739 = vpop.permute.xlu0 %3738
        %3740 = vrot.lane.b32.xlu0 %v3180, 32
        %v3741 = vpop.permute.xlu0 %3740
        %3742 = vrot.lane.b32.xlu0 %v3181, 32
        %v3743 = vpop.permute.xlu0 %3742
        %3744 = vrot.lane.b32.xlu0 %v3182, 32
        %v3745 = vpop.permute.xlu0 %3744
        %3746 = vrot.lane.b32.xlu0 %v3183, 32
        %v3747 = vpop.permute.xlu0 %3746
        %3748 = vrot.lane.b32.xlu0 %v3184, 32
        %v3749 = vpop.permute.xlu0 %3748
        %3750 = vrot.lane.b32.xlu0 %v3185, 32
        %v3751 = vpop.permute.xlu0 %3750
        %3752 = vrot.lane.b32.xlu0 %v3186, 32
        %v3753 = vpop.permute.xlu0 %3752
        %3754 = vrot.lane.b32.xlu0 %v3187, 32
        %v3755 = vpop.permute.xlu0 %3754
        %3756 = vrot.lane.b32.xlu0 %v3188, 32
        %v3757 = vpop.permute.xlu0 %3756
        %3758 = vrot.lane.b32.xlu0 %v3189, 32
        %v3759 = vpop.permute.xlu0 %3758
        %3760 = vrot.lane.b32.xlu0 %v3190, 32
        %v3761 = vpop.permute.xlu0 %3760
        %3762 = vrot.lane.b32.xlu0 %v3191, 32
        %v3763 = vpop.permute.xlu0 %3762
        %3764 = vrot.lane.b32.xlu0 %v3192, 32
        %v3765 = vpop.permute.xlu0 %3764
        %3766 = vrot.lane.b32.xlu0 %v3193, 32
        %v3767 = vpop.permute.xlu0 %3766
        %3768 = vrot.lane.b32.xlu0 %v3194, 32
        %v3769 = vpop.permute.xlu0 %3768
        %3770 = vrot.lane.b32.xlu0 %v3195, 32
        %v3771 = vpop.permute.xlu0 %3770
        %3836 = vrot.lane.b32.xlu0 %v3196, 64
        %v3837 = vpop.permute.xlu0 %3836
        %3838 = vrot.lane.b32.xlu0 %v3197, 64
        %v3839 = vpop.permute.xlu0 %3838
        %3840 = vrot.lane.b32.xlu0 %v3198, 64
        %v3841 = vpop.permute.xlu0 %3840
        %3842 = vrot.lane.b32.xlu0 %v3199, 64
        %v3843 = vpop.permute.xlu0 %3842
        %3844 = vrot.lane.b32.xlu0 %v3200, 64
        %v3845 = vpop.permute.xlu0 %3844
        %3846 = vrot.lane.b32.xlu0 %v3201, 64
        %v3847 = vpop.permute.xlu0 %3846
        %3848 = vrot.lane.b32.xlu0 %v3202, 64
        %v3849 = vpop.permute.xlu0 %3848
        %3850 = vrot.lane.b32.xlu0 %v3203, 64
        %v3851 = vpop.permute.xlu0 %3850
        %3852 = vrot.lane.b32.xlu0 %v3204, 64
        %v3853 = vpop.permute.xlu0 %3852
        %3854 = vrot.lane.b32.xlu0 %v3205, 64
        %v3855 = vpop.permute.xlu0 %3854
        %3856 = vrot.lane.b32.xlu0 %v3206, 64
        %v3857 = vpop.permute.xlu0 %3856
        %3858 = vrot.lane.b32.xlu0 %v3207, 64
        %v3859 = vpop.permute.xlu0 %3858
        %3860 = vrot.lane.b32.xlu0 %v3208, 64
        %v3861 = vpop.permute.xlu0 %3860
        %3862 = vrot.lane.b32.xlu0 %v3209, 64
        %v3863 = vpop.permute.xlu0 %3862
        %3864 = vrot.lane.b32.xlu0 %v3210, 64
        %v3865 = vpop.permute.xlu0 %3864
        %3866 = vrot.lane.b32.xlu0 %v3211, 64
        %v3867 = vpop.permute.xlu0 %3866
        %3868 = vrot.lane.b32.xlu0 %v3212, 64
        %v3869 = vpop.permute.xlu0 %3868
        %3870 = vrot.lane.b32.xlu0 %v3213, 64
        %v3871 = vpop.permute.xlu0 %3870
        %3872 = vrot.lane.b32.xlu0 %v3214, 64
        %v3873 = vpop.permute.xlu0 %3872
        %3874 = vrot.lane.b32.xlu0 %v3215, 64
        %v3875 = vpop.permute.xlu0 %3874
        %3876 = vrot.lane.b32.xlu0 %v3216, 64
        %v3877 = vpop.permute.xlu0 %3876
        %3878 = vrot.lane.b32.xlu0 %v3217, 64
        %v3879 = vpop.permute.xlu0 %3878
        %3880 = vrot.lane.b32.xlu0 %v3218, 64
        %v3881 = vpop.permute.xlu0 %3880
        %3882 = vrot.lane.b32.xlu0 %v3219, 64
        %v3883 = vpop.permute.xlu0 %3882
        %3884 = vrot.lane.b32.xlu0 %v3220, 64
        %v3885 = vpop.permute.xlu0 %3884
        %3886 = vrot.lane.b32.xlu0 %v3221, 64
        %v3887 = vpop.permute.xlu0 %3886
        %3888 = vrot.lane.b32.xlu0 %v3222, 64
        %v3889 = vpop.permute.xlu0 %3888
        %3890 = vrot.lane.b32.xlu0 %v3223, 64
        %v3891 = vpop.permute.xlu0 %3890
        %3892 = vrot.lane.b32.xlu0 %v3224, 64
        %v3893 = vpop.permute.xlu0 %3892
        %3894 = vrot.lane.b32.xlu0 %v3225, 64
        %v3895 = vpop.permute.xlu0 %3894
        %3896 = vrot.lane.b32.xlu0 %v3226, 64
        %v3897 = vpop.permute.xlu0 %3896
        %3898 = vrot.lane.b32.xlu0 %v3227, 64
        %v3899 = vpop.permute.xlu0 %3898
        %3964 = vrot.lane.b32.xlu0 %v3228, 96
        %v3965 = vpop.permute.xlu0 %3964
        %3966 = vrot.lane.b32.xlu0 %v3229, 96
        %v3967 = vpop.permute.xlu0 %3966
        %3968 = vrot.lane.b32.xlu0 %v3230, 96
        %v3969 = vpop.permute.xlu0 %3968
        %3970 = vrot.lane.b32.xlu0 %v3231, 96
        %v3971 = vpop.permute.xlu0 %3970
        %3972 = vrot.lane.b32.xlu0 %v3232, 96
        %v3973 = vpop.permute.xlu0 %3972
        %3974 = vrot.lane.b32.xlu0 %v3233, 96
        %v3975 = vpop.permute.xlu0 %3974
        %3976 = vrot.lane.b32.xlu0 %v3234, 96
        %v3977 = vpop.permute.xlu0 %3976
        %3978 = vrot.lane.b32.xlu0 %v3235, 96
        %v3979 = vpop.permute.xlu0 %3978
        %3980 = vrot.lane.b32.xlu0 %v3236, 96
        %v3981 = vpop.permute.xlu0 %3980
        %3982 = vrot.lane.b32.xlu0 %v3237, 96
        %v3983 = vpop.permute.xlu0 %3982
        %3984 = vrot.lane.b32.xlu0 %v3238, 96
        %v3985 = vpop.permute.xlu0 %3984
        %3986 = vrot.lane.b32.xlu0 %v3239, 96
        %v3987 = vpop.permute.xlu0 %3986
        %3988 = vrot.lane.b32.xlu0 %v3240, 96
        %v3989 = vpop.permute.xlu0 %3988
        %3990 = vrot.lane.b32.xlu0 %v3241, 96
        %v3991 = vpop.permute.xlu0 %3990
        %3992 = vrot.lane.b32.xlu0 %v3242, 96
        %v3993 = vpop.permute.xlu0 %3992
        %3994 = vrot.lane.b32.xlu0 %v3243, 96
        %v3995 = vpop.permute.xlu0 %3994
        %3996 = vrot.lane.b32.xlu0 %v3244, 96
        %v3997 = vpop.permute.xlu0 %3996
        %3998 = vrot.lane.b32.xlu0 %v3245, 96
        %v3999 = vpop.permute.xlu0 %3998
        %4000 = vrot.lane.b32.xlu0 %v3246, 96
        %v4001 = vpop.permute.xlu0 %4000
        %4002 = vrot.lane.b32.xlu0 %v3247, 96
        %v4003 = vpop.permute.xlu0 %4002
        %4004 = vrot.lane.b32.xlu0 %v3248, 96
        %v4005 = vpop.permute.xlu0 %4004
        %4006 = vrot.lane.b32.xlu0 %v3249, 96
        %v4007 = vpop.permute.xlu0 %4006
        %4008 = vrot.lane.b32.xlu0 %v3250, 96
        %v4009 = vpop.permute.xlu0 %4008
        %4010 = vrot.lane.b32.xlu0 %v3251, 96
        %v4011 = vpop.permute.xlu0 %4010
        %4012 = vrot.lane.b32.xlu0 %v3252, 96
        %v4013 = vpop.permute.xlu0 %4012
        %4014 = vrot.lane.b32.xlu0 %v3253, 96
        %v4015 = vpop.permute.xlu0 %4014
        %4016 = vrot.lane.b32.xlu0 %v3254, 96
        %v4017 = vpop.permute.xlu0 %4016
        %4018 = vrot.lane.b32.xlu0 %v3255, 96
        %v4019 = vpop.permute.xlu0 %4018
        %4020 = vrot.lane.b32.xlu0 %v3256, 96
        %v4021 = vpop.permute.xlu0 %4020
        %4022 = vrot.lane.b32.xlu0 %v3257, 96
        %v4023 = vpop.permute.xlu0 %4022
        %4024 = vrot.lane.b32.xlu0 %v3258, 96
        %v4025 = vpop.permute.xlu0 %4024
        %4026 = vrot.lane.b32.xlu0 %v3259, 96
        %v4027 = vpop.permute.xlu0 %4026
        %v4060 = vsel %vm470, %v3004, %v3325
        %v4061 = vsel %vm470, %v3005, %v3327
        %v4062 = vsel %vm470, %v3006, %v3329
        %v4063 = vsel %vm470, %v3007, %v3331
        %v4064 = vsel %vm470, %v3008, %v3333
        %v4065 = vsel %vm470, %v3009, %v3335
        %v4066 = vsel %vm470, %v3010, %v3337
        %v4067 = vsel %vm470, %v3011, %v3339
        %v4068 = vsel %vm470, %v3012, %v3341
        %v4069 = vsel %vm470, %v3013, %v3343
        %v4070 = vsel %vm470, %v3014, %v3345
        %v4071 = vsel %vm470, %v3015, %v3347
        %v4072 = vsel %vm470, %v3016, %v3349
        %v4073 = vsel %vm470, %v3017, %v3351
        %v4074 = vsel %vm470, %v3018, %v3353
        %v4075 = vsel %vm470, %v3019, %v3355
        %v4076 = vsel %vm470, %v3020, %v3357
        %v4077 = vsel %vm470, %v3021, %v3359
        %v4078 = vsel %vm470, %v3022, %v3361
        %v4079 = vsel %vm470, %v3023, %v3363
        %v4080 = vsel %vm470, %v3024, %v3365
        %v4081 = vsel %vm470, %v3025, %v3367
        %v4082 = vsel %vm470, %v3026, %v3369
        %v4083 = vsel %vm470, %v3027, %v3371
        %v4084 = vsel %vm470, %v3028, %v3373
        %v4085 = vsel %vm470, %v3029, %v3375
        %v4086 = vsel %vm470, %v3030, %v3377
        %v4087 = vsel %vm470, %v3031, %v3379
        %v4088 = vsel %vm470, %v3032, %v3381
        %v4089 = vsel %vm470, %v3033, %v3383
        %v4090 = vsel %vm470, %v3034, %v3385
        %v4091 = vsel %vm470, %v3035, %v3387
        %v4092 = vsel %vm1734, %v4060, %v3453
        %v4093 = vsel %vm1734, %v4061, %v3455
        %v4094 = vsel %vm1734, %v4062, %v3457
        %v4095 = vsel %vm1734, %v4063, %v3459
        %v4096 = vsel %vm1734, %v4064, %v3461
        %v4097 = vsel %vm1734, %v4065, %v3463
        %v4098 = vsel %vm1734, %v4066, %v3465
        %v4099 = vsel %vm1734, %v4067, %v3467
        %v4100 = vsel %vm1734, %v4068, %v3469
        %v4101 = vsel %vm1734, %v4069, %v3471
        %v4102 = vsel %vm1734, %v4070, %v3473
        %v4103 = vsel %vm1734, %v4071, %v3475
        %v4104 = vsel %vm1734, %v4072, %v3477
        %v4105 = vsel %vm1734, %v4073, %v3479
        %v4106 = vsel %vm1734, %v4074, %v3481
        %v4107 = vsel %vm1734, %v4075, %v3483
        %v4108 = vsel %vm1734, %v4076, %v3485
        %v4109 = vsel %vm1734, %v4077, %v3487
        %v4110 = vsel %vm1734, %v4078, %v3489
        %v4111 = vsel %vm1734, %v4079, %v3491
        %v4112 = vsel %vm1734, %v4080, %v3493
        %v4113 = vsel %vm1734, %v4081, %v3495
        %v4114 = vsel %vm1734, %v4082, %v3497
        %v4115 = vsel %vm1734, %v4083, %v3499
        %v4116 = vsel %vm1734, %v4084, %v3501
        %v4117 = vsel %vm1734, %v4085, %v3503
        %v4118 = vsel %vm1734, %v4086, %v3505
        %v4119 = vsel %vm1734, %v4087, %v3507
        %v4120 = vsel %vm1734, %v4088, %v3509
        %v4121 = vsel %vm1734, %v4089, %v3511
        %v4122 = vsel %vm1734, %v4090, %v3513
        %v4123 = vsel %vm1734, %v4091, %v3515
        %v4124 = vsel %vm1767, %v4092, %v3581
        %v4125 = vsel %vm1767, %v4093, %v3583
        %v4126 = vsel %vm1767, %v4094, %v3585
        %v4127 = vsel %vm1767, %v4095, %v3587
        %v4128 = vsel %vm1767, %v4096, %v3589
        %v4129 = vsel %vm1767, %v4097, %v3591
        %v4130 = vsel %vm1767, %v4098, %v3593
        %v4131 = vsel %vm1767, %v4099, %v3595
        %v4132 = vsel %vm1767, %v4100, %v3597
        %v4133 = vsel %vm1767, %v4101, %v3599
        %v4134 = vsel %vm1767, %v4102, %v3601
        %v4135 = vsel %vm1767, %v4103, %v3603
        %v4136 = vsel %vm1767, %v4104, %v3605
        %v4137 = vsel %vm1767, %v4105, %v3607
        %v4138 = vsel %vm1767, %v4106, %v3609
        %v4139 = vsel %vm1767, %v4107, %v3611
        %v4140 = vsel %vm1767, %v4108, %v3613
        %v4141 = vsel %vm1767, %v4109, %v3615
        %v4142 = vsel %vm1767, %v4110, %v3617
        %v4143 = vsel %vm1767, %v4111, %v3619
        %v4144 = vsel %vm1767, %v4112, %v3621
        %v4145 = vsel %vm1767, %v4113, %v3623
        %v4146 = vsel %vm1767, %v4114, %v3625
        %v4147 = vsel %vm1767, %v4115, %v3627
        %v4148 = vsel %vm1767, %v4116, %v3629
        %v4149 = vsel %vm1767, %v4117, %v3631
        %v4150 = vsel %vm1767, %v4118, %v3633
        %v4151 = vsel %vm1767, %v4119, %v3635
        %v4152 = vsel %vm1767, %v4120, %v3637
        %v4153 = vsel %vm1767, %v4121, %v3639
        %v4154 = vsel %vm1767, %v4122, %v3641
        %v4155 = vsel %vm1767, %v4123, %v3643
        %v4156 = vsel %vm470, %v3132, %v3709
        %v4157 = vsel %vm470, %v3133, %v3711
        %v4158 = vsel %vm470, %v3134, %v3713
        %v4159 = vsel %vm470, %v3135, %v3715
        %v4160 = vsel %vm470, %v3136, %v3717
        %v4161 = vsel %vm470, %v3137, %v3719
        %v4162 = vsel %vm470, %v3138, %v3721
        %v4163 = vsel %vm470, %v3139, %v3723
        %v4164 = vsel %vm470, %v3140, %v3725
        %v4165 = vsel %vm470, %v3141, %v3727
        %v4166 = vsel %vm470, %v3142, %v3729
        %v4167 = vsel %vm470, %v3143, %v3731
        %v4168 = vsel %vm470, %v3144, %v3733
        %v4169 = vsel %vm470, %v3145, %v3735
        %v4170 = vsel %vm470, %v3146, %v3737
        %v4171 = vsel %vm470, %v3147, %v3739
        %v4172 = vsel %vm470, %v3148, %v3741
        %v4173 = vsel %vm470, %v3149, %v3743
        %v4174 = vsel %vm470, %v3150, %v3745
        %v4175 = vsel %vm470, %v3151, %v3747
        %v4176 = vsel %vm470, %v3152, %v3749
        %v4177 = vsel %vm470, %v3153, %v3751
        %v4178 = vsel %vm470, %v3154, %v3753
        %v4179 = vsel %vm470, %v3155, %v3755
        %v4180 = vsel %vm470, %v3156, %v3757
        %v4181 = vsel %vm470, %v3157, %v3759
        %v4182 = vsel %vm470, %v3158, %v3761
        %v4183 = vsel %vm470, %v3159, %v3763
        %v4184 = vsel %vm470, %v3160, %v3765
        %v4185 = vsel %vm470, %v3161, %v3767
        %v4186 = vsel %vm470, %v3162, %v3769
        %v4187 = vsel %vm470, %v3163, %v3771
        %v4188 = vsel %vm1734, %v4156, %v3837
        %v4189 = vsel %vm1734, %v4157, %v3839
        %v4190 = vsel %vm1734, %v4158, %v3841
        %v4191 = vsel %vm1734, %v4159, %v3843
        %v4192 = vsel %vm1734, %v4160, %v3845
        %v4193 = vsel %vm1734, %v4161, %v3847
        %v4194 = vsel %vm1734, %v4162, %v3849
        %v4195 = vsel %vm1734, %v4163, %v3851
        %v4196 = vsel %vm1734, %v4164, %v3853
        %v4197 = vsel %vm1734, %v4165, %v3855
        %v4198 = vsel %vm1734, %v4166, %v3857
        %v4199 = vsel %vm1734, %v4167, %v3859
        %v4200 = vsel %vm1734, %v4168, %v3861
        %v4201 = vsel %vm1734, %v4169, %v3863
        %v4202 = vsel %vm1734, %v4170, %v3865
        %v4203 = vsel %vm1734, %v4171, %v3867
        %v4204 = vsel %vm1734, %v4172, %v3869
        %v4205 = vsel %vm1734, %v4173, %v3871
        %v4206 = vsel %vm1734, %v4174, %v3873
        %v4207 = vsel %vm1734, %v4175, %v3875
        %v4208 = vsel %vm1734, %v4176, %v3877
        %v4209 = vsel %vm1734, %v4177, %v3879
        %v4210 = vsel %vm1734, %v4178, %v3881
        %v4211 = vsel %vm1734, %v4179, %v3883
        %v4212 = vsel %vm1734, %v4180, %v3885
        %v4213 = vsel %vm1734, %v4181, %v3887
        %v4214 = vsel %vm1734, %v4182, %v3889
        %v4215 = vsel %vm1734, %v4183, %v3891
        %v4216 = vsel %vm1734, %v4184, %v3893
        %v4217 = vsel %vm1734, %v4185, %v3895
        %v4218 = vsel %vm1734, %v4186, %v3897
        %v4219 = vsel %vm1734, %v4187, %v3899
        %v4220 = vsel %vm1767, %v4188, %v3965
        %v4221 = vsel %vm1767, %v4189, %v3967
        %v4222 = vsel %vm1767, %v4190, %v3969
        %v4223 = vsel %vm1767, %v4191, %v3971
        %v4224 = vsel %vm1767, %v4192, %v3973
        %v4225 = vsel %vm1767, %v4193, %v3975
        %v4226 = vsel %vm1767, %v4194, %v3977
        %v4227 = vsel %vm1767, %v4195, %v3979
        %v4228 = vsel %vm1767, %v4196, %v3981
        %v4229 = vsel %vm1767, %v4197, %v3983
        %v4230 = vsel %vm1767, %v4198, %v3985
        %v4231 = vsel %vm1767, %v4199, %v3987
        %v4232 = vsel %vm1767, %v4200, %v3989
        %v4233 = vsel %vm1767, %v4201, %v3991
        %v4234 = vsel %vm1767, %v4202, %v3993
        %v4235 = vsel %vm1767, %v4203, %v3995
        %v4236 = vsel %vm1767, %v4204, %v3997
        %v4237 = vsel %vm1767, %v4205, %v3999
        %v4238 = vsel %vm1767, %v4206, %v4001
        %v4239 = vsel %vm1767, %v4207, %v4003
        %v4240 = vsel %vm1767, %v4208, %v4005
        %v4241 = vsel %vm1767, %v4209, %v4007
        %v4242 = vsel %vm1767, %v4210, %v4009
        %v4243 = vsel %vm1767, %v4211, %v4011
        %v4244 = vsel %vm1767, %v4212, %v4013
        %v4245 = vsel %vm1767, %v4213, %v4015
        %v4246 = vsel %vm1767, %v4214, %v4017
        %v4247 = vsel %vm1767, %v4215, %v4019
        %v4248 = vsel %vm1767, %v4216, %v4021
        %v4249 = vsel %vm1767, %v4217, %v4023
        %v4250 = vsel %vm1767, %v4218, %v4025
        %v4251 = vsel %vm1767, %v4219, %v4027
        %v4252 = vpack.c.bf16 %v4125, %v4124
        %v4253 = vpack.c.bf16 %v4221, %v4220
        %v4254 = vpack.c.bf16 %v3261, %v3260
        %v4255 = vpack.c.bf16 %v4127, %v4126
        %v4256 = vpack.c.bf16 %v4223, %v4222
        %v4257 = vpack.c.bf16 %v3263, %v3262
        %v4258 = vpack.c.bf16 %v4129, %v4128
        %v4259 = vpack.c.bf16 %v4225, %v4224
        %v4260 = vpack.c.bf16 %v3265, %v3264
        %v4261 = vpack.c.bf16 %v4131, %v4130
        %v4262 = vpack.c.bf16 %v4227, %v4226
        %v4263 = vpack.c.bf16 %v3267, %v3266
        %v4264 = vpack.c.bf16 %v4133, %v4132
        %v4265 = vpack.c.bf16 %v4229, %v4228
        %v4266 = vpack.c.bf16 %v3269, %v3268
        %v4267 = vpack.c.bf16 %v4135, %v4134
        %v4268 = vpack.c.bf16 %v4231, %v4230
        %v4269 = vpack.c.bf16 %v3271, %v3270
        %v4270 = vpack.c.bf16 %v4137, %v4136
        %v4271 = vpack.c.bf16 %v4233, %v4232
        %v4272 = vpack.c.bf16 %v3273, %v3272
        %v4273 = vpack.c.bf16 %v4139, %v4138
        %v4274 = vpack.c.bf16 %v4235, %v4234
        %v4275 = vpack.c.bf16 %v3275, %v3274
        %v4276 = vpack.c.bf16 %v4141, %v4140
        %v4277 = vpack.c.bf16 %v4237, %v4236
        %v4278 = vpack.c.bf16 %v3277, %v3276
        %v4279 = vpack.c.bf16 %v4143, %v4142
        %v4280 = vpack.c.bf16 %v4239, %v4238
        %v4281 = vpack.c.bf16 %v3279, %v3278
        %v4282 = vpack.c.bf16 %v4145, %v4144
        %v4283 = vpack.c.bf16 %v4241, %v4240
        %v4284 = vpack.c.bf16 %v3281, %v3280
        %v4285 = vpack.c.bf16 %v4147, %v4146
        %v4286 = vpack.c.bf16 %v4243, %v4242
        %v4287 = vpack.c.bf16 %v3283, %v3282
        %v4288 = vpack.c.bf16 %v4149, %v4148
        %v4289 = vpack.c.bf16 %v4245, %v4244
        %v4290 = vpack.c.bf16 %v3285, %v3284
        %v4291 = vpack.c.bf16 %v4151, %v4150
        %v4292 = vpack.c.bf16 %v4247, %v4246
        %v4293 = vpack.c.bf16 %v3287, %v3286
        %v4294 = vpack.c.bf16 %v4153, %v4152
        %v4295 = vpack.c.bf16 %v4249, %v4248
        %v4296 = vpack.c.bf16 %v3289, %v3288
        %v4297 = vpack.c.bf16 %v4155, %v4154
        %v4298 = vpack.c.bf16 %v4251, %v4250
        %v4299 = vpack.c.bf16 %v3291, %v3290
        %v4300 = vld [vmem:[%s4] sm:$0xf]
        %v4301 = vld [vmem:[%s4 + $0x4] sm:$0xf]
        %v4302 = vld [vmem:[%s4 + $0x8] sm:$0xf]
        %v4303 = vld [vmem:[%s4 + $0xc] sm:$0xf]
        %v4304 = vld [vmem:[%s4 + $0x10] sm:$0xf]
        %v4305 = vld [vmem:[%s4 + $0x14] sm:$0xf]
        %v4306 = vld [vmem:[%s4 + $0x18] sm:$0xf]
        %v4307 = vld [vmem:[%s4 + $0x1c] sm:$0xf]
        %v4308 = vld [vmem:[%s4 + $0x20] sm:$0xf]
        %v4309 = vld [vmem:[%s4 + $0x24] sm:$0xf]
        %v4310 = vld [vmem:[%s4 + $0x28] sm:$0xf]
        %v4311 = vld [vmem:[%s4 + $0x2c] sm:$0xf]
        %v4312 = vld [vmem:[%s4 + $0x30] sm:$0xf]
        %v4313 = vld [vmem:[%s4 + $0x34] sm:$0xf]
        %v4314 = vld [vmem:[%s4 + $0x38] sm:$0xf]
        %v4315 = vld [vmem:[%s4 + $0x3c] sm:$0xf]
        %v4316 = vld [vmem:[%s4 + $0x40] sm:$0xf]
        %v4317 = vld [vmem:[%s4 + $0x44] sm:$0xf]
        %v4318 = vld [vmem:[%s4 + $0x48] sm:$0xf]
        %v4319 = vld [vmem:[%s4 + $0x4c] sm:$0xf]
        %v4320 = vld [vmem:[%s4 + $0x50] sm:$0xf]
        %v4321 = vld [vmem:[%s4 + $0x54] sm:$0xf]
        %v4322 = vld [vmem:[%s4 + $0x58] sm:$0xf]
        %v4323 = vld [vmem:[%s4 + $0x5c] sm:$0xf]
        %v4324 = vld [vmem:[%s4 + $0x60] sm:$0xf]
        %v4325 = vld [vmem:[%s4 + $0x64] sm:$0xf]
        %v4326 = vld [vmem:[%s4 + $0x68] sm:$0xf]
        %v4327 = vld [vmem:[%s4 + $0x6c] sm:$0xf]
        %v4328 = vld [vmem:[%s4 + $0x70] sm:$0xf]
        %v4329 = vld [vmem:[%s4 + $0x74] sm:$0xf]
        %v4330 = vld [vmem:[%s4 + $0x78] sm:$0xf]
        %v4331 = vld [vmem:[%s4 + $0x7c] sm:$0xf]
        %v4332 = vld [vmem:[%s4 + $0x80] sm:$0xf]
        %v4333 = vld [vmem:[%s4 + $0x84] sm:$0xf]
        %v4334 = vld [vmem:[%s4 + $0x88] sm:$0xf]
        %v4335 = vld [vmem:[%s4 + $0x8c] sm:$0xf]
        %v4372 = vunpack.c.l.b16 %v4300
        %v4373 = vunpack.c.l.b16 %v4301
        %v4374 = vunpack.c.l.b16 %v4302
        %v4375 = vunpack.c.l.b16 %v4303
        %v4376 = vunpack.c.l.b16 %v4304
        %v4377 = vunpack.c.l.b16 %v4305
        %v4378 = vunpack.c.l.b16 %v4306
        %v4379 = vunpack.c.l.b16 %v4307
        %v4380 = vunpack.c.l.b16 %v4308
        %v4381 = vunpack.c.l.b16 %v4309
        %v4382 = vunpack.c.l.b16 %v4310
        %v4383 = vunpack.c.l.b16 %v4311
        %v4384 = vunpack.c.l.b16 %v4312
        %v4385 = vunpack.c.l.b16 %v4313
        %v4386 = vunpack.c.l.b16 %v4314
        %v4387 = vunpack.c.l.b16 %v4315
        %v4388 = vunpack.c.l.b16 %v4316
        %v4389 = vunpack.c.l.b16 %v4317
        %v4390 = vunpack.c.l.b16 %v4318
        %v4391 = vunpack.c.l.b16 %v4319
        %v4392 = vunpack.c.l.b16 %v4320
        %v4393 = vunpack.c.l.b16 %v4321
        %v4394 = vunpack.c.l.b16 %v4322
        %v4395 = vunpack.c.l.b16 %v4323
        %v4396 = vunpack.c.l.b16 %v4324
        %v4397 = vunpack.c.l.b16 %v4325
        %v4398 = vunpack.c.l.b16 %v4326
        %v4399 = vunpack.c.l.b16 %v4327
        %v4400 = vunpack.c.l.b16 %v4328
        %v4401 = vunpack.c.l.b16 %v4329
        %v4402 = vunpack.c.l.b16 %v4330
        %v4403 = vunpack.c.l.b16 %v4331
        %v4404 = vunpack.c.l.b16 %v4332
        %v4405 = vunpack.c.l.b16 %v4333
        %v4406 = vunpack.c.l.b16 %v4334
        %v4407 = vunpack.c.l.b16 %v4335
        %v4408 = vpack.c.b16 %v4373, %v4372
        %v4409 = vpack.c.b16 %v4375, %v4374
        %v4410 = vpack.c.b16 %v4377, %v4376
        %v4411 = vpack.c.b16 %v4379, %v4378
        %v4412 = vpack.c.b16 %v4381, %v4380
        %v4413 = vpack.c.b16 %v4383, %v4382
        %v4414 = vpack.c.b16 %v4385, %v4384
        %v4415 = vpack.c.b16 %v4387, %v4386
        %v4416 = vpack.c.b16 %v4389, %v4388
        %v4417 = vpack.c.b16 %v4391, %v4390
        %v4418 = vpack.c.b16 %v4393, %v4392
        %v4419 = vpack.c.b16 %v4395, %v4394
        %v4420 = vpack.c.b16 %v4397, %v4396
        %v4421 = vpack.c.b16 %v4399, %v4398
        %v4422 = vpack.c.b16 %v4401, %v4400
        %v4423 = vpack.c.b16 %v4403, %v4402
        %v4424 = vpack.c.b16 %v4405, %v4404
        %v4425 = vpack.c.b16 %v4407, %v4406
        %v4445 = vsel %vm470, %v4254, 0
        %v4448 = vsel %vm470, %v4257, 0
        %v4451 = vsel %vm470, %v4260, 0
        %v4454 = vsel %vm470, %v4263, 0
        %v4457 = vsel %vm470, %v4266, 0
        %v4460 = vsel %vm470, %v4269, 0
        %v4463 = vsel %vm470, %v4272, 0
        %v4466 = vsel %vm470, %v4275, 0
        %v4469 = vsel %vm470, %v4278, 0
        %v4472 = vsel %vm470, %v4281, 0
        %v4475 = vsel %vm470, %v4284, 0
        %v4478 = vsel %vm470, %v4287, 0
        %v4481 = vsel %vm470, %v4290, 0
        %v4484 = vsel %vm470, %v4293, 0
        %v4487 = vsel %vm470, %v4296, 0
        %v4490 = vsel %vm470, %v4299, 0
        %4492 = vmatprep.subr.bf16.mxu0 0
        %4493 = vmatpush1.bf16.msra.mxu0 %v4415
        %4494 = vmatprep.subr.bf16.mxu0 0
        %4495 = vmatpush1.bf16.msra.mxu0 %v4414
        %4496 = vmatprep.subr.bf16.mxu0 0
        %4497 = vmatpush1.bf16.msra.mxu0 %v4413
        %4498 = vmatprep.subr.bf16.mxu0 0
        %4499 = vmatpush1.bf16.msra.mxu0 %v4412
        %4500 = vmatprep.subr.bf16.mxu0 0
        %4501 = vmatpush1.bf16.msra.mxu0 %v4411
        %4502 = vmatprep.subr.bf16.mxu0 0
        %4503 = vmatpush1.bf16.msra.mxu0 %v4410
        %4504 = vmatprep.subr.bf16.mxu0 0
        %4505 = vmatpush1.bf16.msra.mxu0 %v4409
        %4506 = vmatprep.subr.bf16.mxu0 0
        %4507 = vmatpush1.bf16.msra.mxu0 %v4408
        %4508 = vmatprep.subr.bf16.mxu0 0
        %4509 = vmatpush2.bf16.msra.mxu0 %v4423
        %4510 = vmatprep.subr.bf16.mxu0 0
        %4511 = vmatpush2.bf16.msra.mxu0 %v4422
        %4512 = vmatprep.subr.bf16.mxu0 0
        %4513 = vmatpush2.bf16.msra.mxu0 %v4421
        %4514 = vmatprep.subr.bf16.mxu0 0
        %4515 = vmatpush2.bf16.msra.mxu0 %v4420
        %4516 = vmatprep.subr.bf16.mxu0 0
        %4517 = vmatpush2.bf16.msra.mxu0 %v4419
        %4518 = vmatprep.subr.bf16.mxu0 0
        %4519 = vmatpush2.bf16.msra.mxu0 %v4418
        %4520 = vmatprep.subr.bf16.mxu0 0
        %4521 = vmatpush2.bf16.msra.mxu0 %v4417
        %4522 = vmatprep.subr.bf16.mxu0 0
        %4523 = vmatpush2.bf16.msra.mxu0 %v4416
        %4524 = vmatprep.mubr.bf16.mxu0 %v4253
        %4525 = vmatmul.mubr.bf16.gmra.mxu0 %v4252
        %v4526 = vpop.f32.mrf.mxu0
        %v4527 = vadd.f32 0.0, %v4526
        %v4528 = vpop.f32.mrf.mxu0
        %v4529 = vpop.f32.mrf.mxu0
        %v4530 = vadd.f32 0.0, %v4529
        %v4531 = vpop.f32.mrf.mxu0
        %4532 = vmatprep.mubr.bf16.mxu0 %v4256
        %4533 = vmatmul.mubr.bf16.gmra.mxu0 %v4255
        %v4534 = vpop.f32.mrf.mxu0
        %v4535 = vadd.f32 0.0, %v4534
        %v4536 = vpop.f32.mrf.mxu0
        %v4537 = vpop.f32.mrf.mxu0
        %v4538 = vadd.f32 0.0, %v4537
        %v4539 = vpop.f32.mrf.mxu0
        %4540 = vmatprep.mubr.bf16.mxu0 %v4259
        %4541 = vmatmul.mubr.bf16.gmra.mxu0 %v4258
        %v4542 = vpop.f32.mrf.mxu0
        %v4543 = vadd.f32 0.0, %v4542
        %v4544 = vpop.f32.mrf.mxu0
        %v4545 = vpop.f32.mrf.mxu0
        %v4546 = vadd.f32 0.0, %v4545
        %v4547 = vpop.f32.mrf.mxu0
        %4548 = vmatprep.mubr.bf16.mxu0 %v4262
        %4549 = vmatmul.mubr.bf16.gmra.mxu0 %v4261
        %v4550 = vpop.f32.mrf.mxu0
        %v4551 = vadd.f32 0.0, %v4550
        %v4552 = vpop.f32.mrf.mxu0
        %v4553 = vpop.f32.mrf.mxu0
        %v4554 = vadd.f32 0.0, %v4553
        %v4555 = vpop.f32.mrf.mxu0
        %4556 = vmatprep.mubr.bf16.mxu0 %v4265
        %4557 = vmatmul.mubr.bf16.gmra.mxu0 %v4264
        %v4558 = vpop.f32.mrf.mxu0
        %v4559 = vadd.f32 0.0, %v4558
        %v4560 = vpop.f32.mrf.mxu0
        %v4561 = vpop.f32.mrf.mxu0
        %v4562 = vadd.f32 0.0, %v4561
        %v4563 = vpop.f32.mrf.mxu0
        %4564 = vmatprep.mubr.bf16.mxu0 %v4268
        %4565 = vmatmul.mubr.bf16.gmra.mxu0 %v4267
        %v4566 = vpop.f32.mrf.mxu0
        %v4567 = vadd.f32 0.0, %v4566
        %v4568 = vpop.f32.mrf.mxu0
        %v4569 = vpop.f32.mrf.mxu0
        %v4570 = vadd.f32 0.0, %v4569
        %v4571 = vpop.f32.mrf.mxu0
        %4572 = vmatprep.mubr.bf16.mxu0 %v4271
        %4573 = vmatmul.mubr.bf16.gmra.mxu0 %v4270
        %v4574 = vpop.f32.mrf.mxu0
        %v4575 = vadd.f32 0.0, %v4574
        %v4576 = vpop.f32.mrf.mxu0
        %v4577 = vpop.f32.mrf.mxu0
        %v4578 = vadd.f32 0.0, %v4577
        %v4579 = vpop.f32.mrf.mxu0
        %4580 = vmatprep.mubr.bf16.mxu0 %v4274
        %4581 = vmatmul.mubr.bf16.gmra.mxu0 %v4273
        %v4582 = vpop.f32.mrf.mxu0
        %v4583 = vadd.f32 0.0, %v4582
        %v4584 = vpop.f32.mrf.mxu0
        %v4585 = vpop.f32.mrf.mxu0
        %v4586 = vadd.f32 0.0, %v4585
        %v4587 = vpop.f32.mrf.mxu0
        %4588 = vmatprep.mubr.bf16.mxu0 %v4277
        %4589 = vmatmul.mubr.bf16.gmra.mxu0 %v4276
        %v4590 = vpop.f32.mrf.mxu0
        %v4591 = vadd.f32 0.0, %v4590
        %v4592 = vpop.f32.mrf.mxu0
        %v4593 = vpop.f32.mrf.mxu0
        %v4594 = vadd.f32 0.0, %v4593
        %v4595 = vpop.f32.mrf.mxu0
        %4596 = vmatprep.mubr.bf16.mxu0 %v4280
        %4597 = vmatmul.mubr.bf16.gmra.mxu0 %v4279
        %v4598 = vpop.f32.mrf.mxu0
        %v4599 = vadd.f32 0.0, %v4598
        %v4600 = vpop.f32.mrf.mxu0
        %v4601 = vpop.f32.mrf.mxu0
        %v4602 = vadd.f32 0.0, %v4601
        %v4603 = vpop.f32.mrf.mxu0
        %4604 = vmatprep.mubr.bf16.mxu0 %v4283
        %4605 = vmatmul.mubr.bf16.gmra.mxu0 %v4282
        %v4606 = vpop.f32.mrf.mxu0
        %v4607 = vadd.f32 0.0, %v4606
        %v4608 = vpop.f32.mrf.mxu0
        %v4609 = vpop.f32.mrf.mxu0
        %v4610 = vadd.f32 0.0, %v4609
        %v4611 = vpop.f32.mrf.mxu0
        %4612 = vmatprep.mubr.bf16.mxu0 %v4286
        %4613 = vmatmul.mubr.bf16.gmra.mxu0 %v4285
        %v4614 = vpop.f32.mrf.mxu0
        %v4615 = vadd.f32 0.0, %v4614
        %v4616 = vpop.f32.mrf.mxu0
        %v4617 = vpop.f32.mrf.mxu0
        %v4618 = vadd.f32 0.0, %v4617
        %v4619 = vpop.f32.mrf.mxu0
        %4620 = vmatprep.mubr.bf16.mxu0 %v4289
        %4621 = vmatmul.mubr.bf16.gmra.mxu0 %v4288
        %v4622 = vpop.f32.mrf.mxu0
        %v4623 = vadd.f32 0.0, %v4622
        %v4624 = vpop.f32.mrf.mxu0
        %v4625 = vpop.f32.mrf.mxu0
        %v4626 = vadd.f32 0.0, %v4625
        %v4627 = vpop.f32.mrf.mxu0
        %4628 = vmatprep.mubr.bf16.mxu0 %v4292
        %4629 = vmatmul.mubr.bf16.gmra.mxu0 %v4291
        %v4630 = vpop.f32.mrf.mxu0
        %v4631 = vadd.f32 0.0, %v4630
        %v4632 = vpop.f32.mrf.mxu0
        %v4633 = vpop.f32.mrf.mxu0
        %v4634 = vadd.f32 0.0, %v4633
        %v4635 = vpop.f32.mrf.mxu0
        %4636 = vmatprep.mubr.bf16.mxu0 %v4295
        %4637 = vmatmul.mubr.bf16.gmra.mxu0 %v4294
        %v4638 = vpop.f32.mrf.mxu0
        %v4639 = vadd.f32 0.0, %v4638
        %v4640 = vpop.f32.mrf.mxu0
        %v4641 = vpop.f32.mrf.mxu0
        %v4642 = vadd.f32 0.0, %v4641
        %v4643 = vpop.f32.mrf.mxu0
        %4644 = vmatprep.mubr.bf16.mxu0 %v4298
        %4645 = vmatmul.mubr.bf16.gmra.mxu0 %v4297
        %v4646 = vpop.f32.mrf.mxu0
        %v4647 = vadd.f32 0.0, %v4646
        %v4648 = vpop.f32.mrf.mxu0
        %v4649 = vpop.f32.mrf.mxu0
        %v4650 = vadd.f32 0.0, %v4649
        %v4651 = vpop.f32.mrf.mxu0
        %4652 = vdwg.mxu0
        %4653 = vmatprep.subr.bf16.mxu0 0
        %4654 = vmatpush1.bf16.msra.mxu0 0
        %4655 = vmatprep.subr.bf16.mxu0 0
        %4656 = vmatpush1.bf16.msra.mxu0 0
        %4657 = vmatprep.subr.bf16.mxu0 0
        %4658 = vmatpush1.bf16.msra.mxu0 0
        %4659 = vmatprep.subr.bf16.mxu0 0
        %4660 = vmatpush1.bf16.msra.mxu0 0
        %4661 = vmatprep.subr.bf16.mxu0 0
        %4662 = vmatpush1.bf16.msra.mxu0 0
        %4663 = vmatprep.subr.bf16.mxu0 0
        %4664 = vmatpush1.bf16.msra.mxu0 0
        %4665 = vmatprep.subr.bf16.mxu0 0
        %4666 = vmatpush1.bf16.msra.mxu0 %v4425
        %4667 = vmatprep.subr.bf16.mxu0 0
        %4668 = vmatpush1.bf16.msra.mxu0 %v4424
        %4669 = vmatprep.subr.bf16.mxu0 0
        %4670 = vmatpush2.bf16.msra.mxu0 0
        %4671 = vmatprep.subr.bf16.mxu0 0
        %4672 = vmatpush2.bf16.msra.mxu0 0
        %4673 = vmatprep.subr.bf16.mxu0 0
        %4674 = vmatpush2.bf16.msra.mxu0 0
        %4675 = vmatprep.subr.bf16.mxu0 0
        %4676 = vmatpush2.bf16.msra.mxu0 0
        %4677 = vmatprep.subr.bf16.mxu0 0
        %4678 = vmatpush2.bf16.msra.mxu0 0
        %4679 = vmatprep.subr.bf16.mxu0 0
        %4680 = vmatpush2.bf16.msra.mxu0 0
        %4681 = vmatprep.subr.bf16.mxu0 0
        %4682 = vmatpush2.bf16.msra.mxu0 0
        %4683 = vmatprep.subr.bf16.mxu0 0
        %4684 = vmatpush2.bf16.msra.mxu0 0
        %4685 = vmatprep.mubr.bf16.mxu0 0
        %4686 = vmatmul.mubr.bf16.gmra.mxu0 %v4445
        %v4687 = vpop.f32.mrf.mxu0
        %v4688 = vadd.f32 %v4527, %v4687
        %v4689 = vpop.f32.mrf.mxu0
        %v4690 = vpop.f32.mrf.mxu0
        %v4691 = vadd.f32 %v4530, %v4690
        %v4692 = vpop.f32.mrf.mxu0
        %4693 = vmatprep.mubr.bf16.mxu0 0
        %4694 = vmatmul.mubr.bf16.gmra.mxu0 %v4448
        %v4695 = vpop.f32.mrf.mxu0
        %v4696 = vadd.f32 %v4535, %v4695
        %v4697 = vpop.f32.mrf.mxu0
        %v4698 = vpop.f32.mrf.mxu0
        %v4699 = vadd.f32 %v4538, %v4698
        %v4700 = vpop.f32.mrf.mxu0
        %4701 = vmatprep.mubr.bf16.mxu0 0
        %4702 = vmatmul.mubr.bf16.gmra.mxu0 %v4451
        %v4703 = vpop.f32.mrf.mxu0
        %v4704 = vadd.f32 %v4543, %v4703
        %v4705 = vpop.f32.mrf.mxu0
        %v4706 = vpop.f32.mrf.mxu0
        %v4707 = vadd.f32 %v4546, %v4706
        %v4708 = vpop.f32.mrf.mxu0
        %4709 = vmatprep.mubr.bf16.mxu0 0
        %4710 = vmatmul.mubr.bf16.gmra.mxu0 %v4454
        %v4711 = vpop.f32.mrf.mxu0
        %v4712 = vadd.f32 %v4551, %v4711
        %v4713 = vpop.f32.mrf.mxu0
        %v4714 = vpop.f32.mrf.mxu0
        %v4715 = vadd.f32 %v4554, %v4714
        %v4716 = vpop.f32.mrf.mxu0
        %4717 = vmatprep.mubr.bf16.mxu0 0
        %4718 = vmatmul.mubr.bf16.gmra.mxu0 %v4457
        %v4719 = vpop.f32.mrf.mxu0
        %v4720 = vadd.f32 %v4559, %v4719
        %v4721 = vpop.f32.mrf.mxu0
        %v4722 = vpop.f32.mrf.mxu0
        %v4723 = vadd.f32 %v4562, %v4722
        %v4724 = vpop.f32.mrf.mxu0
        %4725 = vmatprep.mubr.bf16.mxu0 0
        %4726 = vmatmul.mubr.bf16.gmra.mxu0 %v4460
        %v4727 = vpop.f32.mrf.mxu0
        %v4728 = vadd.f32 %v4567, %v4727
        %v4729 = vpop.f32.mrf.mxu0
        %v4730 = vpop.f32.mrf.mxu0
        %v4731 = vadd.f32 %v4570, %v4730
        %v4732 = vpop.f32.mrf.mxu0
        %4733 = vmatprep.mubr.bf16.mxu0 0
        %4734 = vmatmul.mubr.bf16.gmra.mxu0 %v4463
        %v4735 = vpop.f32.mrf.mxu0
        %v4736 = vadd.f32 %v4575, %v4735
        %v4737 = vpop.f32.mrf.mxu0
        %v4738 = vpop.f32.mrf.mxu0
        %v4739 = vadd.f32 %v4578, %v4738
        %v4740 = vpop.f32.mrf.mxu0
        %4741 = vmatprep.mubr.bf16.mxu0 0
        %4742 = vmatmul.mubr.bf16.gmra.mxu0 %v4466
        %v4743 = vpop.f32.mrf.mxu0
        %v4744 = vadd.f32 %v4583, %v4743
        %v4745 = vpop.f32.mrf.mxu0
        %v4746 = vpop.f32.mrf.mxu0
        %v4747 = vadd.f32 %v4586, %v4746
        %v4748 = vpop.f32.mrf.mxu0
        %4749 = vmatprep.mubr.bf16.mxu0 0
        %4750 = vmatmul.mubr.bf16.gmra.mxu0 %v4469
        %v4751 = vpop.f32.mrf.mxu0
        %v4752 = vadd.f32 %v4591, %v4751
        %v4753 = vpop.f32.mrf.mxu0
        %v4754 = vpop.f32.mrf.mxu0
        %v4755 = vadd.f32 %v4594, %v4754
        %v4756 = vpop.f32.mrf.mxu0
        %4757 = vmatprep.mubr.bf16.mxu0 0
        %4758 = vmatmul.mubr.bf16.gmra.mxu0 %v4472
        %v4759 = vpop.f32.mrf.mxu0
        %v4760 = vadd.f32 %v4599, %v4759
        %v4761 = vpop.f32.mrf.mxu0
        %v4762 = vpop.f32.mrf.mxu0
        %v4763 = vadd.f32 %v4602, %v4762
        %v4764 = vpop.f32.mrf.mxu0
        %4765 = vmatprep.mubr.bf16.mxu0 0
        %4766 = vmatmul.mubr.bf16.gmra.mxu0 %v4475
        %v4767 = vpop.f32.mrf.mxu0
        %v4768 = vadd.f32 %v4607, %v4767
        %v4769 = vpop.f32.mrf.mxu0
        %v4770 = vpop.f32.mrf.mxu0
        %v4771 = vadd.f32 %v4610, %v4770
        %v4772 = vpop.f32.mrf.mxu0
        %4773 = vmatprep.mubr.bf16.mxu0 0
        %4774 = vmatmul.mubr.bf16.gmra.mxu0 %v4478
        %v4775 = vpop.f32.mrf.mxu0
        %v4776 = vadd.f32 %v4615, %v4775
        %v4777 = vpop.f32.mrf.mxu0
        %v4778 = vpop.f32.mrf.mxu0
        %v4779 = vadd.f32 %v4618, %v4778
        %v4780 = vpop.f32.mrf.mxu0
        %4781 = vmatprep.mubr.bf16.mxu0 0
        %4782 = vmatmul.mubr.bf16.gmra.mxu0 %v4481
        %v4783 = vpop.f32.mrf.mxu0
        %v4784 = vadd.f32 %v4623, %v4783
        %v4785 = vpop.f32.mrf.mxu0
        %v4786 = vpop.f32.mrf.mxu0
        %v4787 = vadd.f32 %v4626, %v4786
        %v4788 = vpop.f32.mrf.mxu0
        %4789 = vmatprep.mubr.bf16.mxu0 0
        %4790 = vmatmul.mubr.bf16.gmra.mxu0 %v4484
        %v4791 = vpop.f32.mrf.mxu0
        %v4792 = vadd.f32 %v4631, %v4791
        %v4793 = vpop.f32.mrf.mxu0
        %v4794 = vpop.f32.mrf.mxu0
        %v4795 = vadd.f32 %v4634, %v4794
        %v4796 = vpop.f32.mrf.mxu0
        %4797 = vmatprep.mubr.bf16.mxu0 0
        %4798 = vmatmul.mubr.bf16.gmra.mxu0 %v4487
        %v4799 = vpop.f32.mrf.mxu0
        %v4800 = vadd.f32 %v4639, %v4799
        %v4801 = vpop.f32.mrf.mxu0
        %v4802 = vpop.f32.mrf.mxu0
        %v4803 = vadd.f32 %v4642, %v4802
        %v4804 = vpop.f32.mrf.mxu0
        %4805 = vmatprep.mubr.bf16.mxu0 0
        %4806 = vmatmul.mubr.bf16.gmra.mxu0 %v4490
        %v4807 = vpop.f32.mrf.mxu0
        %v4808 = vadd.f32 %v4647, %v4807
        %v4809 = vpop.f32.mrf.mxu0
        %v4810 = vpop.f32.mrf.mxu0
        %v4811 = vadd.f32 %v4650, %v4810
        %v4812 = vpop.f32.mrf.mxu0
        %4813 = vdwg.mxu0
        %v4814 = vsel %vm470, %v4688, 0.0
        %v4815 = vsel %vm470, %v4696, 0.0
        %v4816 = vadd.f32 %v4814, %v4815
        %v4817 = vsel %vm470, %v4704, 0.0
        %v4818 = vadd.f32 %v4816, %v4817
        %v4819 = vsel %vm470, %v4712, 0.0
        %v4820 = vadd.f32 %v4818, %v4819
        %v4821 = vsel %vm470, %v4720, 0.0
        %v4822 = vadd.f32 %v4820, %v4821
        %v4823 = vsel %vm470, %v4728, 0.0
        %v4824 = vadd.f32 %v4822, %v4823
        %v4825 = vsel %vm470, %v4736, 0.0
        %v4826 = vadd.f32 %v4824, %v4825
        %v4827 = vsel %vm470, %v4744, 0.0
        %v4828 = vadd.f32 %v4826, %v4827
        %v4829 = vsel %vm470, %v4752, 0.0
        %v4830 = vadd.f32 %v4828, %v4829
        %v4831 = vsel %vm470, %v4760, 0.0
        %v4832 = vadd.f32 %v4830, %v4831
        %v4833 = vsel %vm470, %v4768, 0.0
        %v4834 = vadd.f32 %v4832, %v4833
        %v4835 = vsel %vm470, %v4776, 0.0
        %v4836 = vadd.f32 %v4834, %v4835
        %v4837 = vsel %vm470, %v4784, 0.0
        %v4838 = vadd.f32 %v4836, %v4837
        %v4839 = vsel %vm470, %v4792, 0.0
        %v4840 = vadd.f32 %v4838, %v4839
        %v4841 = vsel %vm470, %v4800, 0.0
        %v4842 = vadd.f32 %v4840, %v4841
        %v4843 = vsel %vm470, %v4808, 0.0
        %v4844 = vadd.f32 %v4842, %v4843
        %v4845 = vsel %vm470, %v4691, 0.0
        %v4846 = vsel %vm470, %v4699, 0.0
        %v4847 = vadd.f32 %v4845, %v4846
        %v4848 = vsel %vm470, %v4707, 0.0
        %v4849 = vadd.f32 %v4847, %v4848
        %v4850 = vsel %vm470, %v4715, 0.0
        %v4851 = vadd.f32 %v4849, %v4850
        %v4852 = vsel %vm470, %v4723, 0.0
        %v4853 = vadd.f32 %v4851, %v4852
        %v4854 = vsel %vm470, %v4731, 0.0
        %v4855 = vadd.f32 %v4853, %v4854
        %v4856 = vsel %vm470, %v4739, 0.0
        %v4857 = vadd.f32 %v4855, %v4856
        %v4858 = vsel %vm470, %v4747, 0.0
        %v4859 = vadd.f32 %v4857, %v4858
        %v4860 = vsel %vm470, %v4755, 0.0
        %v4861 = vadd.f32 %v4859, %v4860
        %v4862 = vsel %vm470, %v4763, 0.0
        %v4863 = vadd.f32 %v4861, %v4862
        %v4864 = vsel %vm470, %v4771, 0.0
        %v4865 = vadd.f32 %v4863, %v4864
        %v4866 = vsel %vm470, %v4779, 0.0
        %v4867 = vadd.f32 %v4865, %v4866
        %v4868 = vsel %vm470, %v4787, 0.0
        %v4869 = vadd.f32 %v4867, %v4868
        %v4870 = vsel %vm470, %v4795, 0.0
        %v4871 = vadd.f32 %v4869, %v4870
        %v4872 = vsel %vm470, %v4803, 0.0
        %v4873 = vadd.f32 %v4871, %v4872
        %v4874 = vsel %vm470, %v4811, 0.0
        %v4875 = vadd.f32 %v4873, %v4874
        %v4876 = vmul.f32 %v4844, %v2520
        %v4877 = vmul.f32 %v4875, %v2520
        %v4878 = vsel %vm470, %v4876, 0.0
        %v4879 = vsel %vm470, %v4877, 0.0
        %v4880 = vadd.f32 %v4878, %v4879
        %v4881 = vrot.slane %v4880, 4
        %v4882 = vadd.f32 %v4880, %v4881
        %v4883 = vrot.slane %v4882, 2
        %v4884 = vadd.f32 %v4882, %v4883
        %v4885 = vrot.slane %v4884, 1
        %v4886 = vadd.f32 %v4884, %v4885
        %v4887 = vmul.f32 %v4886, %v2520
        %v4888 = vld [vmem:[#allocation7] sm:$0xff]
        %v4889 = vld [vmem:[#allocation7 + $0x8] sm:$0xff]
        %v4890 = vld [vmem:[#allocation7 + $0x10] sm:$0xff]
        %v4891 = vld [vmem:[#allocation7 + $0x18] sm:$0xff]
        %v4893 = vsel %vm470, %v4887, 0
        %4895 = vmatprep.subr.mxu0 0.0
        %4896 = vmatpush1.msra.mxu0 0.0
        %4897 = vmatprep.subr.mxu0 0.0
        %4898 = vmatpush1.msra.mxu0 0.0
        %4899 = vmatprep.subr.mxu0 0.0
        %4900 = vmatpush1.msra.mxu0 0.0
        %4901 = vmatprep.subr.mxu0 0.0
        %4902 = vmatpush1.msra.mxu0 0.0
        %4903 = vmatprep.subr.mxu0 0.0
        %4904 = vmatpush1.msra.mxu0 0.0
        %4905 = vmatprep.subr.mxu0 0.0
        %4906 = vmatpush1.msra.mxu0 0.0
        %4907 = vmatprep.subr.mxu0 0.0
        %4908 = vmatpush1.msra.mxu0 0.0
        %4909 = vmatprep.subr.mxu0 0.0
        %4910 = vmatpush1.msra.mxu0 0.0
        %4911 = vmatprep.subr.mxu0 0.0
        %4912 = vmatpush1.msra.mxu0 0.0
        %4913 = vmatprep.subr.mxu0 0.0
        %4914 = vmatpush1.msra.mxu0 0.0
        %4915 = vmatprep.subr.mxu0 0.0
        %4916 = vmatpush1.msra.mxu0 0.0
        %4917 = vmatprep.subr.mxu0 0.0
        %4918 = vmatpush1.msra.mxu0 0.0
        %4919 = vmatprep.subr.mxu0 0.0
        %4920 = vmatpush1.msra.mxu0 %v4891
        %4921 = vmatprep.subr.mxu0 0.0
        %4922 = vmatpush1.msra.mxu0 %v4890
        %4923 = vmatprep.subr.mxu0 0.0
        %4924 = vmatpush1.msra.mxu0 %v4889
        %4925 = vmatprep.subr.mxu0 0.0
        %4926 = vmatpush1.msra.mxu0 %v4888
        %4927 = vmatprep.subr.mxu0 0.0
        %4928 = vmatpush2.msra.mxu0 0.0
        %4929 = vmatprep.subr.mxu0 0.0
        %4930 = vmatpush2.msra.mxu0 0.0
        %4931 = vmatprep.subr.mxu0 0.0
        %4932 = vmatpush2.msra.mxu0 0.0
        %4933 = vmatprep.subr.mxu0 0.0
        %4934 = vmatpush2.msra.mxu0 0.0
        %4935 = vmatprep.subr.mxu0 0.0
        %4936 = vmatpush2.msra.mxu0 0.0
        %4937 = vmatprep.subr.mxu0 0.0
        %4938 = vmatpush2.msra.mxu0 0.0
        %4939 = vmatprep.subr.mxu0 0.0
        %4940 = vmatpush2.msra.mxu0 0.0
        %4941 = vmatprep.subr.mxu0 0.0
        %4942 = vmatpush2.msra.mxu0 0.0
        %4943 = vmatprep.subr.mxu0 0.0
        %4944 = vmatpush2.msra.mxu0 0.0
        %4945 = vmatprep.subr.mxu0 0.0
        %4946 = vmatpush2.msra.mxu0 0.0
        %4947 = vmatprep.subr.mxu0 0.0
        %4948 = vmatpush2.msra.mxu0 0.0
        %4949 = vmatprep.subr.mxu0 0.0
        %4950 = vmatpush2.msra.mxu0 0.0
        %4951 = vmatprep.subr.mxu0 0.0
        %4952 = vmatpush2.msra.mxu0 0.0
        %4953 = vmatprep.subr.mxu0 0.0
        %4954 = vmatpush2.msra.mxu0 0.0
        %4955 = vmatprep.subr.mxu0 0.0
        %4956 = vmatpush2.msra.mxu0 0.0
        %4957 = vmatprep.subr.mxu0 0.0
        %4958 = vmatpush2.msra.mxu0 0.0
        %4959 = vmatprep.mubr.f32.mxu0 0.0
        %4960 = vmatmul.mubr.f32.gmra.mxu0 %v4893
        %v4961 = vpop.f32.mrf.mxu0
        %v4962 = vadd.f32 0.0, %v4961
        %v4963 = vpop.f32.mrf.mxu0
        %4964 = vdwg.mxu0
        %v4965 = vlaneseq
        %v4966 = vshrl.u32 %v4965, 7
        %v4967 = vsub.s32 0, %v4966
        %v4968 = vrot.slane %v4962, %v4967
        %v4969 = vsub.f32 %v4688, %v4968
        %v4970 = vsub.f32 %v4691, %v4968
        %v4971 = vsub.f32 %v4696, %v4968
        %v4972 = vsub.f32 %v4699, %v4968
        %v4973 = vsub.f32 %v4704, %v4968
        %v4974 = vsub.f32 %v4707, %v4968
        %v4975 = vsub.f32 %v4712, %v4968
        %v4976 = vsub.f32 %v4715, %v4968
        %v4977 = vsub.f32 %v4720, %v4968
        %v4978 = vsub.f32 %v4723, %v4968
        %v4979 = vsub.f32 %v4728, %v4968
        %v4980 = vsub.f32 %v4731, %v4968
        %v4981 = vsub.f32 %v4736, %v4968
        %v4982 = vsub.f32 %v4739, %v4968
        %v4983 = vsub.f32 %v4744, %v4968
        %v4984 = vsub.f32 %v4747, %v4968
        %v4985 = vsub.f32 %v4752, %v4968
        %v4986 = vsub.f32 %v4755, %v4968
        %v4987 = vsub.f32 %v4760, %v4968
        %v4988 = vsub.f32 %v4763, %v4968
        %v4989 = vsub.f32 %v4768, %v4968
        %v4990 = vsub.f32 %v4771, %v4968
        %v4991 = vsub.f32 %v4776, %v4968
        %v4992 = vsub.f32 %v4779, %v4968
        %v4993 = vsub.f32 %v4784, %v4968
        %v4994 = vsub.f32 %v4787, %v4968
        %v4995 = vsub.f32 %v4792, %v4968
        %v4996 = vsub.f32 %v4795, %v4968
        %v4997 = vsub.f32 %v4800, %v4968
        %v4998 = vsub.f32 %v4803, %v4968
        %v4999 = vsub.f32 %v4808, %v4968
        %v5000 = vsub.f32 %v4811, %v4968
        %v5001 = vmul.f32 %v4969, %v4969
        %v5002 = vmul.f32 %v4970, %v4970
        %v5003 = vmul.f32 %v4971, %v4971
        %v5004 = vmul.f32 %v4972, %v4972
        %v5005 = vmul.f32 %v4973, %v4973
        %v5006 = vmul.f32 %v4974, %v4974
        %v5007 = vmul.f32 %v4975, %v4975
        %v5008 = vmul.f32 %v4976, %v4976
        %v5009 = vmul.f32 %v4977, %v4977
        %v5010 = vmul.f32 %v4978, %v4978
        %v5011 = vmul.f32 %v4979, %v4979
        %v5012 = vmul.f32 %v4980, %v4980
        %v5013 = vmul.f32 %v4981, %v4981
        %v5014 = vmul.f32 %v4982, %v4982
        %v5015 = vmul.f32 %v4983, %v4983
        %v5016 = vmul.f32 %v4984, %v4984
        %v5017 = vmul.f32 %v4985, %v4985
        %v5018 = vmul.f32 %v4986, %v4986
        %v5019 = vmul.f32 %v4987, %v4987
        %v5020 = vmul.f32 %v4988, %v4988
        %v5021 = vmul.f32 %v4989, %v4989
        %v5022 = vmul.f32 %v4990, %v4990
        %v5023 = vmul.f32 %v4991, %v4991
        %v5024 = vmul.f32 %v4992, %v4992
        %v5025 = vmul.f32 %v4993, %v4993
        %v5026 = vmul.f32 %v4994, %v4994
        %v5027 = vmul.f32 %v4995, %v4995
        %v5028 = vmul.f32 %v4996, %v4996
        %v5029 = vmul.f32 %v4997, %v4997
        %v5030 = vmul.f32 %v4998, %v4998
        %v5031 = vmul.f32 %v4999, %v4999
        %v5032 = vmul.f32 %v5000, %v5000
        %v5033 = vsel %vm470, %v5001, 0.0
        %v5034 = vsel %vm470, %v5003, 0.0
        %v5035 = vadd.f32 %v5033, %v5034
        %v5036 = vsel %vm470, %v5005, 0.0
        %v5037 = vadd.f32 %v5035, %v5036
        %v5038 = vsel %vm470, %v5007, 0.0
        %v5039 = vadd.f32 %v5037, %v5038
        %v5040 = vsel %vm470, %v5009, 0.0
        %v5041 = vadd.f32 %v5039, %v5040
        %v5042 = vsel %vm470, %v5011, 0.0
        %v5043 = vadd.f32 %v5041, %v5042
        %v5044 = vsel %vm470, %v5013, 0.0
        %v5045 = vadd.f32 %v5043, %v5044
        %v5046 = vsel %vm470, %v5015, 0.0
        %v5047 = vadd.f32 %v5045, %v5046
        %v5048 = vsel %vm470, %v5017, 0.0
        %v5049 = vadd.f32 %v5047, %v5048
        %v5050 = vsel %vm470, %v5019, 0.0
        %v5051 = vadd.f32 %v5049, %v5050
        %v5052 = vsel %vm470, %v5021, 0.0
        %v5053 = vadd.f32 %v5051, %v5052
        %v5054 = vsel %vm470, %v5023, 0.0
        %v5055 = vadd.f32 %v5053, %v5054
        %v5056 = vsel %vm470, %v5025, 0.0
        %v5057 = vadd.f32 %v5055, %v5056
        %v5058 = vsel %vm470, %v5027, 0.0
        %v5059 = vadd.f32 %v5057, %v5058
        %v5060 = vsel %vm470, %v5029, 0.0
        %v5061 = vadd.f32 %v5059, %v5060
        %v5062 = vsel %vm470, %v5031, 0.0
        %v5063 = vadd.f32 %v5061, %v5062
        %v5064 = vsel %vm470, %v5002, 0.0
        %v5065 = vsel %vm470, %v5004, 0.0
        %v5066 = vadd.f32 %v5064, %v5065
        %v5067 = vsel %vm470, %v5006, 0.0
        %v5068 = vadd.f32 %v5066, %v5067
        %v5069 = vsel %vm470, %v5008, 0.0
        %v5070 = vadd.f32 %v5068, %v5069
        %v5071 = vsel %vm470, %v5010, 0.0
        %v5072 = vadd.f32 %v5070, %v5071
        %v5073 = vsel %vm470, %v5012, 0.0
        %v5074 = vadd.f32 %v5072, %v5073
        %v5075 = vsel %vm470, %v5014, 0.0
        %v5076 = vadd.f32 %v5074, %v5075
        %v5077 = vsel %vm470, %v5016, 0.0
        %v5078 = vadd.f32 %v5076, %v5077
        %v5079 = vsel %vm470, %v5018, 0.0
        %v5080 = vadd.f32 %v5078, %v5079
        %v5081 = vsel %vm470, %v5020, 0.0
        %v5082 = vadd.f32 %v5080, %v5081
        %v5083 = vsel %vm470, %v5022, 0.0
        %v5084 = vadd.f32 %v5082, %v5083
        %v5085 = vsel %vm470, %v5024, 0.0
        %v5086 = vadd.f32 %v5084, %v5085
        %v5087 = vsel %vm470, %v5026, 0.0
        %v5088 = vadd.f32 %v5086, %v5087
        %v5089 = vsel %vm470, %v5028, 0.0
        %v5090 = vadd.f32 %v5088, %v5089
        %v5091 = vsel %vm470, %v5030, 0.0
        %v5092 = vadd.f32 %v5090, %v5091
        %v5093 = vsel %vm470, %v5032, 0.0
        %v5094 = vadd.f32 %v5092, %v5093
        %v5095 = vmul.f32 %v5063, %v2520
        %v5096 = vmul.f32 %v5094, %v2520
        %v5097 = vsel %vm470, %v5095, 0.0
        %v5098 = vsel %vm470, %v5096, 0.0
        %v5099 = vadd.f32 %v5097, %v5098
        %v5100 = vrot.slane %v5099, 4
        %v5101 = vadd.f32 %v5099, %v5100
        %v5102 = vrot.slane %v5101, 2
        %v5103 = vadd.f32 %v5101, %v5102
        %v5104 = vrot.slane %v5103, 1
        %v5105 = vadd.f32 %v5103, %v5104
        %v5106 = vmul.f32 %v5105, %v2520
        %v5108 = vsel %vm470, %v5106, 0
        %5110 = vmatprep.subr.mxu0 0.0
        %5111 = vmatpush1.msra.mxu0 0.0
        %5112 = vmatprep.subr.mxu0 0.0
        %5113 = vmatpush1.msra.mxu0 0.0
        %5114 = vmatprep.subr.mxu0 0.0
        %5115 = vmatpush1.msra.mxu0 0.0
        %5116 = vmatprep.subr.mxu0 0.0
        %5117 = vmatpush1.msra.mxu0 0.0
        %5118 = vmatprep.subr.mxu0 0.0
        %5119 = vmatpush1.msra.mxu0 0.0
        %5120 = vmatprep.subr.mxu0 0.0
        %5121 = vmatpush1.msra.mxu0 0.0
        %5122 = vmatprep.subr.mxu0 0.0
        %5123 = vmatpush1.msra.mxu0 0.0
        %5124 = vmatprep.subr.mxu0 0.0
        %5125 = vmatpush1.msra.mxu0 0.0
        %5126 = vmatprep.subr.mxu0 0.0
        %5127 = vmatpush1.msra.mxu0 0.0
        %5128 = vmatprep.subr.mxu0 0.0
        %5129 = vmatpush1.msra.mxu0 0.0
        %5130 = vmatprep.subr.mxu0 0.0
        %5131 = vmatpush1.msra.mxu0 0.0
        %5132 = vmatprep.subr.mxu0 0.0
        %5133 = vmatpush1.msra.mxu0 0.0
        %5134 = vmatprep.subr.mxu0 0.0
        %5135 = vmatpush1.msra.mxu0 %v4891
        %5136 = vmatprep.subr.mxu0 0.0
        %5137 = vmatpush1.msra.mxu0 %v4890
        %5138 = vmatprep.subr.mxu0 0.0
        %5139 = vmatpush1.msra.mxu0 %v4889
        %5140 = vmatprep.subr.mxu0 0.0
        %5141 = vmatpush1.msra.mxu0 %v4888
        %5142 = vmatprep.subr.mxu0 0.0
        %5143 = vmatpush2.msra.mxu0 0.0
        %5144 = vmatprep.subr.mxu0 0.0
        %5145 = vmatpush2.msra.mxu0 0.0
        %5146 = vmatprep.subr.mxu0 0.0
        %5147 = vmatpush2.msra.mxu0 0.0
        %5148 = vmatprep.subr.mxu0 0.0
        %5149 = vmatpush2.msra.mxu0 0.0
        %5150 = vmatprep.subr.mxu0 0.0
        %5151 = vmatpush2.msra.mxu0 0.0
        %5152 = vmatprep.subr.mxu0 0.0
        %5153 = vmatpush2.msra.mxu0 0.0
        %5154 = vmatprep.subr.mxu0 0.0
        %5155 = vmatpush2.msra.mxu0 0.0
        %5156 = vmatprep.subr.mxu0 0.0
        %5157 = vmatpush2.msra.mxu0 0.0
        %5158 = vmatprep.subr.mxu0 0.0
        %5159 = vmatpush2.msra.mxu0 0.0
        %5160 = vmatprep.subr.mxu0 0.0
        %5161 = vmatpush2.msra.mxu0 0.0
        %5162 = vmatprep.subr.mxu0 0.0
        %5163 = vmatpush2.msra.mxu0 0.0
        %5164 = vmatprep.subr.mxu0 0.0
        %5165 = vmatpush2.msra.mxu0 0.0
        %5166 = vmatprep.subr.mxu0 0.0
        %5167 = vmatpush2.msra.mxu0 0.0
        %5168 = vmatprep.subr.mxu0 0.0
        %5169 = vmatpush2.msra.mxu0 0.0
        %5170 = vmatprep.subr.mxu0 0.0
        %5171 = vmatpush2.msra.mxu0 0.0
        %5172 = vmatprep.subr.mxu0 0.0
        %5173 = vmatpush2.msra.mxu0 0.0
        %5174 = vmatprep.mubr.f32.mxu0 0.0
        %5175 = vmatmul.mubr.f32.gmra.mxu0 %v5108
        %v5176 = vpop.f32.mrf.mxu0
        %v5177 = vadd.f32 1e-05, %v5176
        %v5178 = vpop.f32.mrf.mxu0
        %5179 = vdwg.mxu0
        %v5180 = vrsqrt.pop %v5177
        %v5181 = vlaneseq
        %v5182 = vshrl.u32 %v5181, 7
        %v5183 = vsub.s32 0, %v5182
        %v5184 = vrot.slane %v5180, %v5183
        %v5185 = vmul.f32 %v4969, %v5184
        %v5186 = vmul.f32 %v4970, %v5184
        %v5187 = vmul.f32 %v4971, %v5184
        %v5188 = vmul.f32 %v4972, %v5184
        %v5189 = vmul.f32 %v4973, %v5184
        %v5190 = vmul.f32 %v4974, %v5184
        %v5191 = vmul.f32 %v4975, %v5184
        %v5192 = vmul.f32 %v4976, %v5184
        %v5193 = vmul.f32 %v4977, %v5184
        %v5194 = vmul.f32 %v4978, %v5184
        %v5195 = vmul.f32 %v4979, %v5184
        %v5196 = vmul.f32 %v4980, %v5184
        %v5197 = vmul.f32 %v4981, %v5184
        %v5198 = vmul.f32 %v4982, %v5184
        %v5199 = vmul.f32 %v4983, %v5184
        %v5200 = vmul.f32 %v4984, %v5184
        %v5201 = vmul.f32 %v4985, %v5184
        %v5202 = vmul.f32 %v4986, %v5184
        %v5203 = vmul.f32 %v4987, %v5184
        %v5204 = vmul.f32 %v4988, %v5184
        %v5205 = vmul.f32 %v4989, %v5184
        %v5206 = vmul.f32 %v4990, %v5184
        %v5207 = vmul.f32 %v4991, %v5184
        %v5208 = vmul.f32 %v4992, %v5184
        %v5209 = vmul.f32 %v4993, %v5184
        %v5210 = vmul.f32 %v4994, %v5184
        %v5211 = vmul.f32 %v4995, %v5184
        %v5212 = vmul.f32 %v4996, %v5184
        %v5213 = vmul.f32 %v4997, %v5184
        %v5214 = vmul.f32 %v4998, %v5184
        %v5215 = vmul.f32 %v4999, %v5184
        %v5216 = vmul.f32 %v5000, %v5184
        %v5217 = vld [vmem:[%s5] sm:$0x1]
        %v5219 = vlaneseq
        %v5220 = vshrl.u32 %v5219, 7
        %v5221 = vsub.s32 0, %v5220
        %v5222 = vrot.slane %v5217, %v5221
        %v5224 = vmul.f32 %v5185, %v5222
        %v5225 = vmul.f32 %v5186, %v5222
        %v5226 = vmul.f32 %v5187, %v5222
        %v5227 = vmul.f32 %v5188, %v5222
        %v5228 = vmul.f32 %v5189, %v5222
        %v5229 = vmul.f32 %v5190, %v5222
        %v5230 = vmul.f32 %v5191, %v5222
        %v5231 = vmul.f32 %v5192, %v5222
        %v5232 = vmul.f32 %v5193, %v5222
        %v5233 = vmul.f32 %v5194, %v5222
        %v5234 = vmul.f32 %v5195, %v5222
        %v5235 = vmul.f32 %v5196, %v5222
        %v5236 = vmul.f32 %v5197, %v5222
        %v5237 = vmul.f32 %v5198, %v5222
        %v5238 = vmul.f32 %v5199, %v5222
        %v5239 = vmul.f32 %v5200, %v5222
        %v5240 = vmul.f32 %v5201, %v5222
        %v5241 = vmul.f32 %v5202, %v5222
        %v5242 = vmul.f32 %v5203, %v5222
        %v5243 = vmul.f32 %v5204, %v5222
        %v5244 = vmul.f32 %v5205, %v5222
        %v5245 = vmul.f32 %v5206, %v5222
        %v5246 = vmul.f32 %v5207, %v5222
        %v5247 = vmul.f32 %v5208, %v5222
        %v5248 = vmul.f32 %v5209, %v5222
        %v5249 = vmul.f32 %v5210, %v5222
        %v5250 = vmul.f32 %v5211, %v5222
        %v5251 = vmul.f32 %v5212, %v5222
        %v5252 = vmul.f32 %v5213, %v5222
        %v5253 = vmul.f32 %v5214, %v5222
        %v5254 = vmul.f32 %v5215, %v5222
        %v5255 = vmul.f32 %v5216, %v5222
        %v5256 = vld [vmem:[%s6] sm:$0x1]
        %v5258 = vlaneseq
        %v5259 = vshrl.u32 %v5258, 7
        %v5260 = vsub.s32 0, %v5259
        %v5261 = vrot.slane %v5256, %v5260
        %v5263 = vadd.f32 %v5224, %v5261
        %v5264 = vadd.f32 %v5225, %v5261
        %v5265 = vadd.f32 %v5226, %v5261
        %v5266 = vadd.f32 %v5227, %v5261
        %v5267 = vadd.f32 %v5228, %v5261
        %v5268 = vadd.f32 %v5229, %v5261
        %v5269 = vadd.f32 %v5230, %v5261
        %v5270 = vadd.f32 %v5231, %v5261
        %v5271 = vadd.f32 %v5232, %v5261
        %v5272 = vadd.f32 %v5233, %v5261
        %v5273 = vadd.f32 %v5234, %v5261
        %v5274 = vadd.f32 %v5235, %v5261
        %v5275 = vadd.f32 %v5236, %v5261
        %v5276 = vadd.f32 %v5237, %v5261
        %v5277 = vadd.f32 %v5238, %v5261
        %v5278 = vadd.f32 %v5239, %v5261
        %v5279 = vadd.f32 %v5240, %v5261
        %v5280 = vadd.f32 %v5241, %v5261
        %v5281 = vadd.f32 %v5242, %v5261
        %v5282 = vadd.f32 %v5243, %v5261
        %v5283 = vadd.f32 %v5244, %v5261
        %v5284 = vadd.f32 %v5245, %v5261
        %v5285 = vadd.f32 %v5246, %v5261
        %v5286 = vadd.f32 %v5247, %v5261
        %v5287 = vadd.f32 %v5248, %v5261
        %v5288 = vadd.f32 %v5249, %v5261
        %v5289 = vadd.f32 %v5250, %v5261
        %v5290 = vadd.f32 %v5251, %v5261
        %v5291 = vadd.f32 %v5252, %v5261
        %v5292 = vadd.f32 %v5253, %v5261
        %v5293 = vadd.f32 %v5254, %v5261
        %v5294 = vadd.f32 %v5255, %v5261
        %v5295 = vmax.f32 %v5263, 0.0
        %v5296 = vmax.f32 %v5264, 0.0
        %v5297 = vmax.f32 %v5265, 0.0
        %v5298 = vmax.f32 %v5266, 0.0
        %v5299 = vmax.f32 %v5267, 0.0
        %v5300 = vmax.f32 %v5268, 0.0
        %v5301 = vmax.f32 %v5269, 0.0
        %v5302 = vmax.f32 %v5270, 0.0
        %v5303 = vmax.f32 %v5271, 0.0
        %v5304 = vmax.f32 %v5272, 0.0
        %v5305 = vmax.f32 %v5273, 0.0
        %v5306 = vmax.f32 %v5274, 0.0
        %v5307 = vmax.f32 %v5275, 0.0
        %v5308 = vmax.f32 %v5276, 0.0
        %v5309 = vmax.f32 %v5277, 0.0
        %v5310 = vmax.f32 %v5278, 0.0
        %v5311 = vmax.f32 %v5279, 0.0
        %v5312 = vmax.f32 %v5280, 0.0
        %v5313 = vmax.f32 %v5281, 0.0
        %v5314 = vmax.f32 %v5282, 0.0
        %v5315 = vmax.f32 %v5283, 0.0
        %v5316 = vmax.f32 %v5284, 0.0
        %v5317 = vmax.f32 %v5285, 0.0
        %v5318 = vmax.f32 %v5286, 0.0
        %v5319 = vmax.f32 %v5287, 0.0
        %v5320 = vmax.f32 %v5288, 0.0
        %v5321 = vmax.f32 %v5289, 0.0
        %v5322 = vmax.f32 %v5290, 0.0
        %v5323 = vmax.f32 %v5291, 0.0
        %v5324 = vmax.f32 %v5292, 0.0
        %v5325 = vmax.f32 %v5293, 0.0
        %v5326 = vmax.f32 %v5294, 0.0
        %s5327 = scalar_lea.vmem [#allocation3], 24
        %5328 = vst.msk [vmem:[%s5327 + $0x1] sm:$0xff] %vm470, %v5295
        %5329 = vst.msk [vmem:[%s5327 + $0x9] sm:$0xff] %vm470, %v5296
        %5330 = vst.msk [vmem:[%s5327 + $0x19] sm:$0xff] %vm470, %v5297
        %5331 = vst.msk [vmem:[%s5327 + $0x21] sm:$0xff] %vm470, %v5298
        %5332 = vst.msk [vmem:[%s5327 + $0x31] sm:$0xff] %vm470, %v5299
        %5333 = vst.msk [vmem:[%s5327 + $0x39] sm:$0xff] %vm470, %v5300
        %5334 = vst.msk [vmem:[%s5327 + $0x49] sm:$0xff] %vm470, %v5301
        %5335 = vst.msk [vmem:[%s5327 + $0x51] sm:$0xff] %vm470, %v5302
        %5336 = vst.msk [vmem:[%s5327 + $0x61] sm:$0xff] %vm470, %v5303
        %5337 = vst.msk [vmem:[%s5327 + $0x69] sm:$0xff] %vm470, %v5304
        %5338 = vst.msk [vmem:[%s5327 + $0x79] sm:$0xff] %vm470, %v5305
        %5339 = vst.msk [vmem:[%s5327 + $0x81] sm:$0xff] %vm470, %v5306
        %5340 = vst.msk [vmem:[%s5327 + $0x91] sm:$0xff] %vm470, %v5307
        %5341 = vst.msk [vmem:[%s5327 + $0x99] sm:$0xff] %vm470, %v5308
        %5342 = vst.msk [vmem:[%s5327 + $0xa9] sm:$0xff] %vm470, %v5309
        %5343 = vst.msk [vmem:[%s5327 + $0xb1] sm:$0xff] %vm470, %v5310
        %5344 = vst.msk [vmem:[%s5327 + $0xc1] sm:$0xff] %vm470, %v5311
        %5345 = vst.msk [vmem:[%s5327 + $0xc9] sm:$0xff] %vm470, %v5312
        %5346 = vst.msk [vmem:[%s5327 + $0xd9] sm:$0xff] %vm470, %v5313
        %5347 = vst.msk [vmem:[%s5327 + $0xe1] sm:$0xff] %vm470, %v5314
        %5348 = vst.msk [vmem:[%s5327 + $0xf1] sm:$0xff] %vm470, %v5315
        %5349 = vst.msk [vmem:[%s5327 + $0xf9] sm:$0xff] %vm470, %v5316
        %5350 = vst.msk [vmem:[%s5327 + $0x109] sm:$0xff] %vm470, %v5317
        %5351 = vst.msk [vmem:[%s5327 + $0x111] sm:$0xff] %vm470, %v5318
        %5352 = vst.msk [vmem:[%s5327 + $0x121] sm:$0xff] %vm470, %v5319
        %5353 = vst.msk [vmem:[%s5327 + $0x129] sm:$0xff] %vm470, %v5320
        %5354 = vst.msk [vmem:[%s5327 + $0x139] sm:$0xff] %vm470, %v5321
        %5355 = vst.msk [vmem:[%s5327 + $0x141] sm:$0xff] %vm470, %v5322
        %5356 = vst.msk [vmem:[%s5327 + $0x151] sm:$0xff] %vm470, %v5323
        %5357 = vst.msk [vmem:[%s5327 + $0x159] sm:$0xff] %vm470, %v5324
        %5358 = vst.msk [vmem:[%s5327 + $0x169] sm:$0xff] %vm470, %v5325
        %5359 = vst.msk [vmem:[%s5327 + $0x171] sm:$0xff] %vm470, %v5326
        %v5360 = vld [vmem:[#allocation3] sm:$0xff]
        %v5361 = vld [vmem:[#allocation3 + $0x8] sm:$0xff]
        %v5362 = vld [vmem:[#allocation3 + $0x18] sm:$0xff]
        %v5363 = vld [vmem:[#allocation3 + $0x20] sm:$0xff]
        %v5364 = vld [vmem:[#allocation3 + $0x30] sm:$0xff]
        %v5365 = vld [vmem:[#allocation3 + $0x38] sm:$0xff]
        %v5366 = vld [vmem:[#allocation3 + $0x48] sm:$0xff]
        %v5367 = vld [vmem:[#allocation3 + $0x50] sm:$0xff]
        %v5368 = vld [vmem:[#allocation3 + $0x60] sm:$0xff]
        %v5369 = vld [vmem:[#allocation3 + $0x68] sm:$0xff]
        %v5370 = vld [vmem:[#allocation3 + $0x78] sm:$0xff]
        %v5371 = vld [vmem:[#allocation3 + $0x80] sm:$0xff]
        %v5372 = vld [vmem:[#allocation3 + $0x90] sm:$0xff]
        %v5373 = vld [vmem:[#allocation3 + $0x98] sm:$0xff]
        %v5374 = vld [vmem:[#allocation3 + $0xa8] sm:$0xff]
        %v5375 = vld [vmem:[#allocation3 + $0xb0] sm:$0xff]
        %v5376 = vld [vmem:[#allocation3 + $0xc0] sm:$0xff]
        %v5377 = vld [vmem:[#allocation3 + $0xc8] sm:$0xff]
        %v5378 = vld [vmem:[#allocation3 + $0xd8] sm:$0xff]
        %v5379 = vld [vmem:[#allocation3 + $0xe0] sm:$0xff]
        %v5380 = vld [vmem:[#allocation3 + $0xf0] sm:$0xff]
        %v5381 = vld [vmem:[#allocation3 + $0xf8] sm:$0xff]
        %v5382 = vld [vmem:[#allocation3 + $0x108] sm:$0xff]
        %v5383 = vld [vmem:[#allocation3 + $0x110] sm:$0xff]
        %v5384 = vld [vmem:[#allocation3 + $0x120] sm:$0xff]
        %v5385 = vld [vmem:[#allocation3 + $0x128] sm:$0xff]
        %v5386 = vld [vmem:[#allocation3 + $0x138] sm:$0xff]
        %v5387 = vld [vmem:[#allocation3 + $0x140] sm:$0xff]
        %v5388 = vld [vmem:[#allocation3 + $0x150] sm:$0xff]
        %v5389 = vld [vmem:[#allocation3 + $0x158] sm:$0xff]
        %v5390 = vld [vmem:[#allocation3 + $0x168] sm:$0xff]
        %v5391 = vld [vmem:[#allocation3 + $0x170] sm:$0xff]
        %v5392 = vld [vmem:[#allocation3 + $0x1] sm:$0xff]
        %v5393 = vld [vmem:[#allocation3 + $0x9] sm:$0xff]
        %v5394 = vld [vmem:[#allocation3 + $0x19] sm:$0xff]
        %v5395 = vld [vmem:[#allocation3 + $0x21] sm:$0xff]
        %v5396 = vld [vmem:[#allocation3 + $0x31] sm:$0xff]
        %v5397 = vld [vmem:[#allocation3 + $0x39] sm:$0xff]
        %v5398 = vld [vmem:[#allocation3 + $0x49] sm:$0xff]
        %v5399 = vld [vmem:[#allocation3 + $0x51] sm:$0xff]
        %v5400 = vld [vmem:[#allocation3 + $0x61] sm:$0xff]
        %v5401 = vld [vmem:[#allocation3 + $0x69] sm:$0xff]
        %v5402 = vld [vmem:[#allocation3 + $0x79] sm:$0xff]
        %v5403 = vld [vmem:[#allocation3 + $0x81] sm:$0xff]
        %v5404 = vld [vmem:[#allocation3 + $0x91] sm:$0xff]
        %v5405 = vld [vmem:[#allocation3 + $0x99] sm:$0xff]
        %v5406 = vld [vmem:[#allocation3 + $0xa9] sm:$0xff]
        %v5407 = vld [vmem:[#allocation3 + $0xb1] sm:$0xff]
        %v5408 = vld [vmem:[#allocation3 + $0xc1] sm:$0xff]
        %v5409 = vld [vmem:[#allocation3 + $0xc9] sm:$0xff]
        %v5410 = vld [vmem:[#allocation3 + $0xd9] sm:$0xff]
        %v5411 = vld [vmem:[#allocation3 + $0xe1] sm:$0xff]
        %v5412 = vld [vmem:[#allocation3 + $0xf1] sm:$0xff]
        %v5413 = vld [vmem:[#allocation3 + $0xf9] sm:$0xff]
        %v5414 = vld [vmem:[#allocation3 + $0x109] sm:$0xff]
        %v5415 = vld [vmem:[#allocation3 + $0x111] sm:$0xff]
        %v5416 = vld [vmem:[#allocation3 + $0x121] sm:$0xff]
        %v5417 = vld [vmem:[#allocation3 + $0x129] sm:$0xff]
        %v5418 = vld [vmem:[#allocation3 + $0x139] sm:$0xff]
        %v5419 = vld [vmem:[#allocation3 + $0x141] sm:$0xff]
        %v5420 = vld [vmem:[#allocation3 + $0x151] sm:$0xff]
        %v5421 = vld [vmem:[#allocation3 + $0x159] sm:$0xff]
        %v5422 = vld [vmem:[#allocation3 + $0x169] sm:$0xff]
        %v5423 = vld [vmem:[#allocation3 + $0x171] sm:$0xff]
        %v5424 = vld [vmem:[#allocation3 + $0x2] sm:$0xff]
        %v5425 = vld [vmem:[#allocation3 + $0xa] sm:$0xff]
        %v5426 = vld [vmem:[#allocation3 + $0x1a] sm:$0xff]
        %v5427 = vld [vmem:[#allocation3 + $0x22] sm:$0xff]
        %v5428 = vld [vmem:[#allocation3 + $0x32] sm:$0xff]
        %v5429 = vld [vmem:[#allocation3 + $0x3a] sm:$0xff]
        %v5430 = vld [vmem:[#allocation3 + $0x4a] sm:$0xff]
        %v5431 = vld [vmem:[#allocation3 + $0x52] sm:$0xff]
        %v5432 = vld [vmem:[#allocation3 + $0x62] sm:$0xff]
        %v5433 = vld [vmem:[#allocation3 + $0x6a] sm:$0xff]
        %v5434 = vld [vmem:[#allocation3 + $0x7a] sm:$0xff]
        %v5435 = vld [vmem:[#allocation3 + $0x82] sm:$0xff]
        %v5436 = vld [vmem:[#allocation3 + $0x92] sm:$0xff]
        %v5437 = vld [vmem:[#allocation3 + $0x9a] sm:$0xff]
        %v5438 = vld [vmem:[#allocation3 + $0xaa] sm:$0xff]
        %v5439 = vld [vmem:[#allocation3 + $0xb2] sm:$0xff]
        %v5440 = vld [vmem:[#allocation3 + $0xc2] sm:$0xff]
        %v5441 = vld [vmem:[#allocation3 + $0xca] sm:$0xff]
        %v5442 = vld [vmem:[#allocation3 + $0xda] sm:$0xff]
        %v5443 = vld [vmem:[#allocation3 + $0xe2] sm:$0xff]
        %v5444 = vld [vmem:[#allocation3 + $0xf2] sm:$0xff]
        %v5445 = vld [vmem:[#allocation3 + $0xfa] sm:$0xff]
        %v5446 = vld [vmem:[#allocation3 + $0x10a] sm:$0xff]
        %v5447 = vld [vmem:[#allocation3 + $0x112] sm:$0xff]
        %v5448 = vld [vmem:[#allocation3 + $0x122] sm:$0xff]
        %v5449 = vld [vmem:[#allocation3 + $0x12a] sm:$0xff]
        %v5450 = vld [vmem:[#allocation3 + $0x13a] sm:$0xff]
        %v5451 = vld [vmem:[#allocation3 + $0x142] sm:$0xff]
        %v5452 = vld [vmem:[#allocation3 + $0x152] sm:$0xff]
        %v5453 = vld [vmem:[#allocation3 + $0x15a] sm:$0xff]
        %v5454 = vld [vmem:[#allocation3 + $0x16a] sm:$0xff]
        %v5455 = vld [vmem:[#allocation3 + $0x172] sm:$0xff]
        %v5456 = vld [vmem:[%s5327] sm:$0xff]
        %v5457 = vld [vmem:[%s5327 + $0x8] sm:$0xff]
        %v5458 = vld [vmem:[%s5327 + $0x18] sm:$0xff]
        %v5459 = vld [vmem:[%s5327 + $0x20] sm:$0xff]
        %v5460 = vld [vmem:[%s5327 + $0x30] sm:$0xff]
        %v5461 = vld [vmem:[%s5327 + $0x38] sm:$0xff]
        %v5462 = vld [vmem:[%s5327 + $0x48] sm:$0xff]
        %v5463 = vld [vmem:[%s5327 + $0x50] sm:$0xff]
        %v5464 = vld [vmem:[%s5327 + $0x60] sm:$0xff]
        %v5465 = vld [vmem:[%s5327 + $0x68] sm:$0xff]
        %v5466 = vld [vmem:[%s5327 + $0x78] sm:$0xff]
        %v5467 = vld [vmem:[%s5327 + $0x80] sm:$0xff]
        %v5468 = vld [vmem:[%s5327 + $0x90] sm:$0xff]
        %v5469 = vld [vmem:[%s5327 + $0x98] sm:$0xff]
        %v5470 = vld [vmem:[%s5327 + $0xa8] sm:$0xff]
        %v5471 = vld [vmem:[%s5327 + $0xb0] sm:$0xff]
        %v5472 = vld [vmem:[%s5327 + $0xc0] sm:$0xff]
        %v5473 = vld [vmem:[%s5327 + $0xc8] sm:$0xff]
        %v5474 = vld [vmem:[%s5327 + $0xd8] sm:$0xff]
        %v5475 = vld [vmem:[%s5327 + $0xe0] sm:$0xff]
        %v5476 = vld [vmem:[%s5327 + $0xf0] sm:$0xff]
        %v5477 = vld [vmem:[%s5327 + $0xf8] sm:$0xff]
        %v5478 = vld [vmem:[%s5327 + $0x108] sm:$0xff]
        %v5479 = vld [vmem:[%s5327 + $0x110] sm:$0xff]
        %v5480 = vld [vmem:[%s5327 + $0x120] sm:$0xff]
        %v5481 = vld [vmem:[%s5327 + $0x128] sm:$0xff]
        %v5482 = vld [vmem:[%s5327 + $0x138] sm:$0xff]
        %v5483 = vld [vmem:[%s5327 + $0x140] sm:$0xff]
        %v5484 = vld [vmem:[%s5327 + $0x150] sm:$0xff]
        %v5485 = vld [vmem:[%s5327 + $0x158] sm:$0xff]
        %v5486 = vld [vmem:[%s5327 + $0x168] sm:$0xff]
        %v5487 = vld [vmem:[%s5327 + $0x170] sm:$0xff]
        %v5488 = vld [vmem:[%s5327 + $0x1] sm:$0xff]
        %v5489 = vld [vmem:[%s5327 + $0x9] sm:$0xff]
        %v5490 = vld [vmem:[%s5327 + $0x19] sm:$0xff]
        %v5491 = vld [vmem:[%s5327 + $0x21] sm:$0xff]
        %v5492 = vld [vmem:[%s5327 + $0x31] sm:$0xff]
        %v5493 = vld [vmem:[%s5327 + $0x39] sm:$0xff]
        %v5494 = vld [vmem:[%s5327 + $0x49] sm:$0xff]
        %v5495 = vld [vmem:[%s5327 + $0x51] sm:$0xff]
        %v5496 = vld [vmem:[%s5327 + $0x61] sm:$0xff]
        %v5497 = vld [vmem:[%s5327 + $0x69] sm:$0xff]
        %v5498 = vld [vmem:[%s5327 + $0x79] sm:$0xff]
        %v5499 = vld [vmem:[%s5327 + $0x81] sm:$0xff]
        %v5500 = vld [vmem:[%s5327 + $0x91] sm:$0xff]
        %v5501 = vld [vmem:[%s5327 + $0x99] sm:$0xff]
        %v5502 = vld [vmem:[%s5327 + $0xa9] sm:$0xff]
        %v5503 = vld [vmem:[%s5327 + $0xb1] sm:$0xff]
        %v5504 = vld [vmem:[%s5327 + $0xc1] sm:$0xff]
        %v5505 = vld [vmem:[%s5327 + $0xc9] sm:$0xff]
        %v5506 = vld [vmem:[%s5327 + $0xd9] sm:$0xff]
        %v5507 = vld [vmem:[%s5327 + $0xe1] sm:$0xff]
        %v5508 = vld [vmem:[%s5327 + $0xf1] sm:$0xff]
        %v5509 = vld [vmem:[%s5327 + $0xf9] sm:$0xff]
        %v5510 = vld [vmem:[%s5327 + $0x109] sm:$0xff]
        %v5511 = vld [vmem:[%s5327 + $0x111] sm:$0xff]
        %v5512 = vld [vmem:[%s5327 + $0x121] sm:$0xff]
        %v5513 = vld [vmem:[%s5327 + $0x129] sm:$0xff]
        %v5514 = vld [vmem:[%s5327 + $0x139] sm:$0xff]
        %v5515 = vld [vmem:[%s5327 + $0x141] sm:$0xff]
        %v5516 = vld [vmem:[%s5327 + $0x151] sm:$0xff]
        %v5517 = vld [vmem:[%s5327 + $0x159] sm:$0xff]
        %v5518 = vld [vmem:[%s5327 + $0x169] sm:$0xff]
        %v5519 = vld [vmem:[%s5327 + $0x171] sm:$0xff]
        %v5520 = vld [vmem:[%s5327 + $0x2] sm:$0xff]
        %v5521 = vld [vmem:[%s5327 + $0xa] sm:$0xff]
        %v5522 = vld [vmem:[%s5327 + $0x1a] sm:$0xff]
        %v5523 = vld [vmem:[%s5327 + $0x22] sm:$0xff]
        %v5524 = vld [vmem:[%s5327 + $0x32] sm:$0xff]
        %v5525 = vld [vmem:[%s5327 + $0x3a] sm:$0xff]
        %v5526 = vld [vmem:[%s5327 + $0x4a] sm:$0xff]
        %v5527 = vld [vmem:[%s5327 + $0x52] sm:$0xff]
        %v5528 = vld [vmem:[%s5327 + $0x62] sm:$0xff]
        %v5529 = vld [vmem:[%s5327 + $0x6a] sm:$0xff]
        %v5530 = vld [vmem:[%s5327 + $0x7a] sm:$0xff]
        %v5531 = vld [vmem:[%s5327 + $0x82] sm:$0xff]
        %v5532 = vld [vmem:[%s5327 + $0x92] sm:$0xff]
        %v5533 = vld [vmem:[%s5327 + $0x9a] sm:$0xff]
        %v5534 = vld [vmem:[%s5327 + $0xaa] sm:$0xff]
        %v5535 = vld [vmem:[%s5327 + $0xb2] sm:$0xff]
        %v5536 = vld [vmem:[%s5327 + $0xc2] sm:$0xff]
        %v5537 = vld [vmem:[%s5327 + $0xca] sm:$0xff]
        %v5538 = vld [vmem:[%s5327 + $0xda] sm:$0xff]
        %v5539 = vld [vmem:[%s5327 + $0xe2] sm:$0xff]
        %v5540 = vld [vmem:[%s5327 + $0xf2] sm:$0xff]
        %v5541 = vld [vmem:[%s5327 + $0xfa] sm:$0xff]
        %v5542 = vld [vmem:[%s5327 + $0x10a] sm:$0xff]
        %v5543 = vld [vmem:[%s5327 + $0x112] sm:$0xff]
        %v5544 = vld [vmem:[%s5327 + $0x122] sm:$0xff]
        %v5545 = vld [vmem:[%s5327 + $0x12a] sm:$0xff]
        %v5546 = vld [vmem:[%s5327 + $0x13a] sm:$0xff]
        %v5547 = vld [vmem:[%s5327 + $0x142] sm:$0xff]
        %v5548 = vld [vmem:[%s5327 + $0x152] sm:$0xff]
        %v5549 = vld [vmem:[%s5327 + $0x15a] sm:$0xff]
        %v5550 = vld [vmem:[%s5327 + $0x16a] sm:$0xff]
        %v5551 = vld [vmem:[%s5327 + $0x172] sm:$0xff]
        %s5552 = scalar_lea.vmem [#allocation3], 48
        %v5553 = vld [vmem:[%s5552] sm:$0xff]
        %v5554 = vld [vmem:[%s5552 + $0x8] sm:$0xff]
        %v5555 = vld [vmem:[%s5552 + $0x18] sm:$0xff]
        %v5556 = vld [vmem:[%s5552 + $0x20] sm:$0xff]
        %v5557 = vld [vmem:[%s5552 + $0x30] sm:$0xff]
        %v5558 = vld [vmem:[%s5552 + $0x38] sm:$0xff]
        %v5559 = vld [vmem:[%s5552 + $0x48] sm:$0xff]
        %v5560 = vld [vmem:[%s5552 + $0x50] sm:$0xff]
        %v5561 = vld [vmem:[%s5552 + $0x60] sm:$0xff]
        %v5562 = vld [vmem:[%s5552 + $0x68] sm:$0xff]
        %v5563 = vld [vmem:[%s5552 + $0x78] sm:$0xff]
        %v5564 = vld [vmem:[%s5552 + $0x80] sm:$0xff]
        %v5565 = vld [vmem:[%s5552 + $0x90] sm:$0xff]
        %v5566 = vld [vmem:[%s5552 + $0x98] sm:$0xff]
        %v5567 = vld [vmem:[%s5552 + $0xa8] sm:$0xff]
        %v5568 = vld [vmem:[%s5552 + $0xb0] sm:$0xff]
        %v5569 = vld [vmem:[%s5552 + $0xc0] sm:$0xff]
        %v5570 = vld [vmem:[%s5552 + $0xc8] sm:$0xff]
        %v5571 = vld [vmem:[%s5552 + $0xd8] sm:$0xff]
        %v5572 = vld [vmem:[%s5552 + $0xe0] sm:$0xff]
        %v5573 = vld [vmem:[%s5552 + $0xf0] sm:$0xff]
        %v5574 = vld [vmem:[%s5552 + $0xf8] sm:$0xff]
        %v5575 = vld [vmem:[%s5552 + $0x108] sm:$0xff]
        %v5576 = vld [vmem:[%s5552 + $0x110] sm:$0xff]
        %v5577 = vld [vmem:[%s5552 + $0x120] sm:$0xff]
        %v5578 = vld [vmem:[%s5552 + $0x128] sm:$0xff]
        %v5579 = vld [vmem:[%s5552 + $0x138] sm:$0xff]
        %v5580 = vld [vmem:[%s5552 + $0x140] sm:$0xff]
        %v5581 = vld [vmem:[%s5552 + $0x150] sm:$0xff]
        %v5582 = vld [vmem:[%s5552 + $0x158] sm:$0xff]
        %v5583 = vld [vmem:[%s5552 + $0x168] sm:$0xff]
        %v5584 = vld [vmem:[%s5552 + $0x170] sm:$0xff]
        %v5585 = vld [vmem:[%s5552 + $0x1] sm:$0xff]
        %v5586 = vld [vmem:[%s5552 + $0x9] sm:$0xff]
        %v5587 = vld [vmem:[%s5552 + $0x19] sm:$0xff]
        %v5588 = vld [vmem:[%s5552 + $0x21] sm:$0xff]
        %v5589 = vld [vmem:[%s5552 + $0x31] sm:$0xff]
        %v5590 = vld [vmem:[%s5552 + $0x39] sm:$0xff]
        %v5591 = vld [vmem:[%s5552 + $0x49] sm:$0xff]
        %v5592 = vld [vmem:[%s5552 + $0x51] sm:$0xff]
        %v5593 = vld [vmem:[%s5552 + $0x61] sm:$0xff]
        %v5594 = vld [vmem:[%s5552 + $0x69] sm:$0xff]
        %v5595 = vld [vmem:[%s5552 + $0x79] sm:$0xff]
        %v5596 = vld [vmem:[%s5552 + $0x81] sm:$0xff]
        %v5597 = vld [vmem:[%s5552 + $0x91] sm:$0xff]
        %v5598 = vld [vmem:[%s5552 + $0x99] sm:$0xff]
        %v5599 = vld [vmem:[%s5552 + $0xa9] sm:$0xff]
        %v5600 = vld [vmem:[%s5552 + $0xb1] sm:$0xff]
        %v5601 = vld [vmem:[%s5552 + $0xc1] sm:$0xff]
        %v5602 = vld [vmem:[%s5552 + $0xc9] sm:$0xff]
        %v5603 = vld [vmem:[%s5552 + $0xd9] sm:$0xff]
        %v5604 = vld [vmem:[%s5552 + $0xe1] sm:$0xff]
        %v5605 = vld [vmem:[%s5552 + $0xf1] sm:$0xff]
        %v5606 = vld [vmem:[%s5552 + $0xf9] sm:$0xff]
        %v5607 = vld [vmem:[%s5552 + $0x109] sm:$0xff]
        %v5608 = vld [vmem:[%s5552 + $0x111] sm:$0xff]
        %v5609 = vld [vmem:[%s5552 + $0x121] sm:$0xff]
        %v5610 = vld [vmem:[%s5552 + $0x129] sm:$0xff]
        %v5611 = vld [vmem:[%s5552 + $0x139] sm:$0xff]
        %v5612 = vld [vmem:[%s5552 + $0x141] sm:$0xff]
        %v5613 = vld [vmem:[%s5552 + $0x151] sm:$0xff]
        %v5614 = vld [vmem:[%s5552 + $0x159] sm:$0xff]
        %v5615 = vld [vmem:[%s5552 + $0x169] sm:$0xff]
        %v5616 = vld [vmem:[%s5552 + $0x171] sm:$0xff]
        %v5617 = vld [vmem:[%s5552 + $0x2] sm:$0xff]
        %v5618 = vld [vmem:[%s5552 + $0xa] sm:$0xff]
        %v5619 = vld [vmem:[%s5552 + $0x1a] sm:$0xff]
        %v5620 = vld [vmem:[%s5552 + $0x22] sm:$0xff]
        %v5621 = vld [vmem:[%s5552 + $0x32] sm:$0xff]
        %v5622 = vld [vmem:[%s5552 + $0x3a] sm:$0xff]
        %v5623 = vld [vmem:[%s5552 + $0x4a] sm:$0xff]
        %v5624 = vld [vmem:[%s5552 + $0x52] sm:$0xff]
        %v5625 = vld [vmem:[%s5552 + $0x62] sm:$0xff]
        %v5626 = vld [vmem:[%s5552 + $0x6a] sm:$0xff]
        %v5627 = vld [vmem:[%s5552 + $0x7a] sm:$0xff]
        %v5628 = vld [vmem:[%s5552 + $0x82] sm:$0xff]
        %v5629 = vld [vmem:[%s5552 + $0x92] sm:$0xff]
        %v5630 = vld [vmem:[%s5552 + $0x9a] sm:$0xff]
        %v5631 = vld [vmem:[%s5552 + $0xaa] sm:$0xff]
        %v5632 = vld [vmem:[%s5552 + $0xb2] sm:$0xff]
        %v5633 = vld [vmem:[%s5552 + $0xc2] sm:$0xff]
        %v5634 = vld [vmem:[%s5552 + $0xca] sm:$0xff]
        %v5635 = vld [vmem:[%s5552 + $0xda] sm:$0xff]
        %v5636 = vld [vmem:[%s5552 + $0xe2] sm:$0xff]
        %v5637 = vld [vmem:[%s5552 + $0xf2] sm:$0xff]
        %v5638 = vld [vmem:[%s5552 + $0xfa] sm:$0xff]
        %v5639 = vld [vmem:[%s5552 + $0x10a] sm:$0xff]
        %v5640 = vld [vmem:[%s5552 + $0x112] sm:$0xff]
        %v5641 = vld [vmem:[%s5552 + $0x122] sm:$0xff]
        %v5642 = vld [vmem:[%s5552 + $0x12a] sm:$0xff]
        %v5643 = vld [vmem:[%s5552 + $0x13a] sm:$0xff]
        %v5644 = vld [vmem:[%s5552 + $0x142] sm:$0xff]
        %v5645 = vld [vmem:[%s5552 + $0x152] sm:$0xff]
        %v5646 = vld [vmem:[%s5552 + $0x15a] sm:$0xff]
        %v5647 = vld [vmem:[%s5552 + $0x16a] sm:$0xff]
        %v5648 = vld [vmem:[%s5552 + $0x172] sm:$0xff]
        %5681 = vrot.lane.b32.xlu0 %v5392, 32
        %v5682 = vpop.permute.xlu0 %5681
        %5683 = vrot.lane.b32.xlu0 %v5393, 32
        %v5684 = vpop.permute.xlu0 %5683
        %5685 = vrot.lane.b32.xlu0 %v5394, 32
        %v5686 = vpop.permute.xlu0 %5685
        %5687 = vrot.lane.b32.xlu0 %v5395, 32
        %v5688 = vpop.permute.xlu0 %5687
        %5689 = vrot.lane.b32.xlu0 %v5396, 32
        %v5690 = vpop.permute.xlu0 %5689
        %5691 = vrot.lane.b32.xlu0 %v5397, 32
        %v5692 = vpop.permute.xlu0 %5691
        %5693 = vrot.lane.b32.xlu0 %v5398, 32
        %v5694 = vpop.permute.xlu0 %5693
        %5695 = vrot.lane.b32.xlu0 %v5399, 32
        %v5696 = vpop.permute.xlu0 %5695
        %5697 = vrot.lane.b32.xlu0 %v5400, 32
        %v5698 = vpop.permute.xlu0 %5697
        %5699 = vrot.lane.b32.xlu0 %v5401, 32
        %v5700 = vpop.permute.xlu0 %5699
        %5701 = vrot.lane.b32.xlu0 %v5402, 32
        %v5702 = vpop.permute.xlu0 %5701
        %5703 = vrot.lane.b32.xlu0 %v5403, 32
        %v5704 = vpop.permute.xlu0 %5703
        %5705 = vrot.lane.b32.xlu0 %v5404, 32
        %v5706 = vpop.permute.xlu0 %5705
        %5707 = vrot.lane.b32.xlu0 %v5405, 32
        %v5708 = vpop.permute.xlu0 %5707
        %5709 = vrot.lane.b32.xlu0 %v5406, 32
        %v5710 = vpop.permute.xlu0 %5709
        %5711 = vrot.lane.b32.xlu0 %v5407, 32
        %v5712 = vpop.permute.xlu0 %5711
        %5713 = vrot.lane.b32.xlu0 %v5408, 32
        %v5714 = vpop.permute.xlu0 %5713
        %5715 = vrot.lane.b32.xlu0 %v5409, 32
        %v5716 = vpop.permute.xlu0 %5715
        %5717 = vrot.lane.b32.xlu0 %v5410, 32
        %v5718 = vpop.permute.xlu0 %5717
        %5719 = vrot.lane.b32.xlu0 %v5411, 32
        %v5720 = vpop.permute.xlu0 %5719
        %5721 = vrot.lane.b32.xlu0 %v5412, 32
        %v5722 = vpop.permute.xlu0 %5721
        %5723 = vrot.lane.b32.xlu0 %v5413, 32
        %v5724 = vpop.permute.xlu0 %5723
        %5725 = vrot.lane.b32.xlu0 %v5414, 32
        %v5726 = vpop.permute.xlu0 %5725
        %5727 = vrot.lane.b32.xlu0 %v5415, 32
        %v5728 = vpop.permute.xlu0 %5727
        %5729 = vrot.lane.b32.xlu0 %v5416, 32
        %v5730 = vpop.permute.xlu0 %5729
        %5731 = vrot.lane.b32.xlu0 %v5417, 32
        %v5732 = vpop.permute.xlu0 %5731
        %5733 = vrot.lane.b32.xlu0 %v5418, 32
        %v5734 = vpop.permute.xlu0 %5733
        %5735 = vrot.lane.b32.xlu0 %v5419, 32
        %v5736 = vpop.permute.xlu0 %5735
        %5737 = vrot.lane.b32.xlu0 %v5420, 32
        %v5738 = vpop.permute.xlu0 %5737
        %5739 = vrot.lane.b32.xlu0 %v5421, 32
        %v5740 = vpop.permute.xlu0 %5739
        %5741 = vrot.lane.b32.xlu0 %v5422, 32
        %v5742 = vpop.permute.xlu0 %5741
        %5743 = vrot.lane.b32.xlu0 %v5423, 32
        %v5744 = vpop.permute.xlu0 %5743
        %5809 = vrot.lane.b32.xlu0 %v5424, 64
        %v5810 = vpop.permute.xlu0 %5809
        %5811 = vrot.lane.b32.xlu0 %v5425, 64
        %v5812 = vpop.permute.xlu0 %5811
        %5813 = vrot.lane.b32.xlu0 %v5426, 64
        %v5814 = vpop.permute.xlu0 %5813
        %5815 = vrot.lane.b32.xlu0 %v5427, 64
        %v5816 = vpop.permute.xlu0 %5815
        %5817 = vrot.lane.b32.xlu0 %v5428, 64
        %v5818 = vpop.permute.xlu0 %5817
        %5819 = vrot.lane.b32.xlu0 %v5429, 64
        %v5820 = vpop.permute.xlu0 %5819
        %5821 = vrot.lane.b32.xlu0 %v5430, 64
        %v5822 = vpop.permute.xlu0 %5821
        %5823 = vrot.lane.b32.xlu0 %v5431, 64
        %v5824 = vpop.permute.xlu0 %5823
        %5825 = vrot.lane.b32.xlu0 %v5432, 64
        %v5826 = vpop.permute.xlu0 %5825
        %5827 = vrot.lane.b32.xlu0 %v5433, 64
        %v5828 = vpop.permute.xlu0 %5827
        %5829 = vrot.lane.b32.xlu0 %v5434, 64
        %v5830 = vpop.permute.xlu0 %5829
        %5831 = vrot.lane.b32.xlu0 %v5435, 64
        %v5832 = vpop.permute.xlu0 %5831
        %5833 = vrot.lane.b32.xlu0 %v5436, 64
        %v5834 = vpop.permute.xlu0 %5833
        %5835 = vrot.lane.b32.xlu0 %v5437, 64
        %v5836 = vpop.permute.xlu0 %5835
        %5837 = vrot.lane.b32.xlu0 %v5438, 64
        %v5838 = vpop.permute.xlu0 %5837
        %5839 = vrot.lane.b32.xlu0 %v5439, 64
        %v5840 = vpop.permute.xlu0 %5839
        %5841 = vrot.lane.b32.xlu0 %v5440, 64
        %v5842 = vpop.permute.xlu0 %5841
        %5843 = vrot.lane.b32.xlu0 %v5441, 64
        %v5844 = vpop.permute.xlu0 %5843
        %5845 = vrot.lane.b32.xlu0 %v5442, 64
        %v5846 = vpop.permute.xlu0 %5845
        %5847 = vrot.lane.b32.xlu0 %v5443, 64
        %v5848 = vpop.permute.xlu0 %5847
        %5849 = vrot.lane.b32.xlu0 %v5444, 64
        %v5850 = vpop.permute.xlu0 %5849
        %5851 = vrot.lane.b32.xlu0 %v5445, 64
        %v5852 = vpop.permute.xlu0 %5851
        %5853 = vrot.lane.b32.xlu0 %v5446, 64
        %v5854 = vpop.permute.xlu0 %5853
        %5855 = vrot.lane.b32.xlu0 %v5447, 64
        %v5856 = vpop.permute.xlu0 %5855
        %5857 = vrot.lane.b32.xlu0 %v5448, 64
        %v5858 = vpop.permute.xlu0 %5857
        %5859 = vrot.lane.b32.xlu0 %v5449, 64
        %v5860 = vpop.permute.xlu0 %5859
        %5861 = vrot.lane.b32.xlu0 %v5450, 64
        %v5862 = vpop.permute.xlu0 %5861
        %5863 = vrot.lane.b32.xlu0 %v5451, 64
        %v5864 = vpop.permute.xlu0 %5863
        %5865 = vrot.lane.b32.xlu0 %v5452, 64
        %v5866 = vpop.permute.xlu0 %5865
        %5867 = vrot.lane.b32.xlu0 %v5453, 64
        %v5868 = vpop.permute.xlu0 %5867
        %5869 = vrot.lane.b32.xlu0 %v5454, 64
        %v5870 = vpop.permute.xlu0 %5869
        %5871 = vrot.lane.b32.xlu0 %v5455, 64
        %v5872 = vpop.permute.xlu0 %5871
        %5937 = vrot.lane.b32.xlu0 %v5456, 96
        %v5938 = vpop.permute.xlu0 %5937
        %5939 = vrot.lane.b32.xlu0 %v5457, 96
        %v5940 = vpop.permute.xlu0 %5939
        %5941 = vrot.lane.b32.xlu0 %v5458, 96
        %v5942 = vpop.permute.xlu0 %5941
        %5943 = vrot.lane.b32.xlu0 %v5459, 96
        %v5944 = vpop.permute.xlu0 %5943
        %5945 = vrot.lane.b32.xlu0 %v5460, 96
        %v5946 = vpop.permute.xlu0 %5945
        %5947 = vrot.lane.b32.xlu0 %v5461, 96
        %v5948 = vpop.permute.xlu0 %5947
        %5949 = vrot.lane.b32.xlu0 %v5462, 96
        %v5950 = vpop.permute.xlu0 %5949
        %5951 = vrot.lane.b32.xlu0 %v5463, 96
        %v5952 = vpop.permute.xlu0 %5951
        %5953 = vrot.lane.b32.xlu0 %v5464, 96
        %v5954 = vpop.permute.xlu0 %5953
        %5955 = vrot.lane.b32.xlu0 %v5465, 96
        %v5956 = vpop.permute.xlu0 %5955
        %5957 = vrot.lane.b32.xlu0 %v5466, 96
        %v5958 = vpop.permute.xlu0 %5957
        %5959 = vrot.lane.b32.xlu0 %v5467, 96
        %v5960 = vpop.permute.xlu0 %5959
        %5961 = vrot.lane.b32.xlu0 %v5468, 96
        %v5962 = vpop.permute.xlu0 %5961
        %5963 = vrot.lane.b32.xlu0 %v5469, 96
        %v5964 = vpop.permute.xlu0 %5963
        %5965 = vrot.lane.b32.xlu0 %v5470, 96
        %v5966 = vpop.permute.xlu0 %5965
        %5967 = vrot.lane.b32.xlu0 %v5471, 96
        %v5968 = vpop.permute.xlu0 %5967
        %5969 = vrot.lane.b32.xlu0 %v5472, 96
        %v5970 = vpop.permute.xlu0 %5969
        %5971 = vrot.lane.b32.xlu0 %v5473, 96
        %v5972 = vpop.permute.xlu0 %5971
        %5973 = vrot.lane.b32.xlu0 %v5474, 96
        %v5974 = vpop.permute.xlu0 %5973
        %5975 = vrot.lane.b32.xlu0 %v5475, 96
        %v5976 = vpop.permute.xlu0 %5975
        %5977 = vrot.lane.b32.xlu0 %v5476, 96
        %v5978 = vpop.permute.xlu0 %5977
        %5979 = vrot.lane.b32.xlu0 %v5477, 96
        %v5980 = vpop.permute.xlu0 %5979
        %5981 = vrot.lane.b32.xlu0 %v5478, 96
        %v5982 = vpop.permute.xlu0 %5981
        %5983 = vrot.lane.b32.xlu0 %v5479, 96
        %v5984 = vpop.permute.xlu0 %5983
        %5985 = vrot.lane.b32.xlu0 %v5480, 96
        %v5986 = vpop.permute.xlu0 %5985
        %5987 = vrot.lane.b32.xlu0 %v5481, 96
        %v5988 = vpop.permute.xlu0 %5987
        %5989 = vrot.lane.b32.xlu0 %v5482, 96
        %v5990 = vpop.permute.xlu0 %5989
        %5991 = vrot.lane.b32.xlu0 %v5483, 96
        %v5992 = vpop.permute.xlu0 %5991
        %5993 = vrot.lane.b32.xlu0 %v5484, 96
        %v5994 = vpop.permute.xlu0 %5993
        %5995 = vrot.lane.b32.xlu0 %v5485, 96
        %v5996 = vpop.permute.xlu0 %5995
        %5997 = vrot.lane.b32.xlu0 %v5486, 96
        %v5998 = vpop.permute.xlu0 %5997
        %5999 = vrot.lane.b32.xlu0 %v5487, 96
        %v6000 = vpop.permute.xlu0 %5999
        %6065 = vrot.lane.b32.xlu0 %v5520, 32
        %v6066 = vpop.permute.xlu0 %6065
        %6067 = vrot.lane.b32.xlu0 %v5521, 32
        %v6068 = vpop.permute.xlu0 %6067
        %6069 = vrot.lane.b32.xlu0 %v5522, 32
        %v6070 = vpop.permute.xlu0 %6069
        %6071 = vrot.lane.b32.xlu0 %v5523, 32
        %v6072 = vpop.permute.xlu0 %6071
        %6073 = vrot.lane.b32.xlu0 %v5524, 32
        %v6074 = vpop.permute.xlu0 %6073
        %6075 = vrot.lane.b32.xlu0 %v5525, 32
        %v6076 = vpop.permute.xlu0 %6075
        %6077 = vrot.lane.b32.xlu0 %v5526, 32
        %v6078 = vpop.permute.xlu0 %6077
        %6079 = vrot.lane.b32.xlu0 %v5527, 32
        %v6080 = vpop.permute.xlu0 %6079
        %6081 = vrot.lane.b32.xlu0 %v5528, 32
        %v6082 = vpop.permute.xlu0 %6081
        %6083 = vrot.lane.b32.xlu0 %v5529, 32
        %v6084 = vpop.permute.xlu0 %6083
        %6085 = vrot.lane.b32.xlu0 %v5530, 32
        %v6086 = vpop.permute.xlu0 %6085
        %6087 = vrot.lane.b32.xlu0 %v5531, 32
        %v6088 = vpop.permute.xlu0 %6087
        %6089 = vrot.lane.b32.xlu0 %v5532, 32
        %v6090 = vpop.permute.xlu0 %6089
        %6091 = vrot.lane.b32.xlu0 %v5533, 32
        %v6092 = vpop.permute.xlu0 %6091
        %6093 = vrot.lane.b32.xlu0 %v5534, 32
        %v6094 = vpop.permute.xlu0 %6093
        %6095 = vrot.lane.b32.xlu0 %v5535, 32
        %v6096 = vpop.permute.xlu0 %6095
        %6097 = vrot.lane.b32.xlu0 %v5536, 32
        %v6098 = vpop.permute.xlu0 %6097
        %6099 = vrot.lane.b32.xlu0 %v5537, 32
        %v6100 = vpop.permute.xlu0 %6099
        %6101 = vrot.lane.b32.xlu0 %v5538, 32
        %v6102 = vpop.permute.xlu0 %6101
        %6103 = vrot.lane.b32.xlu0 %v5539, 32
        %v6104 = vpop.permute.xlu0 %6103
        %6105 = vrot.lane.b32.xlu0 %v5540, 32
        %v6106 = vpop.permute.xlu0 %6105
        %6107 = vrot.lane.b32.xlu0 %v5541, 32
        %v6108 = vpop.permute.xlu0 %6107
        %6109 = vrot.lane.b32.xlu0 %v5542, 32
        %v6110 = vpop.permute.xlu0 %6109
        %6111 = vrot.lane.b32.xlu0 %v5543, 32
        %v6112 = vpop.permute.xlu0 %6111
        %6113 = vrot.lane.b32.xlu0 %v5544, 32
        %v6114 = vpop.permute.xlu0 %6113
        %6115 = vrot.lane.b32.xlu0 %v5545, 32
        %v6116 = vpop.permute.xlu0 %6115
        %6117 = vrot.lane.b32.xlu0 %v5546, 32
        %v6118 = vpop.permute.xlu0 %6117
        %6119 = vrot.lane.b32.xlu0 %v5547, 32
        %v6120 = vpop.permute.xlu0 %6119
        %6121 = vrot.lane.b32.xlu0 %v5548, 32
        %v6122 = vpop.permute.xlu0 %6121
        %6123 = vrot.lane.b32.xlu0 %v5549, 32
        %v6124 = vpop.permute.xlu0 %6123
        %6125 = vrot.lane.b32.xlu0 %v5550, 32
        %v6126 = vpop.permute.xlu0 %6125
        %6127 = vrot.lane.b32.xlu0 %v5551, 32
        %v6128 = vpop.permute.xlu0 %6127
        %6193 = vrot.lane.b32.xlu0 %v5553, 64
        %v6194 = vpop.permute.xlu0 %6193
        %6195 = vrot.lane.b32.xlu0 %v5554, 64
        %v6196 = vpop.permute.xlu0 %6195
        %6197 = vrot.lane.b32.xlu0 %v5555, 64
        %v6198 = vpop.permute.xlu0 %6197
        %6199 = vrot.lane.b32.xlu0 %v5556, 64
        %v6200 = vpop.permute.xlu0 %6199
        %6201 = vrot.lane.b32.xlu0 %v5557, 64
        %v6202 = vpop.permute.xlu0 %6201
        %6203 = vrot.lane.b32.xlu0 %v5558, 64
        %v6204 = vpop.permute.xlu0 %6203
        %6205 = vrot.lane.b32.xlu0 %v5559, 64
        %v6206 = vpop.permute.xlu0 %6205
        %6207 = vrot.lane.b32.xlu0 %v5560, 64
        %v6208 = vpop.permute.xlu0 %6207
        %6209 = vrot.lane.b32.xlu0 %v5561, 64
        %v6210 = vpop.permute.xlu0 %6209
        %6211 = vrot.lane.b32.xlu0 %v5562, 64
        %v6212 = vpop.permute.xlu0 %6211
        %6213 = vrot.lane.b32.xlu0 %v5563, 64
        %v6214 = vpop.permute.xlu0 %6213
        %6215 = vrot.lane.b32.xlu0 %v5564, 64
        %v6216 = vpop.permute.xlu0 %6215
        %6217 = vrot.lane.b32.xlu0 %v5565, 64
        %v6218 = vpop.permute.xlu0 %6217
        %6219 = vrot.lane.b32.xlu0 %v5566, 64
        %v6220 = vpop.permute.xlu0 %6219
        %6221 = vrot.lane.b32.xlu0 %v5567, 64
        %v6222 = vpop.permute.xlu0 %6221
        %6223 = vrot.lane.b32.xlu0 %v5568, 64
        %v6224 = vpop.permute.xlu0 %6223
        %6225 = vrot.lane.b32.xlu0 %v5569, 64
        %v6226 = vpop.permute.xlu0 %6225
        %6227 = vrot.lane.b32.xlu0 %v5570, 64
        %v6228 = vpop.permute.xlu0 %6227
        %6229 = vrot.lane.b32.xlu0 %v5571, 64
        %v6230 = vpop.permute.xlu0 %6229
        %6231 = vrot.lane.b32.xlu0 %v5572, 64
        %v6232 = vpop.permute.xlu0 %6231
        %6233 = vrot.lane.b32.xlu0 %v5573, 64
        %v6234 = vpop.permute.xlu0 %6233
        %6235 = vrot.lane.b32.xlu0 %v5574, 64
        %v6236 = vpop.permute.xlu0 %6235
        %6237 = vrot.lane.b32.xlu0 %v5575, 64
        %v6238 = vpop.permute.xlu0 %6237
        %6239 = vrot.lane.b32.xlu0 %v5576, 64
        %v6240 = vpop.permute.xlu0 %6239
        %6241 = vrot.lane.b32.xlu0 %v5577, 64
        %v6242 = vpop.permute.xlu0 %6241
        %6243 = vrot.lane.b32.xlu0 %v5578, 64
        %v6244 = vpop.permute.xlu0 %6243
        %6245 = vrot.lane.b32.xlu0 %v5579, 64
        %v6246 = vpop.permute.xlu0 %6245
        %6247 = vrot.lane.b32.xlu0 %v5580, 64
        %v6248 = vpop.permute.xlu0 %6247
        %6249 = vrot.lane.b32.xlu0 %v5581, 64
        %v6250 = vpop.permute.xlu0 %6249
        %6251 = vrot.lane.b32.xlu0 %v5582, 64
        %v6252 = vpop.permute.xlu0 %6251
        %6253 = vrot.lane.b32.xlu0 %v5583, 64
        %v6254 = vpop.permute.xlu0 %6253
        %6255 = vrot.lane.b32.xlu0 %v5584, 64
        %v6256 = vpop.permute.xlu0 %6255
        %6321 = vrot.lane.b32.xlu0 %v5585, 96
        %v6322 = vpop.permute.xlu0 %6321
        %6323 = vrot.lane.b32.xlu0 %v5586, 96
        %v6324 = vpop.permute.xlu0 %6323
        %6325 = vrot.lane.b32.xlu0 %v5587, 96
        %v6326 = vpop.permute.xlu0 %6325
        %6327 = vrot.lane.b32.xlu0 %v5588, 96
        %v6328 = vpop.permute.xlu0 %6327
        %6329 = vrot.lane.b32.xlu0 %v5589, 96
        %v6330 = vpop.permute.xlu0 %6329
        %6331 = vrot.lane.b32.xlu0 %v5590, 96
        %v6332 = vpop.permute.xlu0 %6331
        %6333 = vrot.lane.b32.xlu0 %v5591, 96
        %v6334 = vpop.permute.xlu0 %6333
        %6335 = vrot.lane.b32.xlu0 %v5592, 96
        %v6336 = vpop.permute.xlu0 %6335
        %6337 = vrot.lane.b32.xlu0 %v5593, 96
        %v6338 = vpop.permute.xlu0 %6337
        %6339 = vrot.lane.b32.xlu0 %v5594, 96
        %v6340 = vpop.permute.xlu0 %6339
        %6341 = vrot.lane.b32.xlu0 %v5595, 96
        %v6342 = vpop.permute.xlu0 %6341
        %6343 = vrot.lane.b32.xlu0 %v5596, 96
        %v6344 = vpop.permute.xlu0 %6343
        %6345 = vrot.lane.b32.xlu0 %v5597, 96
        %v6346 = vpop.permute.xlu0 %6345
        %6347 = vrot.lane.b32.xlu0 %v5598, 96
        %v6348 = vpop.permute.xlu0 %6347
        %6349 = vrot.lane.b32.xlu0 %v5599, 96
        %v6350 = vpop.permute.xlu0 %6349
        %6351 = vrot.lane.b32.xlu0 %v5600, 96
        %v6352 = vpop.permute.xlu0 %6351
        %6353 = vrot.lane.b32.xlu0 %v5601, 96
        %v6354 = vpop.permute.xlu0 %6353
        %6355 = vrot.lane.b32.xlu0 %v5602, 96
        %v6356 = vpop.permute.xlu0 %6355
        %6357 = vrot.lane.b32.xlu0 %v5603, 96
        %v6358 = vpop.permute.xlu0 %6357
        %6359 = vrot.lane.b32.xlu0 %v5604, 96
        %v6360 = vpop.permute.xlu0 %6359
        %6361 = vrot.lane.b32.xlu0 %v5605, 96
        %v6362 = vpop.permute.xlu0 %6361
        %6363 = vrot.lane.b32.xlu0 %v5606, 96
        %v6364 = vpop.permute.xlu0 %6363
        %6365 = vrot.lane.b32.xlu0 %v5607, 96
        %v6366 = vpop.permute.xlu0 %6365
        %6367 = vrot.lane.b32.xlu0 %v5608, 96
        %v6368 = vpop.permute.xlu0 %6367
        %6369 = vrot.lane.b32.xlu0 %v5609, 96
        %v6370 = vpop.permute.xlu0 %6369
        %6371 = vrot.lane.b32.xlu0 %v5610, 96
        %v6372 = vpop.permute.xlu0 %6371
        %6373 = vrot.lane.b32.xlu0 %v5611, 96
        %v6374 = vpop.permute.xlu0 %6373
        %6375 = vrot.lane.b32.xlu0 %v5612, 96
        %v6376 = vpop.permute.xlu0 %6375
        %6377 = vrot.lane.b32.xlu0 %v5613, 96
        %v6378 = vpop.permute.xlu0 %6377
        %6379 = vrot.lane.b32.xlu0 %v5614, 96
        %v6380 = vpop.permute.xlu0 %6379
        %6381 = vrot.lane.b32.xlu0 %v5615, 96
        %v6382 = vpop.permute.xlu0 %6381
        %6383 = vrot.lane.b32.xlu0 %v5616, 96
        %v6384 = vpop.permute.xlu0 %6383
        %v6417 = vsel %vm470, %v5360, %v5682
        %v6418 = vsel %vm470, %v5361, %v5684
        %v6419 = vsel %vm470, %v5362, %v5686
        %v6420 = vsel %vm470, %v5363, %v5688
        %v6421 = vsel %vm470, %v5364, %v5690
        %v6422 = vsel %vm470, %v5365, %v5692
        %v6423 = vsel %vm470, %v5366, %v5694
        %v6424 = vsel %vm470, %v5367, %v5696
        %v6425 = vsel %vm470, %v5368, %v5698
        %v6426 = vsel %vm470, %v5369, %v5700
        %v6427 = vsel %vm470, %v5370, %v5702
        %v6428 = vsel %vm470, %v5371, %v5704
        %v6429 = vsel %vm470, %v5372, %v5706
        %v6430 = vsel %vm470, %v5373, %v5708
        %v6431 = vsel %vm470, %v5374, %v5710
        %v6432 = vsel %vm470, %v5375, %v5712
        %v6433 = vsel %vm470, %v5376, %v5714
        %v6434 = vsel %vm470, %v5377, %v5716
        %v6435 = vsel %vm470, %v5378, %v5718
        %v6436 = vsel %vm470, %v5379, %v5720
        %v6437 = vsel %vm470, %v5380, %v5722
        %v6438 = vsel %vm470, %v5381, %v5724
        %v6439 = vsel %vm470, %v5382, %v5726
        %v6440 = vsel %vm470, %v5383, %v5728
        %v6441 = vsel %vm470, %v5384, %v5730
        %v6442 = vsel %vm470, %v5385, %v5732
        %v6443 = vsel %vm470, %v5386, %v5734
        %v6444 = vsel %vm470, %v5387, %v5736
        %v6445 = vsel %vm470, %v5388, %v5738
        %v6446 = vsel %vm470, %v5389, %v5740
        %v6447 = vsel %vm470, %v5390, %v5742
        %v6448 = vsel %vm470, %v5391, %v5744
        %v6449 = vsel %vm1734, %v6417, %v5810
        %v6450 = vsel %vm1734, %v6418, %v5812
        %v6451 = vsel %vm1734, %v6419, %v5814
        %v6452 = vsel %vm1734, %v6420, %v5816
        %v6453 = vsel %vm1734, %v6421, %v5818
        %v6454 = vsel %vm1734, %v6422, %v5820
        %v6455 = vsel %vm1734, %v6423, %v5822
        %v6456 = vsel %vm1734, %v6424, %v5824
        %v6457 = vsel %vm1734, %v6425, %v5826
        %v6458 = vsel %vm1734, %v6426, %v5828
        %v6459 = vsel %vm1734, %v6427, %v5830
        %v6460 = vsel %vm1734, %v6428, %v5832
        %v6461 = vsel %vm1734, %v6429, %v5834
        %v6462 = vsel %vm1734, %v6430, %v5836
        %v6463 = vsel %vm1734, %v6431, %v5838
        %v6464 = vsel %vm1734, %v6432, %v5840
        %v6465 = vsel %vm1734, %v6433, %v5842
        %v6466 = vsel %vm1734, %v6434, %v5844
        %v6467 = vsel %vm1734, %v6435, %v5846
        %v6468 = vsel %vm1734, %v6436, %v5848
        %v6469 = vsel %vm1734, %v6437, %v5850
        %v6470 = vsel %vm1734, %v6438, %v5852
        %v6471 = vsel %vm1734, %v6439, %v5854
        %v6472 = vsel %vm1734, %v6440, %v5856
        %v6473 = vsel %vm1734, %v6441, %v5858
        %v6474 = vsel %vm1734, %v6442, %v5860
        %v6475 = vsel %vm1734, %v6443, %v5862
        %v6476 = vsel %vm1734, %v6444, %v5864
        %v6477 = vsel %vm1734, %v6445, %v5866
        %v6478 = vsel %vm1734, %v6446, %v5868
        %v6479 = vsel %vm1734, %v6447, %v5870
        %v6480 = vsel %vm1734, %v6448, %v5872
        %v6481 = vsel %vm1767, %v6449, %v5938
        %v6482 = vsel %vm1767, %v6450, %v5940
        %v6483 = vsel %vm1767, %v6451, %v5942
        %v6484 = vsel %vm1767, %v6452, %v5944
        %v6485 = vsel %vm1767, %v6453, %v5946
        %v6486 = vsel %vm1767, %v6454, %v5948
        %v6487 = vsel %vm1767, %v6455, %v5950
        %v6488 = vsel %vm1767, %v6456, %v5952
        %v6489 = vsel %vm1767, %v6457, %v5954
        %v6490 = vsel %vm1767, %v6458, %v5956
        %v6491 = vsel %vm1767, %v6459, %v5958
        %v6492 = vsel %vm1767, %v6460, %v5960
        %v6493 = vsel %vm1767, %v6461, %v5962
        %v6494 = vsel %vm1767, %v6462, %v5964
        %v6495 = vsel %vm1767, %v6463, %v5966
        %v6496 = vsel %vm1767, %v6464, %v5968
        %v6497 = vsel %vm1767, %v6465, %v5970
        %v6498 = vsel %vm1767, %v6466, %v5972
        %v6499 = vsel %vm1767, %v6467, %v5974
        %v6500 = vsel %vm1767, %v6468, %v5976
        %v6501 = vsel %vm1767, %v6469, %v5978
        %v6502 = vsel %vm1767, %v6470, %v5980
        %v6503 = vsel %vm1767, %v6471, %v5982
        %v6504 = vsel %vm1767, %v6472, %v5984
        %v6505 = vsel %vm1767, %v6473, %v5986
        %v6506 = vsel %vm1767, %v6474, %v5988
        %v6507 = vsel %vm1767, %v6475, %v5990
        %v6508 = vsel %vm1767, %v6476, %v5992
        %v6509 = vsel %vm1767, %v6477, %v5994
        %v6510 = vsel %vm1767, %v6478, %v5996
        %v6511 = vsel %vm1767, %v6479, %v5998
        %v6512 = vsel %vm1767, %v6480, %v6000
        %v6513 = vsel %vm470, %v5488, %v6066
        %v6514 = vsel %vm470, %v5489, %v6068
        %v6515 = vsel %vm470, %v5490, %v6070
        %v6516 = vsel %vm470, %v5491, %v6072
        %v6517 = vsel %vm470, %v5492, %v6074
        %v6518 = vsel %vm470, %v5493, %v6076
        %v6519 = vsel %vm470, %v5494, %v6078
        %v6520 = vsel %vm470, %v5495, %v6080
        %v6521 = vsel %vm470, %v5496, %v6082
        %v6522 = vsel %vm470, %v5497, %v6084
        %v6523 = vsel %vm470, %v5498, %v6086
        %v6524 = vsel %vm470, %v5499, %v6088
        %v6525 = vsel %vm470, %v5500, %v6090
        %v6526 = vsel %vm470, %v5501, %v6092
        %v6527 = vsel %vm470, %v5502, %v6094
        %v6528 = vsel %vm470, %v5503, %v6096
        %v6529 = vsel %vm470, %v5504, %v6098
        %v6530 = vsel %vm470, %v5505, %v6100
        %v6531 = vsel %vm470, %v5506, %v6102
        %v6532 = vsel %vm470, %v5507, %v6104
        %v6533 = vsel %vm470, %v5508, %v6106
        %v6534 = vsel %vm470, %v5509, %v6108
        %v6535 = vsel %vm470, %v5510, %v6110
        %v6536 = vsel %vm470, %v5511, %v6112
        %v6537 = vsel %vm470, %v5512, %v6114
        %v6538 = vsel %vm470, %v5513, %v6116
        %v6539 = vsel %vm470, %v5514, %v6118
        %v6540 = vsel %vm470, %v5515, %v6120
        %v6541 = vsel %vm470, %v5516, %v6122
        %v6542 = vsel %vm470, %v5517, %v6124
        %v6543 = vsel %vm470, %v5518, %v6126
        %v6544 = vsel %vm470, %v5519, %v6128
        %v6545 = vsel %vm1734, %v6513, %v6194
        %v6546 = vsel %vm1734, %v6514, %v6196
        %v6547 = vsel %vm1734, %v6515, %v6198
        %v6548 = vsel %vm1734, %v6516, %v6200
        %v6549 = vsel %vm1734, %v6517, %v6202
        %v6550 = vsel %vm1734, %v6518, %v6204
        %v6551 = vsel %vm1734, %v6519, %v6206
        %v6552 = vsel %vm1734, %v6520, %v6208
        %v6553 = vsel %vm1734, %v6521, %v6210
        %v6554 = vsel %vm1734, %v6522, %v6212
        %v6555 = vsel %vm1734, %v6523, %v6214
        %v6556 = vsel %vm1734, %v6524, %v6216
        %v6557 = vsel %vm1734, %v6525, %v6218
        %v6558 = vsel %vm1734, %v6526, %v6220
        %v6559 = vsel %vm1734, %v6527, %v6222
        %v6560 = vsel %vm1734, %v6528, %v6224
        %v6561 = vsel %vm1734, %v6529, %v6226
        %v6562 = vsel %vm1734, %v6530, %v6228
        %v6563 = vsel %vm1734, %v6531, %v6230
        %v6564 = vsel %vm1734, %v6532, %v6232
        %v6565 = vsel %vm1734, %v6533, %v6234
        %v6566 = vsel %vm1734, %v6534, %v6236
        %v6567 = vsel %vm1734, %v6535, %v6238
        %v6568 = vsel %vm1734, %v6536, %v6240
        %v6569 = vsel %vm1734, %v6537, %v6242
        %v6570 = vsel %vm1734, %v6538, %v6244
        %v6571 = vsel %vm1734, %v6539, %v6246
        %v6572 = vsel %vm1734, %v6540, %v6248
        %v6573 = vsel %vm1734, %v6541, %v6250
        %v6574 = vsel %vm1734, %v6542, %v6252
        %v6575 = vsel %vm1734, %v6543, %v6254
        %v6576 = vsel %vm1734, %v6544, %v6256
        %v6577 = vsel %vm1767, %v6545, %v6322
        %v6578 = vsel %vm1767, %v6546, %v6324
        %v6579 = vsel %vm1767, %v6547, %v6326
        %v6580 = vsel %vm1767, %v6548, %v6328
        %v6581 = vsel %vm1767, %v6549, %v6330
        %v6582 = vsel %vm1767, %v6550, %v6332
        %v6583 = vsel %vm1767, %v6551, %v6334
        %v6584 = vsel %vm1767, %v6552, %v6336
        %v6585 = vsel %vm1767, %v6553, %v6338
        %v6586 = vsel %vm1767, %v6554, %v6340
        %v6587 = vsel %vm1767, %v6555, %v6342
        %v6588 = vsel %vm1767, %v6556, %v6344
        %v6589 = vsel %vm1767, %v6557, %v6346
        %v6590 = vsel %vm1767, %v6558, %v6348
        %v6591 = vsel %vm1767, %v6559, %v6350
        %v6592 = vsel %vm1767, %v6560, %v6352
        %v6593 = vsel %vm1767, %v6561, %v6354
        %v6594 = vsel %vm1767, %v6562, %v6356
        %v6595 = vsel %vm1767, %v6563, %v6358
        %v6596 = vsel %vm1767, %v6564, %v6360
        %v6597 = vsel %vm1767, %v6565, %v6362
        %v6598 = vsel %vm1767, %v6566, %v6364
        %v6599 = vsel %vm1767, %v6567, %v6366
        %v6600 = vsel %vm1767, %v6568, %v6368
        %v6601 = vsel %vm1767, %v6569, %v6370
        %v6602 = vsel %vm1767, %v6570, %v6372
        %v6603 = vsel %vm1767, %v6571, %v6374
        %v6604 = vsel %vm1767, %v6572, %v6376
        %v6605 = vsel %vm1767, %v6573, %v6378
        %v6606 = vsel %vm1767, %v6574, %v6380
        %v6607 = vsel %vm1767, %v6575, %v6382
        %v6608 = vsel %vm1767, %v6576, %v6384
        %v6609 = vpack.c.bf16 %v6482, %v6481
        %v6610 = vpack.c.bf16 %v6578, %v6577
        %v6611 = vpack.c.bf16 %v5618, %v5617
        %v6612 = vpack.c.bf16 %v6484, %v6483
        %v6613 = vpack.c.bf16 %v6580, %v6579
        %v6614 = vpack.c.bf16 %v5620, %v5619
        %v6615 = vpack.c.bf16 %v6486, %v6485
        %v6616 = vpack.c.bf16 %v6582, %v6581
        %v6617 = vpack.c.bf16 %v5622, %v5621
        %v6618 = vpack.c.bf16 %v6488, %v6487
        %v6619 = vpack.c.bf16 %v6584, %v6583
        %v6620 = vpack.c.bf16 %v5624, %v5623
        %v6621 = vpack.c.bf16 %v6490, %v6489
        %v6622 = vpack.c.bf16 %v6586, %v6585
        %v6623 = vpack.c.bf16 %v5626, %v5625
        %v6624 = vpack.c.bf16 %v6492, %v6491
        %v6625 = vpack.c.bf16 %v6588, %v6587
        %v6626 = vpack.c.bf16 %v5628, %v5627
        %v6627 = vpack.c.bf16 %v6494, %v6493
        %v6628 = vpack.c.bf16 %v6590, %v6589
        %v6629 = vpack.c.bf16 %v5630, %v5629
        %v6630 = vpack.c.bf16 %v6496, %v6495
        %v6631 = vpack.c.bf16 %v6592, %v6591
        %v6632 = vpack.c.bf16 %v5632, %v5631
        %v6633 = vpack.c.bf16 %v6498, %v6497
        %v6634 = vpack.c.bf16 %v6594, %v6593
        %v6635 = vpack.c.bf16 %v5634, %v5633
        %v6636 = vpack.c.bf16 %v6500, %v6499
        %v6637 = vpack.c.bf16 %v6596, %v6595
        %v6638 = vpack.c.bf16 %v5636, %v5635
        %v6639 = vpack.c.bf16 %v6502, %v6501
        %v6640 = vpack.c.bf16 %v6598, %v6597
        %v6641 = vpack.c.bf16 %v5638, %v5637
        %v6642 = vpack.c.bf16 %v6504, %v6503
        %v6643 = vpack.c.bf16 %v6600, %v6599
        %v6644 = vpack.c.bf16 %v5640, %v5639
        %v6645 = vpack.c.bf16 %v6506, %v6505
        %v6646 = vpack.c.bf16 %v6602, %v6601
        %v6647 = vpack.c.bf16 %v5642, %v5641
        %v6648 = vpack.c.bf16 %v6508, %v6507
        %v6649 = vpack.c.bf16 %v6604, %v6603
        %v6650 = vpack.c.bf16 %v5644, %v5643
        %v6651 = vpack.c.bf16 %v6510, %v6509
        %v6652 = vpack.c.bf16 %v6606, %v6605
        %v6653 = vpack.c.bf16 %v5646, %v5645
        %v6654 = vpack.c.bf16 %v6512, %v6511
        %v6655 = vpack.c.bf16 %v6608, %v6607
        %v6656 = vpack.c.bf16 %v5648, %v5647
        %v6657 = vld [vmem:[%s7] sm:$0xf]
        %v6658 = vld [vmem:[%s7 + $0x4] sm:$0xf]
        %v6659 = vld [vmem:[%s7 + $0x8] sm:$0xf]
        %v6660 = vld [vmem:[%s7 + $0xc] sm:$0xf]
        %v6661 = vld [vmem:[%s7 + $0x10] sm:$0xf]
        %v6662 = vld [vmem:[%s7 + $0x14] sm:$0xf]
        %v6663 = vld [vmem:[%s7 + $0x18] sm:$0xf]
        %v6664 = vld [vmem:[%s7 + $0x1c] sm:$0xf]
        %v6665 = vld [vmem:[%s7 + $0x20] sm:$0xf]
        %v6666 = vld [vmem:[%s7 + $0x24] sm:$0xf]
        %v6667 = vld [vmem:[%s7 + $0x28] sm:$0xf]
        %v6668 = vld [vmem:[%s7 + $0x2c] sm:$0xf]
        %v6669 = vld [vmem:[%s7 + $0x30] sm:$0xf]
        %v6670 = vld [vmem:[%s7 + $0x34] sm:$0xf]
        %v6671 = vld [vmem:[%s7 + $0x38] sm:$0xf]
        %v6672 = vld [vmem:[%s7 + $0x3c] sm:$0xf]
        %v6673 = vld [vmem:[%s7 + $0x40] sm:$0xf]
        %v6674 = vld [vmem:[%s7 + $0x44] sm:$0xf]
        %v6675 = vld [vmem:[%s7 + $0x48] sm:$0xf]
        %v6676 = vld [vmem:[%s7 + $0x4c] sm:$0xf]
        %v6677 = vld [vmem:[%s7 + $0x50] sm:$0xf]
        %v6678 = vld [vmem:[%s7 + $0x54] sm:$0xf]
        %v6679 = vld [vmem:[%s7 + $0x58] sm:$0xf]
        %v6680 = vld [vmem:[%s7 + $0x5c] sm:$0xf]
        %v6681 = vld [vmem:[%s7 + $0x60] sm:$0xf]
        %v6682 = vld [vmem:[%s7 + $0x64] sm:$0xf]
        %v6683 = vld [vmem:[%s7 + $0x68] sm:$0xf]
        %v6684 = vld [vmem:[%s7 + $0x6c] sm:$0xf]
        %v6685 = vld [vmem:[%s7 + $0x70] sm:$0xf]
        %v6686 = vld [vmem:[%s7 + $0x74] sm:$0xf]
        %v6687 = vld [vmem:[%s7 + $0x78] sm:$0xf]
        %v6688 = vld [vmem:[%s7 + $0x7c] sm:$0xf]
        %v6689 = vld [vmem:[%s7 + $0x80] sm:$0xf]
        %v6690 = vld [vmem:[%s7 + $0x84] sm:$0xf]
        %v6691 = vld [vmem:[%s7 + $0x88] sm:$0xf]
        %v6692 = vld [vmem:[%s7 + $0x8c] sm:$0xf]
        %v6729 = vunpack.c.l.b16 %v6657
        %v6730 = vunpack.c.l.b16 %v6658
        %v6731 = vunpack.c.l.b16 %v6659
        %v6732 = vunpack.c.l.b16 %v6660
        %v6733 = vunpack.c.l.b16 %v6661
        %v6734 = vunpack.c.l.b16 %v6662
        %v6735 = vunpack.c.l.b16 %v6663
        %v6736 = vunpack.c.l.b16 %v6664
        %v6737 = vunpack.c.l.b16 %v6665
        %v6738 = vunpack.c.l.b16 %v6666
        %v6739 = vunpack.c.l.b16 %v6667
        %v6740 = vunpack.c.l.b16 %v6668
        %v6741 = vunpack.c.l.b16 %v6669
        %v6742 = vunpack.c.l.b16 %v6670
        %v6743 = vunpack.c.l.b16 %v6671
        %v6744 = vunpack.c.l.b16 %v6672
        %v6745 = vunpack.c.l.b16 %v6673
        %v6746 = vunpack.c.l.b16 %v6674
        %v6747 = vunpack.c.l.b16 %v6675
        %v6748 = vunpack.c.l.b16 %v6676
        %v6749 = vunpack.c.l.b16 %v6677
        %v6750 = vunpack.c.l.b16 %v6678
        %v6751 = vunpack.c.l.b16 %v6679
        %v6752 = vunpack.c.l.b16 %v6680
        %v6753 = vunpack.c.l.b16 %v6681
        %v6754 = vunpack.c.l.b16 %v6682
        %v6755 = vunpack.c.l.b16 %v6683
        %v6756 = vunpack.c.l.b16 %v6684
        %v6757 = vunpack.c.l.b16 %v6685
        %v6758 = vunpack.c.l.b16 %v6686
        %v6759 = vunpack.c.l.b16 %v6687
        %v6760 = vunpack.c.l.b16 %v6688
        %v6761 = vunpack.c.l.b16 %v6689
        %v6762 = vunpack.c.l.b16 %v6690
        %v6763 = vunpack.c.l.b16 %v6691
        %v6764 = vunpack.c.l.b16 %v6692
        %v6765 = vpack.c.b16 %v6730, %v6729
        %v6766 = vpack.c.b16 %v6732, %v6731
        %v6767 = vpack.c.b16 %v6734, %v6733
        %v6768 = vpack.c.b16 %v6736, %v6735
        %v6769 = vpack.c.b16 %v6738, %v6737
        %v6770 = vpack.c.b16 %v6740, %v6739
        %v6771 = vpack.c.b16 %v6742, %v6741
        %v6772 = vpack.c.b16 %v6744, %v6743
        %v6773 = vpack.c.b16 %v6746, %v6745
        %v6774 = vpack.c.b16 %v6748, %v6747
        %v6775 = vpack.c.b16 %v6750, %v6749
        %v6776 = vpack.c.b16 %v6752, %v6751
        %v6777 = vpack.c.b16 %v6754, %v6753
        %v6778 = vpack.c.b16 %v6756, %v6755
        %v6779 = vpack.c.b16 %v6758, %v6757
        %v6780 = vpack.c.b16 %v6760, %v6759
        %v6781 = vpack.c.b16 %v6762, %v6761
        %v6782 = vpack.c.b16 %v6764, %v6763
        %v6802 = vsel %vm470, %v6611, 0
        %v6805 = vsel %vm470, %v6614, 0
        %v6808 = vsel %vm470, %v6617, 0
        %v6811 = vsel %vm470, %v6620, 0
        %v6814 = vsel %vm470, %v6623, 0
        %v6817 = vsel %vm470, %v6626, 0
        %v6820 = vsel %vm470, %v6629, 0
        %v6823 = vsel %vm470, %v6632, 0
        %v6826 = vsel %vm470, %v6635, 0
        %v6829 = vsel %vm470, %v6638, 0
        %v6832 = vsel %vm470, %v6641, 0
        %v6835 = vsel %vm470, %v6644, 0
        %v6838 = vsel %vm470, %v6647, 0
        %v6841 = vsel %vm470, %v6650, 0
        %v6844 = vsel %vm470, %v6653, 0
        %v6847 = vsel %vm470, %v6656, 0
        %6849 = vmatprep.subr.bf16.mxu0 0
        %6850 = vmatpush1.bf16.msra.mxu0 %v6772
        %6851 = vmatprep.subr.bf16.mxu0 0
        %6852 = vmatpush1.bf16.msra.mxu0 %v6771
        %6853 = vmatprep.subr.bf16.mxu0 0
        %6854 = vmatpush1.bf16.msra.mxu0 %v6770
        %6855 = vmatprep.subr.bf16.mxu0 0
        %6856 = vmatpush1.bf16.msra.mxu0 %v6769
        %6857 = vmatprep.subr.bf16.mxu0 0
        %6858 = vmatpush1.bf16.msra.mxu0 %v6768
        %6859 = vmatprep.subr.bf16.mxu0 0
        %6860 = vmatpush1.bf16.msra.mxu0 %v6767
        %6861 = vmatprep.subr.bf16.mxu0 0
        %6862 = vmatpush1.bf16.msra.mxu0 %v6766
        %6863 = vmatprep.subr.bf16.mxu0 0
        %6864 = vmatpush1.bf16.msra.mxu0 %v6765
        %6865 = vmatprep.subr.bf16.mxu0 0
        %6866 = vmatpush2.bf16.msra.mxu0 %v6780
        %6867 = vmatprep.subr.bf16.mxu0 0
        %6868 = vmatpush2.bf16.msra.mxu0 %v6779
        %6869 = vmatprep.subr.bf16.mxu0 0
        %6870 = vmatpush2.bf16.msra.mxu0 %v6778
        %6871 = vmatprep.subr.bf16.mxu0 0
        %6872 = vmatpush2.bf16.msra.mxu0 %v6777
        %6873 = vmatprep.subr.bf16.mxu0 0
        %6874 = vmatpush2.bf16.msra.mxu0 %v6776
        %6875 = vmatprep.subr.bf16.mxu0 0
        %6876 = vmatpush2.bf16.msra.mxu0 %v6775
        %6877 = vmatprep.subr.bf16.mxu0 0
        %6878 = vmatpush2.bf16.msra.mxu0 %v6774
        %6879 = vmatprep.subr.bf16.mxu0 0
        %6880 = vmatpush2.bf16.msra.mxu0 %v6773
        %6881 = vmatprep.mubr.bf16.mxu0 %v6610
        %6882 = vmatmul.mubr.bf16.gmra.mxu0 %v6609
        %v6883 = vpop.f32.mrf.mxu0
        %v6884 = vadd.f32 0.0, %v6883
        %v6885 = vpop.f32.mrf.mxu0
        %v6886 = vpop.f32.mrf.mxu0
        %v6887 = vadd.f32 0.0, %v6886
        %v6888 = vpop.f32.mrf.mxu0
        %6889 = vmatprep.mubr.bf16.mxu0 %v6613
        %6890 = vmatmul.mubr.bf16.gmra.mxu0 %v6612
        %v6891 = vpop.f32.mrf.mxu0
        %v6892 = vadd.f32 0.0, %v6891
        %v6893 = vpop.f32.mrf.mxu0
        %v6894 = vpop.f32.mrf.mxu0
        %v6895 = vadd.f32 0.0, %v6894
        %v6896 = vpop.f32.mrf.mxu0
        %6897 = vmatprep.mubr.bf16.mxu0 %v6616
        %6898 = vmatmul.mubr.bf16.gmra.mxu0 %v6615
        %v6899 = vpop.f32.mrf.mxu0
        %v6900 = vadd.f32 0.0, %v6899
        %v6901 = vpop.f32.mrf.mxu0
        %v6902 = vpop.f32.mrf.mxu0
        %v6903 = vadd.f32 0.0, %v6902
        %v6904 = vpop.f32.mrf.mxu0
        %6905 = vmatprep.mubr.bf16.mxu0 %v6619
        %6906 = vmatmul.mubr.bf16.gmra.mxu0 %v6618
        %v6907 = vpop.f32.mrf.mxu0
        %v6908 = vadd.f32 0.0, %v6907
        %v6909 = vpop.f32.mrf.mxu0
        %v6910 = vpop.f32.mrf.mxu0
        %v6911 = vadd.f32 0.0, %v6910
        %v6912 = vpop.f32.mrf.mxu0
        %6913 = vmatprep.mubr.bf16.mxu0 %v6622
        %6914 = vmatmul.mubr.bf16.gmra.mxu0 %v6621
        %v6915 = vpop.f32.mrf.mxu0
        %v6916 = vadd.f32 0.0, %v6915
        %v6917 = vpop.f32.mrf.mxu0
        %v6918 = vpop.f32.mrf.mxu0
        %v6919 = vadd.f32 0.0, %v6918
        %v6920 = vpop.f32.mrf.mxu0
        %6921 = vmatprep.mubr.bf16.mxu0 %v6625
        %6922 = vmatmul.mubr.bf16.gmra.mxu0 %v6624
        %v6923 = vpop.f32.mrf.mxu0
        %v6924 = vadd.f32 0.0, %v6923
        %v6925 = vpop.f32.mrf.mxu0
        %v6926 = vpop.f32.mrf.mxu0
        %v6927 = vadd.f32 0.0, %v6926
        %v6928 = vpop.f32.mrf.mxu0
        %6929 = vmatprep.mubr.bf16.mxu0 %v6628
        %6930 = vmatmul.mubr.bf16.gmra.mxu0 %v6627
        %v6931 = vpop.f32.mrf.mxu0
        %v6932 = vadd.f32 0.0, %v6931
        %v6933 = vpop.f32.mrf.mxu0
        %v6934 = vpop.f32.mrf.mxu0
        %v6935 = vadd.f32 0.0, %v6934
        %v6936 = vpop.f32.mrf.mxu0
        %6937 = vmatprep.mubr.bf16.mxu0 %v6631
        %6938 = vmatmul.mubr.bf16.gmra.mxu0 %v6630
        %v6939 = vpop.f32.mrf.mxu0
        %v6940 = vadd.f32 0.0, %v6939
        %v6941 = vpop.f32.mrf.mxu0
        %v6942 = vpop.f32.mrf.mxu0
        %v6943 = vadd.f32 0.0, %v6942
        %v6944 = vpop.f32.mrf.mxu0
        %6945 = vmatprep.mubr.bf16.mxu0 %v6634
        %6946 = vmatmul.mubr.bf16.gmra.mxu0 %v6633
        %v6947 = vpop.f32.mrf.mxu0
        %v6948 = vadd.f32 0.0, %v6947
        %v6949 = vpop.f32.mrf.mxu0
        %v6950 = vpop.f32.mrf.mxu0
        %v6951 = vadd.f32 0.0, %v6950
        %v6952 = vpop.f32.mrf.mxu0
        %6953 = vmatprep.mubr.bf16.mxu0 %v6637
        %6954 = vmatmul.mubr.bf16.gmra.mxu0 %v6636
        %v6955 = vpop.f32.mrf.mxu0
        %v6956 = vadd.f32 0.0, %v6955
        %v6957 = vpop.f32.mrf.mxu0
        %v6958 = vpop.f32.mrf.mxu0
        %v6959 = vadd.f32 0.0, %v6958
        %v6960 = vpop.f32.mrf.mxu0
        %6961 = vmatprep.mubr.bf16.mxu0 %v6640
        %6962 = vmatmul.mubr.bf16.gmra.mxu0 %v6639
        %v6963 = vpop.f32.mrf.mxu0
        %v6964 = vadd.f32 0.0, %v6963
        %v6965 = vpop.f32.mrf.mxu0
        %v6966 = vpop.f32.mrf.mxu0
        %v6967 = vadd.f32 0.0, %v6966
        %v6968 = vpop.f32.mrf.mxu0
        %6969 = vmatprep.mubr.bf16.mxu0 %v6643
        %6970 = vmatmul.mubr.bf16.gmra.mxu0 %v6642
        %v6971 = vpop.f32.mrf.mxu0
        %v6972 = vadd.f32 0.0, %v6971
        %v6973 = vpop.f32.mrf.mxu0
        %v6974 = vpop.f32.mrf.mxu0
        %v6975 = vadd.f32 0.0, %v6974
        %v6976 = vpop.f32.mrf.mxu0
        %6977 = vmatprep.mubr.bf16.mxu0 %v6646
        %6978 = vmatmul.mubr.bf16.gmra.mxu0 %v6645
        %v6979 = vpop.f32.mrf.mxu0
        %v6980 = vadd.f32 0.0, %v6979
        %v6981 = vpop.f32.mrf.mxu0
        %v6982 = vpop.f32.mrf.mxu0
        %v6983 = vadd.f32 0.0, %v6982
        %v6984 = vpop.f32.mrf.mxu0
        %6985 = vmatprep.mubr.bf16.mxu0 %v6649
        %6986 = vmatmul.mubr.bf16.gmra.mxu0 %v6648
        %v6987 = vpop.f32.mrf.mxu0
        %v6988 = vadd.f32 0.0, %v6987
        %v6989 = vpop.f32.mrf.mxu0
        %v6990 = vpop.f32.mrf.mxu0
        %v6991 = vadd.f32 0.0, %v6990
        %v6992 = vpop.f32.mrf.mxu0
        %6993 = vmatprep.mubr.bf16.mxu0 %v6652
        %6994 = vmatmul.mubr.bf16.gmra.mxu0 %v6651
        %v6995 = vpop.f32.mrf.mxu0
        %v6996 = vadd.f32 0.0, %v6995
        %v6997 = vpop.f32.mrf.mxu0
        %v6998 = vpop.f32.mrf.mxu0
        %v6999 = vadd.f32 0.0, %v6998
        %v7000 = vpop.f32.mrf.mxu0
        %7001 = vmatprep.mubr.bf16.mxu0 %v6655
        %7002 = vmatmul.mubr.bf16.gmra.mxu0 %v6654
        %v7003 = vpop.f32.mrf.mxu0
        %v7004 = vadd.f32 0.0, %v7003
        %v7005 = vpop.f32.mrf.mxu0
        %v7006 = vpop.f32.mrf.mxu0
        %v7007 = vadd.f32 0.0, %v7006
        %v7008 = vpop.f32.mrf.mxu0
        %7009 = vdwg.mxu0
        %7010 = vmatprep.subr.bf16.mxu0 0
        %7011 = vmatpush1.bf16.msra.mxu0 0
        %7012 = vmatprep.subr.bf16.mxu0 0
        %7013 = vmatpush1.bf16.msra.mxu0 0
        %7014 = vmatprep.subr.bf16.mxu0 0
        %7015 = vmatpush1.bf16.msra.mxu0 0
        %7016 = vmatprep.subr.bf16.mxu0 0
        %7017 = vmatpush1.bf16.msra.mxu0 0
        %7018 = vmatprep.subr.bf16.mxu0 0
        %7019 = vmatpush1.bf16.msra.mxu0 0
        %7020 = vmatprep.subr.bf16.mxu0 0
        %7021 = vmatpush1.bf16.msra.mxu0 0
        %7022 = vmatprep.subr.bf16.mxu0 0
        %7023 = vmatpush1.bf16.msra.mxu0 %v6782
        %7024 = vmatprep.subr.bf16.mxu0 0
        %7025 = vmatpush1.bf16.msra.mxu0 %v6781
        %7026 = vmatprep.subr.bf16.mxu0 0
        %7027 = vmatpush2.bf16.msra.mxu0 0
        %7028 = vmatprep.subr.bf16.mxu0 0
        %7029 = vmatpush2.bf16.msra.mxu0 0
        %7030 = vmatprep.subr.bf16.mxu0 0
        %7031 = vmatpush2.bf16.msra.mxu0 0
        %7032 = vmatprep.subr.bf16.mxu0 0
        %7033 = vmatpush2.bf16.msra.mxu0 0
        %7034 = vmatprep.subr.bf16.mxu0 0
        %7035 = vmatpush2.bf16.msra.mxu0 0
        %7036 = vmatprep.subr.bf16.mxu0 0
        %7037 = vmatpush2.bf16.msra.mxu0 0
        %7038 = vmatprep.subr.bf16.mxu0 0
        %7039 = vmatpush2.bf16.msra.mxu0 0
        %7040 = vmatprep.subr.bf16.mxu0 0
        %7041 = vmatpush2.bf16.msra.mxu0 0
        %7042 = vmatprep.mubr.bf16.mxu0 0
        %7043 = vmatmul.mubr.bf16.gmra.mxu0 %v6802
        %v7044 = vpop.f32.mrf.mxu0
        %v7045 = vadd.f32 %v6884, %v7044
        %v7046 = vpop.f32.mrf.mxu0
        %v7047 = vpop.f32.mrf.mxu0
        %v7048 = vadd.f32 %v6887, %v7047
        %v7049 = vpop.f32.mrf.mxu0
        %7050 = vmatprep.mubr.bf16.mxu0 0
        %7051 = vmatmul.mubr.bf16.gmra.mxu0 %v6805
        %v7052 = vpop.f32.mrf.mxu0
        %v7053 = vadd.f32 %v6892, %v7052
        %v7054 = vpop.f32.mrf.mxu0
        %v7055 = vpop.f32.mrf.mxu0
        %v7056 = vadd.f32 %v6895, %v7055
        %v7057 = vpop.f32.mrf.mxu0
        %7058 = vmatprep.mubr.bf16.mxu0 0
        %7059 = vmatmul.mubr.bf16.gmra.mxu0 %v6808
        %v7060 = vpop.f32.mrf.mxu0
        %v7061 = vadd.f32 %v6900, %v7060
        %v7062 = vpop.f32.mrf.mxu0
        %v7063 = vpop.f32.mrf.mxu0
        %v7064 = vadd.f32 %v6903, %v7063
        %v7065 = vpop.f32.mrf.mxu0
        %7066 = vmatprep.mubr.bf16.mxu0 0
        %7067 = vmatmul.mubr.bf16.gmra.mxu0 %v6811
        %v7068 = vpop.f32.mrf.mxu0
        %v7069 = vadd.f32 %v6908, %v7068
        %v7070 = vpop.f32.mrf.mxu0
        %v7071 = vpop.f32.mrf.mxu0
        %v7072 = vadd.f32 %v6911, %v7071
        %v7073 = vpop.f32.mrf.mxu0
        %7074 = vmatprep.mubr.bf16.mxu0 0
        %7075 = vmatmul.mubr.bf16.gmra.mxu0 %v6814
        %v7076 = vpop.f32.mrf.mxu0
        %v7077 = vadd.f32 %v6916, %v7076
        %v7078 = vpop.f32.mrf.mxu0
        %v7079 = vpop.f32.mrf.mxu0
        %v7080 = vadd.f32 %v6919, %v7079
        %v7081 = vpop.f32.mrf.mxu0
        %7082 = vmatprep.mubr.bf16.mxu0 0
        %7083 = vmatmul.mubr.bf16.gmra.mxu0 %v6817
        %v7084 = vpop.f32.mrf.mxu0
        %v7085 = vadd.f32 %v6924, %v7084
        %v7086 = vpop.f32.mrf.mxu0
        %v7087 = vpop.f32.mrf.mxu0
        %v7088 = vadd.f32 %v6927, %v7087
        %v7089 = vpop.f32.mrf.mxu0
        %7090 = vmatprep.mubr.bf16.mxu0 0
        %7091 = vmatmul.mubr.bf16.gmra.mxu0 %v6820
        %v7092 = vpop.f32.mrf.mxu0
        %v7093 = vadd.f32 %v6932, %v7092
        %v7094 = vpop.f32.mrf.mxu0
        %v7095 = vpop.f32.mrf.mxu0
        %v7096 = vadd.f32 %v6935, %v7095
        %v7097 = vpop.f32.mrf.mxu0
        %7098 = vmatprep.mubr.bf16.mxu0 0
        %7099 = vmatmul.mubr.bf16.gmra.mxu0 %v6823
        %v7100 = vpop.f32.mrf.mxu0
        %v7101 = vadd.f32 %v6940, %v7100
        %v7102 = vpop.f32.mrf.mxu0
        %v7103 = vpop.f32.mrf.mxu0
        %v7104 = vadd.f32 %v6943, %v7103
        %v7105 = vpop.f32.mrf.mxu0
        %7106 = vmatprep.mubr.bf16.mxu0 0
        %7107 = vmatmul.mubr.bf16.gmra.mxu0 %v6826
        %v7108 = vpop.f32.mrf.mxu0
        %v7109 = vadd.f32 %v6948, %v7108
        %v7110 = vpop.f32.mrf.mxu0
        %v7111 = vpop.f32.mrf.mxu0
        %v7112 = vadd.f32 %v6951, %v7111
        %v7113 = vpop.f32.mrf.mxu0
        %7114 = vmatprep.mubr.bf16.mxu0 0
        %7115 = vmatmul.mubr.bf16.gmra.mxu0 %v6829
        %v7116 = vpop.f32.mrf.mxu0
        %v7117 = vadd.f32 %v6956, %v7116
        %v7118 = vpop.f32.mrf.mxu0
        %v7119 = vpop.f32.mrf.mxu0
        %v7120 = vadd.f32 %v6959, %v7119
        %v7121 = vpop.f32.mrf.mxu0
        %7122 = vmatprep.mubr.bf16.mxu0 0
        %7123 = vmatmul.mubr.bf16.gmra.mxu0 %v6832
        %v7124 = vpop.f32.mrf.mxu0
        %v7125 = vadd.f32 %v6964, %v7124
        %v7126 = vpop.f32.mrf.mxu0
        %v7127 = vpop.f32.mrf.mxu0
        %v7128 = vadd.f32 %v6967, %v7127
        %v7129 = vpop.f32.mrf.mxu0
        %7130 = vmatprep.mubr.bf16.mxu0 0
        %7131 = vmatmul.mubr.bf16.gmra.mxu0 %v6835
        %v7132 = vpop.f32.mrf.mxu0
        %v7133 = vadd.f32 %v6972, %v7132
        %v7134 = vpop.f32.mrf.mxu0
        %v7135 = vpop.f32.mrf.mxu0
        %v7136 = vadd.f32 %v6975, %v7135
        %v7137 = vpop.f32.mrf.mxu0
        %7138 = vmatprep.mubr.bf16.mxu0 0
        %7139 = vmatmul.mubr.bf16.gmra.mxu0 %v6838
        %v7140 = vpop.f32.mrf.mxu0
        %v7141 = vadd.f32 %v6980, %v7140
        %v7142 = vpop.f32.mrf.mxu0
        %v7143 = vpop.f32.mrf.mxu0
        %v7144 = vadd.f32 %v6983, %v7143
        %v7145 = vpop.f32.mrf.mxu0
        %7146 = vmatprep.mubr.bf16.mxu0 0
        %7147 = vmatmul.mubr.bf16.gmra.mxu0 %v6841
        %v7148 = vpop.f32.mrf.mxu0
        %v7149 = vadd.f32 %v6988, %v7148
        %v7150 = vpop.f32.mrf.mxu0
        %v7151 = vpop.f32.mrf.mxu0
        %v7152 = vadd.f32 %v6991, %v7151
        %v7153 = vpop.f32.mrf.mxu0
        %7154 = vmatprep.mubr.bf16.mxu0 0
        %7155 = vmatmul.mubr.bf16.gmra.mxu0 %v6844
        %v7156 = vpop.f32.mrf.mxu0
        %v7157 = vadd.f32 %v6996, %v7156
        %v7158 = vpop.f32.mrf.mxu0
        %v7159 = vpop.f32.mrf.mxu0
        %v7160 = vadd.f32 %v6999, %v7159
        %v7161 = vpop.f32.mrf.mxu0
        %7162 = vmatprep.mubr.bf16.mxu0 0
        %7163 = vmatmul.mubr.bf16.gmra.mxu0 %v6847
        %v7164 = vpop.f32.mrf.mxu0
        %v7165 = vadd.f32 %v7004, %v7164
        %v7166 = vpop.f32.mrf.mxu0
        %v7167 = vpop.f32.mrf.mxu0
        %v7168 = vadd.f32 %v7007, %v7167
        %v7169 = vpop.f32.mrf.mxu0
        %7170 = vdwg.mxu0
        %v7171 = vsel %vm470, %v7045, 0.0
        %v7172 = vsel %vm470, %v7053, 0.0
        %v7173 = vadd.f32 %v7171, %v7172
        %v7174 = vsel %vm470, %v7061, 0.0
        %v7175 = vadd.f32 %v7173, %v7174
        %v7176 = vsel %vm470, %v7069, 0.0
        %v7177 = vadd.f32 %v7175, %v7176
        %v7178 = vsel %vm470, %v7077, 0.0
        %v7179 = vadd.f32 %v7177, %v7178
        %v7180 = vsel %vm470, %v7085, 0.0
        %v7181 = vadd.f32 %v7179, %v7180
        %v7182 = vsel %vm470, %v7093, 0.0
        %v7183 = vadd.f32 %v7181, %v7182
        %v7184 = vsel %vm470, %v7101, 0.0
        %v7185 = vadd.f32 %v7183, %v7184
        %v7186 = vsel %vm470, %v7109, 0.0
        %v7187 = vadd.f32 %v7185, %v7186
        %v7188 = vsel %vm470, %v7117, 0.0
        %v7189 = vadd.f32 %v7187, %v7188
        %v7190 = vsel %vm470, %v7125, 0.0
        %v7191 = vadd.f32 %v7189, %v7190
        %v7192 = vsel %vm470, %v7133, 0.0
        %v7193 = vadd.f32 %v7191, %v7192
        %v7194 = vsel %vm470, %v7141, 0.0
        %v7195 = vadd.f32 %v7193, %v7194
        %v7196 = vsel %vm470, %v7149, 0.0
        %v7197 = vadd.f32 %v7195, %v7196
        %v7198 = vsel %vm470, %v7157, 0.0
        %v7199 = vadd.f32 %v7197, %v7198
        %v7200 = vsel %vm470, %v7165, 0.0
        %v7201 = vadd.f32 %v7199, %v7200
        %v7202 = vsel %vm470, %v7048, 0.0
        %v7203 = vsel %vm470, %v7056, 0.0
        %v7204 = vadd.f32 %v7202, %v7203
        %v7205 = vsel %vm470, %v7064, 0.0
        %v7206 = vadd.f32 %v7204, %v7205
        %v7207 = vsel %vm470, %v7072, 0.0
        %v7208 = vadd.f32 %v7206, %v7207
        %v7209 = vsel %vm470, %v7080, 0.0
        %v7210 = vadd.f32 %v7208, %v7209
        %v7211 = vsel %vm470, %v7088, 0.0
        %v7212 = vadd.f32 %v7210, %v7211
        %v7213 = vsel %vm470, %v7096, 0.0
        %v7214 = vadd.f32 %v7212, %v7213
        %v7215 = vsel %vm470, %v7104, 0.0
        %v7216 = vadd.f32 %v7214, %v7215
        %v7217 = vsel %vm470, %v7112, 0.0
        %v7218 = vadd.f32 %v7216, %v7217
        %v7219 = vsel %vm470, %v7120, 0.0
        %v7220 = vadd.f32 %v7218, %v7219
        %v7221 = vsel %vm470, %v7128, 0.0
        %v7222 = vadd.f32 %v7220, %v7221
        %v7223 = vsel %vm470, %v7136, 0.0
        %v7224 = vadd.f32 %v7222, %v7223
        %v7225 = vsel %vm470, %v7144, 0.0
        %v7226 = vadd.f32 %v7224, %v7225
        %v7227 = vsel %vm470, %v7152, 0.0
        %v7228 = vadd.f32 %v7226, %v7227
        %v7229 = vsel %vm470, %v7160, 0.0
        %v7230 = vadd.f32 %v7228, %v7229
        %v7231 = vsel %vm470, %v7168, 0.0
        %v7232 = vadd.f32 %v7230, %v7231
        %v7233 = vmul.f32 %v7201, %v2520
        %v7234 = vmul.f32 %v7232, %v2520
        %v7235 = vsel %vm470, %v7233, 0.0
        %v7236 = vsel %vm470, %v7234, 0.0
        %v7237 = vadd.f32 %v7235, %v7236
        %v7238 = vrot.slane %v7237, 4
        %v7239 = vadd.f32 %v7237, %v7238
        %v7240 = vrot.slane %v7239, 2
        %v7241 = vadd.f32 %v7239, %v7240
        %v7242 = vrot.slane %v7241, 1
        %v7243 = vadd.f32 %v7241, %v7242
        %v7244 = vmul.f32 %v7243, %v2520
        %v7245 = vld [vmem:[#allocation7] sm:$0xff]
        %v7246 = vld [vmem:[#allocation7 + $0x8] sm:$0xff]
        %v7247 = vld [vmem:[#allocation7 + $0x10] sm:$0xff]
        %v7248 = vld [vmem:[#allocation7 + $0x18] sm:$0xff]
        %v7250 = vsel %vm470, %v7244, 0
        %7252 = vmatprep.subr.mxu0 0.0
        %7253 = vmatpush1.msra.mxu0 0.0
        %7254 = vmatprep.subr.mxu0 0.0
        %7255 = vmatpush1.msra.mxu0 0.0
        %7256 = vmatprep.subr.mxu0 0.0
        %7257 = vmatpush1.msra.mxu0 0.0
        %7258 = vmatprep.subr.mxu0 0.0
        %7259 = vmatpush1.msra.mxu0 0.0
        %7260 = vmatprep.subr.mxu0 0.0
        %7261 = vmatpush1.msra.mxu0 0.0
        %7262 = vmatprep.subr.mxu0 0.0
        %7263 = vmatpush1.msra.mxu0 0.0
        %7264 = vmatprep.subr.mxu0 0.0
        %7265 = vmatpush1.msra.mxu0 0.0
        %7266 = vmatprep.subr.mxu0 0.0
        %7267 = vmatpush1.msra.mxu0 0.0
        %7268 = vmatprep.subr.mxu0 0.0
        %7269 = vmatpush1.msra.mxu0 0.0
        %7270 = vmatprep.subr.mxu0 0.0
        %7271 = vmatpush1.msra.mxu0 0.0
        %7272 = vmatprep.subr.mxu0 0.0
        %7273 = vmatpush1.msra.mxu0 0.0
        %7274 = vmatprep.subr.mxu0 0.0
        %7275 = vmatpush1.msra.mxu0 0.0
        %7276 = vmatprep.subr.mxu0 0.0
        %7277 = vmatpush1.msra.mxu0 %v7248
        %7278 = vmatprep.subr.mxu0 0.0
        %7279 = vmatpush1.msra.mxu0 %v7247
        %7280 = vmatprep.subr.mxu0 0.0
        %7281 = vmatpush1.msra.mxu0 %v7246
        %7282 = vmatprep.subr.mxu0 0.0
        %7283 = vmatpush1.msra.mxu0 %v7245
        %7284 = vmatprep.subr.mxu0 0.0
        %7285 = vmatpush2.msra.mxu0 0.0
        %7286 = vmatprep.subr.mxu0 0.0
        %7287 = vmatpush2.msra.mxu0 0.0
        %7288 = vmatprep.subr.mxu0 0.0
        %7289 = vmatpush2.msra.mxu0 0.0
        %7290 = vmatprep.subr.mxu0 0.0
        %7291 = vmatpush2.msra.mxu0 0.0
        %7292 = vmatprep.subr.mxu0 0.0
        %7293 = vmatpush2.msra.mxu0 0.0
        %7294 = vmatprep.subr.mxu0 0.0
        %7295 = vmatpush2.msra.mxu0 0.0
        %7296 = vmatprep.subr.mxu0 0.0
        %7297 = vmatpush2.msra.mxu0 0.0
        %7298 = vmatprep.subr.mxu0 0.0
        %7299 = vmatpush2.msra.mxu0 0.0
        %7300 = vmatprep.subr.mxu0 0.0
        %7301 = vmatpush2.msra.mxu0 0.0
        %7302 = vmatprep.subr.mxu0 0.0
        %7303 = vmatpush2.msra.mxu0 0.0
        %7304 = vmatprep.subr.mxu0 0.0
        %7305 = vmatpush2.msra.mxu0 0.0
        %7306 = vmatprep.subr.mxu0 0.0
        %7307 = vmatpush2.msra.mxu0 0.0
        %7308 = vmatprep.subr.mxu0 0.0
        %7309 = vmatpush2.msra.mxu0 0.0
        %7310 = vmatprep.subr.mxu0 0.0
        %7311 = vmatpush2.msra.mxu0 0.0
        %7312 = vmatprep.subr.mxu0 0.0
        %7313 = vmatpush2.msra.mxu0 0.0
        %7314 = vmatprep.subr.mxu0 0.0
        %7315 = vmatpush2.msra.mxu0 0.0
        %7316 = vmatprep.mubr.f32.mxu0 0.0
        %7317 = vmatmul.mubr.f32.gmra.mxu0 %v7250
        %v7318 = vpop.f32.mrf.mxu0
        %v7319 = vadd.f32 0.0, %v7318
        %v7320 = vpop.f32.mrf.mxu0
        %7321 = vdwg.mxu0
        %v7322 = vlaneseq
        %v7323 = vshrl.u32 %v7322, 7
        %v7324 = vsub.s32 0, %v7323
        %v7325 = vrot.slane %v7319, %v7324
        %v7326 = vsub.f32 %v7045, %v7325
        %v7327 = vsub.f32 %v7048, %v7325
        %v7328 = vsub.f32 %v7053, %v7325
        %v7329 = vsub.f32 %v7056, %v7325
        %v7330 = vsub.f32 %v7061, %v7325
        %v7331 = vsub.f32 %v7064, %v7325
        %v7332 = vsub.f32 %v7069, %v7325
        %v7333 = vsub.f32 %v7072, %v7325
        %v7334 = vsub.f32 %v7077, %v7325
        %v7335 = vsub.f32 %v7080, %v7325
        %v7336 = vsub.f32 %v7085, %v7325
        %v7337 = vsub.f32 %v7088, %v7325
        %v7338 = vsub.f32 %v7093, %v7325
        %v7339 = vsub.f32 %v7096, %v7325
        %v7340 = vsub.f32 %v7101, %v7325
        %v7341 = vsub.f32 %v7104, %v7325
        %v7342 = vsub.f32 %v7109, %v7325
        %v7343 = vsub.f32 %v7112, %v7325
        %v7344 = vsub.f32 %v7117, %v7325
        %v7345 = vsub.f32 %v7120, %v7325
        %v7346 = vsub.f32 %v7125, %v7325
        %v7347 = vsub.f32 %v7128, %v7325
        %v7348 = vsub.f32 %v7133, %v7325
        %v7349 = vsub.f32 %v7136, %v7325
        %v7350 = vsub.f32 %v7141, %v7325
        %v7351 = vsub.f32 %v7144, %v7325
        %v7352 = vsub.f32 %v7149, %v7325
        %v7353 = vsub.f32 %v7152, %v7325
        %v7354 = vsub.f32 %v7157, %v7325
        %v7355 = vsub.f32 %v7160, %v7325
        %v7356 = vsub.f32 %v7165, %v7325
        %v7357 = vsub.f32 %v7168, %v7325
        %v7358 = vmul.f32 %v7326, %v7326
        %v7359 = vmul.f32 %v7327, %v7327
        %v7360 = vmul.f32 %v7328, %v7328
        %v7361 = vmul.f32 %v7329, %v7329
        %v7362 = vmul.f32 %v7330, %v7330
        %v7363 = vmul.f32 %v7331, %v7331
        %v7364 = vmul.f32 %v7332, %v7332
        %v7365 = vmul.f32 %v7333, %v7333
        %v7366 = vmul.f32 %v7334, %v7334
        %v7367 = vmul.f32 %v7335, %v7335
        %v7368 = vmul.f32 %v7336, %v7336
        %v7369 = vmul.f32 %v7337, %v7337
        %v7370 = vmul.f32 %v7338, %v7338
        %v7371 = vmul.f32 %v7339, %v7339
        %v7372 = vmul.f32 %v7340, %v7340
        %v7373 = vmul.f32 %v7341, %v7341
        %v7374 = vmul.f32 %v7342, %v7342
        %v7375 = vmul.f32 %v7343, %v7343
        %v7376 = vmul.f32 %v7344, %v7344
        %v7377 = vmul.f32 %v7345, %v7345
        %v7378 = vmul.f32 %v7346, %v7346
        %v7379 = vmul.f32 %v7347, %v7347
        %v7380 = vmul.f32 %v7348, %v7348
        %v7381 = vmul.f32 %v7349, %v7349
        %v7382 = vmul.f32 %v7350, %v7350
        %v7383 = vmul.f32 %v7351, %v7351
        %v7384 = vmul.f32 %v7352, %v7352
        %v7385 = vmul.f32 %v7353, %v7353
        %v7386 = vmul.f32 %v7354, %v7354
        %v7387 = vmul.f32 %v7355, %v7355
        %v7388 = vmul.f32 %v7356, %v7356
        %v7389 = vmul.f32 %v7357, %v7357
        %v7390 = vsel %vm470, %v7358, 0.0
        %v7391 = vsel %vm470, %v7360, 0.0
        %v7392 = vadd.f32 %v7390, %v7391
        %v7393 = vsel %vm470, %v7362, 0.0
        %v7394 = vadd.f32 %v7392, %v7393
        %v7395 = vsel %vm470, %v7364, 0.0
        %v7396 = vadd.f32 %v7394, %v7395
        %v7397 = vsel %vm470, %v7366, 0.0
        %v7398 = vadd.f32 %v7396, %v7397
        %v7399 = vsel %vm470, %v7368, 0.0
        %v7400 = vadd.f32 %v7398, %v7399
        %v7401 = vsel %vm470, %v7370, 0.0
        %v7402 = vadd.f32 %v7400, %v7401
        %v7403 = vsel %vm470, %v7372, 0.0
        %v7404 = vadd.f32 %v7402, %v7403
        %v7405 = vsel %vm470, %v7374, 0.0
        %v7406 = vadd.f32 %v7404, %v7405
        %v7407 = vsel %vm470, %v7376, 0.0
        %v7408 = vadd.f32 %v7406, %v7407
        %v7409 = vsel %vm470, %v7378, 0.0
        %v7410 = vadd.f32 %v7408, %v7409
        %v7411 = vsel %vm470, %v7380, 0.0
        %v7412 = vadd.f32 %v7410, %v7411
        %v7413 = vsel %vm470, %v7382, 0.0
        %v7414 = vadd.f32 %v7412, %v7413
        %v7415 = vsel %vm470, %v7384, 0.0
        %v7416 = vadd.f32 %v7414, %v7415
        %v7417 = vsel %vm470, %v7386, 0.0
        %v7418 = vadd.f32 %v7416, %v7417
        %v7419 = vsel %vm470, %v7388, 0.0
        %v7420 = vadd.f32 %v7418, %v7419
        %v7421 = vsel %vm470, %v7359, 0.0
        %v7422 = vsel %vm470, %v7361, 0.0
        %v7423 = vadd.f32 %v7421, %v7422
        %v7424 = vsel %vm470, %v7363, 0.0
        %v7425 = vadd.f32 %v7423, %v7424
        %v7426 = vsel %vm470, %v7365, 0.0
        %v7427 = vadd.f32 %v7425, %v7426
        %v7428 = vsel %vm470, %v7367, 0.0
        %v7429 = vadd.f32 %v7427, %v7428
        %v7430 = vsel %vm470, %v7369, 0.0
        %v7431 = vadd.f32 %v7429, %v7430
        %v7432 = vsel %vm470, %v7371, 0.0
        %v7433 = vadd.f32 %v7431, %v7432
        %v7434 = vsel %vm470, %v7373, 0.0
        %v7435 = vadd.f32 %v7433, %v7434
        %v7436 = vsel %vm470, %v7375, 0.0
        %v7437 = vadd.f32 %v7435, %v7436
        %v7438 = vsel %vm470, %v7377, 0.0
        %v7439 = vadd.f32 %v7437, %v7438
        %v7440 = vsel %vm470, %v7379, 0.0
        %v7441 = vadd.f32 %v7439, %v7440
        %v7442 = vsel %vm470, %v7381, 0.0
        %v7443 = vadd.f32 %v7441, %v7442
        %v7444 = vsel %vm470, %v7383, 0.0
        %v7445 = vadd.f32 %v7443, %v7444
        %v7446 = vsel %vm470, %v7385, 0.0
        %v7447 = vadd.f32 %v7445, %v7446
        %v7448 = vsel %vm470, %v7387, 0.0
        %v7449 = vadd.f32 %v7447, %v7448
        %v7450 = vsel %vm470, %v7389, 0.0
        %v7451 = vadd.f32 %v7449, %v7450
        %v7452 = vmul.f32 %v7420, %v2520
        %v7453 = vmul.f32 %v7451, %v2520
        %v7454 = vsel %vm470, %v7452, 0.0
        %v7455 = vsel %vm470, %v7453, 0.0
        %v7456 = vadd.f32 %v7454, %v7455
        %v7457 = vrot.slane %v7456, 4
        %v7458 = vadd.f32 %v7456, %v7457
        %v7459 = vrot.slane %v7458, 2
        %v7460 = vadd.f32 %v7458, %v7459
        %v7461 = vrot.slane %v7460, 1
        %v7462 = vadd.f32 %v7460, %v7461
        %v7463 = vmul.f32 %v7462, %v2520
        %v7465 = vsel %vm470, %v7463, 0
        %7467 = vmatprep.subr.mxu0 0.0
        %7468 = vmatpush1.msra.mxu0 0.0
        %7469 = vmatprep.subr.mxu0 0.0
        %7470 = vmatpush1.msra.mxu0 0.0
        %7471 = vmatprep.subr.mxu0 0.0
        %7472 = vmatpush1.msra.mxu0 0.0
        %7473 = vmatprep.subr.mxu0 0.0
        %7474 = vmatpush1.msra.mxu0 0.0
        %7475 = vmatprep.subr.mxu0 0.0
        %7476 = vmatpush1.msra.mxu0 0.0
        %7477 = vmatprep.subr.mxu0 0.0
        %7478 = vmatpush1.msra.mxu0 0.0
        %7479 = vmatprep.subr.mxu0 0.0
        %7480 = vmatpush1.msra.mxu0 0.0
        %7481 = vmatprep.subr.mxu0 0.0
        %7482 = vmatpush1.msra.mxu0 0.0
        %7483 = vmatprep.subr.mxu0 0.0
        %7484 = vmatpush1.msra.mxu0 0.0
        %7485 = vmatprep.subr.mxu0 0.0
        %7486 = vmatpush1.msra.mxu0 0.0
        %7487 = vmatprep.subr.mxu0 0.0
        %7488 = vmatpush1.msra.mxu0 0.0
        %7489 = vmatprep.subr.mxu0 0.0
        %7490 = vmatpush1.msra.mxu0 0.0
        %7491 = vmatprep.subr.mxu0 0.0
        %7492 = vmatpush1.msra.mxu0 %v7248
        %7493 = vmatprep.subr.mxu0 0.0
        %7494 = vmatpush1.msra.mxu0 %v7247
        %7495 = vmatprep.subr.mxu0 0.0
        %7496 = vmatpush1.msra.mxu0 %v7246
        %7497 = vmatprep.subr.mxu0 0.0
        %7498 = vmatpush1.msra.mxu0 %v7245
        %7499 = vmatprep.subr.mxu0 0.0
        %7500 = vmatpush2.msra.mxu0 0.0
        %7501 = vmatprep.subr.mxu0 0.0
        %7502 = vmatpush2.msra.mxu0 0.0
        %7503 = vmatprep.subr.mxu0 0.0
        %7504 = vmatpush2.msra.mxu0 0.0
        %7505 = vmatprep.subr.mxu0 0.0
        %7506 = vmatpush2.msra.mxu0 0.0
        %7507 = vmatprep.subr.mxu0 0.0
        %7508 = vmatpush2.msra.mxu0 0.0
        %7509 = vmatprep.subr.mxu0 0.0
        %7510 = vmatpush2.msra.mxu0 0.0
        %7511 = vmatprep.subr.mxu0 0.0
        %7512 = vmatpush2.msra.mxu0 0.0
        %7513 = vmatprep.subr.mxu0 0.0
        %7514 = vmatpush2.msra.mxu0 0.0
        %7515 = vmatprep.subr.mxu0 0.0
        %7516 = vmatpush2.msra.mxu0 0.0
        %7517 = vmatprep.subr.mxu0 0.0
        %7518 = vmatpush2.msra.mxu0 0.0
        %7519 = vmatprep.subr.mxu0 0.0
        %7520 = vmatpush2.msra.mxu0 0.0
        %7521 = vmatprep.subr.mxu0 0.0
        %7522 = vmatpush2.msra.mxu0 0.0
        %7523 = vmatprep.subr.mxu0 0.0
        %7524 = vmatpush2.msra.mxu0 0.0
        %7525 = vmatprep.subr.mxu0 0.0
        %7526 = vmatpush2.msra.mxu0 0.0
        %7527 = vmatprep.subr.mxu0 0.0
        %7528 = vmatpush2.msra.mxu0 0.0
        %7529 = vmatprep.subr.mxu0 0.0
        %7530 = vmatpush2.msra.mxu0 0.0
        %7531 = vmatprep.mubr.f32.mxu0 0.0
        %7532 = vmatmul.mubr.f32.gmra.mxu0 %v7465
        %v7533 = vpop.f32.mrf.mxu0
        %v7534 = vadd.f32 1e-05, %v7533
        %v7535 = vpop.f32.mrf.mxu0
        %7536 = vdwg.mxu0
        %v7537 = vrsqrt.pop %v7534
        %v7538 = vlaneseq
        %v7539 = vshrl.u32 %v7538, 7
        %v7540 = vsub.s32 0, %v7539
        %v7541 = vrot.slane %v7537, %v7540
        %v7542 = vmul.f32 %v7326, %v7541
        %v7543 = vmul.f32 %v7327, %v7541
        %v7544 = vmul.f32 %v7328, %v7541
        %v7545 = vmul.f32 %v7329, %v7541
        %v7546 = vmul.f32 %v7330, %v7541
        %v7547 = vmul.f32 %v7331, %v7541
        %v7548 = vmul.f32 %v7332, %v7541
        %v7549 = vmul.f32 %v7333, %v7541
        %v7550 = vmul.f32 %v7334, %v7541
        %v7551 = vmul.f32 %v7335, %v7541
        %v7552 = vmul.f32 %v7336, %v7541
        %v7553 = vmul.f32 %v7337, %v7541
        %v7554 = vmul.f32 %v7338, %v7541
        %v7555 = vmul.f32 %v7339, %v7541
        %v7556 = vmul.f32 %v7340, %v7541
        %v7557 = vmul.f32 %v7341, %v7541
        %v7558 = vmul.f32 %v7342, %v7541
        %v7559 = vmul.f32 %v7343, %v7541
        %v7560 = vmul.f32 %v7344, %v7541
        %v7561 = vmul.f32 %v7345, %v7541
        %v7562 = vmul.f32 %v7346, %v7541
        %v7563 = vmul.f32 %v7347, %v7541
        %v7564 = vmul.f32 %v7348, %v7541
        %v7565 = vmul.f32 %v7349, %v7541
        %v7566 = vmul.f32 %v7350, %v7541
        %v7567 = vmul.f32 %v7351, %v7541
        %v7568 = vmul.f32 %v7352, %v7541
        %v7569 = vmul.f32 %v7353, %v7541
        %v7570 = vmul.f32 %v7354, %v7541
        %v7571 = vmul.f32 %v7355, %v7541
        %v7572 = vmul.f32 %v7356, %v7541
        %v7573 = vmul.f32 %v7357, %v7541
        %v7574 = vld [vmem:[%s8] sm:$0x1]
        %v7576 = vlaneseq
        %v7577 = vshrl.u32 %v7576, 7
        %v7578 = vsub.s32 0, %v7577
        %v7579 = vrot.slane %v7574, %v7578
        %v7581 = vmul.f32 %v7542, %v7579
        %v7582 = vmul.f32 %v7543, %v7579
        %v7583 = vmul.f32 %v7544, %v7579
        %v7584 = vmul.f32 %v7545, %v7579
        %v7585 = vmul.f32 %v7546, %v7579
        %v7586 = vmul.f32 %v7547, %v7579
        %v7587 = vmul.f32 %v7548, %v7579
        %v7588 = vmul.f32 %v7549, %v7579
        %v7589 = vmul.f32 %v7550, %v7579
        %v7590 = vmul.f32 %v7551, %v7579
        %v7591 = vmul.f32 %v7552, %v7579
        %v7592 = vmul.f32 %v7553, %v7579
        %v7593 = vmul.f32 %v7554, %v7579
        %v7594 = vmul.f32 %v7555, %v7579
        %v7595 = vmul.f32 %v7556, %v7579
        %v7596 = vmul.f32 %v7557, %v7579
        %v7597 = vmul.f32 %v7558, %v7579
        %v7598 = vmul.f32 %v7559, %v7579
        %v7599 = vmul.f32 %v7560, %v7579
        %v7600 = vmul.f32 %v7561, %v7579
        %v7601 = vmul.f32 %v7562, %v7579
        %v7602 = vmul.f32 %v7563, %v7579
        %v7603 = vmul.f32 %v7564, %v7579
        %v7604 = vmul.f32 %v7565, %v7579
        %v7605 = vmul.f32 %v7566, %v7579
        %v7606 = vmul.f32 %v7567, %v7579
        %v7607 = vmul.f32 %v7568, %v7579
        %v7608 = vmul.f32 %v7569, %v7579
        %v7609 = vmul.f32 %v7570, %v7579
        %v7610 = vmul.f32 %v7571, %v7579
        %v7611 = vmul.f32 %v7572, %v7579
        %v7612 = vmul.f32 %v7573, %v7579
        %v7613 = vld [vmem:[%s9] sm:$0x1]
        %v7615 = vlaneseq
        %v7616 = vshrl.u32 %v7615, 7
        %v7617 = vsub.s32 0, %v7616
        %v7618 = vrot.slane %v7613, %v7617
        %v7620 = vadd.f32 %v7581, %v7618
        %v7621 = vadd.f32 %v7582, %v7618
        %v7622 = vadd.f32 %v7583, %v7618
        %v7623 = vadd.f32 %v7584, %v7618
        %v7624 = vadd.f32 %v7585, %v7618
        %v7625 = vadd.f32 %v7586, %v7618
        %v7626 = vadd.f32 %v7587, %v7618
        %v7627 = vadd.f32 %v7588, %v7618
        %v7628 = vadd.f32 %v7589, %v7618
        %v7629 = vadd.f32 %v7590, %v7618
        %v7630 = vadd.f32 %v7591, %v7618
        %v7631 = vadd.f32 %v7592, %v7618
        %v7632 = vadd.f32 %v7593, %v7618
        %v7633 = vadd.f32 %v7594, %v7618
        %v7634 = vadd.f32 %v7595, %v7618
        %v7635 = vadd.f32 %v7596, %v7618
        %v7636 = vadd.f32 %v7597, %v7618
        %v7637 = vadd.f32 %v7598, %v7618
        %v7638 = vadd.f32 %v7599, %v7618
        %v7639 = vadd.f32 %v7600, %v7618
        %v7640 = vadd.f32 %v7601, %v7618
        %v7641 = vadd.f32 %v7602, %v7618
        %v7642 = vadd.f32 %v7603, %v7618
        %v7643 = vadd.f32 %v7604, %v7618
        %v7644 = vadd.f32 %v7605, %v7618
        %v7645 = vadd.f32 %v7606, %v7618
        %v7646 = vadd.f32 %v7607, %v7618
        %v7647 = vadd.f32 %v7608, %v7618
        %v7648 = vadd.f32 %v7609, %v7618
        %v7649 = vadd.f32 %v7610, %v7618
        %v7650 = vadd.f32 %v7611, %v7618
        %v7651 = vadd.f32 %v7612, %v7618
        %v7652 = vmax.f32 %v7620, 0.0
        %v7653 = vmax.f32 %v7621, 0.0
        %v7654 = vmax.f32 %v7622, 0.0
        %v7655 = vmax.f32 %v7623, 0.0
        %v7656 = vmax.f32 %v7624, 0.0
        %v7657 = vmax.f32 %v7625, 0.0
        %v7658 = vmax.f32 %v7626, 0.0
        %v7659 = vmax.f32 %v7627, 0.0
        %v7660 = vmax.f32 %v7628, 0.0
        %v7661 = vmax.f32 %v7629, 0.0
        %v7662 = vmax.f32 %v7630, 0.0
        %v7663 = vmax.f32 %v7631, 0.0
        %v7664 = vmax.f32 %v7632, 0.0
        %v7665 = vmax.f32 %v7633, 0.0
        %v7666 = vmax.f32 %v7634, 0.0
        %v7667 = vmax.f32 %v7635, 0.0
        %v7668 = vmax.f32 %v7636, 0.0
        %v7669 = vmax.f32 %v7637, 0.0
        %v7670 = vmax.f32 %v7638, 0.0
        %v7671 = vmax.f32 %v7639, 0.0
        %v7672 = vmax.f32 %v7640, 0.0
        %v7673 = vmax.f32 %v7641, 0.0
        %v7674 = vmax.f32 %v7642, 0.0
        %v7675 = vmax.f32 %v7643, 0.0
        %v7676 = vmax.f32 %v7644, 0.0
        %v7677 = vmax.f32 %v7645, 0.0
        %v7678 = vmax.f32 %v7646, 0.0
        %v7679 = vmax.f32 %v7647, 0.0
        %v7680 = vmax.f32 %v7648, 0.0
        %v7681 = vmax.f32 %v7649, 0.0
        %v7682 = vmax.f32 %v7650, 0.0
        %v7683 = vmax.f32 %v7651, 0.0
        %v7684 = vpack.c.bf16 %v7653, %v7652
        %v7685 = vpack.c.bf16 %v7655, %v7654
        %v7686 = vpack.c.bf16 %v7657, %v7656
        %v7687 = vpack.c.bf16 %v7659, %v7658
        %v7688 = vpack.c.bf16 %v7661, %v7660
        %v7689 = vpack.c.bf16 %v7663, %v7662
        %v7690 = vpack.c.bf16 %v7665, %v7664
        %v7691 = vpack.c.bf16 %v7667, %v7666
        %v7692 = vpack.c.bf16 %v7669, %v7668
        %v7693 = vpack.c.bf16 %v7671, %v7670
        %v7694 = vpack.c.bf16 %v7673, %v7672
        %v7695 = vpack.c.bf16 %v7675, %v7674
        %v7696 = vpack.c.bf16 %v7677, %v7676
        %v7697 = vpack.c.bf16 %v7679, %v7678
        %v7698 = vpack.c.bf16 %v7681, %v7680
        %v7699 = vpack.c.bf16 %v7683, %v7682
        %v7700 = vld [vmem:[%s12] sm:$0xf]
        %v7701 = vld [vmem:[%s12 + $0x4] sm:$0xf]
        %v7702 = vld [vmem:[%s12 + $0x8] sm:$0xf]
        %v7703 = vld [vmem:[%s12 + $0xc] sm:$0xf]
        %v7708 = vunpack.c.l.b16 %v7700
        %v7709 = vunpack.c.l.b16 %v7701
        %v7710 = vunpack.c.l.b16 %v7702
        %v7711 = vunpack.c.l.b16 %v7703
        %v7712 = vpack.c.b16 %v7709, %v7708
        %v7713 = vpack.c.b16 %v7711, %v7710
        %v7717 = vsel %vm470, %v7684, 0
        %v7720 = vsel %vm470, %v7685, 0
        %v7723 = vsel %vm470, %v7686, 0
        %v7726 = vsel %vm470, %v7687, 0
        %v7729 = vsel %vm470, %v7688, 0
        %v7732 = vsel %vm470, %v7689, 0
        %v7735 = vsel %vm470, %v7690, 0
        %v7738 = vsel %vm470, %v7691, 0
        %v7741 = vsel %vm470, %v7692, 0
        %v7744 = vsel %vm470, %v7693, 0
        %v7747 = vsel %vm470, %v7694, 0
        %v7750 = vsel %vm470, %v7695, 0
        %v7753 = vsel %vm470, %v7696, 0
        %v7756 = vsel %vm470, %v7697, 0
        %v7759 = vsel %vm470, %v7698, 0
        %v7762 = vsel %vm470, %v7699, 0
        %7764 = vmatprep.subr.bf16.mxu0 0
        %7765 = vmatpush1.bf16.msra.mxu0 0
        %7766 = vmatprep.subr.bf16.mxu0 0
        %7767 = vmatpush1.bf16.msra.mxu0 0
        %7768 = vmatprep.subr.bf16.mxu0 0
        %7769 = vmatpush1.bf16.msra.mxu0 0
        %7770 = vmatprep.subr.bf16.mxu0 0
        %7771 = vmatpush1.bf16.msra.mxu0 0
        %7772 = vmatprep.subr.bf16.mxu0 0
        %7773 = vmatpush1.bf16.msra.mxu0 0
        %7774 = vmatprep.subr.bf16.mxu0 0
        %7775 = vmatpush1.bf16.msra.mxu0 0
        %7776 = vmatprep.subr.bf16.mxu0 0
        %7777 = vmatpush1.bf16.msra.mxu0 %v7713
        %7778 = vmatprep.subr.bf16.mxu0 0
        %7779 = vmatpush1.bf16.msra.mxu0 %v7712
        %7780 = vmatprep.subr.bf16.mxu0 0
        %7781 = vmatpush2.bf16.msra.mxu0 0
        %7782 = vmatprep.subr.bf16.mxu0 0
        %7783 = vmatpush2.bf16.msra.mxu0 0
        %7784 = vmatprep.subr.bf16.mxu0 0
        %7785 = vmatpush2.bf16.msra.mxu0 0
        %7786 = vmatprep.subr.bf16.mxu0 0
        %7787 = vmatpush2.bf16.msra.mxu0 0
        %7788 = vmatprep.subr.bf16.mxu0 0
        %7789 = vmatpush2.bf16.msra.mxu0 0
        %7790 = vmatprep.subr.bf16.mxu0 0
        %7791 = vmatpush2.bf16.msra.mxu0 0
        %7792 = vmatprep.subr.bf16.mxu0 0
        %7793 = vmatpush2.bf16.msra.mxu0 0
        %7794 = vmatprep.subr.bf16.mxu0 0
        %7795 = vmatpush2.bf16.msra.mxu0 0
        %7796 = vmatprep.mubr.bf16.mxu0 0
        %7797 = vmatmul.mubr.bf16.gmra.mxu0 %v7717
        %v7798 = vpop.f32.mrf.mxu0
        %v7799 = vadd.f32 0.0, %v7798
        %v7800 = vpop.f32.mrf.mxu0
        %v7801 = vpop.f32.mrf.mxu0
        %v7802 = vadd.f32 0.0, %v7801
        %v7803 = vpop.f32.mrf.mxu0
        %7804 = vmatprep.mubr.bf16.mxu0 0
        %7805 = vmatmul.mubr.bf16.gmra.mxu0 %v7720
        %v7806 = vpop.f32.mrf.mxu0
        %v7807 = vadd.f32 0.0, %v7806
        %v7808 = vpop.f32.mrf.mxu0
        %v7809 = vpop.f32.mrf.mxu0
        %v7810 = vadd.f32 0.0, %v7809
        %v7811 = vpop.f32.mrf.mxu0
        %7812 = vmatprep.mubr.bf16.mxu0 0
        %7813 = vmatmul.mubr.bf16.gmra.mxu0 %v7723
        %v7814 = vpop.f32.mrf.mxu0
        %v7815 = vadd.f32 0.0, %v7814
        %v7816 = vpop.f32.mrf.mxu0
        %v7817 = vpop.f32.mrf.mxu0
        %v7818 = vadd.f32 0.0, %v7817
        %v7819 = vpop.f32.mrf.mxu0
        %7820 = vmatprep.mubr.bf16.mxu0 0
        %7821 = vmatmul.mubr.bf16.gmra.mxu0 %v7726
        %v7822 = vpop.f32.mrf.mxu0
        %v7823 = vadd.f32 0.0, %v7822
        %v7824 = vpop.f32.mrf.mxu0
        %v7825 = vpop.f32.mrf.mxu0
        %v7826 = vadd.f32 0.0, %v7825
        %v7827 = vpop.f32.mrf.mxu0
        %7828 = vmatprep.mubr.bf16.mxu0 0
        %7829 = vmatmul.mubr.bf16.gmra.mxu0 %v7729
        %v7830 = vpop.f32.mrf.mxu0
        %v7831 = vadd.f32 0.0, %v7830
        %v7832 = vpop.f32.mrf.mxu0
        %v7833 = vpop.f32.mrf.mxu0
        %v7834 = vadd.f32 0.0, %v7833
        %v7835 = vpop.f32.mrf.mxu0
        %7836 = vmatprep.mubr.bf16.mxu0 0
        %7837 = vmatmul.mubr.bf16.gmra.mxu0 %v7732
        %v7838 = vpop.f32.mrf.mxu0
        %v7839 = vadd.f32 0.0, %v7838
        %v7840 = vpop.f32.mrf.mxu0
        %v7841 = vpop.f32.mrf.mxu0
        %v7842 = vadd.f32 0.0, %v7841
        %v7843 = vpop.f32.mrf.mxu0
        %7844 = vmatprep.mubr.bf16.mxu0 0
        %7845 = vmatmul.mubr.bf16.gmra.mxu0 %v7735
        %v7846 = vpop.f32.mrf.mxu0
        %v7847 = vadd.f32 0.0, %v7846
        %v7848 = vpop.f32.mrf.mxu0
        %v7849 = vpop.f32.mrf.mxu0
        %v7850 = vadd.f32 0.0, %v7849
        %v7851 = vpop.f32.mrf.mxu0
        %7852 = vmatprep.mubr.bf16.mxu0 0
        %7853 = vmatmul.mubr.bf16.gmra.mxu0 %v7738
        %v7854 = vpop.f32.mrf.mxu0
        %v7855 = vadd.f32 0.0, %v7854
        %v7856 = vpop.f32.mrf.mxu0
        %v7857 = vpop.f32.mrf.mxu0
        %v7858 = vadd.f32 0.0, %v7857
        %v7859 = vpop.f32.mrf.mxu0
        %7860 = vmatprep.mubr.bf16.mxu0 0
        %7861 = vmatmul.mubr.bf16.gmra.mxu0 %v7741
        %v7862 = vpop.f32.mrf.mxu0
        %v7863 = vadd.f32 0.0, %v7862
        %v7864 = vpop.f32.mrf.mxu0
        %v7865 = vpop.f32.mrf.mxu0
        %v7866 = vadd.f32 0.0, %v7865
        %v7867 = vpop.f32.mrf.mxu0
        %7868 = vmatprep.mubr.bf16.mxu0 0
        %7869 = vmatmul.mubr.bf16.gmra.mxu0 %v7744
        %v7870 = vpop.f32.mrf.mxu0
        %v7871 = vadd.f32 0.0, %v7870
        %v7872 = vpop.f32.mrf.mxu0
        %v7873 = vpop.f32.mrf.mxu0
        %v7874 = vadd.f32 0.0, %v7873
        %v7875 = vpop.f32.mrf.mxu0
        %7876 = vmatprep.mubr.bf16.mxu0 0
        %7877 = vmatmul.mubr.bf16.gmra.mxu0 %v7747
        %v7878 = vpop.f32.mrf.mxu0
        %v7879 = vadd.f32 0.0, %v7878
        %v7880 = vpop.f32.mrf.mxu0
        %v7881 = vpop.f32.mrf.mxu0
        %v7882 = vadd.f32 0.0, %v7881
        %v7883 = vpop.f32.mrf.mxu0
        %7884 = vmatprep.mubr.bf16.mxu0 0
        %7885 = vmatmul.mubr.bf16.gmra.mxu0 %v7750
        %v7886 = vpop.f32.mrf.mxu0
        %v7887 = vadd.f32 0.0, %v7886
        %v7888 = vpop.f32.mrf.mxu0
        %v7889 = vpop.f32.mrf.mxu0
        %v7890 = vadd.f32 0.0, %v7889
        %v7891 = vpop.f32.mrf.mxu0
        %7892 = vmatprep.mubr.bf16.mxu0 0
        %7893 = vmatmul.mubr.bf16.gmra.mxu0 %v7753
        %v7894 = vpop.f32.mrf.mxu0
        %v7895 = vadd.f32 0.0, %v7894
        %v7896 = vpop.f32.mrf.mxu0
        %v7897 = vpop.f32.mrf.mxu0
        %v7898 = vadd.f32 0.0, %v7897
        %v7899 = vpop.f32.mrf.mxu0
        %7900 = vmatprep.mubr.bf16.mxu0 0
        %7901 = vmatmul.mubr.bf16.gmra.mxu0 %v7756
        %v7902 = vpop.f32.mrf.mxu0
        %v7903 = vadd.f32 0.0, %v7902
        %v7904 = vpop.f32.mrf.mxu0
        %v7905 = vpop.f32.mrf.mxu0
        %v7906 = vadd.f32 0.0, %v7905
        %v7907 = vpop.f32.mrf.mxu0
        %7908 = vmatprep.mubr.bf16.mxu0 0
        %7909 = vmatmul.mubr.bf16.gmra.mxu0 %v7759
        %v7910 = vpop.f32.mrf.mxu0
        %v7911 = vadd.f32 0.0, %v7910
        %v7912 = vpop.f32.mrf.mxu0
        %v7913 = vpop.f32.mrf.mxu0
        %v7914 = vadd.f32 0.0, %v7913
        %v7915 = vpop.f32.mrf.mxu0
        %7916 = vmatprep.mubr.bf16.mxu0 0
        %7917 = vmatmul.mubr.bf16.gmra.mxu0 %v7762
        %v7918 = vpop.f32.mrf.mxu0
        %v7919 = vadd.f32 0.0, %v7918
        %v7920 = vpop.f32.mrf.mxu0
        %v7921 = vpop.f32.mrf.mxu0
        %v7922 = vadd.f32 0.0, %v7921
        %v7923 = vpop.f32.mrf.mxu0
        %7924 = vdwg.mxu0
        %7925 = vst [vmem:[%s463] sm:$0xff] %v7799
        %7926 = vst [vmem:[%s463 + $0x8] sm:$0xff] %v7802
        %7927 = vst [vmem:[%s463 + $0x10] sm:$0xff] %v7807
        %7928 = vst [vmem:[%s463 + $0x18] sm:$0xff] %v7810
        %7929 = vst [vmem:[%s463 + $0x20] sm:$0xff] %v7815
        %7930 = vst [vmem:[%s463 + $0x28] sm:$0xff] %v7818
        %7931 = vst [vmem:[%s463 + $0x30] sm:$0xff] %v7823
        %7932 = vst [vmem:[%s463 + $0x38] sm:$0xff] %v7826
        %7933 = vst [vmem:[%s463 + $0x40] sm:$0xff] %v7831
        %7934 = vst [vmem:[%s463 + $0x48] sm:$0xff] %v7834
        %7935 = vst [vmem:[%s463 + $0x50] sm:$0xff] %v7839
        %7936 = vst [vmem:[%s463 + $0x58] sm:$0xff] %v7842
        %7937 = vst [vmem:[%s463 + $0x60] sm:$0xff] %v7847
        %7938 = vst [vmem:[%s463 + $0x68] sm:$0xff] %v7850
        %7939 = vst [vmem:[%s463 + $0x70] sm:$0xff] %v7855
        %7940 = vst [vmem:[%s463 + $0x78] sm:$0xff] %v7858
        %7941 = vst [vmem:[%s463 + $0x80] sm:$0xff] %v7863
        %7942 = vst [vmem:[%s463 + $0x88] sm:$0xff] %v7866
        %7943 = vst [vmem:[%s463 + $0x90] sm:$0xff] %v7871
        %7944 = vst [vmem:[%s463 + $0x98] sm:$0xff] %v7874
        %7945 = vst [vmem:[%s463 + $0xa0] sm:$0xff] %v7879
        %7946 = vst [vmem:[%s463 + $0xa8] sm:$0xff] %v7882
        %7947 = vst [vmem:[%s463 + $0xb0] sm:$0xff] %v7887
        %7948 = vst [vmem:[%s463 + $0xb8] sm:$0xff] %v7890
        %7949 = vst [vmem:[%s463 + $0xc0] sm:$0xff] %v7895
        %7950 = vst [vmem:[%s463 + $0xc8] sm:$0xff] %v7898
        %7951 = vst [vmem:[%s463 + $0xd0] sm:$0xff] %v7903
        %7952 = vst [vmem:[%s463 + $0xd8] sm:$0xff] %v7906
        %7953 = vst [vmem:[%s463 + $0xe0] sm:$0xff] %v7911
        %7954 = vst [vmem:[%s463 + $0xe8] sm:$0xff] %v7914
        %7955 = vst [vmem:[%s463 + $0xf0] sm:$0xff] %v7919
        %7956 = vst [vmem:[%s463 + $0xf8] sm:$0xff] %v7922
        %s7957 = sand.u32 %s315, 1
        %s7958 = scalar_lea.sflag [#allocation6], %s7957
        %s7959 = sand.u32 %s315, 1
        %s7960 = smul.addr %s7959, 256
        %s7961 = scalar_lea.vmem [#allocation9], %s7960
        // Predicated region
        $region81: #{tpu_custom_call.1} parent=71 // pred_check
          %p7962 = pneg %p325
        $region82: #{tpu_custom_call.1} parent=71 // pred_check_branch
          %7964 = sbr.rel (%p7962) target = $region84
        $region83: #{tpu_custom_call.1} parent=71 // pred_region
          %s7966 = ssub.s32 4096, 4096
          %7967 = vsyncadd %s7958, %s7966
          %s7968 = smul.addr %s29, 32
          %s7969 = smul.addr %s7968, 128
          %s7970 = scalar_lea.hbm %s13, %s7969
          %s7971 = sshll.u32 %s7961, 4
          %s7972 = int_to_ptr.vmem [resolvable:$true] %s7971
          %7977 = dma.vmem_to_hbm [thread:$0]  %s7972, 4096, %s7970, %s7958, 128, 128, 8
        $region84: #{tpu_custom_call.1} parent=71 // pred_fallthru
          _
      $region72: #{tpu_custom_call.1} parent=5 // pred_fallthru
        _
      %p7978 = scmp.le.s32.totalorder 2, %s24
      // Predicated region
      $region85: #{tpu_custom_call.1} parent=5 // pred_check
        %p7979 = pneg %p7978
      $region86: #{tpu_custom_call.1} parent=5 // pred_check_branch
        %7981 = sbr.rel (%p7979) target = $region88
      $region87: #{tpu_custom_call.1} parent=5 // pred_region
        %s7982 = ssub.s32 %s24, 2
        // Predicated region
        $region89: #{tpu_custom_call.1} parent=87 // pred_check
          %p7983 = pneg %p331
        $region90: #{tpu_custom_call.1} parent=87 // pred_check_branch
          %7985 = sbr.rel (%p7983) target = $region92
        $region91: #{tpu_custom_call.1} parent=87 // pred_region
          %s7986 = sand.u32 %s316, 1
          %s7987 = scalar_lea.sflag [#allocation6], %s7986
          %s7988 = sand.u32 %s316, 1
          %s7989 = smul.addr %s7988, 256
          %s7990 = scalar_lea.vmem [#allocation9], %s7989
          %7991 = dma.done %s7987, 4096
        $region92: #{tpu_custom_call.1} parent=87 // pred_fallthru
          _
      $region88: #{tpu_custom_call.1} parent=5 // pred_fallthru
        _
    $region6: #{tpu_custom_call.1} parent=1 // loop_footer
      %s28 = sadd.s32 1, %s24
    $region7: #{tpu_custom_call.1} parent=1 // loop_footer_branch
      %23 = sbr.rel target = $region3
    $region8: #{tpu_custom_call.1} parent=1 // loop_exit
      _
    %7992 = vsyncpa [#allocation5], 1
    %s7993 = scalar_lea.sflag [#allocation5], 1
    %7994 = vsyncpa %s7993, 1
    %7995 = vsyncpa [#allocation8], 1
    %7996 = vsyncpa [#allocation6], 1
    %s7997 = scalar_lea.sflag [#allocation6], 1
    %7998 = vsyncpa %s7997, 1

</llo_original>
